<compile_context>
chip_gen: v5e
topology: v5e:2x2
jax: 0.10.0
libtpu: 0.0.40
codegen_flags: <defaults>
</compile_context>

<pallas_src>
import functools

import numpy as np
import jax
import jax.numpy as jnp
from jax import lax
from jax.experimental import pallas as pl
from jax.experimental.pallas import tpu as pltpu


def _pcritical_kernel(
    # scalar prefetch
    t0_ref,                                   # SMEM (1,) i32 : simulation time of grid step 0
    # inputs
    inp_ref,                                  # (C, B, N) f32 : input currents for this chunk
    w_ref,                                    # (N, N) f32    : initial recurrent weights
    sign_ref,                                 # (N, N) f32    : 1.0 where sign(W_rec) > 0 else 0.0
    pot_ref, cur_ref,                         # (B, N) f32    : initial membrane state
    pot_p_ref, cur_p_ref,                     # (B, N) f32    : initial paired-neuron state
    refrac_ref,                               # (B, N) i32
    st_ref,                                   # (B, N) f32    : last-spike-time trace
    # outputs (state outputs are VMEM-resident across the whole grid; aliased with inputs)
    s_out,                                    # (C, B, N) spike dtype -> (T, B, N) spikes
    w_out,                                    # (N, N) f32
    pot_out, cur_out, pot_p_out, cur_p_out,   # (B, N) f32
    refrac_out,                               # (B, N) i32
    st_out,                                   # (B, N) f32
    *, steps, row_block, alpha, beta, v_th, inv_tau_v, inv_tau_i,
    inv_tau_v_pair, inv_tau_i_pair, inv_exp_tau, refrac_steps,
):
    g = pl.program_id(0)
    N = w_out.shape[0]

    # Seed the VMEM-resident state from the caller's arrays on the first grid step only.
    # (Output windows are write-only; aliasing shares the HBM buffers, not the VMEM window.)
    @pl.when(g == 0)
    def _seed():
        w_out[...] = w_ref[...]
        pot_out[...] = pot_ref[...]
        cur_out[...] = cur_ref[...]
        pot_p_out[...] = pot_p_ref[...]
        cur_p_out[...] = cur_p_ref[...]
        refrac_out[...] = refrac_ref[...]
        st_out[...] = st_ref[...]

    t_base = t0_ref[0] + g * steps            # i32 scalar: global time of inner step 0

    def _step(c, carry):
        t = (t_base + c).astype(jnp.float32)

        mem_pot = pot_out[...]
        mem_pot_p = pot_p_out[...]
        # (x - v_th).ceil().clamp(0, 1) == (x > v_th)
        spk = mem_pot > v_th
        spk_p = mem_pot_p > (v_th + alpha)
        S = spk.astype(jnp.float32)

        st = jnp.where(spk, t, st_out[...])
        st_out[...] = st

        # ---------------- plasticity (always on; stochastic_alpha=False) ----------------
        # Factored pairwise exponential: exp(|st_i - st_j|/tau) = max(e_i*r_j, e_j*r_i)
        # with d = clamp((max(st) - st)/tau, 80), e = exp(-d), r = exp(d).  Only 2 length-N
        # exps on the lane layout; row gate (any paired spike in batch) is folded into the
        # per-row column factors a = alpha*gate*e, b = alpha*gate*r.
        gate = jnp.max(spk_p.astype(jnp.float32), axis=0)          # (N,) 0/1 per presyn row
        max_st = jnp.max(st, axis=0)                               # (N,)
        m = jnp.max(max_st[None, :], axis=1, keepdims=True)        # (1, 1)
        d = jnp.minimum((m - max_st[None, :]) * inv_exp_tau, 80.0)[0]   # (N,)
        e = jnp.exp(-d)                                            # (N,)  EUP, 1 vreg
        r = jnp.exp(d)                                             # (N,)  EUP, 1 vreg
        e_row = e[None, :]                                         # (1, N)
        r_row = r[None, :]
        a_col = (alpha * (gate * e))[:, None]                      # (N, 1) relayout, no EUP
        b_col = (alpha * (gate * r))[:, None]                      # (N, 1)

        # Row-block read-modify-write of W directly on the resident VMEM ref keeps the live
        # set small (no full NxN temporaries).
        for r0 in range(0, N, row_block):
            rows = pl.ds(r0, row_block)
            w_blk = w_out[rows, :]
            sub = jnp.maximum(a_col[r0:r0 + row_block, :] * r_row,
                              b_col[r0:r0 + row_block, :] * e_row)
            upd = jnp.clip((w_blk + beta) - sub, 0.0, 1.0)
            w_out[rows, :] = jnp.where(sign_ref[rows, :] != 0.0, upd, w_blk)

        # ------------------------------ membrane dynamics ------------------------------
        w = w_out[...]
        sw = jnp.dot(S, w, preferred_element_type=jnp.float32)                 # S @ W
        swt = lax.dot_general(S, w, (((1,), (1,)), ((), ())),                  # S @ W^T
                              preferred_element_type=jnp.float32)

        refrac = refrac_out[...]
        refrac = jnp.where(refrac > 0, refrac - 1, refrac)
        active = refrac == 0

        mem_cur = cur_out[...]
        mem_cur_p = cur_p_out[...]
        mem_cur = jnp.where(active, inp_ref[c] + sw + mem_cur, mem_cur)
        mem_cur_p = jnp.where(active, swt + mem_cur_p, mem_cur_p)
        mem_pot = jnp.where(active, mem_cur + mem_pot, mem_pot)
        mem_pot_p = jnp.where(active, mem_cur_p + mem_pot_p, mem_pot_p)

        mem_pot = mem_pot * inv_tau_v
        mem_cur = mem_cur * inv_tau_i
        mem_pot_p = mem_pot_p * inv_tau_v_pair
        mem_cur_p = mem_cur_p * inv_tau_i_pair

        mem_pot = jnp.where(spk, 0.0, mem_pot)
        mem_pot_p = jnp.where(spk_p, 0.0, mem_pot_p)
        refrac = jnp.where(spk, jnp.int32(refrac_steps), refrac)

        s_out[c] = S.astype(s_out.dtype)       # spikes are exactly 0/1 -> lossless in bf16
        pot_out[...] = mem_pot
        cur_out[...] = mem_cur
        pot_p_out[...] = mem_pot_p
        cur_p_out[...] = mem_cur_p
        refrac_out[...] = refrac
        return carry

    lax.fori_loop(0, steps, _step, 0, unroll=True)


class PCriticalPallas:
    """JAX/Pallas port of the PCritical reservoir.

    forward(inp) performs one time step (same contract as the PyTorch module);
    run(inp_seq) fuses all T steps of a (T, B, N) input into one pallas_call with
    W_rec and all per-neuron state resident in VMEM across the whole run, processing
    `time_chunk` steps per grid iteration.
    """

    def __init__(self, batch_size, w_rec, alpha=0.025, beta=0.00025,
                 tau_v_ms=50.0, tau_i_ms=1.0, v_th=1.0, refractory_ms=2.0,
                 dt_ms=1.0, tau_v_pair_ms=None, tau_i_pair_ms=None,
                 time_chunk=32, spike_dtype=jnp.bfloat16):
        self.N = int(w_rec.shape[0])
        self.B = int(batch_size)
        self.alpha = float(alpha)
        self.beta = float(beta)
        self.v_th = float(v_th)
        self.inv_tau_i = float(np.exp(-dt_ms / tau_i_ms))
        self.inv_tau_v = float(np.exp(-dt_ms / tau_v_ms))
        tvp = tau_v_ms if tau_v_pair_ms is None else tau_v_pair_ms
        tip = tau_i_ms if tau_i_pair_ms is None else tau_i_pair_ms
        self.inv_tau_v_pair = 0.0 if tvp == 0 else float(np.exp(-dt_ms / tvp))
        self.inv_tau_i_pair = 0.0 if tip == 0 else float(np.exp(-dt_ms / tip))
        self.refrac_steps = int(round(refractory_ms / dt_ms))
        self.exp_tau = float(tau_v_ms / dt_ms)
        self.time_chunk = max(1, int(time_chunk))
        self.spike_dtype = spike_dtype

        if self.N % 32 == 0:
            self.row_block = 32
        elif self.N % 16 == 0:
            self.row_block = 16
        elif self.N % 8 == 0:
            self.row_block = 8
        else:
            self.row_block = self.N

        self.W_rec = jnp.asarray(w_rec, jnp.float32)
        # Frozen at init, exactly like the PyTorch reference (sign_mask is never recomputed).
        # Stored as f32 {0,1} so the kernel needs no per-step int8->f32 convert.
        self.sign_mask = (jnp.sign(self.W_rec) > 0).astype(jnp.float32)
        self.mem_pot = jnp.zeros((self.B, self.N), jnp.float32)
        self.mem_cur = jnp.zeros((self.B, self.N), jnp.float32)
        self.mem_pot_paired = jnp.zeros((self.B, self.N), jnp.float32)
        self.mem_cur_paired = jnp.zeros((self.B, self.N), jnp.float32)
        self.refrac_neurons = jnp.zeros((self.B, self.N), jnp.int32)
        # torch keeps st as (N,) and broadcasts on the first step; both start at zero.
        self.st = jnp.zeros((self.B, self.N), jnp.float32)
        self.t = 0

        self._calls = {}   # (T, C) -> compiled fused simulation

    def _pick_chunk(self, T):
        c = min(self.time_chunk, T)
        while T % c:
            c -= 1
        return c

    def _build(self, T, C):
        B, N = self.B, self.N
        f32 = jnp.float32
        kernel = functools.partial(
            _pcritical_kernel,
            steps=C, row_block=self.row_block,
            alpha=self.alpha, beta=self.beta, v_th=self.v_th,
            inv_tau_v=self.inv_tau_v, inv_tau_i=self.inv_tau_i,
            inv_tau_v_pair=self.inv_tau_v_pair, inv_tau_i_pair=self.inv_tau_i_pair,
            inv_exp_tau=1.0 / self.exp_tau, refrac_steps=self.refrac_steps)

        def carry_spec(shape):
            zeros = (0,) * len(shape)
            return pl.BlockSpec(shape, lambda g, t0, _z=zeros: _z)

        stream_in = pl.BlockSpec((C, B, N), lambda g, t0: (g, 0, 0))
        stream_out = pl.BlockSpec((C, B, N), lambda g, t0: (g, 0, 0))

        grid_spec = pltpu.PrefetchScalarGridSpec(
            num_scalar_prefetch=1,                 # t0 scalar (int32, shape (1,)) -> SMEM
            grid=(T // C,),
            in_specs=[
                stream_in,                         # inp  (T, B, N): one (C, B, N) slab per step
                carry_spec((N, N)),                # W_rec
                carry_spec((N, N)),                # sign_mask (f32 {0,1})
                carry_spec((B, N)), carry_spec((B, N)),   # mem_pot, mem_cur
                carry_spec((B, N)), carry_spec((B, N)),   # mem_pot_paired, mem_cur_paired
                carry_spec((B, N)),                # refrac_neurons (int32)
                carry_spec((B, N)),                # st
            ],
            out_specs=(
                stream_out,                        # spikes (T, B, N), lane-dense last dim
                carry_spec((N, N)),                # W_rec  (VMEM-resident across the grid)
                carry_spec((B, N)), carry_spec((B, N)),
                carry_spec((B, N)), carry_spec((B, N)),
                carry_spec((B, N)),
                carry_spec((B, N)),
            ),
        )

        call = pl.pallas_call(
            kernel,
            grid_spec=grid_spec,
            out_shape=(
                jax.ShapeDtypeStruct((T, B, N), self.spike_dtype),   # spikes per step
                jax.ShapeDtypeStruct((N, N), f32),                   # updated W_rec
                jax.ShapeDtypeStruct((B, N), f32),                   # mem_pot
                jax.ShapeDtypeStruct((B, N), f32),                   # mem_cur
                jax.ShapeDtypeStruct((B, N), f32),                   # mem_pot_paired
                jax.ShapeDtypeStruct((B, N), f32),                   # mem_cur_paired
                jax.ShapeDtypeStruct((B, N), jnp.int32),             # refrac_neurons
                jax.ShapeDtypeStruct((B, N), f32),                   # st
            ),
            # Alias initial state -> final state (indices count the scalar-prefetch operand).
            input_output_aliases={2: 1, 4: 2, 5: 3, 6: 4, 7: 5, 8: 6, 9: 7},
            compiler_params=pltpu.CompilerParams(
                dimension_semantics=("arbitrary",),      # state carries across time chunks
                vmem_limit_bytes=32 * 1024 * 1024),
        )
        return jax.jit(call)

    def run(self, inp_seq):
        """Run T fused reservoir time steps. inp_seq: (T, B, N). Returns (T, B, N) spikes."""
        inp_seq = jnp.asarray(inp_seq, jnp.float32)
        T = int(inp_seq.shape[0])
        C = self._pick_chunk(T)
        key = (T, C)
        if key not in self._calls:
            self._calls[key] = self._build(T, C)
        t0 = jnp.asarray([self.t], jnp.int32)
        (S_seq, self.W_rec, self.mem_pot, self.mem_cur, self.mem_pot_paired,
         self.mem_cur_paired, self.refrac_neurons, self.st) = self._calls[key](
            t0, inp_seq, self.W_rec, self.sign_mask,
            self.mem_pot, self.mem_cur, self.mem_pot_paired, self.mem_cur_paired,
            self.refrac_neurons, self.st)
        self.t += T
        return S_seq

    def forward(self, inp):
        """One reservoir time step (same contract as the PyTorch module's forward)."""
        return self.run(jnp.asarray(inp, jnp.float32)[None])[0]


if __name__ == "__main__":
    B, N, T = 8, 128, 16   # batch, reservoir neurons (lane-dense), simulated time steps

    key = jax.random.PRNGKey(0)
    k_w, k_mask, k_inp = jax.random.split(key, 3)

    # Deterministic synthetic topology (stand-in for graph_to_tensor(topology)):
    # ~20% connectivity, positive weights in [0, 0.5), no self-connections.
    w = jax.random.uniform(k_w, (N, N), jnp.float32, 0.0, 0.5)
    conn = (jax.random.uniform(k_mask, (N, N)) < 0.2).astype(jnp.float32)
    w_rec = w * conn * (1.0 - jnp.eye(N, dtype=jnp.float32))

    inp_seq = jax.random.uniform(k_inp, (T, B, N), jnp.float32, 0.0, 0.6)

    # Fused path: 16 steps in 2 grid iterations of 8 fused steps each (exercises the
    # cross-chunk state carry as well as the time chunking).
    mod_fused = PCriticalPallas(batch_size=B, w_rec=w_rec, time_chunk=8)
    S_fused = jax.block_until_ready(mod_fused.run(inp_seq))

    # Stepwise path: original per-step forward() API (chunk size 1); must agree exactly.
    mod_step = PCriticalPallas(batch_size=B, w_rec=w_rec)
    S_step = jnp.stack([mod_step.forward(inp_seq[t]) for t in range(T)])
    S_step = jax.block_until_ready(S_step)

    assert S_fused.shape == (T, B, N)
    assert S_fused.dtype == jnp.bfloat16
    s_f = np.asarray(S_fused, dtype=np.float32)
    s_s = np.asarray(S_step, dtype=np.float32)
    assert np.all(np.isfinite(s_f))
    assert np.all((s_f == 0.0) | (s_f == 1.0))      # spikes are binary
    assert np.any(s_f > 0.0)                        # reservoir actually spikes
    np.testing.assert_allclose(s_f, s_s, atol=0.0)
    np.testing.assert_allclose(np.asarray(mod_fused.W_rec), np.asarray(mod_step.W_rec),
                               atol=1e-6, rtol=0.0)
    np.testing.assert_allclose(np.asarray(mod_fused.mem_pot), np.asarray(mod_step.mem_pot),
                               atol=1e-6, rtol=0.0)
    print("KERNEL_OK")
</pallas_src>

<mosaic_0001>
module attributes {stable_mosaic.version = 11 : i64} {
  func.func @_pcritical_kernel(%arg0: i32, %arg1: memref<1xi32, #tpu.memory_space<smem>>, %arg2: memref<8x8x128xf32, #tpu.memory_space<vmem>>, %arg3: memref<128x128xf32, #tpu.memory_space<vmem>>, %arg4: memref<128x128xf32, #tpu.memory_space<vmem>>, %arg5: memref<8x128xf32, #tpu.memory_space<vmem>>, %arg6: memref<8x128xf32, #tpu.memory_space<vmem>>, %arg7: memref<8x128xf32, #tpu.memory_space<vmem>>, %arg8: memref<8x128xf32, #tpu.memory_space<vmem>>, %arg9: memref<8x128xi32, #tpu.memory_space<vmem>>, %arg10: memref<8x128xf32, #tpu.memory_space<vmem>>, %arg11: memref<8x8x128xbf16, #tpu.memory_space<vmem>>, %arg12: memref<128x128xf32, #tpu.memory_space<vmem>>, %arg13: memref<8x128xf32, #tpu.memory_space<vmem>>, %arg14: memref<8x128xf32, #tpu.memory_space<vmem>>, %arg15: memref<8x128xf32, #tpu.memory_space<vmem>>, %arg16: memref<8x128xf32, #tpu.memory_space<vmem>>, %arg17: memref<8x128xi32, #tpu.memory_space<vmem>>, %arg18: memref<8x128xf32, #tpu.memory_space<vmem>>) attributes {dimension_semantics = [#tpu.dimension_semantics<arbitrary>], iteration_bounds = array<i64: 2>, scalar_prefetch = 1 : i64, scratch_operands = 0 : i64, tpu.core_type = #tpu.core_type<tc>, window_params = [{transform_indices = @transform_0, window_bounds = array<i64: 8, 8, 128>}, {pipeline_mode = #tpu.pipeline_mode<synchronous>, transform_indices = @transform_1, window_bounds = array<i64: 128, 128>}, {pipeline_mode = #tpu.pipeline_mode<synchronous>, transform_indices = @transform_2, window_bounds = array<i64: 128, 128>}, {pipeline_mode = #tpu.pipeline_mode<synchronous>, transform_indices = @transform_3, window_bounds = array<i64: 8, 128>}, {pipeline_mode = #tpu.pipeline_mode<synchronous>, transform_indices = @transform_4, window_bounds = array<i64: 8, 128>}, {pipeline_mode = #tpu.pipeline_mode<synchronous>, transform_indices = @transform_5, window_bounds = array<i64: 8, 128>}, {pipeline_mode = #tpu.pipeline_mode<synchronous>, transform_indices = @transform_6, window_bounds = array<i64: 8, 128>}, {pipeline_mode = #tpu.pipeline_mode<synchronous>, transform_indices = @transform_7, window_bounds = array<i64: 8, 128>}, {pipeline_mode = #tpu.pipeline_mode<synchronous>, transform_indices = @transform_8, window_bounds = array<i64: 8, 128>}, {transform_indices = @transform_9, window_bounds = array<i64: 8, 8, 128>}, {pipeline_mode = #tpu.pipeline_mode<synchronous>, transform_indices = @transform_10, window_bounds = array<i64: 128, 128>}, {pipeline_mode = #tpu.pipeline_mode<synchronous>, transform_indices = @transform_11, window_bounds = array<i64: 8, 128>}, {pipeline_mode = #tpu.pipeline_mode<synchronous>, transform_indices = @transform_12, window_bounds = array<i64: 8, 128>}, {pipeline_mode = #tpu.pipeline_mode<synchronous>, transform_indices = @transform_13, window_bounds = array<i64: 8, 128>}, {pipeline_mode = #tpu.pipeline_mode<synchronous>, transform_indices = @transform_14, window_bounds = array<i64: 8, 128>}, {pipeline_mode = #tpu.pipeline_mode<synchronous>, transform_indices = @transform_15, window_bounds = array<i64: 8, 128>}, {pipeline_mode = #tpu.pipeline_mode<synchronous>, transform_indices = @transform_16, window_bounds = array<i64: 8, 128>}]} {
    %c0_i32 = arith.constant 0 : i32
    %0 = arith.cmpi eq, %arg0, %c0_i32 : i32
    %1 = arith.extui %0 : i1 to i32
    %c0_i32_0 = arith.constant 0 : i32
    %2 = arith.cmpi ne, %1, %c0_i32_0 : i32
    scf.if %2 {
      %c0_735 = arith.constant 0 : index
      %c0_736 = arith.constant 0 : index
      %1446 = vector.load %arg3[%c0_735, %c0_736] : memref<128x128xf32, #tpu.memory_space<vmem>>, vector<128x128xf32>
      %c0_737 = arith.constant 0 : index
      %c0_738 = arith.constant 0 : index
      %1447 = vector.load %arg12[%c0_737, %c0_738] : memref<128x128xf32, #tpu.memory_space<vmem>>, vector<128x128xf32>
      tpu.vector_store %arg12[%c0_737, %c0_738], %1446 {strides = array<i32>} : memref<128x128xf32, #tpu.memory_space<vmem>>, vector<128x128xf32>,
      %c0_739 = arith.constant 0 : index
      %c0_740 = arith.constant 0 : index
      %1448 = vector.load %arg5[%c0_739, %c0_740] : memref<8x128xf32, #tpu.memory_space<vmem>>, vector<8x128xf32>
      %c0_741 = arith.constant 0 : index
      %c0_742 = arith.constant 0 : index
      %1449 = vector.load %arg13[%c0_741, %c0_742] : memref<8x128xf32, #tpu.memory_space<vmem>>, vector<8x128xf32>
      tpu.vector_store %arg13[%c0_741, %c0_742], %1448 {strides = array<i32>} : memref<8x128xf32, #tpu.memory_space<vmem>>, vector<8x128xf32>,
      %c0_743 = arith.constant 0 : index
      %c0_744 = arith.constant 0 : index
      %1450 = vector.load %arg6[%c0_743, %c0_744] : memref<8x128xf32, #tpu.memory_space<vmem>>, vector<8x128xf32>
      %c0_745 = arith.constant 0 : index
      %c0_746 = arith.constant 0 : index
      %1451 = vector.load %arg14[%c0_745, %c0_746] : memref<8x128xf32, #tpu.memory_space<vmem>>, vector<8x128xf32>
      tpu.vector_store %arg14[%c0_745, %c0_746], %1450 {strides = array<i32>} : memref<8x128xf32, #tpu.memory_space<vmem>>, vector<8x128xf32>,
      %c0_747 = arith.constant 0 : index
      %c0_748 = arith.constant 0 : index
      %1452 = vector.load %arg7[%c0_747, %c0_748] : memref<8x128xf32, #tpu.memory_space<vmem>>, vector<8x128xf32>
      %c0_749 = arith.constant 0 : index
      %c0_750 = arith.constant 0 : index
      %1453 = vector.load %arg15[%c0_749, %c0_750] : memref<8x128xf32, #tpu.memory_space<vmem>>, vector<8x128xf32>
      tpu.vector_store %arg15[%c0_749, %c0_750], %1452 {strides = array<i32>} : memref<8x128xf32, #tpu.memory_space<vmem>>, vector<8x128xf32>,
      %c0_751 = arith.constant 0 : index
      %c0_752 = arith.constant 0 : index
      %1454 = vector.load %arg8[%c0_751, %c0_752] : memref<8x128xf32, #tpu.memory_space<vmem>>, vector<8x128xf32>
      %c0_753 = arith.constant 0 : index
      %c0_754 = arith.constant 0 : index
      %1455 = vector.load %arg16[%c0_753, %c0_754] : memref<8x128xf32, #tpu.memory_space<vmem>>, vector<8x128xf32>
      tpu.vector_store %arg16[%c0_753, %c0_754], %1454 {strides = array<i32>} : memref<8x128xf32, #tpu.memory_space<vmem>>, vector<8x128xf32>,
      %c0_755 = arith.constant 0 : index
      %c0_756 = arith.constant 0 : index
      %1456 = vector.load %arg9[%c0_755, %c0_756] : memref<8x128xi32, #tpu.memory_space<vmem>>, vector<8x128xi32>
      %c0_757 = arith.constant 0 : index
      %c0_758 = arith.constant 0 : index
      %1457 = vector.load %arg17[%c0_757, %c0_758] : memref<8x128xi32, #tpu.memory_space<vmem>>, vector<8x128xi32>
      tpu.vector_store %arg17[%c0_757, %c0_758], %1456 {strides = array<i32>} : memref<8x128xi32, #tpu.memory_space<vmem>>, vector<8x128xi32>,
      %c0_759 = arith.constant 0 : index
      %c0_760 = arith.constant 0 : index
      %1458 = vector.load %arg10[%c0_759, %c0_760] : memref<8x128xf32, #tpu.memory_space<vmem>>, vector<8x128xf32>
      %c0_761 = arith.constant 0 : index
      %c0_762 = arith.constant 0 : index
      %1459 = vector.load %arg18[%c0_761, %c0_762] : memref<8x128xf32, #tpu.memory_space<vmem>>, vector<8x128xf32>
      tpu.vector_store %arg18[%c0_761, %c0_762], %1458 {strides = array<i32>} : memref<8x128xf32, #tpu.memory_space<vmem>>, vector<8x128xf32>,
    } else {
    }
    %c0 = arith.constant 0 : index
    %3 = memref.load %arg1[%c0] : memref<1xi32, #tpu.memory_space<smem>>
    %c8_i32 = arith.constant 8 : i32
    %4 = arith.muli %arg0, %c8_i32 : i32
    %5 = arith.addi %3, %4 : i32
    %c0_i32_1 = arith.constant 0 : i32
    %6 = arith.addi %5, %c0_i32_1 : i32
    %7 = arith.sitofp %6 : i32 to f32
    %c0_2 = arith.constant 0 : index
    %c0_3 = arith.constant 0 : index
    %8 = vector.load %arg13[%c0_2, %c0_3] : memref<8x128xf32, #tpu.memory_space<vmem>>, vector<8x128xf32>
    %c0_4 = arith.constant 0 : index
    %c0_5 = arith.constant 0 : index
    %9 = vector.load %arg15[%c0_4, %c0_5] : memref<8x128xf32, #tpu.memory_space<vmem>>, vector<8x128xf32>
    %cst = arith.constant 1.000000e+00 : f32
    %10 = vector.broadcast %cst : f32 to vector<8x128xf32>
    %11 = arith.cmpf ogt, %8, %10 : vector<8x128xf32>
    %cst_6 = arith.constant 1.025000e+00 : f32
    %12 = vector.broadcast %cst_6 : f32 to vector<8x128xf32>
    %13 = arith.cmpf ogt, %9, %12 : vector<8x128xf32>
    %14 = arith.extui %11 : vector<8x128xi1> to vector<8x128xi32>
    %15 = arith.sitofp %14 : vector<8x128xi32> to vector<8x128xf32>
    %c0_7 = arith.constant 0 : index
    %c0_8 = arith.constant 0 : index
    %16 = vector.load %arg18[%c0_7, %c0_8] : memref<8x128xf32, #tpu.memory_space<vmem>>, vector<8x128xf32>
    %17 = vector.broadcast %7 : f32 to vector<8x128xf32>
    %18 = arith.select %11, %17, %16 : vector<8x128xi1>, vector<8x128xf32>
    %c0_9 = arith.constant 0 : index
    %c0_10 = arith.constant 0 : index
    %19 = vector.load %arg18[%c0_9, %c0_10] : memref<8x128xf32, #tpu.memory_space<vmem>>, vector<8x128xf32>
    tpu.vector_store %arg18[%c0_9, %c0_10], %18 {strides = array<i32>} : memref<8x128xf32, #tpu.memory_space<vmem>>, vector<8x128xf32>,
    %20 = arith.extui %13 : vector<8x128xi1> to vector<8x128xi32>
    %21 = arith.sitofp %20 : vector<8x128xi32> to vector<8x128xf32>
    %cst_11 = arith.constant dense<0xFF800000> : vector<128xf32>
    %22 = vector.multi_reduction <maximumf>, %21, %cst_11 [0] : vector<8x128xf32> to vector<128xf32>
    %cst_12 = arith.constant dense<0xFF800000> : vector<128xf32>
    %23 = vector.multi_reduction <maximumf>, %18, %cst_12 [0] : vector<8x128xf32> to vector<128xf32>
    %24 = vector.shape_cast %23 : vector<128xf32> to vector<1x128xf32>
    %cst_13 = arith.constant dense<0xFF800000> : vector<1xf32>
    %25 = vector.multi_reduction <maximumf>, %24, %cst_13 [1] : vector<1x128xf32> to vector<1xf32>
    %26 = vector.shape_cast %25 : vector<1xf32> to vector<1x1xf32>
    %27 = vector.shape_cast %23 : vector<128xf32> to vector<1x128xf32>
    %28 = vector.broadcast %26 : vector<1x1xf32> to vector<1x128xf32>
    %29 = arith.subf %28, %27 : vector<1x128xf32>
    %cst_14 = arith.constant 2.000000e-02 : f32
    %30 = vector.broadcast %cst_14 : f32 to vector<1x128xf32>
    %31 = arith.mulf %29, %30 : vector<1x128xf32>
    %cst_15 = arith.constant 8.000000e+01 : f32
    %32 = vector.broadcast %cst_15 : f32 to vector<1x128xf32>
    %33 = arith.minimumf %31, %32 : vector<1x128xf32>
    %34 = vector.shape_cast %33 : vector<1x128xf32> to vector<128xf32>
    %cst_16 = arith.constant 0.000000e+00 : f32
    %35 = vector.broadcast %cst_16 : f32 to vector<128xf32>
    %36 = arith.subf %35, %34 : vector<128xf32>
    %37 = math.exp %36 : vector<128xf32>
    %38 = math.exp %34 : vector<128xf32>
    %39 = vector.shape_cast %37 : vector<128xf32> to vector<1x128xf32>
    %40 = vector.shape_cast %38 : vector<128xf32> to vector<1x128xf32>
    %41 = arith.mulf %22, %37 : vector<128xf32>
    %cst_17 = arith.constant 2.500000e-02 : f32
    %42 = vector.broadcast %cst_17 : f32 to vector<128xf32>
    %43 = arith.mulf %42, %41 : vector<128xf32>
    %44 = vector.shape_cast %43 : vector<128xf32> to vector<128x1xf32>
    %45 = arith.mulf %22, %38 : vector<128xf32>
    %cst_18 = arith.constant 2.500000e-02 : f32
    %46 = vector.broadcast %cst_18 : f32 to vector<128xf32>
    %47 = arith.mulf %46, %45 : vector<128xf32>
    %48 = vector.shape_cast %47 : vector<128xf32> to vector<128x1xf32>
    %c0_19 = arith.constant 0 : index
    %c0_20 = arith.constant 0 : index
    %49 = vector.load %arg12[%c0_19, %c0_20] : memref<128x128xf32, #tpu.memory_space<vmem>>, vector<32x128xf32>
    %50 = vector.extract_strided_slice %44 {offsets = [0, 0], sizes = [32, 1], strides = [1, 1]} : vector<128x1xf32> to vector<32x1xf32>
    %51 = vector.broadcast %50 : vector<32x1xf32> to vector<32x128xf32>
    %52 = vector.broadcast %40 : vector<1x128xf32> to vector<32x128xf32>
    %53 = arith.mulf %51, %52 : vector<32x128xf32>
    %54 = vector.extract_strided_slice %48 {offsets = [0, 0], sizes = [32, 1], strides = [1, 1]} : vector<128x1xf32> to vector<32x1xf32>
    %55 = vector.broadcast %54 : vector<32x1xf32> to vector<32x128xf32>
    %56 = vector.broadcast %39 : vector<1x128xf32> to vector<32x128xf32>
    %57 = arith.mulf %55, %56 : vector<32x128xf32>
    %58 = arith.maximumf %53, %57 : vector<32x128xf32>
    %cst_21 = arith.constant 2.500000e-04 : f32
    %59 = vector.broadcast %cst_21 : f32 to vector<32x128xf32>
    %60 = arith.addf %49, %59 : vector<32x128xf32>
    %61 = arith.subf %60, %58 : vector<32x128xf32>
    %cst_22 = arith.constant 0.000000e+00 : f32
    %cst_23 = arith.constant 1.000000e+00 : f32
    %62 = vector.broadcast %cst_22 : f32 to vector<32x128xf32>
    %63 = arith.maximumf %62, %61 : vector<32x128xf32>
    %64 = vector.broadcast %cst_23 : f32 to vector<32x128xf32>
    %65 = arith.minimumf %64, %63 : vector<32x128xf32>
    %c0_24 = arith.constant 0 : index
    %c0_25 = arith.constant 0 : index
    %66 = vector.load %arg4[%c0_24, %c0_25] : memref<128x128xf32, #tpu.memory_space<vmem>>, vector<32x128xf32>
    %cst_26 = arith.constant 0.000000e+00 : f32
    %67 = vector.broadcast %cst_26 : f32 to vector<32x128xf32>
    %68 = arith.cmpf one, %66, %67 : vector<32x128xf32>
    %69 = arith.select %68, %65, %49 : vector<32x128xi1>, vector<32x128xf32>
    %c0_27 = arith.constant 0 : index
    %c0_28 = arith.constant 0 : index
    %70 = vector.load %arg12[%c0_27, %c0_28] : memref<128x128xf32, #tpu.memory_space<vmem>>, vector<32x128xf32>
    tpu.vector_store %arg12[%c0_27, %c0_28], %69 {strides = array<i32>} : memref<128x128xf32, #tpu.memory_space<vmem>>, vector<32x128xf32>,
    %c32 = arith.constant 32 : index
    %c0_29 = arith.constant 0 : index
    %71 = vector.load %arg12[%c32, %c0_29] : memref<128x128xf32, #tpu.memory_space<vmem>>, vector<32x128xf32>
    %72 = vector.extract_strided_slice %44 {offsets = [32, 0], sizes = [32, 1], strides = [1, 1]} : vector<128x1xf32> to vector<32x1xf32>
    %73 = vector.broadcast %72 : vector<32x1xf32> to vector<32x128xf32>
    %74 = vector.broadcast %40 : vector<1x128xf32> to vector<32x128xf32>
    %75 = arith.mulf %73, %74 : vector<32x128xf32>
    %76 = vector.extract_strided_slice %48 {offsets = [32, 0], sizes = [32, 1], strides = [1, 1]} : vector<128x1xf32> to vector<32x1xf32>
    %77 = vector.broadcast %76 : vector<32x1xf32> to vector<32x128xf32>
    %78 = vector.broadcast %39 : vector<1x128xf32> to vector<32x128xf32>
    %79 = arith.mulf %77, %78 : vector<32x128xf32>
    %80 = arith.maximumf %75, %79 : vector<32x128xf32>
    %cst_30 = arith.constant 2.500000e-04 : f32
    %81 = vector.broadcast %cst_30 : f32 to vector<32x128xf32>
    %82 = arith.addf %71, %81 : vector<32x128xf32>
    %83 = arith.subf %82, %80 : vector<32x128xf32>
    %cst_31 = arith.constant 0.000000e+00 : f32
    %cst_32 = arith.constant 1.000000e+00 : f32
    %84 = vector.broadcast %cst_31 : f32 to vector<32x128xf32>
    %85 = arith.maximumf %84, %83 : vector<32x128xf32>
    %86 = vector.broadcast %cst_32 : f32 to vector<32x128xf32>
    %87 = arith.minimumf %86, %85 : vector<32x128xf32>
    %c32_33 = arith.constant 32 : index
    %c0_34 = arith.constant 0 : index
    %88 = vector.load %arg4[%c32_33, %c0_34] : memref<128x128xf32, #tpu.memory_space<vmem>>, vector<32x128xf32>
    %cst_35 = arith.constant 0.000000e+00 : f32
    %89 = vector.broadcast %cst_35 : f32 to vector<32x128xf32>
    %90 = arith.cmpf one, %88, %89 : vector<32x128xf32>
    %91 = arith.select %90, %87, %71 : vector<32x128xi1>, vector<32x128xf32>
    %c32_36 = arith.constant 32 : index
    %c0_37 = arith.constant 0 : index
    %92 = vector.load %arg12[%c32_36, %c0_37] : memref<128x128xf32, #tpu.memory_space<vmem>>, vector<32x128xf32>
    tpu.vector_store %arg12[%c32_36, %c0_37], %91 {strides = array<i32>} : memref<128x128xf32, #tpu.memory_space<vmem>>, vector<32x128xf32>,
    %c64 = arith.constant 64 : index
    %c0_38 = arith.constant 0 : index
    %93 = vector.load %arg12[%c64, %c0_38] : memref<128x128xf32, #tpu.memory_space<vmem>>, vector<32x128xf32>
    %94 = vector.extract_strided_slice %44 {offsets = [64, 0], sizes = [32, 1], strides = [1, 1]} : vector<128x1xf32> to vector<32x1xf32>
    %95 = vector.broadcast %94 : vector<32x1xf32> to vector<32x128xf32>
    %96 = vector.broadcast %40 : vector<1x128xf32> to vector<32x128xf32>
    %97 = arith.mulf %95, %96 : vector<32x128xf32>
    %98 = vector.extract_strided_slice %48 {offsets = [64, 0], sizes = [32, 1], strides = [1, 1]} : vector<128x1xf32> to vector<32x1xf32>
    %99 = vector.broadcast %98 : vector<32x1xf32> to vector<32x128xf32>
    %100 = vector.broadcast %39 : vector<1x128xf32> to vector<32x128xf32>
    %101 = arith.mulf %99, %100 : vector<32x128xf32>
    %102 = arith.maximumf %97, %101 : vector<32x128xf32>
    %cst_39 = arith.constant 2.500000e-04 : f32
    %103 = vector.broadcast %cst_39 : f32 to vector<32x128xf32>
    %104 = arith.addf %93, %103 : vector<32x128xf32>
    %105 = arith.subf %104, %102 : vector<32x128xf32>
    %cst_40 = arith.constant 0.000000e+00 : f32
    %cst_41 = arith.constant 1.000000e+00 : f32
    %106 = vector.broadcast %cst_40 : f32 to vector<32x128xf32>
    %107 = arith.maximumf %106, %105 : vector<32x128xf32>
    %108 = vector.broadcast %cst_41 : f32 to vector<32x128xf32>
    %109 = arith.minimumf %108, %107 : vector<32x128xf32>
    %c64_42 = arith.constant 64 : index
    %c0_43 = arith.constant 0 : index
    %110 = vector.load %arg4[%c64_42, %c0_43] : memref<128x128xf32, #tpu.memory_space<vmem>>, vector<32x128xf32>
    %cst_44 = arith.constant 0.000000e+00 : f32
    %111 = vector.broadcast %cst_44 : f32 to vector<32x128xf32>
    %112 = arith.cmpf one, %110, %111 : vector<32x128xf32>
    %113 = arith.select %112, %109, %93 : vector<32x128xi1>, vector<32x128xf32>
    %c64_45 = arith.constant 64 : index
    %c0_46 = arith.constant 0 : index
    %114 = vector.load %arg12[%c64_45, %c0_46] : memref<128x128xf32, #tpu.memory_space<vmem>>, vector<32x128xf32>
    tpu.vector_store %arg12[%c64_45, %c0_46], %113 {strides = array<i32>} : memref<128x128xf32, #tpu.memory_space<vmem>>, vector<32x128xf32>,
    %c96 = arith.constant 96 : index
    %c0_47 = arith.constant 0 : index
    %115 = vector.load %arg12[%c96, %c0_47] : memref<128x128xf32, #tpu.memory_space<vmem>>, vector<32x128xf32>
    %116 = vector.extract_strided_slice %44 {offsets = [96, 0], sizes = [32, 1], strides = [1, 1]} : vector<128x1xf32> to vector<32x1xf32>
    %117 = vector.broadcast %116 : vector<32x1xf32> to vector<32x128xf32>
    %118 = vector.broadcast %40 : vector<1x128xf32> to vector<32x128xf32>
    %119 = arith.mulf %117, %118 : vector<32x128xf32>
    %120 = vector.extract_strided_slice %48 {offsets = [96, 0], sizes = [32, 1], strides = [1, 1]} : vector<128x1xf32> to vector<32x1xf32>
    %121 = vector.broadcast %120 : vector<32x1xf32> to vector<32x128xf32>
    %122 = vector.broadcast %39 : vector<1x128xf32> to vector<32x128xf32>
    %123 = arith.mulf %121, %122 : vector<32x128xf32>
    %124 = arith.maximumf %119, %123 : vector<32x128xf32>
    %cst_48 = arith.constant 2.500000e-04 : f32
    %125 = vector.broadcast %cst_48 : f32 to vector<32x128xf32>
    %126 = arith.addf %115, %125 : vector<32x128xf32>
    %127 = arith.subf %126, %124 : vector<32x128xf32>
    %cst_49 = arith.constant 0.000000e+00 : f32
    %cst_50 = arith.constant 1.000000e+00 : f32
    %128 = vector.broadcast %cst_49 : f32 to vector<32x128xf32>
    %129 = arith.maximumf %128, %127 : vector<32x128xf32>
    %130 = vector.broadcast %cst_50 : f32 to vector<32x128xf32>
    %131 = arith.minimumf %130, %129 : vector<32x128xf32>
    %c96_51 = arith.constant 96 : index
    %c0_52 = arith.constant 0 : index
    %132 = vector.load %arg4[%c96_51, %c0_52] : memref<128x128xf32, #tpu.memory_space<vmem>>, vector<32x128xf32>
    %cst_53 = arith.constant 0.000000e+00 : f32
    %133 = vector.broadcast %cst_53 : f32 to vector<32x128xf32>
    %134 = arith.cmpf one, %132, %133 : vector<32x128xf32>
    %135 = arith.select %134, %131, %115 : vector<32x128xi1>, vector<32x128xf32>
    %c96_54 = arith.constant 96 : index
    %c0_55 = arith.constant 0 : index
    %136 = vector.load %arg12[%c96_54, %c0_55] : memref<128x128xf32, #tpu.memory_space<vmem>>, vector<32x128xf32>
    tpu.vector_store %arg12[%c96_54, %c0_55], %135 {strides = array<i32>} : memref<128x128xf32, #tpu.memory_space<vmem>>, vector<32x128xf32>,
    %c0_56 = arith.constant 0 : index
    %c0_57 = arith.constant 0 : index
    %137 = vector.load %arg12[%c0_56, %c0_57] : memref<128x128xf32, #tpu.memory_space<vmem>>, vector<128x128xf32>
    %cst_58 = arith.constant dense<0.000000e+00> : vector<8x128xf32>
    %138 = tpu.matmul %15, %137, %cst_58 {dimension_numbers = #tpu.dot_dimension_numbers<[1], [0], [0], [1], [0, 0, 1, 1], [], []>} : vector<8x128xf32>, vector<128x128xf32>, vector<8x128xf32> -> vector<8x128xf32>
    %cst_59 = arith.constant dense<0.000000e+00> : vector<8x128xf32>
    %139 = tpu.matmul %15, %137, %cst_59 {dimension_numbers = #tpu.dot_dimension_numbers<[1], [1], [0], [0], [0, 0, 1, 0], [], []>} : vector<8x128xf32>, vector<128x128xf32>, vector<8x128xf32> -> vector<8x128xf32>
    %c0_60 = arith.constant 0 : index
    %c0_61 = arith.constant 0 : index
    %140 = vector.load %arg17[%c0_60, %c0_61] : memref<8x128xi32, #tpu.memory_space<vmem>>, vector<8x128xi32>
    %c0_i32_62 = arith.constant 0 : i32
    %141 = vector.broadcast %c0_i32_62 : i32 to vector<8x128xi32>
    %142 = arith.cmpi sgt, %140, %141 : vector<8x128xi32>
    %c1_i32 = arith.constant 1 : i32
    %143 = vector.broadcast %c1_i32 : i32 to vector<8x128xi32>
    %144 = arith.subi %140, %143 : vector<8x128xi32>
    %145 = arith.select %142, %144, %140 : vector<8x128xi1>, vector<8x128xi32>
    %c0_i32_63 = arith.constant 0 : i32
    %146 = vector.broadcast %c0_i32_63 : i32 to vector<8x128xi32>
    %147 = arith.cmpi eq, %145, %146 : vector<8x128xi32>
    %c0_64 = arith.constant 0 : index
    %c0_65 = arith.constant 0 : index
    %148 = vector.load %arg14[%c0_64, %c0_65] : memref<8x128xf32, #tpu.memory_space<vmem>>, vector<8x128xf32>
    %c0_66 = arith.constant 0 : index
    %c0_67 = arith.constant 0 : index
    %149 = vector.load %arg16[%c0_66, %c0_67] : memref<8x128xf32, #tpu.memory_space<vmem>>, vector<8x128xf32>
    %150 = arith.index_cast %c0_i32_1 : i32 to index
    %c0_68 = arith.constant 0 : index
    %c0_69 = arith.constant 0 : index
    %151 = vector.load %arg2[%150, %c0_68, %c0_69] : memref<8x8x128xf32, #tpu.memory_space<vmem>>, vector<1x8x128xf32>
    %152 = vector.shape_cast %151 : vector<1x8x128xf32> to vector<8x128xf32>
    %153 = arith.addf %152, %138 : vector<8x128xf32>
    %154 = arith.addf %153, %148 : vector<8x128xf32>
    %155 = arith.select %147, %154, %148 : vector<8x128xi1>, vector<8x128xf32>
    %156 = arith.addf %139, %149 : vector<8x128xf32>
    %157 = arith.select %147, %156, %149 : vector<8x128xi1>, vector<8x128xf32>
    %158 = arith.addf %155, %8 : vector<8x128xf32>
    %159 = arith.select %147, %158, %8 : vector<8x128xi1>, vector<8x128xf32>
    %160 = arith.addf %157, %9 : vector<8x128xf32>
    %161 = arith.select %147, %160, %9 : vector<8x128xi1>, vector<8x128xf32>
    %cst_70 = arith.constant 0.980198681 : f32
    %162 = vector.broadcast %cst_70 : f32 to vector<8x128xf32>
    %163 = arith.mulf %159, %162 : vector<8x128xf32>
    %cst_71 = arith.constant 0.36787945 : f32
    %164 = vector.broadcast %cst_71 : f32 to vector<8x128xf32>
    %165 = arith.mulf %155, %164 : vector<8x128xf32>
    %cst_72 = arith.constant 0.980198681 : f32
    %166 = vector.broadcast %cst_72 : f32 to vector<8x128xf32>
    %167 = arith.mulf %161, %166 : vector<8x128xf32>
    %cst_73 = arith.constant 0.36787945 : f32
    %168 = vector.broadcast %cst_73 : f32 to vector<8x128xf32>
    %169 = arith.mulf %157, %168 : vector<8x128xf32>
    %cst_74 = arith.constant 0.000000e+00 : f32
    %170 = vector.broadcast %cst_74 : f32 to vector<8x128xf32>
    %171 = arith.select %11, %170, %163 : vector<8x128xi1>, vector<8x128xf32>
    %cst_75 = arith.constant 0.000000e+00 : f32
    %172 = vector.broadcast %cst_75 : f32 to vector<8x128xf32>
    %173 = arith.select %13, %172, %167 : vector<8x128xi1>, vector<8x128xf32>
    %c2_i32 = arith.constant 2 : i32
    %174 = vector.broadcast %c2_i32 : i32 to vector<8x128xi32>
    %175 = arith.select %11, %174, %145 : vector<8x128xi1>, vector<8x128xi32>
    %176 = arith.truncf %15 : vector<8x128xf32> to vector<8x128xbf16>
    %177 = arith.index_cast %c0_i32_1 : i32 to index
    %c0_76 = arith.constant 0 : index
    %c0_77 = arith.constant 0 : index
    %178 = vector.load %arg11[%177, %c0_76, %c0_77] : memref<8x8x128xbf16, #tpu.memory_space<vmem>>, vector<1x8x128xbf16>
    %179 = vector.shape_cast %178 : vector<1x8x128xbf16> to vector<8x128xbf16>
    %180 = vector.shape_cast %176 : vector<8x128xbf16> to vector<1x8x128xbf16>
    tpu.vector_store %arg11[%177, %c0_76, %c0_77], %180 {strides = array<i32>} : memref<8x8x128xbf16, #tpu.memory_space<vmem>>, vector<1x8x128xbf16>,
    %c0_78 = arith.constant 0 : index
    %c0_79 = arith.constant 0 : index
    %181 = vector.load %arg13[%c0_78, %c0_79] : memref<8x128xf32, #tpu.memory_space<vmem>>, vector<8x128xf32>
    tpu.vector_store %arg13[%c0_78, %c0_79], %171 {strides = array<i32>} : memref<8x128xf32, #tpu.memory_space<vmem>>, vector<8x128xf32>,
    %c0_80 = arith.constant 0 : index
    %c0_81 = arith.constant 0 : index
    %182 = vector.load %arg14[%c0_80, %c0_81] : memref<8x128xf32, #tpu.memory_space<vmem>>, vector<8x128xf32>
    tpu.vector_store %arg14[%c0_80, %c0_81], %165 {strides = array<i32>} : memref<8x128xf32, #tpu.memory_space<vmem>>, vector<8x128xf32>,
    %c0_82 = arith.constant 0 : index
    %c0_83 = arith.constant 0 : index
    %183 = vector.load %arg15[%c0_82, %c0_83] : memref<8x128xf32, #tpu.memory_space<vmem>>, vector<8x128xf32>
    tpu.vector_store %arg15[%c0_82, %c0_83], %173 {strides = array<i32>} : memref<8x128xf32, #tpu.memory_space<vmem>>, vector<8x128xf32>,
    %c0_84 = arith.constant 0 : index
    %c0_85 = arith.constant 0 : index
    %184 = vector.load %arg16[%c0_84, %c0_85] : memref<8x128xf32, #tpu.memory_space<vmem>>, vector<8x128xf32>
    tpu.vector_store %arg16[%c0_84, %c0_85], %169 {strides = array<i32>} : memref<8x128xf32, #tpu.memory_space<vmem>>, vector<8x128xf32>,
    %c0_86 = arith.constant 0 : index
    %c0_87 = arith.constant 0 : index
    %185 = vector.load %arg17[%c0_86, %c0_87] : memref<8x128xi32, #tpu.memory_space<vmem>>, vector<8x128xi32>
    tpu.vector_store %arg17[%c0_86, %c0_87], %175 {strides = array<i32>} : memref<8x128xi32, #tpu.memory_space<vmem>>, vector<8x128xi32>,
    %c1_i32_88 = arith.constant 1 : i32
    %186 = arith.addi %5, %c1_i32_88 : i32
    %187 = arith.sitofp %186 : i32 to f32
    %c0_89 = arith.constant 0 : index
    %c0_90 = arith.constant 0 : index
    %188 = vector.load %arg13[%c0_89, %c0_90] : memref<8x128xf32, #tpu.memory_space<vmem>>, vector<8x128xf32>
    %c0_91 = arith.constant 0 : index
    %c0_92 = arith.constant 0 : index
    %189 = vector.load %arg15[%c0_91, %c0_92] : memref<8x128xf32, #tpu.memory_space<vmem>>, vector<8x128xf32>
    %cst_93 = arith.constant 1.000000e+00 : f32
    %190 = vector.broadcast %cst_93 : f32 to vector<8x128xf32>
    %191 = arith.cmpf ogt, %188, %190 : vector<8x128xf32>
    %cst_94 = arith.constant 1.025000e+00 : f32
    %192 = vector.broadcast %cst_94 : f32 to vector<8x128xf32>
    %193 = arith.cmpf ogt, %189, %192 : vector<8x128xf32>
    %194 = arith.extui %191 : vector<8x128xi1> to vector<8x128xi32>
    %195 = arith.sitofp %194 : vector<8x128xi32> to vector<8x128xf32>
    %c0_95 = arith.constant 0 : index
    %c0_96 = arith.constant 0 : index
    %196 = vector.load %arg18[%c0_95, %c0_96] : memref<8x128xf32, #tpu.memory_space<vmem>>, vector<8x128xf32>
    %197 = vector.broadcast %187 : f32 to vector<8x128xf32>
    %198 = arith.select %191, %197, %196 : vector<8x128xi1>, vector<8x128xf32>
    %c0_97 = arith.constant 0 : index
    %c0_98 = arith.constant 0 : index
    %199 = vector.load %arg18[%c0_97, %c0_98] : memref<8x128xf32, #tpu.memory_space<vmem>>, vector<8x128xf32>
    tpu.vector_store %arg18[%c0_97, %c0_98], %198 {strides = array<i32>} : memref<8x128xf32, #tpu.memory_space<vmem>>, vector<8x128xf32>,
    %200 = arith.extui %193 : vector<8x128xi1> to vector<8x128xi32>
    %201 = arith.sitofp %200 : vector<8x128xi32> to vector<8x128xf32>
    %cst_99 = arith.constant dense<0xFF800000> : vector<128xf32>
    %202 = vector.multi_reduction <maximumf>, %201, %cst_99 [0] : vector<8x128xf32> to vector<128xf32>
    %cst_100 = arith.constant dense<0xFF800000> : vector<128xf32>
    %203 = vector.multi_reduction <maximumf>, %198, %cst_100 [0] : vector<8x128xf32> to vector<128xf32>
    %204 = vector.shape_cast %203 : vector<128xf32> to vector<1x128xf32>
    %cst_101 = arith.constant dense<0xFF800000> : vector<1xf32>
    %205 = vector.multi_reduction <maximumf>, %204, %cst_101 [1] : vector<1x128xf32> to vector<1xf32>
    %206 = vector.shape_cast %205 : vector<1xf32> to vector<1x1xf32>
    %207 = vector.shape_cast %203 : vector<128xf32> to vector<1x128xf32>
    %208 = vector.broadcast %206 : vector<1x1xf32> to vector<1x128xf32>
    %209 = arith.subf %208, %207 : vector<1x128xf32>
    %cst_102 = arith.constant 2.000000e-02 : f32
    %210 = vector.broadcast %cst_102 : f32 to vector<1x128xf32>
    %211 = arith.mulf %209, %210 : vector<1x128xf32>
    %cst_103 = arith.constant 8.000000e+01 : f32
    %212 = vector.broadcast %cst_103 : f32 to vector<1x128xf32>
    %213 = arith.minimumf %211, %212 : vector<1x128xf32>
    %214 = vector.shape_cast %213 : vector<1x128xf32> to vector<128xf32>
    %cst_104 = arith.constant 0.000000e+00 : f32
    %215 = vector.broadcast %cst_104 : f32 to vector<128xf32>
    %216 = arith.subf %215, %214 : vector<128xf32>
    %217 = math.exp %216 : vector<128xf32>
    %218 = math.exp %214 : vector<128xf32>
    %219 = vector.shape_cast %217 : vector<128xf32> to vector<1x128xf32>
    %220 = vector.shape_cast %218 : vector<128xf32> to vector<1x128xf32>
    %221 = arith.mulf %202, %217 : vector<128xf32>
    %cst_105 = arith.constant 2.500000e-02 : f32
    %222 = vector.broadcast %cst_105 : f32 to vector<128xf32>
    %223 = arith.mulf %222, %221 : vector<128xf32>
    %224 = vector.shape_cast %223 : vector<128xf32> to vector<128x1xf32>
    %225 = arith.mulf %202, %218 : vector<128xf32>
    %cst_106 = arith.constant 2.500000e-02 : f32
    %226 = vector.broadcast %cst_106 : f32 to vector<128xf32>
    %227 = arith.mulf %226, %225 : vector<128xf32>
    %228 = vector.shape_cast %227 : vector<128xf32> to vector<128x1xf32>
    %c0_107 = arith.constant 0 : index
    %c0_108 = arith.constant 0 : index
    %229 = vector.load %arg12[%c0_107, %c0_108] : memref<128x128xf32, #tpu.memory_space<vmem>>, vector<32x128xf32>
    %230 = vector.extract_strided_slice %224 {offsets = [0, 0], sizes = [32, 1], strides = [1, 1]} : vector<128x1xf32> to vector<32x1xf32>
    %231 = vector.broadcast %230 : vector<32x1xf32> to vector<32x128xf32>
    %232 = vector.broadcast %220 : vector<1x128xf32> to vector<32x128xf32>
    %233 = arith.mulf %231, %232 : vector<32x128xf32>
    %234 = vector.extract_strided_slice %228 {offsets = [0, 0], sizes = [32, 1], strides = [1, 1]} : vector<128x1xf32> to vector<32x1xf32>
    %235 = vector.broadcast %234 : vector<32x1xf32> to vector<32x128xf32>
    %236 = vector.broadcast %219 : vector<1x128xf32> to vector<32x128xf32>
    %237 = arith.mulf %235, %236 : vector<32x128xf32>
    %238 = arith.maximumf %233, %237 : vector<32x128xf32>
    %cst_109 = arith.constant 2.500000e-04 : f32
    %239 = vector.broadcast %cst_109 : f32 to vector<32x128xf32>
    %240 = arith.addf %229, %239 : vector<32x128xf32>
    %241 = arith.subf %240, %238 : vector<32x128xf32>
    %cst_110 = arith.constant 0.000000e+00 : f32
    %cst_111 = arith.constant 1.000000e+00 : f32
    %242 = vector.broadcast %cst_110 : f32 to vector<32x128xf32>
    %243 = arith.maximumf %242, %241 : vector<32x128xf32>
    %244 = vector.broadcast %cst_111 : f32 to vector<32x128xf32>
    %245 = arith.minimumf %244, %243 : vector<32x128xf32>
    %c0_112 = arith.constant 0 : index
    %c0_113 = arith.constant 0 : index
    %246 = vector.load %arg4[%c0_112, %c0_113] : memref<128x128xf32, #tpu.memory_space<vmem>>, vector<32x128xf32>
    %cst_114 = arith.constant 0.000000e+00 : f32
    %247 = vector.broadcast %cst_114 : f32 to vector<32x128xf32>
    %248 = arith.cmpf one, %246, %247 : vector<32x128xf32>
    %249 = arith.select %248, %245, %229 : vector<32x128xi1>, vector<32x128xf32>
    %c0_115 = arith.constant 0 : index
    %c0_116 = arith.constant 0 : index
    %250 = vector.load %arg12[%c0_115, %c0_116] : memref<128x128xf32, #tpu.memory_space<vmem>>, vector<32x128xf32>
    tpu.vector_store %arg12[%c0_115, %c0_116], %249 {strides = array<i32>} : memref<128x128xf32, #tpu.memory_space<vmem>>, vector<32x128xf32>,
    %c32_117 = arith.constant 32 : index
    %c0_118 = arith.constant 0 : index
    %251 = vector.load %arg12[%c32_117, %c0_118] : memref<128x128xf32, #tpu.memory_space<vmem>>, vector<32x128xf32>
    %252 = vector.extract_strided_slice %224 {offsets = [32, 0], sizes = [32, 1], strides = [1, 1]} : vector<128x1xf32> to vector<32x1xf32>
    %253 = vector.broadcast %252 : vector<32x1xf32> to vector<32x128xf32>
    %254 = vector.broadcast %220 : vector<1x128xf32> to vector<32x128xf32>
    %255 = arith.mulf %253, %254 : vector<32x128xf32>
    %256 = vector.extract_strided_slice %228 {offsets = [32, 0], sizes = [32, 1], strides = [1, 1]} : vector<128x1xf32> to vector<32x1xf32>
    %257 = vector.broadcast %256 : vector<32x1xf32> to vector<32x128xf32>
    %258 = vector.broadcast %219 : vector<1x128xf32> to vector<32x128xf32>
    %259 = arith.mulf %257, %258 : vector<32x128xf32>
    %260 = arith.maximumf %255, %259 : vector<32x128xf32>
    %cst_119 = arith.constant 2.500000e-04 : f32
    %261 = vector.broadcast %cst_119 : f32 to vector<32x128xf32>
    %262 = arith.addf %251, %261 : vector<32x128xf32>
    %263 = arith.subf %262, %260 : vector<32x128xf32>
    %cst_120 = arith.constant 0.000000e+00 : f32
    %cst_121 = arith.constant 1.000000e+00 : f32
    %264 = vector.broadcast %cst_120 : f32 to vector<32x128xf32>
    %265 = arith.maximumf %264, %263 : vector<32x128xf32>
    %266 = vector.broadcast %cst_121 : f32 to vector<32x128xf32>
    %267 = arith.minimumf %266, %265 : vector<32x128xf32>
    %c32_122 = arith.constant 32 : index
    %c0_123 = arith.constant 0 : index
    %268 = vector.load %arg4[%c32_122, %c0_123] : memref<128x128xf32, #tpu.memory_space<vmem>>, vector<32x128xf32>
    %cst_124 = arith.constant 0.000000e+00 : f32
    %269 = vector.broadcast %cst_124 : f32 to vector<32x128xf32>
    %270 = arith.cmpf one, %268, %269 : vector<32x128xf32>
    %271 = arith.select %270, %267, %251 : vector<32x128xi1>, vector<32x128xf32>
    %c32_125 = arith.constant 32 : index
    %c0_126 = arith.constant 0 : index
    %272 = vector.load %arg12[%c32_125, %c0_126] : memref<128x128xf32, #tpu.memory_space<vmem>>, vector<32x128xf32>
    tpu.vector_store %arg12[%c32_125, %c0_126], %271 {strides = array<i32>} : memref<128x128xf32, #tpu.memory_space<vmem>>, vector<32x128xf32>,
    %c64_127 = arith.constant 64 : index
    %c0_128 = arith.constant 0 : index
    %273 = vector.load %arg12[%c64_127, %c0_128] : memref<128x128xf32, #tpu.memory_space<vmem>>, vector<32x128xf32>
    %274 = vector.extract_strided_slice %224 {offsets = [64, 0], sizes = [32, 1], strides = [1, 1]} : vector<128x1xf32> to vector<32x1xf32>
    %275 = vector.broadcast %274 : vector<32x1xf32> to vector<32x128xf32>
    %276 = vector.broadcast %220 : vector<1x128xf32> to vector<32x128xf32>
    %277 = arith.mulf %275, %276 : vector<32x128xf32>
    %278 = vector.extract_strided_slice %228 {offsets = [64, 0], sizes = [32, 1], strides = [1, 1]} : vector<128x1xf32> to vector<32x1xf32>
    %279 = vector.broadcast %278 : vector<32x1xf32> to vector<32x128xf32>
    %280 = vector.broadcast %219 : vector<1x128xf32> to vector<32x128xf32>
    %281 = arith.mulf %279, %280 : vector<32x128xf32>
    %282 = arith.maximumf %277, %281 : vector<32x128xf32>
    %cst_129 = arith.constant 2.500000e-04 : f32
    %283 = vector.broadcast %cst_129 : f32 to vector<32x128xf32>
    %284 = arith.addf %273, %283 : vector<32x128xf32>
    %285 = arith.subf %284, %282 : vector<32x128xf32>
    %cst_130 = arith.constant 0.000000e+00 : f32
    %cst_131 = arith.constant 1.000000e+00 : f32
    %286 = vector.broadcast %cst_130 : f32 to vector<32x128xf32>
    %287 = arith.maximumf %286, %285 : vector<32x128xf32>
    %288 = vector.broadcast %cst_131 : f32 to vector<32x128xf32>
    %289 = arith.minimumf %288, %287 : vector<32x128xf32>
    %c64_132 = arith.constant 64 : index
    %c0_133 = arith.constant 0 : index
    %290 = vector.load %arg4[%c64_132, %c0_133] : memref<128x128xf32, #tpu.memory_space<vmem>>, vector<32x128xf32>
    %cst_134 = arith.constant 0.000000e+00 : f32
    %291 = vector.broadcast %cst_134 : f32 to vector<32x128xf32>
    %292 = arith.cmpf one, %290, %291 : vector<32x128xf32>
    %293 = arith.select %292, %289, %273 : vector<32x128xi1>, vector<32x128xf32>
    %c64_135 = arith.constant 64 : index
    %c0_136 = arith.constant 0 : index
    %294 = vector.load %arg12[%c64_135, %c0_136] : memref<128x128xf32, #tpu.memory_space<vmem>>, vector<32x128xf32>
    tpu.vector_store %arg12[%c64_135, %c0_136], %293 {strides = array<i32>} : memref<128x128xf32, #tpu.memory_space<vmem>>, vector<32x128xf32>,
    %c96_137 = arith.constant 96 : index
    %c0_138 = arith.constant 0 : index
    %295 = vector.load %arg12[%c96_137, %c0_138] : memref<128x128xf32, #tpu.memory_space<vmem>>, vector<32x128xf32>
    %296 = vector.extract_strided_slice %224 {offsets = [96, 0], sizes = [32, 1], strides = [1, 1]} : vector<128x1xf32> to vector<32x1xf32>
    %297 = vector.broadcast %296 : vector<32x1xf32> to vector<32x128xf32>
    %298 = vector.broadcast %220 : vector<1x128xf32> to vector<32x128xf32>
    %299 = arith.mulf %297, %298 : vector<32x128xf32>
    %300 = vector.extract_strided_slice %228 {offsets = [96, 0], sizes = [32, 1], strides = [1, 1]} : vector<128x1xf32> to vector<32x1xf32>
    %301 = vector.broadcast %300 : vector<32x1xf32> to vector<32x128xf32>
    %302 = vector.broadcast %219 : vector<1x128xf32> to vector<32x128xf32>
    %303 = arith.mulf %301, %302 : vector<32x128xf32>
    %304 = arith.maximumf %299, %303 : vector<32x128xf32>
    %cst_139 = arith.constant 2.500000e-04 : f32
    %305 = vector.broadcast %cst_139 : f32 to vector<32x128xf32>
    %306 = arith.addf %295, %305 : vector<32x128xf32>
    %307 = arith.subf %306, %304 : vector<32x128xf32>
    %cst_140 = arith.constant 0.000000e+00 : f32
    %cst_141 = arith.constant 1.000000e+00 : f32
    %308 = vector.broadcast %cst_140 : f32 to vector<32x128xf32>
    %309 = arith.maximumf %308, %307 : vector<32x128xf32>
    %310 = vector.broadcast %cst_141 : f32 to vector<32x128xf32>
    %311 = arith.minimumf %310, %309 : vector<32x128xf32>
    %c96_142 = arith.constant 96 : index
    %c0_143 = arith.constant 0 : index
    %312 = vector.load %arg4[%c96_142, %c0_143] : memref<128x128xf32, #tpu.memory_space<vmem>>, vector<32x128xf32>
    %cst_144 = arith.constant 0.000000e+00 : f32
    %313 = vector.broadcast %cst_144 : f32 to vector<32x128xf32>
    %314 = arith.cmpf one, %312, %313 : vector<32x128xf32>
    %315 = arith.select %314, %311, %295 : vector<32x128xi1>, vector<32x128xf32>
    %c96_145 = arith.constant 96 : index
    %c0_146 = arith.constant 0 : index
    %316 = vector.load %arg12[%c96_145, %c0_146] : memref<128x128xf32, #tpu.memory_space<vmem>>, vector<32x128xf32>
    tpu.vector_store %arg12[%c96_145, %c0_146], %315 {strides = array<i32>} : memref<128x128xf32, #tpu.memory_space<vmem>>, vector<32x128xf32>,
    %c0_147 = arith.constant 0 : index
    %c0_148 = arith.constant 0 : index
    %317 = vector.load %arg12[%c0_147, %c0_148] : memref<128x128xf32, #tpu.memory_space<vmem>>, vector<128x128xf32>
    %cst_149 = arith.constant dense<0.000000e+00> : vector<8x128xf32>
    %318 = tpu.matmul %195, %317, %cst_149 {dimension_numbers = #tpu.dot_dimension_numbers<[1], [0], [0], [1], [0, 0, 1, 1], [], []>} : vector<8x128xf32>, vector<128x128xf32>, vector<8x128xf32> -> vector<8x128xf32>
    %cst_150 = arith.constant dense<0.000000e+00> : vector<8x128xf32>
    %319 = tpu.matmul %195, %317, %cst_150 {dimension_numbers = #tpu.dot_dimension_numbers<[1], [1], [0], [0], [0, 0, 1, 0], [], []>} : vector<8x128xf32>, vector<128x128xf32>, vector<8x128xf32> -> vector<8x128xf32>
    %c0_151 = arith.constant 0 : index
    %c0_152 = arith.constant 0 : index
    %320 = vector.load %arg17[%c0_151, %c0_152] : memref<8x128xi32, #tpu.memory_space<vmem>>, vector<8x128xi32>
    %c0_i32_153 = arith.constant 0 : i32
    %321 = vector.broadcast %c0_i32_153 : i32 to vector<8x128xi32>
    %322 = arith.cmpi sgt, %320, %321 : vector<8x128xi32>
    %c1_i32_154 = arith.constant 1 : i32
    %323 = vector.broadcast %c1_i32_154 : i32 to vector<8x128xi32>
    %324 = arith.subi %320, %323 : vector<8x128xi32>
    %325 = arith.select %322, %324, %320 : vector<8x128xi1>, vector<8x128xi32>
    %c0_i32_155 = arith.constant 0 : i32
    %326 = vector.broadcast %c0_i32_155 : i32 to vector<8x128xi32>
    %327 = arith.cmpi eq, %325, %326 : vector<8x128xi32>
    %c0_156 = arith.constant 0 : index
    %c0_157 = arith.constant 0 : index
    %328 = vector.load %arg14[%c0_156, %c0_157] : memref<8x128xf32, #tpu.memory_space<vmem>>, vector<8x128xf32>
    %c0_158 = arith.constant 0 : index
    %c0_159 = arith.constant 0 : index
    %329 = vector.load %arg16[%c0_158, %c0_159] : memref<8x128xf32, #tpu.memory_space<vmem>>, vector<8x128xf32>
    %330 = arith.index_cast %c1_i32_88 : i32 to index
    %c0_160 = arith.constant 0 : index
    %c0_161 = arith.constant 0 : index
    %331 = vector.load %arg2[%330, %c0_160, %c0_161] : memref<8x8x128xf32, #tpu.memory_space<vmem>>, vector<1x8x128xf32>
    %332 = vector.shape_cast %331 : vector<1x8x128xf32> to vector<8x128xf32>
    %333 = arith.addf %332, %318 : vector<8x128xf32>
    %334 = arith.addf %333, %328 : vector<8x128xf32>
    %335 = arith.select %327, %334, %328 : vector<8x128xi1>, vector<8x128xf32>
    %336 = arith.addf %319, %329 : vector<8x128xf32>
    %337 = arith.select %327, %336, %329 : vector<8x128xi1>, vector<8x128xf32>
    %338 = arith.addf %335, %188 : vector<8x128xf32>
    %339 = arith.select %327, %338, %188 : vector<8x128xi1>, vector<8x128xf32>
    %340 = arith.addf %337, %189 : vector<8x128xf32>
    %341 = arith.select %327, %340, %189 : vector<8x128xi1>, vector<8x128xf32>
    %cst_162 = arith.constant 0.980198681 : f32
    %342 = vector.broadcast %cst_162 : f32 to vector<8x128xf32>
    %343 = arith.mulf %339, %342 : vector<8x128xf32>
    %cst_163 = arith.constant 0.36787945 : f32
    %344 = vector.broadcast %cst_163 : f32 to vector<8x128xf32>
    %345 = arith.mulf %335, %344 : vector<8x128xf32>
    %cst_164 = arith.constant 0.980198681 : f32
    %346 = vector.broadcast %cst_164 : f32 to vector<8x128xf32>
    %347 = arith.mulf %341, %346 : vector<8x128xf32>
    %cst_165 = arith.constant 0.36787945 : f32
    %348 = vector.broadcast %cst_165 : f32 to vector<8x128xf32>
    %349 = arith.mulf %337, %348 : vector<8x128xf32>
    %cst_166 = arith.constant 0.000000e+00 : f32
    %350 = vector.broadcast %cst_166 : f32 to vector<8x128xf32>
    %351 = arith.select %191, %350, %343 : vector<8x128xi1>, vector<8x128xf32>
    %cst_167 = arith.constant 0.000000e+00 : f32
    %352 = vector.broadcast %cst_167 : f32 to vector<8x128xf32>
    %353 = arith.select %193, %352, %347 : vector<8x128xi1>, vector<8x128xf32>
    %c2_i32_168 = arith.constant 2 : i32
    %354 = vector.broadcast %c2_i32_168 : i32 to vector<8x128xi32>
    %355 = arith.select %191, %354, %325 : vector<8x128xi1>, vector<8x128xi32>
    %356 = arith.truncf %195 : vector<8x128xf32> to vector<8x128xbf16>
    %357 = arith.index_cast %c1_i32_88 : i32 to index
    %c0_169 = arith.constant 0 : index
    %c0_170 = arith.constant 0 : index
    %358 = vector.load %arg11[%357, %c0_169, %c0_170] : memref<8x8x128xbf16, #tpu.memory_space<vmem>>, vector<1x8x128xbf16>
    %359 = vector.shape_cast %358 : vector<1x8x128xbf16> to vector<8x128xbf16>
    %360 = vector.shape_cast %356 : vector<8x128xbf16> to vector<1x8x128xbf16>
    tpu.vector_store %arg11[%357, %c0_169, %c0_170], %360 {strides = array<i32>} : memref<8x8x128xbf16, #tpu.memory_space<vmem>>, vector<1x8x128xbf16>,
    %c0_171 = arith.constant 0 : index
    %c0_172 = arith.constant 0 : index
    %361 = vector.load %arg13[%c0_171, %c0_172] : memref<8x128xf32, #tpu.memory_space<vmem>>, vector<8x128xf32>
    tpu.vector_store %arg13[%c0_171, %c0_172], %351 {strides = array<i32>} : memref<8x128xf32, #tpu.memory_space<vmem>>, vector<8x128xf32>,
    %c0_173 = arith.constant 0 : index
    %c0_174 = arith.constant 0 : index
    %362 = vector.load %arg14[%c0_173, %c0_174] : memref<8x128xf32, #tpu.memory_space<vmem>>, vector<8x128xf32>
    tpu.vector_store %arg14[%c0_173, %c0_174], %345 {strides = array<i32>} : memref<8x128xf32, #tpu.memory_space<vmem>>, vector<8x128xf32>,
    %c0_175 = arith.constant 0 : index
    %c0_176 = arith.constant 0 : index
    %363 = vector.load %arg15[%c0_175, %c0_176] : memref<8x128xf32, #tpu.memory_space<vmem>>, vector<8x128xf32>
    tpu.vector_store %arg15[%c0_175, %c0_176], %353 {strides = array<i32>} : memref<8x128xf32, #tpu.memory_space<vmem>>, vector<8x128xf32>,
    %c0_177 = arith.constant 0 : index
    %c0_178 = arith.constant 0 : index
    %364 = vector.load %arg16[%c0_177, %c0_178] : memref<8x128xf32, #tpu.memory_space<vmem>>, vector<8x128xf32>
    tpu.vector_store %arg16[%c0_177, %c0_178], %349 {strides = array<i32>} : memref<8x128xf32, #tpu.memory_space<vmem>>, vector<8x128xf32>,
    %c0_179 = arith.constant 0 : index
    %c0_180 = arith.constant 0 : index
    %365 = vector.load %arg17[%c0_179, %c0_180] : memref<8x128xi32, #tpu.memory_space<vmem>>, vector<8x128xi32>
    tpu.vector_store %arg17[%c0_179, %c0_180], %355 {strides = array<i32>} : memref<8x128xi32, #tpu.memory_space<vmem>>, vector<8x128xi32>,
    %c2_i32_181 = arith.constant 2 : i32
    %366 = arith.addi %5, %c2_i32_181 : i32
    %367 = arith.sitofp %366 : i32 to f32
    %c0_182 = arith.constant 0 : index
    %c0_183 = arith.constant 0 : index
    %368 = vector.load %arg13[%c0_182, %c0_183] : memref<8x128xf32, #tpu.memory_space<vmem>>, vector<8x128xf32>
    %c0_184 = arith.constant 0 : index
    %c0_185 = arith.constant 0 : index
    %369 = vector.load %arg15[%c0_184, %c0_185] : memref<8x128xf32, #tpu.memory_space<vmem>>, vector<8x128xf32>
    %cst_186 = arith.constant 1.000000e+00 : f32
    %370 = vector.broadcast %cst_186 : f32 to vector<8x128xf32>
    %371 = arith.cmpf ogt, %368, %370 : vector<8x128xf32>
    %cst_187 = arith.constant 1.025000e+00 : f32
    %372 = vector.broadcast %cst_187 : f32 to vector<8x128xf32>
    %373 = arith.cmpf ogt, %369, %372 : vector<8x128xf32>
    %374 = arith.extui %371 : vector<8x128xi1> to vector<8x128xi32>
    %375 = arith.sitofp %374 : vector<8x128xi32> to vector<8x128xf32>
    %c0_188 = arith.constant 0 : index
    %c0_189 = arith.constant 0 : index
    %376 = vector.load %arg18[%c0_188, %c0_189] : memref<8x128xf32, #tpu.memory_space<vmem>>, vector<8x128xf32>
    %377 = vector.broadcast %367 : f32 to vector<8x128xf32>
    %378 = arith.select %371, %377, %376 : vector<8x128xi1>, vector<8x128xf32>
    %c0_190 = arith.constant 0 : index
    %c0_191 = arith.constant 0 : index
    %379 = vector.load %arg18[%c0_190, %c0_191] : memref<8x128xf32, #tpu.memory_space<vmem>>, vector<8x128xf32>
    tpu.vector_store %arg18[%c0_190, %c0_191], %378 {strides = array<i32>} : memref<8x128xf32, #tpu.memory_space<vmem>>, vector<8x128xf32>,
    %380 = arith.extui %373 : vector<8x128xi1> to vector<8x128xi32>
    %381 = arith.sitofp %380 : vector<8x128xi32> to vector<8x128xf32>
    %cst_192 = arith.constant dense<0xFF800000> : vector<128xf32>
    %382 = vector.multi_reduction <maximumf>, %381, %cst_192 [0] : vector<8x128xf32> to vector<128xf32>
    %cst_193 = arith.constant dense<0xFF800000> : vector<128xf32>
    %383 = vector.multi_reduction <maximumf>, %378, %cst_193 [0] : vector<8x128xf32> to vector<128xf32>
    %384 = vector.shape_cast %383 : vector<128xf32> to vector<1x128xf32>
    %cst_194 = arith.constant dense<0xFF800000> : vector<1xf32>
    %385 = vector.multi_reduction <maximumf>, %384, %cst_194 [1] : vector<1x128xf32> to vector<1xf32>
    %386 = vector.shape_cast %385 : vector<1xf32> to vector<1x1xf32>
    %387 = vector.shape_cast %383 : vector<128xf32> to vector<1x128xf32>
    %388 = vector.broadcast %386 : vector<1x1xf32> to vector<1x128xf32>
    %389 = arith.subf %388, %387 : vector<1x128xf32>
    %cst_195 = arith.constant 2.000000e-02 : f32
    %390 = vector.broadcast %cst_195 : f32 to vector<1x128xf32>
    %391 = arith.mulf %389, %390 : vector<1x128xf32>
    %cst_196 = arith.constant 8.000000e+01 : f32
    %392 = vector.broadcast %cst_196 : f32 to vector<1x128xf32>
    %393 = arith.minimumf %391, %392 : vector<1x128xf32>
    %394 = vector.shape_cast %393 : vector<1x128xf32> to vector<128xf32>
    %cst_197 = arith.constant 0.000000e+00 : f32
    %395 = vector.broadcast %cst_197 : f32 to vector<128xf32>
    %396 = arith.subf %395, %394 : vector<128xf32>
    %397 = math.exp %396 : vector<128xf32>
    %398 = math.exp %394 : vector<128xf32>
    %399 = vector.shape_cast %397 : vector<128xf32> to vector<1x128xf32>
    %400 = vector.shape_cast %398 : vector<128xf32> to vector<1x128xf32>
    %401 = arith.mulf %382, %397 : vector<128xf32>
    %cst_198 = arith.constant 2.500000e-02 : f32
    %402 = vector.broadcast %cst_198 : f32 to vector<128xf32>
    %403 = arith.mulf %402, %401 : vector<128xf32>
    %404 = vector.shape_cast %403 : vector<128xf32> to vector<128x1xf32>
    %405 = arith.mulf %382, %398 : vector<128xf32>
    %cst_199 = arith.constant 2.500000e-02 : f32
    %406 = vector.broadcast %cst_199 : f32 to vector<128xf32>
    %407 = arith.mulf %406, %405 : vector<128xf32>
    %408 = vector.shape_cast %407 : vector<128xf32> to vector<128x1xf32>
    %c0_200 = arith.constant 0 : index
    %c0_201 = arith.constant 0 : index
    %409 = vector.load %arg12[%c0_200, %c0_201] : memref<128x128xf32, #tpu.memory_space<vmem>>, vector<32x128xf32>
    %410 = vector.extract_strided_slice %404 {offsets = [0, 0], sizes = [32, 1], strides = [1, 1]} : vector<128x1xf32> to vector<32x1xf32>
    %411 = vector.broadcast %410 : vector<32x1xf32> to vector<32x128xf32>
    %412 = vector.broadcast %400 : vector<1x128xf32> to vector<32x128xf32>
    %413 = arith.mulf %411, %412 : vector<32x128xf32>
    %414 = vector.extract_strided_slice %408 {offsets = [0, 0], sizes = [32, 1], strides = [1, 1]} : vector<128x1xf32> to vector<32x1xf32>
    %415 = vector.broadcast %414 : vector<32x1xf32> to vector<32x128xf32>
    %416 = vector.broadcast %399 : vector<1x128xf32> to vector<32x128xf32>
    %417 = arith.mulf %415, %416 : vector<32x128xf32>
    %418 = arith.maximumf %413, %417 : vector<32x128xf32>
    %cst_202 = arith.constant 2.500000e-04 : f32
    %419 = vector.broadcast %cst_202 : f32 to vector<32x128xf32>
    %420 = arith.addf %409, %419 : vector<32x128xf32>
    %421 = arith.subf %420, %418 : vector<32x128xf32>
    %cst_203 = arith.constant 0.000000e+00 : f32
    %cst_204 = arith.constant 1.000000e+00 : f32
    %422 = vector.broadcast %cst_203 : f32 to vector<32x128xf32>
    %423 = arith.maximumf %422, %421 : vector<32x128xf32>
    %424 = vector.broadcast %cst_204 : f32 to vector<32x128xf32>
    %425 = arith.minimumf %424, %423 : vector<32x128xf32>
    %c0_205 = arith.constant 0 : index
    %c0_206 = arith.constant 0 : index
    %426 = vector.load %arg4[%c0_205, %c0_206] : memref<128x128xf32, #tpu.memory_space<vmem>>, vector<32x128xf32>
    %cst_207 = arith.constant 0.000000e+00 : f32
    %427 = vector.broadcast %cst_207 : f32 to vector<32x128xf32>
    %428 = arith.cmpf one, %426, %427 : vector<32x128xf32>
    %429 = arith.select %428, %425, %409 : vector<32x128xi1>, vector<32x128xf32>
    %c0_208 = arith.constant 0 : index
    %c0_209 = arith.constant 0 : index
    %430 = vector.load %arg12[%c0_208, %c0_209] : memref<128x128xf32, #tpu.memory_space<vmem>>, vector<32x128xf32>
    tpu.vector_store %arg12[%c0_208, %c0_209], %429 {strides = array<i32>} : memref<128x128xf32, #tpu.memory_space<vmem>>, vector<32x128xf32>,
    %c32_210 = arith.constant 32 : index
    %c0_211 = arith.constant 0 : index
    %431 = vector.load %arg12[%c32_210, %c0_211] : memref<128x128xf32, #tpu.memory_space<vmem>>, vector<32x128xf32>
    %432 = vector.extract_strided_slice %404 {offsets = [32, 0], sizes = [32, 1], strides = [1, 1]} : vector<128x1xf32> to vector<32x1xf32>
    %433 = vector.broadcast %432 : vector<32x1xf32> to vector<32x128xf32>
    %434 = vector.broadcast %400 : vector<1x128xf32> to vector<32x128xf32>
    %435 = arith.mulf %433, %434 : vector<32x128xf32>
    %436 = vector.extract_strided_slice %408 {offsets = [32, 0], sizes = [32, 1], strides = [1, 1]} : vector<128x1xf32> to vector<32x1xf32>
    %437 = vector.broadcast %436 : vector<32x1xf32> to vector<32x128xf32>
    %438 = vector.broadcast %399 : vector<1x128xf32> to vector<32x128xf32>
    %439 = arith.mulf %437, %438 : vector<32x128xf32>
    %440 = arith.maximumf %435, %439 : vector<32x128xf32>
    %cst_212 = arith.constant 2.500000e-04 : f32
    %441 = vector.broadcast %cst_212 : f32 to vector<32x128xf32>
    %442 = arith.addf %431, %441 : vector<32x128xf32>
    %443 = arith.subf %442, %440 : vector<32x128xf32>
    %cst_213 = arith.constant 0.000000e+00 : f32
    %cst_214 = arith.constant 1.000000e+00 : f32
    %444 = vector.broadcast %cst_213 : f32 to vector<32x128xf32>
    %445 = arith.maximumf %444, %443 : vector<32x128xf32>
    %446 = vector.broadcast %cst_214 : f32 to vector<32x128xf32>
    %447 = arith.minimumf %446, %445 : vector<32x128xf32>
    %c32_215 = arith.constant 32 : index
    %c0_216 = arith.constant 0 : index
    %448 = vector.load %arg4[%c32_215, %c0_216] : memref<128x128xf32, #tpu.memory_space<vmem>>, vector<32x128xf32>
    %cst_217 = arith.constant 0.000000e+00 : f32
    %449 = vector.broadcast %cst_217 : f32 to vector<32x128xf32>
    %450 = arith.cmpf one, %448, %449 : vector<32x128xf32>
    %451 = arith.select %450, %447, %431 : vector<32x128xi1>, vector<32x128xf32>
    %c32_218 = arith.constant 32 : index
    %c0_219 = arith.constant 0 : index
    %452 = vector.load %arg12[%c32_218, %c0_219] : memref<128x128xf32, #tpu.memory_space<vmem>>, vector<32x128xf32>
    tpu.vector_store %arg12[%c32_218, %c0_219], %451 {strides = array<i32>} : memref<128x128xf32, #tpu.memory_space<vmem>>, vector<32x128xf32>,
    %c64_220 = arith.constant 64 : index
    %c0_221 = arith.constant 0 : index
    %453 = vector.load %arg12[%c64_220, %c0_221] : memref<128x128xf32, #tpu.memory_space<vmem>>, vector<32x128xf32>
    %454 = vector.extract_strided_slice %404 {offsets = [64, 0], sizes = [32, 1], strides = [1, 1]} : vector<128x1xf32> to vector<32x1xf32>
    %455 = vector.broadcast %454 : vector<32x1xf32> to vector<32x128xf32>
    %456 = vector.broadcast %400 : vector<1x128xf32> to vector<32x128xf32>
    %457 = arith.mulf %455, %456 : vector<32x128xf32>
    %458 = vector.extract_strided_slice %408 {offsets = [64, 0], sizes = [32, 1], strides = [1, 1]} : vector<128x1xf32> to vector<32x1xf32>
    %459 = vector.broadcast %458 : vector<32x1xf32> to vector<32x128xf32>
    %460 = vector.broadcast %399 : vector<1x128xf32> to vector<32x128xf32>
    %461 = arith.mulf %459, %460 : vector<32x128xf32>
    %462 = arith.maximumf %457, %461 : vector<32x128xf32>
    %cst_222 = arith.constant 2.500000e-04 : f32
    %463 = vector.broadcast %cst_222 : f32 to vector<32x128xf32>
    %464 = arith.addf %453, %463 : vector<32x128xf32>
    %465 = arith.subf %464, %462 : vector<32x128xf32>
    %cst_223 = arith.constant 0.000000e+00 : f32
    %cst_224 = arith.constant 1.000000e+00 : f32
    %466 = vector.broadcast %cst_223 : f32 to vector<32x128xf32>
    %467 = arith.maximumf %466, %465 : vector<32x128xf32>
    %468 = vector.broadcast %cst_224 : f32 to vector<32x128xf32>
    %469 = arith.minimumf %468, %467 : vector<32x128xf32>
    %c64_225 = arith.constant 64 : index
    %c0_226 = arith.constant 0 : index
    %470 = vector.load %arg4[%c64_225, %c0_226] : memref<128x128xf32, #tpu.memory_space<vmem>>, vector<32x128xf32>
    %cst_227 = arith.constant 0.000000e+00 : f32
    %471 = vector.broadcast %cst_227 : f32 to vector<32x128xf32>
    %472 = arith.cmpf one, %470, %471 : vector<32x128xf32>
    %473 = arith.select %472, %469, %453 : vector<32x128xi1>, vector<32x128xf32>
    %c64_228 = arith.constant 64 : index
    %c0_229 = arith.constant 0 : index
    %474 = vector.load %arg12[%c64_228, %c0_229] : memref<128x128xf32, #tpu.memory_space<vmem>>, vector<32x128xf32>
    tpu.vector_store %arg12[%c64_228, %c0_229], %473 {strides = array<i32>} : memref<128x128xf32, #tpu.memory_space<vmem>>, vector<32x128xf32>,
    %c96_230 = arith.constant 96 : index
    %c0_231 = arith.constant 0 : index
    %475 = vector.load %arg12[%c96_230, %c0_231] : memref<128x128xf32, #tpu.memory_space<vmem>>, vector<32x128xf32>
    %476 = vector.extract_strided_slice %404 {offsets = [96, 0], sizes = [32, 1], strides = [1, 1]} : vector<128x1xf32> to vector<32x1xf32>
    %477 = vector.broadcast %476 : vector<32x1xf32> to vector<32x128xf32>
    %478 = vector.broadcast %400 : vector<1x128xf32> to vector<32x128xf32>
    %479 = arith.mulf %477, %478 : vector<32x128xf32>
    %480 = vector.extract_strided_slice %408 {offsets = [96, 0], sizes = [32, 1], strides = [1, 1]} : vector<128x1xf32> to vector<32x1xf32>
    %481 = vector.broadcast %480 : vector<32x1xf32> to vector<32x128xf32>
    %482 = vector.broadcast %399 : vector<1x128xf32> to vector<32x128xf32>
    %483 = arith.mulf %481, %482 : vector<32x128xf32>
    %484 = arith.maximumf %479, %483 : vector<32x128xf32>
    %cst_232 = arith.constant 2.500000e-04 : f32
    %485 = vector.broadcast %cst_232 : f32 to vector<32x128xf32>
    %486 = arith.addf %475, %485 : vector<32x128xf32>
    %487 = arith.subf %486, %484 : vector<32x128xf32>
    %cst_233 = arith.constant 0.000000e+00 : f32
    %cst_234 = arith.constant 1.000000e+00 : f32
    %488 = vector.broadcast %cst_233 : f32 to vector<32x128xf32>
    %489 = arith.maximumf %488, %487 : vector<32x128xf32>
    %490 = vector.broadcast %cst_234 : f32 to vector<32x128xf32>
    %491 = arith.minimumf %490, %489 : vector<32x128xf32>
    %c96_235 = arith.constant 96 : index
    %c0_236 = arith.constant 0 : index
    %492 = vector.load %arg4[%c96_235, %c0_236] : memref<128x128xf32, #tpu.memory_space<vmem>>, vector<32x128xf32>
    %cst_237 = arith.constant 0.000000e+00 : f32
    %493 = vector.broadcast %cst_237 : f32 to vector<32x128xf32>
    %494 = arith.cmpf one, %492, %493 : vector<32x128xf32>
    %495 = arith.select %494, %491, %475 : vector<32x128xi1>, vector<32x128xf32>
    %c96_238 = arith.constant 96 : index
    %c0_239 = arith.constant 0 : index
    %496 = vector.load %arg12[%c96_238, %c0_239] : memref<128x128xf32, #tpu.memory_space<vmem>>, vector<32x128xf32>
    tpu.vector_store %arg12[%c96_238, %c0_239], %495 {strides = array<i32>} : memref<128x128xf32, #tpu.memory_space<vmem>>, vector<32x128xf32>,
    %c0_240 = arith.constant 0 : index
    %c0_241 = arith.constant 0 : index
    %497 = vector.load %arg12[%c0_240, %c0_241] : memref<128x128xf32, #tpu.memory_space<vmem>>, vector<128x128xf32>
    %cst_242 = arith.constant dense<0.000000e+00> : vector<8x128xf32>
    %498 = tpu.matmul %375, %497, %cst_242 {dimension_numbers = #tpu.dot_dimension_numbers<[1], [0], [0], [1], [0, 0, 1, 1], [], []>} : vector<8x128xf32>, vector<128x128xf32>, vector<8x128xf32> -> vector<8x128xf32>
    %cst_243 = arith.constant dense<0.000000e+00> : vector<8x128xf32>
    %499 = tpu.matmul %375, %497, %cst_243 {dimension_numbers = #tpu.dot_dimension_numbers<[1], [1], [0], [0], [0, 0, 1, 0], [], []>} : vector<8x128xf32>, vector<128x128xf32>, vector<8x128xf32> -> vector<8x128xf32>
    %c0_244 = arith.constant 0 : index
    %c0_245 = arith.constant 0 : index
    %500 = vector.load %arg17[%c0_244, %c0_245] : memref<8x128xi32, #tpu.memory_space<vmem>>, vector<8x128xi32>
    %c0_i32_246 = arith.constant 0 : i32
    %501 = vector.broadcast %c0_i32_246 : i32 to vector<8x128xi32>
    %502 = arith.cmpi sgt, %500, %501 : vector<8x128xi32>
    %c1_i32_247 = arith.constant 1 : i32
    %503 = vector.broadcast %c1_i32_247 : i32 to vector<8x128xi32>
    %504 = arith.subi %500, %503 : vector<8x128xi32>
    %505 = arith.select %502, %504, %500 : vector<8x128xi1>, vector<8x128xi32>
    %c0_i32_248 = arith.constant 0 : i32
    %506 = vector.broadcast %c0_i32_248 : i32 to vector<8x128xi32>
    %507 = arith.cmpi eq, %505, %506 : vector<8x128xi32>
    %c0_249 = arith.constant 0 : index
    %c0_250 = arith.constant 0 : index
    %508 = vector.load %arg14[%c0_249, %c0_250] : memref<8x128xf32, #tpu.memory_space<vmem>>, vector<8x128xf32>
    %c0_251 = arith.constant 0 : index
    %c0_252 = arith.constant 0 : index
    %509 = vector.load %arg16[%c0_251, %c0_252] : memref<8x128xf32, #tpu.memory_space<vmem>>, vector<8x128xf32>
    %510 = arith.index_cast %c2_i32_181 : i32 to index
    %c0_253 = arith.constant 0 : index
    %c0_254 = arith.constant 0 : index
    %511 = vector.load %arg2[%510, %c0_253, %c0_254] : memref<8x8x128xf32, #tpu.memory_space<vmem>>, vector<1x8x128xf32>
    %512 = vector.shape_cast %511 : vector<1x8x128xf32> to vector<8x128xf32>
    %513 = arith.addf %512, %498 : vector<8x128xf32>
    %514 = arith.addf %513, %508 : vector<8x128xf32>
    %515 = arith.select %507, %514, %508 : vector<8x128xi1>, vector<8x128xf32>
    %516 = arith.addf %499, %509 : vector<8x128xf32>
    %517 = arith.select %507, %516, %509 : vector<8x128xi1>, vector<8x128xf32>
    %518 = arith.addf %515, %368 : vector<8x128xf32>
    %519 = arith.select %507, %518, %368 : vector<8x128xi1>, vector<8x128xf32>
    %520 = arith.addf %517, %369 : vector<8x128xf32>
    %521 = arith.select %507, %520, %369 : vector<8x128xi1>, vector<8x128xf32>
    %cst_255 = arith.constant 0.980198681 : f32
    %522 = vector.broadcast %cst_255 : f32 to vector<8x128xf32>
    %523 = arith.mulf %519, %522 : vector<8x128xf32>
    %cst_256 = arith.constant 0.36787945 : f32
    %524 = vector.broadcast %cst_256 : f32 to vector<8x128xf32>
    %525 = arith.mulf %515, %524 : vector<8x128xf32>
    %cst_257 = arith.constant 0.980198681 : f32
    %526 = vector.broadcast %cst_257 : f32 to vector<8x128xf32>
    %527 = arith.mulf %521, %526 : vector<8x128xf32>
    %cst_258 = arith.constant 0.36787945 : f32
    %528 = vector.broadcast %cst_258 : f32 to vector<8x128xf32>
    %529 = arith.mulf %517, %528 : vector<8x128xf32>
    %cst_259 = arith.constant 0.000000e+00 : f32
    %530 = vector.broadcast %cst_259 : f32 to vector<8x128xf32>
    %531 = arith.select %371, %530, %523 : vector<8x128xi1>, vector<8x128xf32>
    %cst_260 = arith.constant 0.000000e+00 : f32
    %532 = vector.broadcast %cst_260 : f32 to vector<8x128xf32>
    %533 = arith.select %373, %532, %527 : vector<8x128xi1>, vector<8x128xf32>
    %c2_i32_261 = arith.constant 2 : i32
    %534 = vector.broadcast %c2_i32_261 : i32 to vector<8x128xi32>
    %535 = arith.select %371, %534, %505 : vector<8x128xi1>, vector<8x128xi32>
    %536 = arith.truncf %375 : vector<8x128xf32> to vector<8x128xbf16>
    %537 = arith.index_cast %c2_i32_181 : i32 to index
    %c0_262 = arith.constant 0 : index
    %c0_263 = arith.constant 0 : index
    %538 = vector.load %arg11[%537, %c0_262, %c0_263] : memref<8x8x128xbf16, #tpu.memory_space<vmem>>, vector<1x8x128xbf16>
    %539 = vector.shape_cast %538 : vector<1x8x128xbf16> to vector<8x128xbf16>
    %540 = vector.shape_cast %536 : vector<8x128xbf16> to vector<1x8x128xbf16>
    tpu.vector_store %arg11[%537, %c0_262, %c0_263], %540 {strides = array<i32>} : memref<8x8x128xbf16, #tpu.memory_space<vmem>>, vector<1x8x128xbf16>,
    %c0_264 = arith.constant 0 : index
    %c0_265 = arith.constant 0 : index
    %541 = vector.load %arg13[%c0_264, %c0_265] : memref<8x128xf32, #tpu.memory_space<vmem>>, vector<8x128xf32>
    tpu.vector_store %arg13[%c0_264, %c0_265], %531 {strides = array<i32>} : memref<8x128xf32, #tpu.memory_space<vmem>>, vector<8x128xf32>,
    %c0_266 = arith.constant 0 : index
    %c0_267 = arith.constant 0 : index
    %542 = vector.load %arg14[%c0_266, %c0_267] : memref<8x128xf32, #tpu.memory_space<vmem>>, vector<8x128xf32>
    tpu.vector_store %arg14[%c0_266, %c0_267], %525 {strides = array<i32>} : memref<8x128xf32, #tpu.memory_space<vmem>>, vector<8x128xf32>,
    %c0_268 = arith.constant 0 : index
    %c0_269 = arith.constant 0 : index
    %543 = vector.load %arg15[%c0_268, %c0_269] : memref<8x128xf32, #tpu.memory_space<vmem>>, vector<8x128xf32>
    tpu.vector_store %arg15[%c0_268, %c0_269], %533 {strides = array<i32>} : memref<8x128xf32, #tpu.memory_space<vmem>>, vector<8x128xf32>,
    %c0_270 = arith.constant 0 : index
    %c0_271 = arith.constant 0 : index
    %544 = vector.load %arg16[%c0_270, %c0_271] : memref<8x128xf32, #tpu.memory_space<vmem>>, vector<8x128xf32>
    tpu.vector_store %arg16[%c0_270, %c0_271], %529 {strides = array<i32>} : memref<8x128xf32, #tpu.memory_space<vmem>>, vector<8x128xf32>,
    %c0_272 = arith.constant 0 : index
    %c0_273 = arith.constant 0 : index
    %545 = vector.load %arg17[%c0_272, %c0_273] : memref<8x128xi32, #tpu.memory_space<vmem>>, vector<8x128xi32>
    tpu.vector_store %arg17[%c0_272, %c0_273], %535 {strides = array<i32>} : memref<8x128xi32, #tpu.memory_space<vmem>>, vector<8x128xi32>,
    %c3_i32 = arith.constant 3 : i32
    %546 = arith.addi %5, %c3_i32 : i32
    %547 = arith.sitofp %546 : i32 to f32
    %c0_274 = arith.constant 0 : index
    %c0_275 = arith.constant 0 : index
    %548 = vector.load %arg13[%c0_274, %c0_275] : memref<8x128xf32, #tpu.memory_space<vmem>>, vector<8x128xf32>
    %c0_276 = arith.constant 0 : index
    %c0_277 = arith.constant 0 : index
    %549 = vector.load %arg15[%c0_276, %c0_277] : memref<8x128xf32, #tpu.memory_space<vmem>>, vector<8x128xf32>
    %cst_278 = arith.constant 1.000000e+00 : f32
    %550 = vector.broadcast %cst_278 : f32 to vector<8x128xf32>
    %551 = arith.cmpf ogt, %548, %550 : vector<8x128xf32>
    %cst_279 = arith.constant 1.025000e+00 : f32
    %552 = vector.broadcast %cst_279 : f32 to vector<8x128xf32>
    %553 = arith.cmpf ogt, %549, %552 : vector<8x128xf32>
    %554 = arith.extui %551 : vector<8x128xi1> to vector<8x128xi32>
    %555 = arith.sitofp %554 : vector<8x128xi32> to vector<8x128xf32>
    %c0_280 = arith.constant 0 : index
    %c0_281 = arith.constant 0 : index
    %556 = vector.load %arg18[%c0_280, %c0_281] : memref<8x128xf32, #tpu.memory_space<vmem>>, vector<8x128xf32>
    %557 = vector.broadcast %547 : f32 to vector<8x128xf32>
    %558 = arith.select %551, %557, %556 : vector<8x128xi1>, vector<8x128xf32>
    %c0_282 = arith.constant 0 : index
    %c0_283 = arith.constant 0 : index
    %559 = vector.load %arg18[%c0_282, %c0_283] : memref<8x128xf32, #tpu.memory_space<vmem>>, vector<8x128xf32>
    tpu.vector_store %arg18[%c0_282, %c0_283], %558 {strides = array<i32>} : memref<8x128xf32, #tpu.memory_space<vmem>>, vector<8x128xf32>,
    %560 = arith.extui %553 : vector<8x128xi1> to vector<8x128xi32>
    %561 = arith.sitofp %560 : vector<8x128xi32> to vector<8x128xf32>
    %cst_284 = arith.constant dense<0xFF800000> : vector<128xf32>
    %562 = vector.multi_reduction <maximumf>, %561, %cst_284 [0] : vector<8x128xf32> to vector<128xf32>
    %cst_285 = arith.constant dense<0xFF800000> : vector<128xf32>
    %563 = vector.multi_reduction <maximumf>, %558, %cst_285 [0] : vector<8x128xf32> to vector<128xf32>
    %564 = vector.shape_cast %563 : vector<128xf32> to vector<1x128xf32>
    %cst_286 = arith.constant dense<0xFF800000> : vector<1xf32>
    %565 = vector.multi_reduction <maximumf>, %564, %cst_286 [1] : vector<1x128xf32> to vector<1xf32>
    %566 = vector.shape_cast %565 : vector<1xf32> to vector<1x1xf32>
    %567 = vector.shape_cast %563 : vector<128xf32> to vector<1x128xf32>
    %568 = vector.broadcast %566 : vector<1x1xf32> to vector<1x128xf32>
    %569 = arith.subf %568, %567 : vector<1x128xf32>
    %cst_287 = arith.constant 2.000000e-02 : f32
    %570 = vector.broadcast %cst_287 : f32 to vector<1x128xf32>
    %571 = arith.mulf %569, %570 : vector<1x128xf32>
    %cst_288 = arith.constant 8.000000e+01 : f32
    %572 = vector.broadcast %cst_288 : f32 to vector<1x128xf32>
    %573 = arith.minimumf %571, %572 : vector<1x128xf32>
    %574 = vector.shape_cast %573 : vector<1x128xf32> to vector<128xf32>
    %cst_289 = arith.constant 0.000000e+00 : f32
    %575 = vector.broadcast %cst_289 : f32 to vector<128xf32>
    %576 = arith.subf %575, %574 : vector<128xf32>
    %577 = math.exp %576 : vector<128xf32>
    %578 = math.exp %574 : vector<128xf32>
    %579 = vector.shape_cast %577 : vector<128xf32> to vector<1x128xf32>
    %580 = vector.shape_cast %578 : vector<128xf32> to vector<1x128xf32>
    %581 = arith.mulf %562, %577 : vector<128xf32>
    %cst_290 = arith.constant 2.500000e-02 : f32
    %582 = vector.broadcast %cst_290 : f32 to vector<128xf32>
    %583 = arith.mulf %582, %581 : vector<128xf32>
    %584 = vector.shape_cast %583 : vector<128xf32> to vector<128x1xf32>
    %585 = arith.mulf %562, %578 : vector<128xf32>
    %cst_291 = arith.constant 2.500000e-02 : f32
    %586 = vector.broadcast %cst_291 : f32 to vector<128xf32>
    %587 = arith.mulf %586, %585 : vector<128xf32>
    %588 = vector.shape_cast %587 : vector<128xf32> to vector<128x1xf32>
    %c0_292 = arith.constant 0 : index
    %c0_293 = arith.constant 0 : index
    %589 = vector.load %arg12[%c0_292, %c0_293] : memref<128x128xf32, #tpu.memory_space<vmem>>, vector<32x128xf32>
    %590 = vector.extract_strided_slice %584 {offsets = [0, 0], sizes = [32, 1], strides = [1, 1]} : vector<128x1xf32> to vector<32x1xf32>
    %591 = vector.broadcast %590 : vector<32x1xf32> to vector<32x128xf32>
    %592 = vector.broadcast %580 : vector<1x128xf32> to vector<32x128xf32>
    %593 = arith.mulf %591, %592 : vector<32x128xf32>
    %594 = vector.extract_strided_slice %588 {offsets = [0, 0], sizes = [32, 1], strides = [1, 1]} : vector<128x1xf32> to vector<32x1xf32>
    %595 = vector.broadcast %594 : vector<32x1xf32> to vector<32x128xf32>
    %596 = vector.broadcast %579 : vector<1x128xf32> to vector<32x128xf32>
    %597 = arith.mulf %595, %596 : vector<32x128xf32>
    %598 = arith.maximumf %593, %597 : vector<32x128xf32>
    %cst_294 = arith.constant 2.500000e-04 : f32
    %599 = vector.broadcast %cst_294 : f32 to vector<32x128xf32>
    %600 = arith.addf %589, %599 : vector<32x128xf32>
    %601 = arith.subf %600, %598 : vector<32x128xf32>
    %cst_295 = arith.constant 0.000000e+00 : f32
    %cst_296 = arith.constant 1.000000e+00 : f32
    %602 = vector.broadcast %cst_295 : f32 to vector<32x128xf32>
    %603 = arith.maximumf %602, %601 : vector<32x128xf32>
    %604 = vector.broadcast %cst_296 : f32 to vector<32x128xf32>
    %605 = arith.minimumf %604, %603 : vector<32x128xf32>
    %c0_297 = arith.constant 0 : index
    %c0_298 = arith.constant 0 : index
    %606 = vector.load %arg4[%c0_297, %c0_298] : memref<128x128xf32, #tpu.memory_space<vmem>>, vector<32x128xf32>
    %cst_299 = arith.constant 0.000000e+00 : f32
    %607 = vector.broadcast %cst_299 : f32 to vector<32x128xf32>
    %608 = arith.cmpf one, %606, %607 : vector<32x128xf32>
    %609 = arith.select %608, %605, %589 : vector<32x128xi1>, vector<32x128xf32>
    %c0_300 = arith.constant 0 : index
    %c0_301 = arith.constant 0 : index
    %610 = vector.load %arg12[%c0_300, %c0_301] : memref<128x128xf32, #tpu.memory_space<vmem>>, vector<32x128xf32>
    tpu.vector_store %arg12[%c0_300, %c0_301], %609 {strides = array<i32>} : memref<128x128xf32, #tpu.memory_space<vmem>>, vector<32x128xf32>,
    %c32_302 = arith.constant 32 : index
    %c0_303 = arith.constant 0 : index
    %611 = vector.load %arg12[%c32_302, %c0_303] : memref<128x128xf32, #tpu.memory_space<vmem>>, vector<32x128xf32>
    %612 = vector.extract_strided_slice %584 {offsets = [32, 0], sizes = [32, 1], strides = [1, 1]} : vector<128x1xf32> to vector<32x1xf32>
    %613 = vector.broadcast %612 : vector<32x1xf32> to vector<32x128xf32>
    %614 = vector.broadcast %580 : vector<1x128xf32> to vector<32x128xf32>
    %615 = arith.mulf %613, %614 : vector<32x128xf32>
    %616 = vector.extract_strided_slice %588 {offsets = [32, 0], sizes = [32, 1], strides = [1, 1]} : vector<128x1xf32> to vector<32x1xf32>
    %617 = vector.broadcast %616 : vector<32x1xf32> to vector<32x128xf32>
    %618 = vector.broadcast %579 : vector<1x128xf32> to vector<32x128xf32>
    %619 = arith.mulf %617, %618 : vector<32x128xf32>
    %620 = arith.maximumf %615, %619 : vector<32x128xf32>
    %cst_304 = arith.constant 2.500000e-04 : f32
    %621 = vector.broadcast %cst_304 : f32 to vector<32x128xf32>
    %622 = arith.addf %611, %621 : vector<32x128xf32>
    %623 = arith.subf %622, %620 : vector<32x128xf32>
    %cst_305 = arith.constant 0.000000e+00 : f32
    %cst_306 = arith.constant 1.000000e+00 : f32
    %624 = vector.broadcast %cst_305 : f32 to vector<32x128xf32>
    %625 = arith.maximumf %624, %623 : vector<32x128xf32>
    %626 = vector.broadcast %cst_306 : f32 to vector<32x128xf32>
    %627 = arith.minimumf %626, %625 : vector<32x128xf32>
    %c32_307 = arith.constant 32 : index
    %c0_308 = arith.constant 0 : index
    %628 = vector.load %arg4[%c32_307, %c0_308] : memref<128x128xf32, #tpu.memory_space<vmem>>, vector<32x128xf32>
    %cst_309 = arith.constant 0.000000e+00 : f32
    %629 = vector.broadcast %cst_309 : f32 to vector<32x128xf32>
    %630 = arith.cmpf one, %628, %629 : vector<32x128xf32>
    %631 = arith.select %630, %627, %611 : vector<32x128xi1>, vector<32x128xf32>
    %c32_310 = arith.constant 32 : index
    %c0_311 = arith.constant 0 : index
    %632 = vector.load %arg12[%c32_310, %c0_311] : memref<128x128xf32, #tpu.memory_space<vmem>>, vector<32x128xf32>
    tpu.vector_store %arg12[%c32_310, %c0_311], %631 {strides = array<i32>} : memref<128x128xf32, #tpu.memory_space<vmem>>, vector<32x128xf32>,
    %c64_312 = arith.constant 64 : index
    %c0_313 = arith.constant 0 : index
    %633 = vector.load %arg12[%c64_312, %c0_313] : memref<128x128xf32, #tpu.memory_space<vmem>>, vector<32x128xf32>
    %634 = vector.extract_strided_slice %584 {offsets = [64, 0], sizes = [32, 1], strides = [1, 1]} : vector<128x1xf32> to vector<32x1xf32>
    %635 = vector.broadcast %634 : vector<32x1xf32> to vector<32x128xf32>
    %636 = vector.broadcast %580 : vector<1x128xf32> to vector<32x128xf32>
    %637 = arith.mulf %635, %636 : vector<32x128xf32>
    %638 = vector.extract_strided_slice %588 {offsets = [64, 0], sizes = [32, 1], strides = [1, 1]} : vector<128x1xf32> to vector<32x1xf32>
    %639 = vector.broadcast %638 : vector<32x1xf32> to vector<32x128xf32>
    %640 = vector.broadcast %579 : vector<1x128xf32> to vector<32x128xf32>
    %641 = arith.mulf %639, %640 : vector<32x128xf32>
    %642 = arith.maximumf %637, %641 : vector<32x128xf32>
    %cst_314 = arith.constant 2.500000e-04 : f32
    %643 = vector.broadcast %cst_314 : f32 to vector<32x128xf32>
    %644 = arith.addf %633, %643 : vector<32x128xf32>
    %645 = arith.subf %644, %642 : vector<32x128xf32>
    %cst_315 = arith.constant 0.000000e+00 : f32
    %cst_316 = arith.constant 1.000000e+00 : f32
    %646 = vector.broadcast %cst_315 : f32 to vector<32x128xf32>
    %647 = arith.maximumf %646, %645 : vector<32x128xf32>
    %648 = vector.broadcast %cst_316 : f32 to vector<32x128xf32>
    %649 = arith.minimumf %648, %647 : vector<32x128xf32>
    %c64_317 = arith.constant 64 : index
    %c0_318 = arith.constant 0 : index
    %650 = vector.load %arg4[%c64_317, %c0_318] : memref<128x128xf32, #tpu.memory_space<vmem>>, vector<32x128xf32>
    %cst_319 = arith.constant 0.000000e+00 : f32
    %651 = vector.broadcast %cst_319 : f32 to vector<32x128xf32>
    %652 = arith.cmpf one, %650, %651 : vector<32x128xf32>
    %653 = arith.select %652, %649, %633 : vector<32x128xi1>, vector<32x128xf32>
    %c64_320 = arith.constant 64 : index
    %c0_321 = arith.constant 0 : index
    %654 = vector.load %arg12[%c64_320, %c0_321] : memref<128x128xf32, #tpu.memory_space<vmem>>, vector<32x128xf32>
    tpu.vector_store %arg12[%c64_320, %c0_321], %653 {strides = array<i32>} : memref<128x128xf32, #tpu.memory_space<vmem>>, vector<32x128xf32>,
    %c96_322 = arith.constant 96 : index
    %c0_323 = arith.constant 0 : index
    %655 = vector.load %arg12[%c96_322, %c0_323] : memref<128x128xf32, #tpu.memory_space<vmem>>, vector<32x128xf32>
    %656 = vector.extract_strided_slice %584 {offsets = [96, 0], sizes = [32, 1], strides = [1, 1]} : vector<128x1xf32> to vector<32x1xf32>
    %657 = vector.broadcast %656 : vector<32x1xf32> to vector<32x128xf32>
    %658 = vector.broadcast %580 : vector<1x128xf32> to vector<32x128xf32>
    %659 = arith.mulf %657, %658 : vector<32x128xf32>
    %660 = vector.extract_strided_slice %588 {offsets = [96, 0], sizes = [32, 1], strides = [1, 1]} : vector<128x1xf32> to vector<32x1xf32>
    %661 = vector.broadcast %660 : vector<32x1xf32> to vector<32x128xf32>
    %662 = vector.broadcast %579 : vector<1x128xf32> to vector<32x128xf32>
    %663 = arith.mulf %661, %662 : vector<32x128xf32>
    %664 = arith.maximumf %659, %663 : vector<32x128xf32>
    %cst_324 = arith.constant 2.500000e-04 : f32
    %665 = vector.broadcast %cst_324 : f32 to vector<32x128xf32>
    %666 = arith.addf %655, %665 : vector<32x128xf32>
    %667 = arith.subf %666, %664 : vector<32x128xf32>
    %cst_325 = arith.constant 0.000000e+00 : f32
    %cst_326 = arith.constant 1.000000e+00 : f32
    %668 = vector.broadcast %cst_325 : f32 to vector<32x128xf32>
    %669 = arith.maximumf %668, %667 : vector<32x128xf32>
    %670 = vector.broadcast %cst_326 : f32 to vector<32x128xf32>
    %671 = arith.minimumf %670, %669 : vector<32x128xf32>
    %c96_327 = arith.constant 96 : index
    %c0_328 = arith.constant 0 : index
    %672 = vector.load %arg4[%c96_327, %c0_328] : memref<128x128xf32, #tpu.memory_space<vmem>>, vector<32x128xf32>
    %cst_329 = arith.constant 0.000000e+00 : f32
    %673 = vector.broadcast %cst_329 : f32 to vector<32x128xf32>
    %674 = arith.cmpf one, %672, %673 : vector<32x128xf32>
    %675 = arith.select %674, %671, %655 : vector<32x128xi1>, vector<32x128xf32>
    %c96_330 = arith.constant 96 : index
    %c0_331 = arith.constant 0 : index
    %676 = vector.load %arg12[%c96_330, %c0_331] : memref<128x128xf32, #tpu.memory_space<vmem>>, vector<32x128xf32>
    tpu.vector_store %arg12[%c96_330, %c0_331], %675 {strides = array<i32>} : memref<128x128xf32, #tpu.memory_space<vmem>>, vector<32x128xf32>,
    %c0_332 = arith.constant 0 : index
    %c0_333 = arith.constant 0 : index
    %677 = vector.load %arg12[%c0_332, %c0_333] : memref<128x128xf32, #tpu.memory_space<vmem>>, vector<128x128xf32>
    %cst_334 = arith.constant dense<0.000000e+00> : vector<8x128xf32>
    %678 = tpu.matmul %555, %677, %cst_334 {dimension_numbers = #tpu.dot_dimension_numbers<[1], [0], [0], [1], [0, 0, 1, 1], [], []>} : vector<8x128xf32>, vector<128x128xf32>, vector<8x128xf32> -> vector<8x128xf32>
    %cst_335 = arith.constant dense<0.000000e+00> : vector<8x128xf32>
    %679 = tpu.matmul %555, %677, %cst_335 {dimension_numbers = #tpu.dot_dimension_numbers<[1], [1], [0], [0], [0, 0, 1, 0], [], []>} : vector<8x128xf32>, vector<128x128xf32>, vector<8x128xf32> -> vector<8x128xf32>
    %c0_336 = arith.constant 0 : index
    %c0_337 = arith.constant 0 : index
    %680 = vector.load %arg17[%c0_336, %c0_337] : memref<8x128xi32, #tpu.memory_space<vmem>>, vector<8x128xi32>
    %c0_i32_338 = arith.constant 0 : i32
    %681 = vector.broadcast %c0_i32_338 : i32 to vector<8x128xi32>
    %682 = arith.cmpi sgt, %680, %681 : vector<8x128xi32>
    %c1_i32_339 = arith.constant 1 : i32
    %683 = vector.broadcast %c1_i32_339 : i32 to vector<8x128xi32>
    %684 = arith.subi %680, %683 : vector<8x128xi32>
    %685 = arith.select %682, %684, %680 : vector<8x128xi1>, vector<8x128xi32>
    %c0_i32_340 = arith.constant 0 : i32
    %686 = vector.broadcast %c0_i32_340 : i32 to vector<8x128xi32>
    %687 = arith.cmpi eq, %685, %686 : vector<8x128xi32>
    %c0_341 = arith.constant 0 : index
    %c0_342 = arith.constant 0 : index
    %688 = vector.load %arg14[%c0_341, %c0_342] : memref<8x128xf32, #tpu.memory_space<vmem>>, vector<8x128xf32>
    %c0_343 = arith.constant 0 : index
    %c0_344 = arith.constant 0 : index
    %689 = vector.load %arg16[%c0_343, %c0_344] : memref<8x128xf32, #tpu.memory_space<vmem>>, vector<8x128xf32>
    %690 = arith.index_cast %c3_i32 : i32 to index
    %c0_345 = arith.constant 0 : index
    %c0_346 = arith.constant 0 : index
    %691 = vector.load %arg2[%690, %c0_345, %c0_346] : memref<8x8x128xf32, #tpu.memory_space<vmem>>, vector<1x8x128xf32>
    %692 = vector.shape_cast %691 : vector<1x8x128xf32> to vector<8x128xf32>
    %693 = arith.addf %692, %678 : vector<8x128xf32>
    %694 = arith.addf %693, %688 : vector<8x128xf32>
    %695 = arith.select %687, %694, %688 : vector<8x128xi1>, vector<8x128xf32>
    %696 = arith.addf %679, %689 : vector<8x128xf32>
    %697 = arith.select %687, %696, %689 : vector<8x128xi1>, vector<8x128xf32>
    %698 = arith.addf %695, %548 : vector<8x128xf32>
    %699 = arith.select %687, %698, %548 : vector<8x128xi1>, vector<8x128xf32>
    %700 = arith.addf %697, %549 : vector<8x128xf32>
    %701 = arith.select %687, %700, %549 : vector<8x128xi1>, vector<8x128xf32>
    %cst_347 = arith.constant 0.980198681 : f32
    %702 = vector.broadcast %cst_347 : f32 to vector<8x128xf32>
    %703 = arith.mulf %699, %702 : vector<8x128xf32>
    %cst_348 = arith.constant 0.36787945 : f32
    %704 = vector.broadcast %cst_348 : f32 to vector<8x128xf32>
    %705 = arith.mulf %695, %704 : vector<8x128xf32>
    %cst_349 = arith.constant 0.980198681 : f32
    %706 = vector.broadcast %cst_349 : f32 to vector<8x128xf32>
    %707 = arith.mulf %701, %706 : vector<8x128xf32>
    %cst_350 = arith.constant 0.36787945 : f32
    %708 = vector.broadcast %cst_350 : f32 to vector<8x128xf32>
    %709 = arith.mulf %697, %708 : vector<8x128xf32>
    %cst_351 = arith.constant 0.000000e+00 : f32
    %710 = vector.broadcast %cst_351 : f32 to vector<8x128xf32>
    %711 = arith.select %551, %710, %703 : vector<8x128xi1>, vector<8x128xf32>
    %cst_352 = arith.constant 0.000000e+00 : f32
    %712 = vector.broadcast %cst_352 : f32 to vector<8x128xf32>
    %713 = arith.select %553, %712, %707 : vector<8x128xi1>, vector<8x128xf32>
    %c2_i32_353 = arith.constant 2 : i32
    %714 = vector.broadcast %c2_i32_353 : i32 to vector<8x128xi32>
    %715 = arith.select %551, %714, %685 : vector<8x128xi1>, vector<8x128xi32>
    %716 = arith.truncf %555 : vector<8x128xf32> to vector<8x128xbf16>
    %717 = arith.index_cast %c3_i32 : i32 to index
    %c0_354 = arith.constant 0 : index
    %c0_355 = arith.constant 0 : index
    %718 = vector.load %arg11[%717, %c0_354, %c0_355] : memref<8x8x128xbf16, #tpu.memory_space<vmem>>, vector<1x8x128xbf16>
    %719 = vector.shape_cast %718 : vector<1x8x128xbf16> to vector<8x128xbf16>
    %720 = vector.shape_cast %716 : vector<8x128xbf16> to vector<1x8x128xbf16>
    tpu.vector_store %arg11[%717, %c0_354, %c0_355], %720 {strides = array<i32>} : memref<8x8x128xbf16, #tpu.memory_space<vmem>>, vector<1x8x128xbf16>,
    %c0_356 = arith.constant 0 : index
    %c0_357 = arith.constant 0 : index
    %721 = vector.load %arg13[%c0_356, %c0_357] : memref<8x128xf32, #tpu.memory_space<vmem>>, vector<8x128xf32>
    tpu.vector_store %arg13[%c0_356, %c0_357], %711 {strides = array<i32>} : memref<8x128xf32, #tpu.memory_space<vmem>>, vector<8x128xf32>,
    %c0_358 = arith.constant 0 : index
    %c0_359 = arith.constant 0 : index
    %722 = vector.load %arg14[%c0_358, %c0_359] : memref<8x128xf32, #tpu.memory_space<vmem>>, vector<8x128xf32>
    tpu.vector_store %arg14[%c0_358, %c0_359], %705 {strides = array<i32>} : memref<8x128xf32, #tpu.memory_space<vmem>>, vector<8x128xf32>,
    %c0_360 = arith.constant 0 : index
    %c0_361 = arith.constant 0 : index
    %723 = vector.load %arg15[%c0_360, %c0_361] : memref<8x128xf32, #tpu.memory_space<vmem>>, vector<8x128xf32>
    tpu.vector_store %arg15[%c0_360, %c0_361], %713 {strides = array<i32>} : memref<8x128xf32, #tpu.memory_space<vmem>>, vector<8x128xf32>,
    %c0_362 = arith.constant 0 : index
    %c0_363 = arith.constant 0 : index
    %724 = vector.load %arg16[%c0_362, %c0_363] : memref<8x128xf32, #tpu.memory_space<vmem>>, vector<8x128xf32>
    tpu.vector_store %arg16[%c0_362, %c0_363], %709 {strides = array<i32>} : memref<8x128xf32, #tpu.memory_space<vmem>>, vector<8x128xf32>,
    %c0_364 = arith.constant 0 : index
    %c0_365 = arith.constant 0 : index
    %725 = vector.load %arg17[%c0_364, %c0_365] : memref<8x128xi32, #tpu.memory_space<vmem>>, vector<8x128xi32>
    tpu.vector_store %arg17[%c0_364, %c0_365], %715 {strides = array<i32>} : memref<8x128xi32, #tpu.memory_space<vmem>>, vector<8x128xi32>,
    %c4_i32 = arith.constant 4 : i32
    %726 = arith.addi %5, %c4_i32 : i32
    %727 = arith.sitofp %726 : i32 to f32
    %c0_366 = arith.constant 0 : index
    %c0_367 = arith.constant 0 : index
    %728 = vector.load %arg13[%c0_366, %c0_367] : memref<8x128xf32, #tpu.memory_space<vmem>>, vector<8x128xf32>
    %c0_368 = arith.constant 0 : index
    %c0_369 = arith.constant 0 : index
    %729 = vector.load %arg15[%c0_368, %c0_369] : memref<8x128xf32, #tpu.memory_space<vmem>>, vector<8x128xf32>
    %cst_370 = arith.constant 1.000000e+00 : f32
    %730 = vector.broadcast %cst_370 : f32 to vector<8x128xf32>
    %731 = arith.cmpf ogt, %728, %730 : vector<8x128xf32>
    %cst_371 = arith.constant 1.025000e+00 : f32
    %732 = vector.broadcast %cst_371 : f32 to vector<8x128xf32>
    %733 = arith.cmpf ogt, %729, %732 : vector<8x128xf32>
    %734 = arith.extui %731 : vector<8x128xi1> to vector<8x128xi32>
    %735 = arith.sitofp %734 : vector<8x128xi32> to vector<8x128xf32>
    %c0_372 = arith.constant 0 : index
    %c0_373 = arith.constant 0 : index
    %736 = vector.load %arg18[%c0_372, %c0_373] : memref<8x128xf32, #tpu.memory_space<vmem>>, vector<8x128xf32>
    %737 = vector.broadcast %727 : f32 to vector<8x128xf32>
    %738 = arith.select %731, %737, %736 : vector<8x128xi1>, vector<8x128xf32>
    %c0_374 = arith.constant 0 : index
    %c0_375 = arith.constant 0 : index
    %739 = vector.load %arg18[%c0_374, %c0_375] : memref<8x128xf32, #tpu.memory_space<vmem>>, vector<8x128xf32>
    tpu.vector_store %arg18[%c0_374, %c0_375], %738 {strides = array<i32>} : memref<8x128xf32, #tpu.memory_space<vmem>>, vector<8x128xf32>,
    %740 = arith.extui %733 : vector<8x128xi1> to vector<8x128xi32>
    %741 = arith.sitofp %740 : vector<8x128xi32> to vector<8x128xf32>
    %cst_376 = arith.constant dense<0xFF800000> : vector<128xf32>
    %742 = vector.multi_reduction <maximumf>, %741, %cst_376 [0] : vector<8x128xf32> to vector<128xf32>
    %cst_377 = arith.constant dense<0xFF800000> : vector<128xf32>
    %743 = vector.multi_reduction <maximumf>, %738, %cst_377 [0] : vector<8x128xf32> to vector<128xf32>
    %744 = vector.shape_cast %743 : vector<128xf32> to vector<1x128xf32>
    %cst_378 = arith.constant dense<0xFF800000> : vector<1xf32>
    %745 = vector.multi_reduction <maximumf>, %744, %cst_378 [1] : vector<1x128xf32> to vector<1xf32>
    %746 = vector.shape_cast %745 : vector<1xf32> to vector<1x1xf32>
    %747 = vector.shape_cast %743 : vector<128xf32> to vector<1x128xf32>
    %748 = vector.broadcast %746 : vector<1x1xf32> to vector<1x128xf32>
    %749 = arith.subf %748, %747 : vector<1x128xf32>
    %cst_379 = arith.constant 2.000000e-02 : f32
    %750 = vector.broadcast %cst_379 : f32 to vector<1x128xf32>
    %751 = arith.mulf %749, %750 : vector<1x128xf32>
    %cst_380 = arith.constant 8.000000e+01 : f32
    %752 = vector.broadcast %cst_380 : f32 to vector<1x128xf32>
    %753 = arith.minimumf %751, %752 : vector<1x128xf32>
    %754 = vector.shape_cast %753 : vector<1x128xf32> to vector<128xf32>
    %cst_381 = arith.constant 0.000000e+00 : f32
    %755 = vector.broadcast %cst_381 : f32 to vector<128xf32>
    %756 = arith.subf %755, %754 : vector<128xf32>
    %757 = math.exp %756 : vector<128xf32>
    %758 = math.exp %754 : vector<128xf32>
    %759 = vector.shape_cast %757 : vector<128xf32> to vector<1x128xf32>
    %760 = vector.shape_cast %758 : vector<128xf32> to vector<1x128xf32>
    %761 = arith.mulf %742, %757 : vector<128xf32>
    %cst_382 = arith.constant 2.500000e-02 : f32
    %762 = vector.broadcast %cst_382 : f32 to vector<128xf32>
    %763 = arith.mulf %762, %761 : vector<128xf32>
    %764 = vector.shape_cast %763 : vector<128xf32> to vector<128x1xf32>
    %765 = arith.mulf %742, %758 : vector<128xf32>
    %cst_383 = arith.constant 2.500000e-02 : f32
    %766 = vector.broadcast %cst_383 : f32 to vector<128xf32>
    %767 = arith.mulf %766, %765 : vector<128xf32>
    %768 = vector.shape_cast %767 : vector<128xf32> to vector<128x1xf32>
    %c0_384 = arith.constant 0 : index
    %c0_385 = arith.constant 0 : index
    %769 = vector.load %arg12[%c0_384, %c0_385] : memref<128x128xf32, #tpu.memory_space<vmem>>, vector<32x128xf32>
    %770 = vector.extract_strided_slice %764 {offsets = [0, 0], sizes = [32, 1], strides = [1, 1]} : vector<128x1xf32> to vector<32x1xf32>
    %771 = vector.broadcast %770 : vector<32x1xf32> to vector<32x128xf32>
    %772 = vector.broadcast %760 : vector<1x128xf32> to vector<32x128xf32>
    %773 = arith.mulf %771, %772 : vector<32x128xf32>
    %774 = vector.extract_strided_slice %768 {offsets = [0, 0], sizes = [32, 1], strides = [1, 1]} : vector<128x1xf32> to vector<32x1xf32>
    %775 = vector.broadcast %774 : vector<32x1xf32> to vector<32x128xf32>
    %776 = vector.broadcast %759 : vector<1x128xf32> to vector<32x128xf32>
    %777 = arith.mulf %775, %776 : vector<32x128xf32>
    %778 = arith.maximumf %773, %777 : vector<32x128xf32>
    %cst_386 = arith.constant 2.500000e-04 : f32
    %779 = vector.broadcast %cst_386 : f32 to vector<32x128xf32>
    %780 = arith.addf %769, %779 : vector<32x128xf32>
    %781 = arith.subf %780, %778 : vector<32x128xf32>
    %cst_387 = arith.constant 0.000000e+00 : f32
    %cst_388 = arith.constant 1.000000e+00 : f32
    %782 = vector.broadcast %cst_387 : f32 to vector<32x128xf32>
    %783 = arith.maximumf %782, %781 : vector<32x128xf32>
    %784 = vector.broadcast %cst_388 : f32 to vector<32x128xf32>
    %785 = arith.minimumf %784, %783 : vector<32x128xf32>
    %c0_389 = arith.constant 0 : index
    %c0_390 = arith.constant 0 : index
    %786 = vector.load %arg4[%c0_389, %c0_390] : memref<128x128xf32, #tpu.memory_space<vmem>>, vector<32x128xf32>
    %cst_391 = arith.constant 0.000000e+00 : f32
    %787 = vector.broadcast %cst_391 : f32 to vector<32x128xf32>
    %788 = arith.cmpf one, %786, %787 : vector<32x128xf32>
    %789 = arith.select %788, %785, %769 : vector<32x128xi1>, vector<32x128xf32>
    %c0_392 = arith.constant 0 : index
    %c0_393 = arith.constant 0 : index
    %790 = vector.load %arg12[%c0_392, %c0_393] : memref<128x128xf32, #tpu.memory_space<vmem>>, vector<32x128xf32>
    tpu.vector_store %arg12[%c0_392, %c0_393], %789 {strides = array<i32>} : memref<128x128xf32, #tpu.memory_space<vmem>>, vector<32x128xf32>,
    %c32_394 = arith.constant 32 : index
    %c0_395 = arith.constant 0 : index
    %791 = vector.load %arg12[%c32_394, %c0_395] : memref<128x128xf32, #tpu.memory_space<vmem>>, vector<32x128xf32>
    %792 = vector.extract_strided_slice %764 {offsets = [32, 0], sizes = [32, 1], strides = [1, 1]} : vector<128x1xf32> to vector<32x1xf32>
    %793 = vector.broadcast %792 : vector<32x1xf32> to vector<32x128xf32>
    %794 = vector.broadcast %760 : vector<1x128xf32> to vector<32x128xf32>
    %795 = arith.mulf %793, %794 : vector<32x128xf32>
    %796 = vector.extract_strided_slice %768 {offsets = [32, 0], sizes = [32, 1], strides = [1, 1]} : vector<128x1xf32> to vector<32x1xf32>
    %797 = vector.broadcast %796 : vector<32x1xf32> to vector<32x128xf32>
    %798 = vector.broadcast %759 : vector<1x128xf32> to vector<32x128xf32>
    %799 = arith.mulf %797, %798 : vector<32x128xf32>
    %800 = arith.maximumf %795, %799 : vector<32x128xf32>
    %cst_396 = arith.constant 2.500000e-04 : f32
    %801 = vector.broadcast %cst_396 : f32 to vector<32x128xf32>
    %802 = arith.addf %791, %801 : vector<32x128xf32>
    %803 = arith.subf %802, %800 : vector<32x128xf32>
    %cst_397 = arith.constant 0.000000e+00 : f32
    %cst_398 = arith.constant 1.000000e+00 : f32
    %804 = vector.broadcast %cst_397 : f32 to vector<32x128xf32>
    %805 = arith.maximumf %804, %803 : vector<32x128xf32>
    %806 = vector.broadcast %cst_398 : f32 to vector<32x128xf32>
    %807 = arith.minimumf %806, %805 : vector<32x128xf32>
    %c32_399 = arith.constant 32 : index
    %c0_400 = arith.constant 0 : index
    %808 = vector.load %arg4[%c32_399, %c0_400] : memref<128x128xf32, #tpu.memory_space<vmem>>, vector<32x128xf32>
    %cst_401 = arith.constant 0.000000e+00 : f32
    %809 = vector.broadcast %cst_401 : f32 to vector<32x128xf32>
    %810 = arith.cmpf one, %808, %809 : vector<32x128xf32>
    %811 = arith.select %810, %807, %791 : vector<32x128xi1>, vector<32x128xf32>
    %c32_402 = arith.constant 32 : index
    %c0_403 = arith.constant 0 : index
    %812 = vector.load %arg12[%c32_402, %c0_403] : memref<128x128xf32, #tpu.memory_space<vmem>>, vector<32x128xf32>
    tpu.vector_store %arg12[%c32_402, %c0_403], %811 {strides = array<i32>} : memref<128x128xf32, #tpu.memory_space<vmem>>, vector<32x128xf32>,
    %c64_404 = arith.constant 64 : index
    %c0_405 = arith.constant 0 : index
    %813 = vector.load %arg12[%c64_404, %c0_405] : memref<128x128xf32, #tpu.memory_space<vmem>>, vector<32x128xf32>
    %814 = vector.extract_strided_slice %764 {offsets = [64, 0], sizes = [32, 1], strides = [1, 1]} : vector<128x1xf32> to vector<32x1xf32>
    %815 = vector.broadcast %814 : vector<32x1xf32> to vector<32x128xf32>
    %816 = vector.broadcast %760 : vector<1x128xf32> to vector<32x128xf32>
    %817 = arith.mulf %815, %816 : vector<32x128xf32>
    %818 = vector.extract_strided_slice %768 {offsets = [64, 0], sizes = [32, 1], strides = [1, 1]} : vector<128x1xf32> to vector<32x1xf32>
    %819 = vector.broadcast %818 : vector<32x1xf32> to vector<32x128xf32>
    %820 = vector.broadcast %759 : vector<1x128xf32> to vector<32x128xf32>
    %821 = arith.mulf %819, %820 : vector<32x128xf32>
    %822 = arith.maximumf %817, %821 : vector<32x128xf32>
    %cst_406 = arith.constant 2.500000e-04 : f32
    %823 = vector.broadcast %cst_406 : f32 to vector<32x128xf32>
    %824 = arith.addf %813, %823 : vector<32x128xf32>
    %825 = arith.subf %824, %822 : vector<32x128xf32>
    %cst_407 = arith.constant 0.000000e+00 : f32
    %cst_408 = arith.constant 1.000000e+00 : f32
    %826 = vector.broadcast %cst_407 : f32 to vector<32x128xf32>
    %827 = arith.maximumf %826, %825 : vector<32x128xf32>
    %828 = vector.broadcast %cst_408 : f32 to vector<32x128xf32>
    %829 = arith.minimumf %828, %827 : vector<32x128xf32>
    %c64_409 = arith.constant 64 : index
    %c0_410 = arith.constant 0 : index
    %830 = vector.load %arg4[%c64_409, %c0_410] : memref<128x128xf32, #tpu.memory_space<vmem>>, vector<32x128xf32>
    %cst_411 = arith.constant 0.000000e+00 : f32
    %831 = vector.broadcast %cst_411 : f32 to vector<32x128xf32>
    %832 = arith.cmpf one, %830, %831 : vector<32x128xf32>
    %833 = arith.select %832, %829, %813 : vector<32x128xi1>, vector<32x128xf32>
    %c64_412 = arith.constant 64 : index
    %c0_413 = arith.constant 0 : index
    %834 = vector.load %arg12[%c64_412, %c0_413] : memref<128x128xf32, #tpu.memory_space<vmem>>, vector<32x128xf32>
    tpu.vector_store %arg12[%c64_412, %c0_413], %833 {strides = array<i32>} : memref<128x128xf32, #tpu.memory_space<vmem>>, vector<32x128xf32>,
    %c96_414 = arith.constant 96 : index
    %c0_415 = arith.constant 0 : index
    %835 = vector.load %arg12[%c96_414, %c0_415] : memref<128x128xf32, #tpu.memory_space<vmem>>, vector<32x128xf32>
    %836 = vector.extract_strided_slice %764 {offsets = [96, 0], sizes = [32, 1], strides = [1, 1]} : vector<128x1xf32> to vector<32x1xf32>
    %837 = vector.broadcast %836 : vector<32x1xf32> to vector<32x128xf32>
    %838 = vector.broadcast %760 : vector<1x128xf32> to vector<32x128xf32>
    %839 = arith.mulf %837, %838 : vector<32x128xf32>
    %840 = vector.extract_strided_slice %768 {offsets = [96, 0], sizes = [32, 1], strides = [1, 1]} : vector<128x1xf32> to vector<32x1xf32>
    %841 = vector.broadcast %840 : vector<32x1xf32> to vector<32x128xf32>
    %842 = vector.broadcast %759 : vector<1x128xf32> to vector<32x128xf32>
    %843 = arith.mulf %841, %842 : vector<32x128xf32>
    %844 = arith.maximumf %839, %843 : vector<32x128xf32>
    %cst_416 = arith.constant 2.500000e-04 : f32
    %845 = vector.broadcast %cst_416 : f32 to vector<32x128xf32>
    %846 = arith.addf %835, %845 : vector<32x128xf32>
    %847 = arith.subf %846, %844 : vector<32x128xf32>
    %cst_417 = arith.constant 0.000000e+00 : f32
    %cst_418 = arith.constant 1.000000e+00 : f32
    %848 = vector.broadcast %cst_417 : f32 to vector<32x128xf32>
    %849 = arith.maximumf %848, %847 : vector<32x128xf32>
    %850 = vector.broadcast %cst_418 : f32 to vector<32x128xf32>
    %851 = arith.minimumf %850, %849 : vector<32x128xf32>
    %c96_419 = arith.constant 96 : index
    %c0_420 = arith.constant 0 : index
    %852 = vector.load %arg4[%c96_419, %c0_420] : memref<128x128xf32, #tpu.memory_space<vmem>>, vector<32x128xf32>
    %cst_421 = arith.constant 0.000000e+00 : f32
    %853 = vector.broadcast %cst_421 : f32 to vector<32x128xf32>
    %854 = arith.cmpf one, %852, %853 : vector<32x128xf32>
    %855 = arith.select %854, %851, %835 : vector<32x128xi1>, vector<32x128xf32>
    %c96_422 = arith.constant 96 : index
    %c0_423 = arith.constant 0 : index
    %856 = vector.load %arg12[%c96_422, %c0_423] : memref<128x128xf32, #tpu.memory_space<vmem>>, vector<32x128xf32>
    tpu.vector_store %arg12[%c96_422, %c0_423], %855 {strides = array<i32>} : memref<128x128xf32, #tpu.memory_space<vmem>>, vector<32x128xf32>,
    %c0_424 = arith.constant 0 : index
    %c0_425 = arith.constant 0 : index
    %857 = vector.load %arg12[%c0_424, %c0_425] : memref<128x128xf32, #tpu.memory_space<vmem>>, vector<128x128xf32>
    %cst_426 = arith.constant dense<0.000000e+00> : vector<8x128xf32>
    %858 = tpu.matmul %735, %857, %cst_426 {dimension_numbers = #tpu.dot_dimension_numbers<[1], [0], [0], [1], [0, 0, 1, 1], [], []>} : vector<8x128xf32>, vector<128x128xf32>, vector<8x128xf32> -> vector<8x128xf32>
    %cst_427 = arith.constant dense<0.000000e+00> : vector<8x128xf32>
    %859 = tpu.matmul %735, %857, %cst_427 {dimension_numbers = #tpu.dot_dimension_numbers<[1], [1], [0], [0], [0, 0, 1, 0], [], []>} : vector<8x128xf32>, vector<128x128xf32>, vector<8x128xf32> -> vector<8x128xf32>
    %c0_428 = arith.constant 0 : index
    %c0_429 = arith.constant 0 : index
    %860 = vector.load %arg17[%c0_428, %c0_429] : memref<8x128xi32, #tpu.memory_space<vmem>>, vector<8x128xi32>
    %c0_i32_430 = arith.constant 0 : i32
    %861 = vector.broadcast %c0_i32_430 : i32 to vector<8x128xi32>
    %862 = arith.cmpi sgt, %860, %861 : vector<8x128xi32>
    %c1_i32_431 = arith.constant 1 : i32
    %863 = vector.broadcast %c1_i32_431 : i32 to vector<8x128xi32>
    %864 = arith.subi %860, %863 : vector<8x128xi32>
    %865 = arith.select %862, %864, %860 : vector<8x128xi1>, vector<8x128xi32>
    %c0_i32_432 = arith.constant 0 : i32
    %866 = vector.broadcast %c0_i32_432 : i32 to vector<8x128xi32>
    %867 = arith.cmpi eq, %865, %866 : vector<8x128xi32>
    %c0_433 = arith.constant 0 : index
    %c0_434 = arith.constant 0 : index
    %868 = vector.load %arg14[%c0_433, %c0_434] : memref<8x128xf32, #tpu.memory_space<vmem>>, vector<8x128xf32>
    %c0_435 = arith.constant 0 : index
    %c0_436 = arith.constant 0 : index
    %869 = vector.load %arg16[%c0_435, %c0_436] : memref<8x128xf32, #tpu.memory_space<vmem>>, vector<8x128xf32>
    %870 = arith.index_cast %c4_i32 : i32 to index
    %c0_437 = arith.constant 0 : index
    %c0_438 = arith.constant 0 : index
    %871 = vector.load %arg2[%870, %c0_437, %c0_438] : memref<8x8x128xf32, #tpu.memory_space<vmem>>, vector<1x8x128xf32>
    %872 = vector.shape_cast %871 : vector<1x8x128xf32> to vector<8x128xf32>
    %873 = arith.addf %872, %858 : vector<8x128xf32>
    %874 = arith.addf %873, %868 : vector<8x128xf32>
    %875 = arith.select %867, %874, %868 : vector<8x128xi1>, vector<8x128xf32>
    %876 = arith.addf %859, %869 : vector<8x128xf32>
    %877 = arith.select %867, %876, %869 : vector<8x128xi1>, vector<8x128xf32>
    %878 = arith.addf %875, %728 : vector<8x128xf32>
    %879 = arith.select %867, %878, %728 : vector<8x128xi1>, vector<8x128xf32>
    %880 = arith.addf %877, %729 : vector<8x128xf32>
    %881 = arith.select %867, %880, %729 : vector<8x128xi1>, vector<8x128xf32>
    %cst_439 = arith.constant 0.980198681 : f32
    %882 = vector.broadcast %cst_439 : f32 to vector<8x128xf32>
    %883 = arith.mulf %879, %882 : vector<8x128xf32>
    %cst_440 = arith.constant 0.36787945 : f32
    %884 = vector.broadcast %cst_440 : f32 to vector<8x128xf32>
    %885 = arith.mulf %875, %884 : vector<8x128xf32>
    %cst_441 = arith.constant 0.980198681 : f32
    %886 = vector.broadcast %cst_441 : f32 to vector<8x128xf32>
    %887 = arith.mulf %881, %886 : vector<8x128xf32>
    %cst_442 = arith.constant 0.36787945 : f32
    %888 = vector.broadcast %cst_442 : f32 to vector<8x128xf32>
    %889 = arith.mulf %877, %888 : vector<8x128xf32>
    %cst_443 = arith.constant 0.000000e+00 : f32
    %890 = vector.broadcast %cst_443 : f32 to vector<8x128xf32>
    %891 = arith.select %731, %890, %883 : vector<8x128xi1>, vector<8x128xf32>
    %cst_444 = arith.constant 0.000000e+00 : f32
    %892 = vector.broadcast %cst_444 : f32 to vector<8x128xf32>
    %893 = arith.select %733, %892, %887 : vector<8x128xi1>, vector<8x128xf32>
    %c2_i32_445 = arith.constant 2 : i32
    %894 = vector.broadcast %c2_i32_445 : i32 to vector<8x128xi32>
    %895 = arith.select %731, %894, %865 : vector<8x128xi1>, vector<8x128xi32>
    %896 = arith.truncf %735 : vector<8x128xf32> to vector<8x128xbf16>
    %897 = arith.index_cast %c4_i32 : i32 to index
    %c0_446 = arith.constant 0 : index
    %c0_447 = arith.constant 0 : index
    %898 = vector.load %arg11[%897, %c0_446, %c0_447] : memref<8x8x128xbf16, #tpu.memory_space<vmem>>, vector<1x8x128xbf16>
    %899 = vector.shape_cast %898 : vector<1x8x128xbf16> to vector<8x128xbf16>
    %900 = vector.shape_cast %896 : vector<8x128xbf16> to vector<1x8x128xbf16>
    tpu.vector_store %arg11[%897, %c0_446, %c0_447], %900 {strides = array<i32>} : memref<8x8x128xbf16, #tpu.memory_space<vmem>>, vector<1x8x128xbf16>,
    %c0_448 = arith.constant 0 : index
    %c0_449 = arith.constant 0 : index
    %901 = vector.load %arg13[%c0_448, %c0_449] : memref<8x128xf32, #tpu.memory_space<vmem>>, vector<8x128xf32>
    tpu.vector_store %arg13[%c0_448, %c0_449], %891 {strides = array<i32>} : memref<8x128xf32, #tpu.memory_space<vmem>>, vector<8x128xf32>,
    %c0_450 = arith.constant 0 : index
    %c0_451 = arith.constant 0 : index
    %902 = vector.load %arg14[%c0_450, %c0_451] : memref<8x128xf32, #tpu.memory_space<vmem>>, vector<8x128xf32>
    tpu.vector_store %arg14[%c0_450, %c0_451], %885 {strides = array<i32>} : memref<8x128xf32, #tpu.memory_space<vmem>>, vector<8x128xf32>,
    %c0_452 = arith.constant 0 : index
    %c0_453 = arith.constant 0 : index
    %903 = vector.load %arg15[%c0_452, %c0_453] : memref<8x128xf32, #tpu.memory_space<vmem>>, vector<8x128xf32>
    tpu.vector_store %arg15[%c0_452, %c0_453], %893 {strides = array<i32>} : memref<8x128xf32, #tpu.memory_space<vmem>>, vector<8x128xf32>,
    %c0_454 = arith.constant 0 : index
    %c0_455 = arith.constant 0 : index
    %904 = vector.load %arg16[%c0_454, %c0_455] : memref<8x128xf32, #tpu.memory_space<vmem>>, vector<8x128xf32>
    tpu.vector_store %arg16[%c0_454, %c0_455], %889 {strides = array<i32>} : memref<8x128xf32, #tpu.memory_space<vmem>>, vector<8x128xf32>,
    %c0_456 = arith.constant 0 : index
    %c0_457 = arith.constant 0 : index
    %905 = vector.load %arg17[%c0_456, %c0_457] : memref<8x128xi32, #tpu.memory_space<vmem>>, vector<8x128xi32>
    tpu.vector_store %arg17[%c0_456, %c0_457], %895 {strides = array<i32>} : memref<8x128xi32, #tpu.memory_space<vmem>>, vector<8x128xi32>,
    %c5_i32 = arith.constant 5 : i32
    %906 = arith.addi %5, %c5_i32 : i32
    %907 = arith.sitofp %906 : i32 to f32
    %c0_458 = arith.constant 0 : index
    %c0_459 = arith.constant 0 : index
    %908 = vector.load %arg13[%c0_458, %c0_459] : memref<8x128xf32, #tpu.memory_space<vmem>>, vector<8x128xf32>
    %c0_460 = arith.constant 0 : index
    %c0_461 = arith.constant 0 : index
    %909 = vector.load %arg15[%c0_460, %c0_461] : memref<8x128xf32, #tpu.memory_space<vmem>>, vector<8x128xf32>
    %cst_462 = arith.constant 1.000000e+00 : f32
    %910 = vector.broadcast %cst_462 : f32 to vector<8x128xf32>
    %911 = arith.cmpf ogt, %908, %910 : vector<8x128xf32>
    %cst_463 = arith.constant 1.025000e+00 : f32
    %912 = vector.broadcast %cst_463 : f32 to vector<8x128xf32>
    %913 = arith.cmpf ogt, %909, %912 : vector<8x128xf32>
    %914 = arith.extui %911 : vector<8x128xi1> to vector<8x128xi32>
    %915 = arith.sitofp %914 : vector<8x128xi32> to vector<8x128xf32>
    %c0_464 = arith.constant 0 : index
    %c0_465 = arith.constant 0 : index
    %916 = vector.load %arg18[%c0_464, %c0_465] : memref<8x128xf32, #tpu.memory_space<vmem>>, vector<8x128xf32>
    %917 = vector.broadcast %907 : f32 to vector<8x128xf32>
    %918 = arith.select %911, %917, %916 : vector<8x128xi1>, vector<8x128xf32>
    %c0_466 = arith.constant 0 : index
    %c0_467 = arith.constant 0 : index
    %919 = vector.load %arg18[%c0_466, %c0_467] : memref<8x128xf32, #tpu.memory_space<vmem>>, vector<8x128xf32>
    tpu.vector_store %arg18[%c0_466, %c0_467], %918 {strides = array<i32>} : memref<8x128xf32, #tpu.memory_space<vmem>>, vector<8x128xf32>,
    %920 = arith.extui %913 : vector<8x128xi1> to vector<8x128xi32>
    %921 = arith.sitofp %920 : vector<8x128xi32> to vector<8x128xf32>
    %cst_468 = arith.constant dense<0xFF800000> : vector<128xf32>
    %922 = vector.multi_reduction <maximumf>, %921, %cst_468 [0] : vector<8x128xf32> to vector<128xf32>
    %cst_469 = arith.constant dense<0xFF800000> : vector<128xf32>
    %923 = vector.multi_reduction <maximumf>, %918, %cst_469 [0] : vector<8x128xf32> to vector<128xf32>
    %924 = vector.shape_cast %923 : vector<128xf32> to vector<1x128xf32>
    %cst_470 = arith.constant dense<0xFF800000> : vector<1xf32>
    %925 = vector.multi_reduction <maximumf>, %924, %cst_470 [1] : vector<1x128xf32> to vector<1xf32>
    %926 = vector.shape_cast %925 : vector<1xf32> to vector<1x1xf32>
    %927 = vector.shape_cast %923 : vector<128xf32> to vector<1x128xf32>
    %928 = vector.broadcast %926 : vector<1x1xf32> to vector<1x128xf32>
    %929 = arith.subf %928, %927 : vector<1x128xf32>
    %cst_471 = arith.constant 2.000000e-02 : f32
    %930 = vector.broadcast %cst_471 : f32 to vector<1x128xf32>
    %931 = arith.mulf %929, %930 : vector<1x128xf32>
    %cst_472 = arith.constant 8.000000e+01 : f32
    %932 = vector.broadcast %cst_472 : f32 to vector<1x128xf32>
    %933 = arith.minimumf %931, %932 : vector<1x128xf32>
    %934 = vector.shape_cast %933 : vector<1x128xf32> to vector<128xf32>
    %cst_473 = arith.constant 0.000000e+00 : f32
    %935 = vector.broadcast %cst_473 : f32 to vector<128xf32>
    %936 = arith.subf %935, %934 : vector<128xf32>
    %937 = math.exp %936 : vector<128xf32>
    %938 = math.exp %934 : vector<128xf32>
    %939 = vector.shape_cast %937 : vector<128xf32> to vector<1x128xf32>
    %940 = vector.shape_cast %938 : vector<128xf32> to vector<1x128xf32>
    %941 = arith.mulf %922, %937 : vector<128xf32>
    %cst_474 = arith.constant 2.500000e-02 : f32
    %942 = vector.broadcast %cst_474 : f32 to vector<128xf32>
    %943 = arith.mulf %942, %941 : vector<128xf32>
    %944 = vector.shape_cast %943 : vector<128xf32> to vector<128x1xf32>
    %945 = arith.mulf %922, %938 : vector<128xf32>
    %cst_475 = arith.constant 2.500000e-02 : f32
    %946 = vector.broadcast %cst_475 : f32 to vector<128xf32>
    %947 = arith.mulf %946, %945 : vector<128xf32>
    %948 = vector.shape_cast %947 : vector<128xf32> to vector<128x1xf32>
    %c0_476 = arith.constant 0 : index
    %c0_477 = arith.constant 0 : index
    %949 = vector.load %arg12[%c0_476, %c0_477] : memref<128x128xf32, #tpu.memory_space<vmem>>, vector<32x128xf32>
    %950 = vector.extract_strided_slice %944 {offsets = [0, 0], sizes = [32, 1], strides = [1, 1]} : vector<128x1xf32> to vector<32x1xf32>
    %951 = vector.broadcast %950 : vector<32x1xf32> to vector<32x128xf32>
    %952 = vector.broadcast %940 : vector<1x128xf32> to vector<32x128xf32>
    %953 = arith.mulf %951, %952 : vector<32x128xf32>
    %954 = vector.extract_strided_slice %948 {offsets = [0, 0], sizes = [32, 1], strides = [1, 1]} : vector<128x1xf32> to vector<32x1xf32>
    %955 = vector.broadcast %954 : vector<32x1xf32> to vector<32x128xf32>
    %956 = vector.broadcast %939 : vector<1x128xf32> to vector<32x128xf32>
    %957 = arith.mulf %955, %956 : vector<32x128xf32>
    %958 = arith.maximumf %953, %957 : vector<32x128xf32>
    %cst_478 = arith.constant 2.500000e-04 : f32
    %959 = vector.broadcast %cst_478 : f32 to vector<32x128xf32>
    %960 = arith.addf %949, %959 : vector<32x128xf32>
    %961 = arith.subf %960, %958 : vector<32x128xf32>
    %cst_479 = arith.constant 0.000000e+00 : f32
    %cst_480 = arith.constant 1.000000e+00 : f32
    %962 = vector.broadcast %cst_479 : f32 to vector<32x128xf32>
    %963 = arith.maximumf %962, %961 : vector<32x128xf32>
    %964 = vector.broadcast %cst_480 : f32 to vector<32x128xf32>
    %965 = arith.minimumf %964, %963 : vector<32x128xf32>
    %c0_481 = arith.constant 0 : index
    %c0_482 = arith.constant 0 : index
    %966 = vector.load %arg4[%c0_481, %c0_482] : memref<128x128xf32, #tpu.memory_space<vmem>>, vector<32x128xf32>
    %cst_483 = arith.constant 0.000000e+00 : f32
    %967 = vector.broadcast %cst_483 : f32 to vector<32x128xf32>
    %968 = arith.cmpf one, %966, %967 : vector<32x128xf32>
    %969 = arith.select %968, %965, %949 : vector<32x128xi1>, vector<32x128xf32>
    %c0_484 = arith.constant 0 : index
    %c0_485 = arith.constant 0 : index
    %970 = vector.load %arg12[%c0_484, %c0_485] : memref<128x128xf32, #tpu.memory_space<vmem>>, vector<32x128xf32>
    tpu.vector_store %arg12[%c0_484, %c0_485], %969 {strides = array<i32>} : memref<128x128xf32, #tpu.memory_space<vmem>>, vector<32x128xf32>,
    %c32_486 = arith.constant 32 : index
    %c0_487 = arith.constant 0 : index
    %971 = vector.load %arg12[%c32_486, %c0_487] : memref<128x128xf32, #tpu.memory_space<vmem>>, vector<32x128xf32>
    %972 = vector.extract_strided_slice %944 {offsets = [32, 0], sizes = [32, 1], strides = [1, 1]} : vector<128x1xf32> to vector<32x1xf32>
    %973 = vector.broadcast %972 : vector<32x1xf32> to vector<32x128xf32>
    %974 = vector.broadcast %940 : vector<1x128xf32> to vector<32x128xf32>
    %975 = arith.mulf %973, %974 : vector<32x128xf32>
    %976 = vector.extract_strided_slice %948 {offsets = [32, 0], sizes = [32, 1], strides = [1, 1]} : vector<128x1xf32> to vector<32x1xf32>
    %977 = vector.broadcast %976 : vector<32x1xf32> to vector<32x128xf32>
    %978 = vector.broadcast %939 : vector<1x128xf32> to vector<32x128xf32>
    %979 = arith.mulf %977, %978 : vector<32x128xf32>
    %980 = arith.maximumf %975, %979 : vector<32x128xf32>
    %cst_488 = arith.constant 2.500000e-04 : f32
    %981 = vector.broadcast %cst_488 : f32 to vector<32x128xf32>
    %982 = arith.addf %971, %981 : vector<32x128xf32>
    %983 = arith.subf %982, %980 : vector<32x128xf32>
    %cst_489 = arith.constant 0.000000e+00 : f32
    %cst_490 = arith.constant 1.000000e+00 : f32
    %984 = vector.broadcast %cst_489 : f32 to vector<32x128xf32>
    %985 = arith.maximumf %984, %983 : vector<32x128xf32>
    %986 = vector.broadcast %cst_490 : f32 to vector<32x128xf32>
    %987 = arith.minimumf %986, %985 : vector<32x128xf32>
    %c32_491 = arith.constant 32 : index
    %c0_492 = arith.constant 0 : index
    %988 = vector.load %arg4[%c32_491, %c0_492] : memref<128x128xf32, #tpu.memory_space<vmem>>, vector<32x128xf32>
    %cst_493 = arith.constant 0.000000e+00 : f32
    %989 = vector.broadcast %cst_493 : f32 to vector<32x128xf32>
    %990 = arith.cmpf one, %988, %989 : vector<32x128xf32>
    %991 = arith.select %990, %987, %971 : vector<32x128xi1>, vector<32x128xf32>
    %c32_494 = arith.constant 32 : index
    %c0_495 = arith.constant 0 : index
    %992 = vector.load %arg12[%c32_494, %c0_495] : memref<128x128xf32, #tpu.memory_space<vmem>>, vector<32x128xf32>
    tpu.vector_store %arg12[%c32_494, %c0_495], %991 {strides = array<i32>} : memref<128x128xf32, #tpu.memory_space<vmem>>, vector<32x128xf32>,
    %c64_496 = arith.constant 64 : index
    %c0_497 = arith.constant 0 : index
    %993 = vector.load %arg12[%c64_496, %c0_497] : memref<128x128xf32, #tpu.memory_space<vmem>>, vector<32x128xf32>
    %994 = vector.extract_strided_slice %944 {offsets = [64, 0], sizes = [32, 1], strides = [1, 1]} : vector<128x1xf32> to vector<32x1xf32>
    %995 = vector.broadcast %994 : vector<32x1xf32> to vector<32x128xf32>
    %996 = vector.broadcast %940 : vector<1x128xf32> to vector<32x128xf32>
    %997 = arith.mulf %995, %996 : vector<32x128xf32>
    %998 = vector.extract_strided_slice %948 {offsets = [64, 0], sizes = [32, 1], strides = [1, 1]} : vector<128x1xf32> to vector<32x1xf32>
    %999 = vector.broadcast %998 : vector<32x1xf32> to vector<32x128xf32>
    %1000 = vector.broadcast %939 : vector<1x128xf32> to vector<32x128xf32>
    %1001 = arith.mulf %999, %1000 : vector<32x128xf32>
    %1002 = arith.maximumf %997, %1001 : vector<32x128xf32>
    %cst_498 = arith.constant 2.500000e-04 : f32
    %1003 = vector.broadcast %cst_498 : f32 to vector<32x128xf32>
    %1004 = arith.addf %993, %1003 : vector<32x128xf32>
    %1005 = arith.subf %1004, %1002 : vector<32x128xf32>
    %cst_499 = arith.constant 0.000000e+00 : f32
    %cst_500 = arith.constant 1.000000e+00 : f32
    %1006 = vector.broadcast %cst_499 : f32 to vector<32x128xf32>
    %1007 = arith.maximumf %1006, %1005 : vector<32x128xf32>
    %1008 = vector.broadcast %cst_500 : f32 to vector<32x128xf32>
    %1009 = arith.minimumf %1008, %1007 : vector<32x128xf32>
    %c64_501 = arith.constant 64 : index
    %c0_502 = arith.constant 0 : index
    %1010 = vector.load %arg4[%c64_501, %c0_502] : memref<128x128xf32, #tpu.memory_space<vmem>>, vector<32x128xf32>
    %cst_503 = arith.constant 0.000000e+00 : f32
    %1011 = vector.broadcast %cst_503 : f32 to vector<32x128xf32>
    %1012 = arith.cmpf one, %1010, %1011 : vector<32x128xf32>
    %1013 = arith.select %1012, %1009, %993 : vector<32x128xi1>, vector<32x128xf32>
    %c64_504 = arith.constant 64 : index
    %c0_505 = arith.constant 0 : index
    %1014 = vector.load %arg12[%c64_504, %c0_505] : memref<128x128xf32, #tpu.memory_space<vmem>>, vector<32x128xf32>
    tpu.vector_store %arg12[%c64_504, %c0_505], %1013 {strides = array<i32>} : memref<128x128xf32, #tpu.memory_space<vmem>>, vector<32x128xf32>,
    %c96_506 = arith.constant 96 : index
    %c0_507 = arith.constant 0 : index
    %1015 = vector.load %arg12[%c96_506, %c0_507] : memref<128x128xf32, #tpu.memory_space<vmem>>, vector<32x128xf32>
    %1016 = vector.extract_strided_slice %944 {offsets = [96, 0], sizes = [32, 1], strides = [1, 1]} : vector<128x1xf32> to vector<32x1xf32>
    %1017 = vector.broadcast %1016 : vector<32x1xf32> to vector<32x128xf32>
    %1018 = vector.broadcast %940 : vector<1x128xf32> to vector<32x128xf32>
    %1019 = arith.mulf %1017, %1018 : vector<32x128xf32>
    %1020 = vector.extract_strided_slice %948 {offsets = [96, 0], sizes = [32, 1], strides = [1, 1]} : vector<128x1xf32> to vector<32x1xf32>
    %1021 = vector.broadcast %1020 : vector<32x1xf32> to vector<32x128xf32>
    %1022 = vector.broadcast %939 : vector<1x128xf32> to vector<32x128xf32>
    %1023 = arith.mulf %1021, %1022 : vector<32x128xf32>
    %1024 = arith.maximumf %1019, %1023 : vector<32x128xf32>
    %cst_508 = arith.constant 2.500000e-04 : f32
    %1025 = vector.broadcast %cst_508 : f32 to vector<32x128xf32>
    %1026 = arith.addf %1015, %1025 : vector<32x128xf32>
    %1027 = arith.subf %1026, %1024 : vector<32x128xf32>
    %cst_509 = arith.constant 0.000000e+00 : f32
    %cst_510 = arith.constant 1.000000e+00 : f32
    %1028 = vector.broadcast %cst_509 : f32 to vector<32x128xf32>
    %1029 = arith.maximumf %1028, %1027 : vector<32x128xf32>
    %1030 = vector.broadcast %cst_510 : f32 to vector<32x128xf32>
    %1031 = arith.minimumf %1030, %1029 : vector<32x128xf32>
    %c96_511 = arith.constant 96 : index
    %c0_512 = arith.constant 0 : index
    %1032 = vector.load %arg4[%c96_511, %c0_512] : memref<128x128xf32, #tpu.memory_space<vmem>>, vector<32x128xf32>
    %cst_513 = arith.constant 0.000000e+00 : f32
    %1033 = vector.broadcast %cst_513 : f32 to vector<32x128xf32>
    %1034 = arith.cmpf one, %1032, %1033 : vector<32x128xf32>
    %1035 = arith.select %1034, %1031, %1015 : vector<32x128xi1>, vector<32x128xf32>
    %c96_514 = arith.constant 96 : index
    %c0_515 = arith.constant 0 : index
    %1036 = vector.load %arg12[%c96_514, %c0_515] : memref<128x128xf32, #tpu.memory_space<vmem>>, vector<32x128xf32>
    tpu.vector_store %arg12[%c96_514, %c0_515], %1035 {strides = array<i32>} : memref<128x128xf32, #tpu.memory_space<vmem>>, vector<32x128xf32>,
    %c0_516 = arith.constant 0 : index
    %c0_517 = arith.constant 0 : index
    %1037 = vector.load %arg12[%c0_516, %c0_517] : memref<128x128xf32, #tpu.memory_space<vmem>>, vector<128x128xf32>
    %cst_518 = arith.constant dense<0.000000e+00> : vector<8x128xf32>
    %1038 = tpu.matmul %915, %1037, %cst_518 {dimension_numbers = #tpu.dot_dimension_numbers<[1], [0], [0], [1], [0, 0, 1, 1], [], []>} : vector<8x128xf32>, vector<128x128xf32>, vector<8x128xf32> -> vector<8x128xf32>
    %cst_519 = arith.constant dense<0.000000e+00> : vector<8x128xf32>
    %1039 = tpu.matmul %915, %1037, %cst_519 {dimension_numbers = #tpu.dot_dimension_numbers<[1], [1], [0], [0], [0, 0, 1, 0], [], []>} : vector<8x128xf32>, vector<128x128xf32>, vector<8x128xf32> -> vector<8x128xf32>
    %c0_520 = arith.constant 0 : index
    %c0_521 = arith.constant 0 : index
    %1040 = vector.load %arg17[%c0_520, %c0_521] : memref<8x128xi32, #tpu.memory_space<vmem>>, vector<8x128xi32>
    %c0_i32_522 = arith.constant 0 : i32
    %1041 = vector.broadcast %c0_i32_522 : i32 to vector<8x128xi32>
    %1042 = arith.cmpi sgt, %1040, %1041 : vector<8x128xi32>
    %c1_i32_523 = arith.constant 1 : i32
    %1043 = vector.broadcast %c1_i32_523 : i32 to vector<8x128xi32>
    %1044 = arith.subi %1040, %1043 : vector<8x128xi32>
    %1045 = arith.select %1042, %1044, %1040 : vector<8x128xi1>, vector<8x128xi32>
    %c0_i32_524 = arith.constant 0 : i32
    %1046 = vector.broadcast %c0_i32_524 : i32 to vector<8x128xi32>
    %1047 = arith.cmpi eq, %1045, %1046 : vector<8x128xi32>
    %c0_525 = arith.constant 0 : index
    %c0_526 = arith.constant 0 : index
    %1048 = vector.load %arg14[%c0_525, %c0_526] : memref<8x128xf32, #tpu.memory_space<vmem>>, vector<8x128xf32>
    %c0_527 = arith.constant 0 : index
    %c0_528 = arith.constant 0 : index
    %1049 = vector.load %arg16[%c0_527, %c0_528] : memref<8x128xf32, #tpu.memory_space<vmem>>, vector<8x128xf32>
    %1050 = arith.index_cast %c5_i32 : i32 to index
    %c0_529 = arith.constant 0 : index
    %c0_530 = arith.constant 0 : index
    %1051 = vector.load %arg2[%1050, %c0_529, %c0_530] : memref<8x8x128xf32, #tpu.memory_space<vmem>>, vector<1x8x128xf32>
    %1052 = vector.shape_cast %1051 : vector<1x8x128xf32> to vector<8x128xf32>
    %1053 = arith.addf %1052, %1038 : vector<8x128xf32>
    %1054 = arith.addf %1053, %1048 : vector<8x128xf32>
    %1055 = arith.select %1047, %1054, %1048 : vector<8x128xi1>, vector<8x128xf32>
    %1056 = arith.addf %1039, %1049 : vector<8x128xf32>
    %1057 = arith.select %1047, %1056, %1049 : vector<8x128xi1>, vector<8x128xf32>
    %1058 = arith.addf %1055, %908 : vector<8x128xf32>
    %1059 = arith.select %1047, %1058, %908 : vector<8x128xi1>, vector<8x128xf32>
    %1060 = arith.addf %1057, %909 : vector<8x128xf32>
    %1061 = arith.select %1047, %1060, %909 : vector<8x128xi1>, vector<8x128xf32>
    %cst_531 = arith.constant 0.980198681 : f32
    %1062 = vector.broadcast %cst_531 : f32 to vector<8x128xf32>
    %1063 = arith.mulf %1059, %1062 : vector<8x128xf32>
    %cst_532 = arith.constant 0.36787945 : f32
    %1064 = vector.broadcast %cst_532 : f32 to vector<8x128xf32>
    %1065 = arith.mulf %1055, %1064 : vector<8x128xf32>
    %cst_533 = arith.constant 0.980198681 : f32
    %1066 = vector.broadcast %cst_533 : f32 to vector<8x128xf32>
    %1067 = arith.mulf %1061, %1066 : vector<8x128xf32>
    %cst_534 = arith.constant 0.36787945 : f32
    %1068 = vector.broadcast %cst_534 : f32 to vector<8x128xf32>
    %1069 = arith.mulf %1057, %1068 : vector<8x128xf32>
    %cst_535 = arith.constant 0.000000e+00 : f32
    %1070 = vector.broadcast %cst_535 : f32 to vector<8x128xf32>
    %1071 = arith.select %911, %1070, %1063 : vector<8x128xi1>, vector<8x128xf32>
    %cst_536 = arith.constant 0.000000e+00 : f32
    %1072 = vector.broadcast %cst_536 : f32 to vector<8x128xf32>
    %1073 = arith.select %913, %1072, %1067 : vector<8x128xi1>, vector<8x128xf32>
    %c2_i32_537 = arith.constant 2 : i32
    %1074 = vector.broadcast %c2_i32_537 : i32 to vector<8x128xi32>
    %1075 = arith.select %911, %1074, %1045 : vector<8x128xi1>, vector<8x128xi32>
    %1076 = arith.truncf %915 : vector<8x128xf32> to vector<8x128xbf16>
    %1077 = arith.index_cast %c5_i32 : i32 to index
    %c0_538 = arith.constant 0 : index
    %c0_539 = arith.constant 0 : index
    %1078 = vector.load %arg11[%1077, %c0_538, %c0_539] : memref<8x8x128xbf16, #tpu.memory_space<vmem>>, vector<1x8x128xbf16>
    %1079 = vector.shape_cast %1078 : vector<1x8x128xbf16> to vector<8x128xbf16>
    %1080 = vector.shape_cast %1076 : vector<8x128xbf16> to vector<1x8x128xbf16>
    tpu.vector_store %arg11[%1077, %c0_538, %c0_539], %1080 {strides = array<i32>} : memref<8x8x128xbf16, #tpu.memory_space<vmem>>, vector<1x8x128xbf16>,
    %c0_540 = arith.constant 0 : index
    %c0_541 = arith.constant 0 : index
    %1081 = vector.load %arg13[%c0_540, %c0_541] : memref<8x128xf32, #tpu.memory_space<vmem>>, vector<8x128xf32>
    tpu.vector_store %arg13[%c0_540, %c0_541], %1071 {strides = array<i32>} : memref<8x128xf32, #tpu.memory_space<vmem>>, vector<8x128xf32>,
    %c0_542 = arith.constant 0 : index
    %c0_543 = arith.constant 0 : index
    %1082 = vector.load %arg14[%c0_542, %c0_543] : memref<8x128xf32, #tpu.memory_space<vmem>>, vector<8x128xf32>
    tpu.vector_store %arg14[%c0_542, %c0_543], %1065 {strides = array<i32>} : memref<8x128xf32, #tpu.memory_space<vmem>>, vector<8x128xf32>,
    %c0_544 = arith.constant 0 : index
    %c0_545 = arith.constant 0 : index
    %1083 = vector.load %arg15[%c0_544, %c0_545] : memref<8x128xf32, #tpu.memory_space<vmem>>, vector<8x128xf32>
    tpu.vector_store %arg15[%c0_544, %c0_545], %1073 {strides = array<i32>} : memref<8x128xf32, #tpu.memory_space<vmem>>, vector<8x128xf32>,
    %c0_546 = arith.constant 0 : index
    %c0_547 = arith.constant 0 : index
    %1084 = vector.load %arg16[%c0_546, %c0_547] : memref<8x128xf32, #tpu.memory_space<vmem>>, vector<8x128xf32>
    tpu.vector_store %arg16[%c0_546, %c0_547], %1069 {strides = array<i32>} : memref<8x128xf32, #tpu.memory_space<vmem>>, vector<8x128xf32>,
    %c0_548 = arith.constant 0 : index
    %c0_549 = arith.constant 0 : index
    %1085 = vector.load %arg17[%c0_548, %c0_549] : memref<8x128xi32, #tpu.memory_space<vmem>>, vector<8x128xi32>
    tpu.vector_store %arg17[%c0_548, %c0_549], %1075 {strides = array<i32>} : memref<8x128xi32, #tpu.memory_space<vmem>>, vector<8x128xi32>,
    %c6_i32 = arith.constant 6 : i32
    %1086 = arith.addi %5, %c6_i32 : i32
    %1087 = arith.sitofp %1086 : i32 to f32
    %c0_550 = arith.constant 0 : index
    %c0_551 = arith.constant 0 : index
    %1088 = vector.load %arg13[%c0_550, %c0_551] : memref<8x128xf32, #tpu.memory_space<vmem>>, vector<8x128xf32>
    %c0_552 = arith.constant 0 : index
    %c0_553 = arith.constant 0 : index
    %1089 = vector.load %arg15[%c0_552, %c0_553] : memref<8x128xf32, #tpu.memory_space<vmem>>, vector<8x128xf32>
    %cst_554 = arith.constant 1.000000e+00 : f32
    %1090 = vector.broadcast %cst_554 : f32 to vector<8x128xf32>
    %1091 = arith.cmpf ogt, %1088, %1090 : vector<8x128xf32>
    %cst_555 = arith.constant 1.025000e+00 : f32
    %1092 = vector.broadcast %cst_555 : f32 to vector<8x128xf32>
    %1093 = arith.cmpf ogt, %1089, %1092 : vector<8x128xf32>
    %1094 = arith.extui %1091 : vector<8x128xi1> to vector<8x128xi32>
    %1095 = arith.sitofp %1094 : vector<8x128xi32> to vector<8x128xf32>
    %c0_556 = arith.constant 0 : index
    %c0_557 = arith.constant 0 : index
    %1096 = vector.load %arg18[%c0_556, %c0_557] : memref<8x128xf32, #tpu.memory_space<vmem>>, vector<8x128xf32>
    %1097 = vector.broadcast %1087 : f32 to vector<8x128xf32>
    %1098 = arith.select %1091, %1097, %1096 : vector<8x128xi1>, vector<8x128xf32>
    %c0_558 = arith.constant 0 : index
    %c0_559 = arith.constant 0 : index
    %1099 = vector.load %arg18[%c0_558, %c0_559] : memref<8x128xf32, #tpu.memory_space<vmem>>, vector<8x128xf32>
    tpu.vector_store %arg18[%c0_558, %c0_559], %1098 {strides = array<i32>} : memref<8x128xf32, #tpu.memory_space<vmem>>, vector<8x128xf32>,
    %1100 = arith.extui %1093 : vector<8x128xi1> to vector<8x128xi32>
    %1101 = arith.sitofp %1100 : vector<8x128xi32> to vector<8x128xf32>
    %cst_560 = arith.constant dense<0xFF800000> : vector<128xf32>
    %1102 = vector.multi_reduction <maximumf>, %1101, %cst_560 [0] : vector<8x128xf32> to vector<128xf32>
    %cst_561 = arith.constant dense<0xFF800000> : vector<128xf32>
    %1103 = vector.multi_reduction <maximumf>, %1098, %cst_561 [0] : vector<8x128xf32> to vector<128xf32>
    %1104 = vector.shape_cast %1103 : vector<128xf32> to vector<1x128xf32>
    %cst_562 = arith.constant dense<0xFF800000> : vector<1xf32>
    %1105 = vector.multi_reduction <maximumf>, %1104, %cst_562 [1] : vector<1x128xf32> to vector<1xf32>
    %1106 = vector.shape_cast %1105 : vector<1xf32> to vector<1x1xf32>
    %1107 = vector.shape_cast %1103 : vector<128xf32> to vector<1x128xf32>
    %1108 = vector.broadcast %1106 : vector<1x1xf32> to vector<1x128xf32>
    %1109 = arith.subf %1108, %1107 : vector<1x128xf32>
    %cst_563 = arith.constant 2.000000e-02 : f32
    %1110 = vector.broadcast %cst_563 : f32 to vector<1x128xf32>
    %1111 = arith.mulf %1109, %1110 : vector<1x128xf32>
    %cst_564 = arith.constant 8.000000e+01 : f32
    %1112 = vector.broadcast %cst_564 : f32 to vector<1x128xf32>
    %1113 = arith.minimumf %1111, %1112 : vector<1x128xf32>
    %1114 = vector.shape_cast %1113 : vector<1x128xf32> to vector<128xf32>
    %cst_565 = arith.constant 0.000000e+00 : f32
    %1115 = vector.broadcast %cst_565 : f32 to vector<128xf32>
    %1116 = arith.subf %1115, %1114 : vector<128xf32>
    %1117 = math.exp %1116 : vector<128xf32>
    %1118 = math.exp %1114 : vector<128xf32>
    %1119 = vector.shape_cast %1117 : vector<128xf32> to vector<1x128xf32>
    %1120 = vector.shape_cast %1118 : vector<128xf32> to vector<1x128xf32>
    %1121 = arith.mulf %1102, %1117 : vector<128xf32>
    %cst_566 = arith.constant 2.500000e-02 : f32
    %1122 = vector.broadcast %cst_566 : f32 to vector<128xf32>
    %1123 = arith.mulf %1122, %1121 : vector<128xf32>
    %1124 = vector.shape_cast %1123 : vector<128xf32> to vector<128x1xf32>
    %1125 = arith.mulf %1102, %1118 : vector<128xf32>
    %cst_567 = arith.constant 2.500000e-02 : f32
    %1126 = vector.broadcast %cst_567 : f32 to vector<128xf32>
    %1127 = arith.mulf %1126, %1125 : vector<128xf32>
    %1128 = vector.shape_cast %1127 : vector<128xf32> to vector<128x1xf32>
    %c0_568 = arith.constant 0 : index
    %c0_569 = arith.constant 0 : index
    %1129 = vector.load %arg12[%c0_568, %c0_569] : memref<128x128xf32, #tpu.memory_space<vmem>>, vector<32x128xf32>
    %1130 = vector.extract_strided_slice %1124 {offsets = [0, 0], sizes = [32, 1], strides = [1, 1]} : vector<128x1xf32> to vector<32x1xf32>
    %1131 = vector.broadcast %1130 : vector<32x1xf32> to vector<32x128xf32>
    %1132 = vector.broadcast %1120 : vector<1x128xf32> to vector<32x128xf32>
    %1133 = arith.mulf %1131, %1132 : vector<32x128xf32>
    %1134 = vector.extract_strided_slice %1128 {offsets = [0, 0], sizes = [32, 1], strides = [1, 1]} : vector<128x1xf32> to vector<32x1xf32>
    %1135 = vector.broadcast %1134 : vector<32x1xf32> to vector<32x128xf32>
    %1136 = vector.broadcast %1119 : vector<1x128xf32> to vector<32x128xf32>
    %1137 = arith.mulf %1135, %1136 : vector<32x128xf32>
    %1138 = arith.maximumf %1133, %1137 : vector<32x128xf32>
    %cst_570 = arith.constant 2.500000e-04 : f32
    %1139 = vector.broadcast %cst_570 : f32 to vector<32x128xf32>
    %1140 = arith.addf %1129, %1139 : vector<32x128xf32>
    %1141 = arith.subf %1140, %1138 : vector<32x128xf32>
    %cst_571 = arith.constant 0.000000e+00 : f32
    %cst_572 = arith.constant 1.000000e+00 : f32
    %1142 = vector.broadcast %cst_571 : f32 to vector<32x128xf32>
    %1143 = arith.maximumf %1142, %1141 : vector<32x128xf32>
    %1144 = vector.broadcast %cst_572 : f32 to vector<32x128xf32>
    %1145 = arith.minimumf %1144, %1143 : vector<32x128xf32>
    %c0_573 = arith.constant 0 : index
    %c0_574 = arith.constant 0 : index
    %1146 = vector.load %arg4[%c0_573, %c0_574] : memref<128x128xf32, #tpu.memory_space<vmem>>, vector<32x128xf32>
    %cst_575 = arith.constant 0.000000e+00 : f32
    %1147 = vector.broadcast %cst_575 : f32 to vector<32x128xf32>
    %1148 = arith.cmpf one, %1146, %1147 : vector<32x128xf32>
    %1149 = arith.select %1148, %1145, %1129 : vector<32x128xi1>, vector<32x128xf32>
    %c0_576 = arith.constant 0 : index
    %c0_577 = arith.constant 0 : index
    %1150 = vector.load %arg12[%c0_576, %c0_577] : memref<128x128xf32, #tpu.memory_space<vmem>>, vector<32x128xf32>
    tpu.vector_store %arg12[%c0_576, %c0_577], %1149 {strides = array<i32>} : memref<128x128xf32, #tpu.memory_space<vmem>>, vector<32x128xf32>,
    %c32_578 = arith.constant 32 : index
    %c0_579 = arith.constant 0 : index
    %1151 = vector.load %arg12[%c32_578, %c0_579] : memref<128x128xf32, #tpu.memory_space<vmem>>, vector<32x128xf32>
    %1152 = vector.extract_strided_slice %1124 {offsets = [32, 0], sizes = [32, 1], strides = [1, 1]} : vector<128x1xf32> to vector<32x1xf32>
    %1153 = vector.broadcast %1152 : vector<32x1xf32> to vector<32x128xf32>
    %1154 = vector.broadcast %1120 : vector<1x128xf32> to vector<32x128xf32>
    %1155 = arith.mulf %1153, %1154 : vector<32x128xf32>
    %1156 = vector.extract_strided_slice %1128 {offsets = [32, 0], sizes = [32, 1], strides = [1, 1]} : vector<128x1xf32> to vector<32x1xf32>
    %1157 = vector.broadcast %1156 : vector<32x1xf32> to vector<32x128xf32>
    %1158 = vector.broadcast %1119 : vector<1x128xf32> to vector<32x128xf32>
    %1159 = arith.mulf %1157, %1158 : vector<32x128xf32>
    %1160 = arith.maximumf %1155, %1159 : vector<32x128xf32>
    %cst_580 = arith.constant 2.500000e-04 : f32
    %1161 = vector.broadcast %cst_580 : f32 to vector<32x128xf32>
    %1162 = arith.addf %1151, %1161 : vector<32x128xf32>
    %1163 = arith.subf %1162, %1160 : vector<32x128xf32>
    %cst_581 = arith.constant 0.000000e+00 : f32
    %cst_582 = arith.constant 1.000000e+00 : f32
    %1164 = vector.broadcast %cst_581 : f32 to vector<32x128xf32>
    %1165 = arith.maximumf %1164, %1163 : vector<32x128xf32>
    %1166 = vector.broadcast %cst_582 : f32 to vector<32x128xf32>
    %1167 = arith.minimumf %1166, %1165 : vector<32x128xf32>
    %c32_583 = arith.constant 32 : index
    %c0_584 = arith.constant 0 : index
    %1168 = vector.load %arg4[%c32_583, %c0_584] : memref<128x128xf32, #tpu.memory_space<vmem>>, vector<32x128xf32>
    %cst_585 = arith.constant 0.000000e+00 : f32
    %1169 = vector.broadcast %cst_585 : f32 to vector<32x128xf32>
    %1170 = arith.cmpf one, %1168, %1169 : vector<32x128xf32>
    %1171 = arith.select %1170, %1167, %1151 : vector<32x128xi1>, vector<32x128xf32>
    %c32_586 = arith.constant 32 : index
    %c0_587 = arith.constant 0 : index
    %1172 = vector.load %arg12[%c32_586, %c0_587] : memref<128x128xf32, #tpu.memory_space<vmem>>, vector<32x128xf32>
    tpu.vector_store %arg12[%c32_586, %c0_587], %1171 {strides = array<i32>} : memref<128x128xf32, #tpu.memory_space<vmem>>, vector<32x128xf32>,
    %c64_588 = arith.constant 64 : index
    %c0_589 = arith.constant 0 : index
    %1173 = vector.load %arg12[%c64_588, %c0_589] : memref<128x128xf32, #tpu.memory_space<vmem>>, vector<32x128xf32>
    %1174 = vector.extract_strided_slice %1124 {offsets = [64, 0], sizes = [32, 1], strides = [1, 1]} : vector<128x1xf32> to vector<32x1xf32>
    %1175 = vector.broadcast %1174 : vector<32x1xf32> to vector<32x128xf32>
    %1176 = vector.broadcast %1120 : vector<1x128xf32> to vector<32x128xf32>
    %1177 = arith.mulf %1175, %1176 : vector<32x128xf32>
    %1178 = vector.extract_strided_slice %1128 {offsets = [64, 0], sizes = [32, 1], strides = [1, 1]} : vector<128x1xf32> to vector<32x1xf32>
    %1179 = vector.broadcast %1178 : vector<32x1xf32> to vector<32x128xf32>
    %1180 = vector.broadcast %1119 : vector<1x128xf32> to vector<32x128xf32>
    %1181 = arith.mulf %1179, %1180 : vector<32x128xf32>
    %1182 = arith.maximumf %1177, %1181 : vector<32x128xf32>
    %cst_590 = arith.constant 2.500000e-04 : f32
    %1183 = vector.broadcast %cst_590 : f32 to vector<32x128xf32>
    %1184 = arith.addf %1173, %1183 : vector<32x128xf32>
    %1185 = arith.subf %1184, %1182 : vector<32x128xf32>
    %cst_591 = arith.constant 0.000000e+00 : f32
    %cst_592 = arith.constant 1.000000e+00 : f32
    %1186 = vector.broadcast %cst_591 : f32 to vector<32x128xf32>
    %1187 = arith.maximumf %1186, %1185 : vector<32x128xf32>
    %1188 = vector.broadcast %cst_592 : f32 to vector<32x128xf32>
    %1189 = arith.minimumf %1188, %1187 : vector<32x128xf32>
    %c64_593 = arith.constant 64 : index
    %c0_594 = arith.constant 0 : index
    %1190 = vector.load %arg4[%c64_593, %c0_594] : memref<128x128xf32, #tpu.memory_space<vmem>>, vector<32x128xf32>
    %cst_595 = arith.constant 0.000000e+00 : f32
    %1191 = vector.broadcast %cst_595 : f32 to vector<32x128xf32>
    %1192 = arith.cmpf one, %1190, %1191 : vector<32x128xf32>
    %1193 = arith.select %1192, %1189, %1173 : vector<32x128xi1>, vector<32x128xf32>
    %c64_596 = arith.constant 64 : index
    %c0_597 = arith.constant 0 : index
    %1194 = vector.load %arg12[%c64_596, %c0_597] : memref<128x128xf32, #tpu.memory_space<vmem>>, vector<32x128xf32>
    tpu.vector_store %arg12[%c64_596, %c0_597], %1193 {strides = array<i32>} : memref<128x128xf32, #tpu.memory_space<vmem>>, vector<32x128xf32>,
    %c96_598 = arith.constant 96 : index
    %c0_599 = arith.constant 0 : index
    %1195 = vector.load %arg12[%c96_598, %c0_599] : memref<128x128xf32, #tpu.memory_space<vmem>>, vector<32x128xf32>
    %1196 = vector.extract_strided_slice %1124 {offsets = [96, 0], sizes = [32, 1], strides = [1, 1]} : vector<128x1xf32> to vector<32x1xf32>
    %1197 = vector.broadcast %1196 : vector<32x1xf32> to vector<32x128xf32>
    %1198 = vector.broadcast %1120 : vector<1x128xf32> to vector<32x128xf32>
    %1199 = arith.mulf %1197, %1198 : vector<32x128xf32>
    %1200 = vector.extract_strided_slice %1128 {offsets = [96, 0], sizes = [32, 1], strides = [1, 1]} : vector<128x1xf32> to vector<32x1xf32>
    %1201 = vector.broadcast %1200 : vector<32x1xf32> to vector<32x128xf32>
    %1202 = vector.broadcast %1119 : vector<1x128xf32> to vector<32x128xf32>
    %1203 = arith.mulf %1201, %1202 : vector<32x128xf32>
    %1204 = arith.maximumf %1199, %1203 : vector<32x128xf32>
    %cst_600 = arith.constant 2.500000e-04 : f32
    %1205 = vector.broadcast %cst_600 : f32 to vector<32x128xf32>
    %1206 = arith.addf %1195, %1205 : vector<32x128xf32>
    %1207 = arith.subf %1206, %1204 : vector<32x128xf32>
    %cst_601 = arith.constant 0.000000e+00 : f32
    %cst_602 = arith.constant 1.000000e+00 : f32
    %1208 = vector.broadcast %cst_601 : f32 to vector<32x128xf32>
    %1209 = arith.maximumf %1208, %1207 : vector<32x128xf32>
    %1210 = vector.broadcast %cst_602 : f32 to vector<32x128xf32>
    %1211 = arith.minimumf %1210, %1209 : vector<32x128xf32>
    %c96_603 = arith.constant 96 : index
    %c0_604 = arith.constant 0 : index
    %1212 = vector.load %arg4[%c96_603, %c0_604] : memref<128x128xf32, #tpu.memory_space<vmem>>, vector<32x128xf32>
    %cst_605 = arith.constant 0.000000e+00 : f32
    %1213 = vector.broadcast %cst_605 : f32 to vector<32x128xf32>
    %1214 = arith.cmpf one, %1212, %1213 : vector<32x128xf32>
    %1215 = arith.select %1214, %1211, %1195 : vector<32x128xi1>, vector<32x128xf32>
    %c96_606 = arith.constant 96 : index
    %c0_607 = arith.constant 0 : index
    %1216 = vector.load %arg12[%c96_606, %c0_607] : memref<128x128xf32, #tpu.memory_space<vmem>>, vector<32x128xf32>
    tpu.vector_store %arg12[%c96_606, %c0_607], %1215 {strides = array<i32>} : memref<128x128xf32, #tpu.memory_space<vmem>>, vector<32x128xf32>,
    %c0_608 = arith.constant 0 : index
    %c0_609 = arith.constant 0 : index
    %1217 = vector.load %arg12[%c0_608, %c0_609] : memref<128x128xf32, #tpu.memory_space<vmem>>, vector<128x128xf32>
    %cst_610 = arith.constant dense<0.000000e+00> : vector<8x128xf32>
    %1218 = tpu.matmul %1095, %1217, %cst_610 {dimension_numbers = #tpu.dot_dimension_numbers<[1], [0], [0], [1], [0, 0, 1, 1], [], []>} : vector<8x128xf32>, vector<128x128xf32>, vector<8x128xf32> -> vector<8x128xf32>
    %cst_611 = arith.constant dense<0.000000e+00> : vector<8x128xf32>
    %1219 = tpu.matmul %1095, %1217, %cst_611 {dimension_numbers = #tpu.dot_dimension_numbers<[1], [1], [0], [0], [0, 0, 1, 0], [], []>} : vector<8x128xf32>, vector<128x128xf32>, vector<8x128xf32> -> vector<8x128xf32>
    %c0_612 = arith.constant 0 : index
    %c0_613 = arith.constant 0 : index
    %1220 = vector.load %arg17[%c0_612, %c0_613] : memref<8x128xi32, #tpu.memory_space<vmem>>, vector<8x128xi32>
    %c0_i32_614 = arith.constant 0 : i32
    %1221 = vector.broadcast %c0_i32_614 : i32 to vector<8x128xi32>
    %1222 = arith.cmpi sgt, %1220, %1221 : vector<8x128xi32>
    %c1_i32_615 = arith.constant 1 : i32
    %1223 = vector.broadcast %c1_i32_615 : i32 to vector<8x128xi32>
    %1224 = arith.subi %1220, %1223 : vector<8x128xi32>
    %1225 = arith.select %1222, %1224, %1220 : vector<8x128xi1>, vector<8x128xi32>
    %c0_i32_616 = arith.constant 0 : i32
    %1226 = vector.broadcast %c0_i32_616 : i32 to vector<8x128xi32>
    %1227 = arith.cmpi eq, %1225, %1226 : vector<8x128xi32>
    %c0_617 = arith.constant 0 : index
    %c0_618 = arith.constant 0 : index
    %1228 = vector.load %arg14[%c0_617, %c0_618] : memref<8x128xf32, #tpu.memory_space<vmem>>, vector<8x128xf32>
    %c0_619 = arith.constant 0 : index
    %c0_620 = arith.constant 0 : index
    %1229 = vector.load %arg16[%c0_619, %c0_620] : memref<8x128xf32, #tpu.memory_space<vmem>>, vector<8x128xf32>
    %1230 = arith.index_cast %c6_i32 : i32 to index
    %c0_621 = arith.constant 0 : index
    %c0_622 = arith.constant 0 : index
    %1231 = vector.load %arg2[%1230, %c0_621, %c0_622] : memref<8x8x128xf32, #tpu.memory_space<vmem>>, vector<1x8x128xf32>
    %1232 = vector.shape_cast %1231 : vector<1x8x128xf32> to vector<8x128xf32>
    %1233 = arith.addf %1232, %1218 : vector<8x128xf32>
    %1234 = arith.addf %1233, %1228 : vector<8x128xf32>
    %1235 = arith.select %1227, %1234, %1228 : vector<8x128xi1>, vector<8x128xf32>
    %1236 = arith.addf %1219, %1229 : vector<8x128xf32>
    %1237 = arith.select %1227, %1236, %1229 : vector<8x128xi1>, vector<8x128xf32>
    %1238 = arith.addf %1235, %1088 : vector<8x128xf32>
    %1239 = arith.select %1227, %1238, %1088 : vector<8x128xi1>, vector<8x128xf32>
    %1240 = arith.addf %1237, %1089 : vector<8x128xf32>
    %1241 = arith.select %1227, %1240, %1089 : vector<8x128xi1>, vector<8x128xf32>
    %cst_623 = arith.constant 0.980198681 : f32
    %1242 = vector.broadcast %cst_623 : f32 to vector<8x128xf32>
    %1243 = arith.mulf %1239, %1242 : vector<8x128xf32>
    %cst_624 = arith.constant 0.36787945 : f32
    %1244 = vector.broadcast %cst_624 : f32 to vector<8x128xf32>
    %1245 = arith.mulf %1235, %1244 : vector<8x128xf32>
    %cst_625 = arith.constant 0.980198681 : f32
    %1246 = vector.broadcast %cst_625 : f32 to vector<8x128xf32>
    %1247 = arith.mulf %1241, %1246 : vector<8x128xf32>
    %cst_626 = arith.constant 0.36787945 : f32
    %1248 = vector.broadcast %cst_626 : f32 to vector<8x128xf32>
    %1249 = arith.mulf %1237, %1248 : vector<8x128xf32>
    %cst_627 = arith.constant 0.000000e+00 : f32
    %1250 = vector.broadcast %cst_627 : f32 to vector<8x128xf32>
    %1251 = arith.select %1091, %1250, %1243 : vector<8x128xi1>, vector<8x128xf32>
    %cst_628 = arith.constant 0.000000e+00 : f32
    %1252 = vector.broadcast %cst_628 : f32 to vector<8x128xf32>
    %1253 = arith.select %1093, %1252, %1247 : vector<8x128xi1>, vector<8x128xf32>
    %c2_i32_629 = arith.constant 2 : i32
    %1254 = vector.broadcast %c2_i32_629 : i32 to vector<8x128xi32>
    %1255 = arith.select %1091, %1254, %1225 : vector<8x128xi1>, vector<8x128xi32>
    %1256 = arith.truncf %1095 : vector<8x128xf32> to vector<8x128xbf16>
    %1257 = arith.index_cast %c6_i32 : i32 to index
    %c0_630 = arith.constant 0 : index
    %c0_631 = arith.constant 0 : index
    %1258 = vector.load %arg11[%1257, %c0_630, %c0_631] : memref<8x8x128xbf16, #tpu.memory_space<vmem>>, vector<1x8x128xbf16>
    %1259 = vector.shape_cast %1258 : vector<1x8x128xbf16> to vector<8x128xbf16>
    %1260 = vector.shape_cast %1256 : vector<8x128xbf16> to vector<1x8x128xbf16>
    tpu.vector_store %arg11[%1257, %c0_630, %c0_631], %1260 {strides = array<i32>} : memref<8x8x128xbf16, #tpu.memory_space<vmem>>, vector<1x8x128xbf16>,
    %c0_632 = arith.constant 0 : index
    %c0_633 = arith.constant 0 : index
    %1261 = vector.load %arg13[%c0_632, %c0_633] : memref<8x128xf32, #tpu.memory_space<vmem>>, vector<8x128xf32>
    tpu.vector_store %arg13[%c0_632, %c0_633], %1251 {strides = array<i32>} : memref<8x128xf32, #tpu.memory_space<vmem>>, vector<8x128xf32>,
    %c0_634 = arith.constant 0 : index
    %c0_635 = arith.constant 0 : index
    %1262 = vector.load %arg14[%c0_634, %c0_635] : memref<8x128xf32, #tpu.memory_space<vmem>>, vector<8x128xf32>
    tpu.vector_store %arg14[%c0_634, %c0_635], %1245 {strides = array<i32>} : memref<8x128xf32, #tpu.memory_space<vmem>>, vector<8x128xf32>,
    %c0_636 = arith.constant 0 : index
    %c0_637 = arith.constant 0 : index
    %1263 = vector.load %arg15[%c0_636, %c0_637] : memref<8x128xf32, #tpu.memory_space<vmem>>, vector<8x128xf32>
    tpu.vector_store %arg15[%c0_636, %c0_637], %1253 {strides = array<i32>} : memref<8x128xf32, #tpu.memory_space<vmem>>, vector<8x128xf32>,
    %c0_638 = arith.constant 0 : index
    %c0_639 = arith.constant 0 : index
    %1264 = vector.load %arg16[%c0_638, %c0_639] : memref<8x128xf32, #tpu.memory_space<vmem>>, vector<8x128xf32>
    tpu.vector_store %arg16[%c0_638, %c0_639], %1249 {strides = array<i32>} : memref<8x128xf32, #tpu.memory_space<vmem>>, vector<8x128xf32>,
    %c0_640 = arith.constant 0 : index
    %c0_641 = arith.constant 0 : index
    %1265 = vector.load %arg17[%c0_640, %c0_641] : memref<8x128xi32, #tpu.memory_space<vmem>>, vector<8x128xi32>
    tpu.vector_store %arg17[%c0_640, %c0_641], %1255 {strides = array<i32>} : memref<8x128xi32, #tpu.memory_space<vmem>>, vector<8x128xi32>,
    %c7_i32 = arith.constant 7 : i32
    %1266 = arith.addi %5, %c7_i32 : i32
    %1267 = arith.sitofp %1266 : i32 to f32
    %c0_642 = arith.constant 0 : index
    %c0_643 = arith.constant 0 : index
    %1268 = vector.load %arg13[%c0_642, %c0_643] : memref<8x128xf32, #tpu.memory_space<vmem>>, vector<8x128xf32>
    %c0_644 = arith.constant 0 : index
    %c0_645 = arith.constant 0 : index
    %1269 = vector.load %arg15[%c0_644, %c0_645] : memref<8x128xf32, #tpu.memory_space<vmem>>, vector<8x128xf32>
    %cst_646 = arith.constant 1.000000e+00 : f32
    %1270 = vector.broadcast %cst_646 : f32 to vector<8x128xf32>
    %1271 = arith.cmpf ogt, %1268, %1270 : vector<8x128xf32>
    %cst_647 = arith.constant 1.025000e+00 : f32
    %1272 = vector.broadcast %cst_647 : f32 to vector<8x128xf32>
    %1273 = arith.cmpf ogt, %1269, %1272 : vector<8x128xf32>
    %1274 = arith.extui %1271 : vector<8x128xi1> to vector<8x128xi32>
    %1275 = arith.sitofp %1274 : vector<8x128xi32> to vector<8x128xf32>
    %c0_648 = arith.constant 0 : index
    %c0_649 = arith.constant 0 : index
    %1276 = vector.load %arg18[%c0_648, %c0_649] : memref<8x128xf32, #tpu.memory_space<vmem>>, vector<8x128xf32>
    %1277 = vector.broadcast %1267 : f32 to vector<8x128xf32>
    %1278 = arith.select %1271, %1277, %1276 : vector<8x128xi1>, vector<8x128xf32>
    %c0_650 = arith.constant 0 : index
    %c0_651 = arith.constant 0 : index
    %1279 = vector.load %arg18[%c0_650, %c0_651] : memref<8x128xf32, #tpu.memory_space<vmem>>, vector<8x128xf32>
    tpu.vector_store %arg18[%c0_650, %c0_651], %1278 {strides = array<i32>} : memref<8x128xf32, #tpu.memory_space<vmem>>, vector<8x128xf32>,
    %1280 = arith.extui %1273 : vector<8x128xi1> to vector<8x128xi32>
    %1281 = arith.sitofp %1280 : vector<8x128xi32> to vector<8x128xf32>
    %cst_652 = arith.constant dense<0xFF800000> : vector<128xf32>
    %1282 = vector.multi_reduction <maximumf>, %1281, %cst_652 [0] : vector<8x128xf32> to vector<128xf32>
    %cst_653 = arith.constant dense<0xFF800000> : vector<128xf32>
    %1283 = vector.multi_reduction <maximumf>, %1278, %cst_653 [0] : vector<8x128xf32> to vector<128xf32>
    %1284 = vector.shape_cast %1283 : vector<128xf32> to vector<1x128xf32>
    %cst_654 = arith.constant dense<0xFF800000> : vector<1xf32>
    %1285 = vector.multi_reduction <maximumf>, %1284, %cst_654 [1] : vector<1x128xf32> to vector<1xf32>
    %1286 = vector.shape_cast %1285 : vector<1xf32> to vector<1x1xf32>
    %1287 = vector.shape_cast %1283 : vector<128xf32> to vector<1x128xf32>
    %1288 = vector.broadcast %1286 : vector<1x1xf32> to vector<1x128xf32>
    %1289 = arith.subf %1288, %1287 : vector<1x128xf32>
    %cst_655 = arith.constant 2.000000e-02 : f32
    %1290 = vector.broadcast %cst_655 : f32 to vector<1x128xf32>
    %1291 = arith.mulf %1289, %1290 : vector<1x128xf32>
    %cst_656 = arith.constant 8.000000e+01 : f32
    %1292 = vector.broadcast %cst_656 : f32 to vector<1x128xf32>
    %1293 = arith.minimumf %1291, %1292 : vector<1x128xf32>
    %1294 = vector.shape_cast %1293 : vector<1x128xf32> to vector<128xf32>
    %cst_657 = arith.constant 0.000000e+00 : f32
    %1295 = vector.broadcast %cst_657 : f32 to vector<128xf32>
    %1296 = arith.subf %1295, %1294 : vector<128xf32>
    %1297 = math.exp %1296 : vector<128xf32>
    %1298 = math.exp %1294 : vector<128xf32>
    %1299 = vector.shape_cast %1297 : vector<128xf32> to vector<1x128xf32>
    %1300 = vector.shape_cast %1298 : vector<128xf32> to vector<1x128xf32>
    %1301 = arith.mulf %1282, %1297 : vector<128xf32>
    %cst_658 = arith.constant 2.500000e-02 : f32
    %1302 = vector.broadcast %cst_658 : f32 to vector<128xf32>
    %1303 = arith.mulf %1302, %1301 : vector<128xf32>
    %1304 = vector.shape_cast %1303 : vector<128xf32> to vector<128x1xf32>
    %1305 = arith.mulf %1282, %1298 : vector<128xf32>
    %cst_659 = arith.constant 2.500000e-02 : f32
    %1306 = vector.broadcast %cst_659 : f32 to vector<128xf32>
    %1307 = arith.mulf %1306, %1305 : vector<128xf32>
    %1308 = vector.shape_cast %1307 : vector<128xf32> to vector<128x1xf32>
    %c0_660 = arith.constant 0 : index
    %c0_661 = arith.constant 0 : index
    %1309 = vector.load %arg12[%c0_660, %c0_661] : memref<128x128xf32, #tpu.memory_space<vmem>>, vector<32x128xf32>
    %1310 = vector.extract_strided_slice %1304 {offsets = [0, 0], sizes = [32, 1], strides = [1, 1]} : vector<128x1xf32> to vector<32x1xf32>
    %1311 = vector.broadcast %1310 : vector<32x1xf32> to vector<32x128xf32>
    %1312 = vector.broadcast %1300 : vector<1x128xf32> to vector<32x128xf32>
    %1313 = arith.mulf %1311, %1312 : vector<32x128xf32>
    %1314 = vector.extract_strided_slice %1308 {offsets = [0, 0], sizes = [32, 1], strides = [1, 1]} : vector<128x1xf32> to vector<32x1xf32>
    %1315 = vector.broadcast %1314 : vector<32x1xf32> to vector<32x128xf32>
    %1316 = vector.broadcast %1299 : vector<1x128xf32> to vector<32x128xf32>
    %1317 = arith.mulf %1315, %1316 : vector<32x128xf32>
    %1318 = arith.maximumf %1313, %1317 : vector<32x128xf32>
    %cst_662 = arith.constant 2.500000e-04 : f32
    %1319 = vector.broadcast %cst_662 : f32 to vector<32x128xf32>
    %1320 = arith.addf %1309, %1319 : vector<32x128xf32>
    %1321 = arith.subf %1320, %1318 : vector<32x128xf32>
    %cst_663 = arith.constant 0.000000e+00 : f32
    %cst_664 = arith.constant 1.000000e+00 : f32
    %1322 = vector.broadcast %cst_663 : f32 to vector<32x128xf32>
    %1323 = arith.maximumf %1322, %1321 : vector<32x128xf32>
    %1324 = vector.broadcast %cst_664 : f32 to vector<32x128xf32>
    %1325 = arith.minimumf %1324, %1323 : vector<32x128xf32>
    %c0_665 = arith.constant 0 : index
    %c0_666 = arith.constant 0 : index
    %1326 = vector.load %arg4[%c0_665, %c0_666] : memref<128x128xf32, #tpu.memory_space<vmem>>, vector<32x128xf32>
    %cst_667 = arith.constant 0.000000e+00 : f32
    %1327 = vector.broadcast %cst_667 : f32 to vector<32x128xf32>
    %1328 = arith.cmpf one, %1326, %1327 : vector<32x128xf32>
    %1329 = arith.select %1328, %1325, %1309 : vector<32x128xi1>, vector<32x128xf32>
    %c0_668 = arith.constant 0 : index
    %c0_669 = arith.constant 0 : index
    %1330 = vector.load %arg12[%c0_668, %c0_669] : memref<128x128xf32, #tpu.memory_space<vmem>>, vector<32x128xf32>
    tpu.vector_store %arg12[%c0_668, %c0_669], %1329 {strides = array<i32>} : memref<128x128xf32, #tpu.memory_space<vmem>>, vector<32x128xf32>,
    %c32_670 = arith.constant 32 : index
    %c0_671 = arith.constant 0 : index
    %1331 = vector.load %arg12[%c32_670, %c0_671] : memref<128x128xf32, #tpu.memory_space<vmem>>, vector<32x128xf32>
    %1332 = vector.extract_strided_slice %1304 {offsets = [32, 0], sizes = [32, 1], strides = [1, 1]} : vector<128x1xf32> to vector<32x1xf32>
    %1333 = vector.broadcast %1332 : vector<32x1xf32> to vector<32x128xf32>
    %1334 = vector.broadcast %1300 : vector<1x128xf32> to vector<32x128xf32>
    %1335 = arith.mulf %1333, %1334 : vector<32x128xf32>
    %1336 = vector.extract_strided_slice %1308 {offsets = [32, 0], sizes = [32, 1], strides = [1, 1]} : vector<128x1xf32> to vector<32x1xf32>
    %1337 = vector.broadcast %1336 : vector<32x1xf32> to vector<32x128xf32>
    %1338 = vector.broadcast %1299 : vector<1x128xf32> to vector<32x128xf32>
    %1339 = arith.mulf %1337, %1338 : vector<32x128xf32>
    %1340 = arith.maximumf %1335, %1339 : vector<32x128xf32>
    %cst_672 = arith.constant 2.500000e-04 : f32
    %1341 = vector.broadcast %cst_672 : f32 to vector<32x128xf32>
    %1342 = arith.addf %1331, %1341 : vector<32x128xf32>
    %1343 = arith.subf %1342, %1340 : vector<32x128xf32>
    %cst_673 = arith.constant 0.000000e+00 : f32
    %cst_674 = arith.constant 1.000000e+00 : f32
    %1344 = vector.broadcast %cst_673 : f32 to vector<32x128xf32>
    %1345 = arith.maximumf %1344, %1343 : vector<32x128xf32>
    %1346 = vector.broadcast %cst_674 : f32 to vector<32x128xf32>
    %1347 = arith.minimumf %1346, %1345 : vector<32x128xf32>
    %c32_675 = arith.constant 32 : index
    %c0_676 = arith.constant 0 : index
    %1348 = vector.load %arg4[%c32_675, %c0_676] : memref<128x128xf32, #tpu.memory_space<vmem>>, vector<32x128xf32>
    %cst_677 = arith.constant 0.000000e+00 : f32
    %1349 = vector.broadcast %cst_677 : f32 to vector<32x128xf32>
    %1350 = arith.cmpf one, %1348, %1349 : vector<32x128xf32>
    %1351 = arith.select %1350, %1347, %1331 : vector<32x128xi1>, vector<32x128xf32>
    %c32_678 = arith.constant 32 : index
    %c0_679 = arith.constant 0 : index
    %1352 = vector.load %arg12[%c32_678, %c0_679] : memref<128x128xf32, #tpu.memory_space<vmem>>, vector<32x128xf32>
    tpu.vector_store %arg12[%c32_678, %c0_679], %1351 {strides = array<i32>} : memref<128x128xf32, #tpu.memory_space<vmem>>, vector<32x128xf32>,
    %c64_680 = arith.constant 64 : index
    %c0_681 = arith.constant 0 : index
    %1353 = vector.load %arg12[%c64_680, %c0_681] : memref<128x128xf32, #tpu.memory_space<vmem>>, vector<32x128xf32>
    %1354 = vector.extract_strided_slice %1304 {offsets = [64, 0], sizes = [32, 1], strides = [1, 1]} : vector<128x1xf32> to vector<32x1xf32>
    %1355 = vector.broadcast %1354 : vector<32x1xf32> to vector<32x128xf32>
    %1356 = vector.broadcast %1300 : vector<1x128xf32> to vector<32x128xf32>
    %1357 = arith.mulf %1355, %1356 : vector<32x128xf32>
    %1358 = vector.extract_strided_slice %1308 {offsets = [64, 0], sizes = [32, 1], strides = [1, 1]} : vector<128x1xf32> to vector<32x1xf32>
    %1359 = vector.broadcast %1358 : vector<32x1xf32> to vector<32x128xf32>
    %1360 = vector.broadcast %1299 : vector<1x128xf32> to vector<32x128xf32>
    %1361 = arith.mulf %1359, %1360 : vector<32x128xf32>
    %1362 = arith.maximumf %1357, %1361 : vector<32x128xf32>
    %cst_682 = arith.constant 2.500000e-04 : f32
    %1363 = vector.broadcast %cst_682 : f32 to vector<32x128xf32>
    %1364 = arith.addf %1353, %1363 : vector<32x128xf32>
    %1365 = arith.subf %1364, %1362 : vector<32x128xf32>
    %cst_683 = arith.constant 0.000000e+00 : f32
    %cst_684 = arith.constant 1.000000e+00 : f32
    %1366 = vector.broadcast %cst_683 : f32 to vector<32x128xf32>
    %1367 = arith.maximumf %1366, %1365 : vector<32x128xf32>
    %1368 = vector.broadcast %cst_684 : f32 to vector<32x128xf32>
    %1369 = arith.minimumf %1368, %1367 : vector<32x128xf32>
    %c64_685 = arith.constant 64 : index
    %c0_686 = arith.constant 0 : index
    %1370 = vector.load %arg4[%c64_685, %c0_686] : memref<128x128xf32, #tpu.memory_space<vmem>>, vector<32x128xf32>
    %cst_687 = arith.constant 0.000000e+00 : f32
    %1371 = vector.broadcast %cst_687 : f32 to vector<32x128xf32>
    %1372 = arith.cmpf one, %1370, %1371 : vector<32x128xf32>
    %1373 = arith.select %1372, %1369, %1353 : vector<32x128xi1>, vector<32x128xf32>
    %c64_688 = arith.constant 64 : index
    %c0_689 = arith.constant 0 : index
    %1374 = vector.load %arg12[%c64_688, %c0_689] : memref<128x128xf32, #tpu.memory_space<vmem>>, vector<32x128xf32>
    tpu.vector_store %arg12[%c64_688, %c0_689], %1373 {strides = array<i32>} : memref<128x128xf32, #tpu.memory_space<vmem>>, vector<32x128xf32>,
    %c96_690 = arith.constant 96 : index
    %c0_691 = arith.constant 0 : index
    %1375 = vector.load %arg12[%c96_690, %c0_691] : memref<128x128xf32, #tpu.memory_space<vmem>>, vector<32x128xf32>
    %1376 = vector.extract_strided_slice %1304 {offsets = [96, 0], sizes = [32, 1], strides = [1, 1]} : vector<128x1xf32> to vector<32x1xf32>
    %1377 = vector.broadcast %1376 : vector<32x1xf32> to vector<32x128xf32>
    %1378 = vector.broadcast %1300 : vector<1x128xf32> to vector<32x128xf32>
    %1379 = arith.mulf %1377, %1378 : vector<32x128xf32>
    %1380 = vector.extract_strided_slice %1308 {offsets = [96, 0], sizes = [32, 1], strides = [1, 1]} : vector<128x1xf32> to vector<32x1xf32>
    %1381 = vector.broadcast %1380 : vector<32x1xf32> to vector<32x128xf32>
    %1382 = vector.broadcast %1299 : vector<1x128xf32> to vector<32x128xf32>
    %1383 = arith.mulf %1381, %1382 : vector<32x128xf32>
    %1384 = arith.maximumf %1379, %1383 : vector<32x128xf32>
    %cst_692 = arith.constant 2.500000e-04 : f32
    %1385 = vector.broadcast %cst_692 : f32 to vector<32x128xf32>
    %1386 = arith.addf %1375, %1385 : vector<32x128xf32>
    %1387 = arith.subf %1386, %1384 : vector<32x128xf32>
    %cst_693 = arith.constant 0.000000e+00 : f32
    %cst_694 = arith.constant 1.000000e+00 : f32
    %1388 = vector.broadcast %cst_693 : f32 to vector<32x128xf32>
    %1389 = arith.maximumf %1388, %1387 : vector<32x128xf32>
    %1390 = vector.broadcast %cst_694 : f32 to vector<32x128xf32>
    %1391 = arith.minimumf %1390, %1389 : vector<32x128xf32>
    %c96_695 = arith.constant 96 : index
    %c0_696 = arith.constant 0 : index
    %1392 = vector.load %arg4[%c96_695, %c0_696] : memref<128x128xf32, #tpu.memory_space<vmem>>, vector<32x128xf32>
    %cst_697 = arith.constant 0.000000e+00 : f32
    %1393 = vector.broadcast %cst_697 : f32 to vector<32x128xf32>
    %1394 = arith.cmpf one, %1392, %1393 : vector<32x128xf32>
    %1395 = arith.select %1394, %1391, %1375 : vector<32x128xi1>, vector<32x128xf32>
    %c96_698 = arith.constant 96 : index
    %c0_699 = arith.constant 0 : index
    %1396 = vector.load %arg12[%c96_698, %c0_699] : memref<128x128xf32, #tpu.memory_space<vmem>>, vector<32x128xf32>
    tpu.vector_store %arg12[%c96_698, %c0_699], %1395 {strides = array<i32>} : memref<128x128xf32, #tpu.memory_space<vmem>>, vector<32x128xf32>,
    %c0_700 = arith.constant 0 : index
    %c0_701 = arith.constant 0 : index
    %1397 = vector.load %arg12[%c0_700, %c0_701] : memref<128x128xf32, #tpu.memory_space<vmem>>, vector<128x128xf32>
    %cst_702 = arith.constant dense<0.000000e+00> : vector<8x128xf32>
    %1398 = tpu.matmul %1275, %1397, %cst_702 {dimension_numbers = #tpu.dot_dimension_numbers<[1], [0], [0], [1], [0, 0, 1, 1], [], []>} : vector<8x128xf32>, vector<128x128xf32>, vector<8x128xf32> -> vector<8x128xf32>
    %cst_703 = arith.constant dense<0.000000e+00> : vector<8x128xf32>
    %1399 = tpu.matmul %1275, %1397, %cst_703 {dimension_numbers = #tpu.dot_dimension_numbers<[1], [1], [0], [0], [0, 0, 1, 0], [], []>} : vector<8x128xf32>, vector<128x128xf32>, vector<8x128xf32> -> vector<8x128xf32>
    %c0_704 = arith.constant 0 : index
    %c0_705 = arith.constant 0 : index
    %1400 = vector.load %arg17[%c0_704, %c0_705] : memref<8x128xi32, #tpu.memory_space<vmem>>, vector<8x128xi32>
    %c0_i32_706 = arith.constant 0 : i32
    %1401 = vector.broadcast %c0_i32_706 : i32 to vector<8x128xi32>
    %1402 = arith.cmpi sgt, %1400, %1401 : vector<8x128xi32>
    %c1_i32_707 = arith.constant 1 : i32
    %1403 = vector.broadcast %c1_i32_707 : i32 to vector<8x128xi32>
    %1404 = arith.subi %1400, %1403 : vector<8x128xi32>
    %1405 = arith.select %1402, %1404, %1400 : vector<8x128xi1>, vector<8x128xi32>
    %c0_i32_708 = arith.constant 0 : i32
    %1406 = vector.broadcast %c0_i32_708 : i32 to vector<8x128xi32>
    %1407 = arith.cmpi eq, %1405, %1406 : vector<8x128xi32>
    %c0_709 = arith.constant 0 : index
    %c0_710 = arith.constant 0 : index
    %1408 = vector.load %arg14[%c0_709, %c0_710] : memref<8x128xf32, #tpu.memory_space<vmem>>, vector<8x128xf32>
    %c0_711 = arith.constant 0 : index
    %c0_712 = arith.constant 0 : index
    %1409 = vector.load %arg16[%c0_711, %c0_712] : memref<8x128xf32, #tpu.memory_space<vmem>>, vector<8x128xf32>
    %1410 = arith.index_cast %c7_i32 : i32 to index
    %c0_713 = arith.constant 0 : index
    %c0_714 = arith.constant 0 : index
    %1411 = vector.load %arg2[%1410, %c0_713, %c0_714] : memref<8x8x128xf32, #tpu.memory_space<vmem>>, vector<1x8x128xf32>
    %1412 = vector.shape_cast %1411 : vector<1x8x128xf32> to vector<8x128xf32>
    %1413 = arith.addf %1412, %1398 : vector<8x128xf32>
    %1414 = arith.addf %1413, %1408 : vector<8x128xf32>
    %1415 = arith.select %1407, %1414, %1408 : vector<8x128xi1>, vector<8x128xf32>
    %1416 = arith.addf %1399, %1409 : vector<8x128xf32>
    %1417 = arith.select %1407, %1416, %1409 : vector<8x128xi1>, vector<8x128xf32>
    %1418 = arith.addf %1415, %1268 : vector<8x128xf32>
    %1419 = arith.select %1407, %1418, %1268 : vector<8x128xi1>, vector<8x128xf32>
    %1420 = arith.addf %1417, %1269 : vector<8x128xf32>
    %1421 = arith.select %1407, %1420, %1269 : vector<8x128xi1>, vector<8x128xf32>
    %cst_715 = arith.constant 0.980198681 : f32
    %1422 = vector.broadcast %cst_715 : f32 to vector<8x128xf32>
    %1423 = arith.mulf %1419, %1422 : vector<8x128xf32>
    %cst_716 = arith.constant 0.36787945 : f32
    %1424 = vector.broadcast %cst_716 : f32 to vector<8x128xf32>
    %1425 = arith.mulf %1415, %1424 : vector<8x128xf32>
    %cst_717 = arith.constant 0.980198681 : f32
    %1426 = vector.broadcast %cst_717 : f32 to vector<8x128xf32>
    %1427 = arith.mulf %1421, %1426 : vector<8x128xf32>
    %cst_718 = arith.constant 0.36787945 : f32
    %1428 = vector.broadcast %cst_718 : f32 to vector<8x128xf32>
    %1429 = arith.mulf %1417, %1428 : vector<8x128xf32>
    %cst_719 = arith.constant 0.000000e+00 : f32
    %1430 = vector.broadcast %cst_719 : f32 to vector<8x128xf32>
    %1431 = arith.select %1271, %1430, %1423 : vector<8x128xi1>, vector<8x128xf32>
    %cst_720 = arith.constant 0.000000e+00 : f32
    %1432 = vector.broadcast %cst_720 : f32 to vector<8x128xf32>
    %1433 = arith.select %1273, %1432, %1427 : vector<8x128xi1>, vector<8x128xf32>
    %c2_i32_721 = arith.constant 2 : i32
    %1434 = vector.broadcast %c2_i32_721 : i32 to vector<8x128xi32>
    %1435 = arith.select %1271, %1434, %1405 : vector<8x128xi1>, vector<8x128xi32>
    %1436 = arith.truncf %1275 : vector<8x128xf32> to vector<8x128xbf16>
    %1437 = arith.index_cast %c7_i32 : i32 to index
    %c0_722 = arith.constant 0 : index
    %c0_723 = arith.constant 0 : index
    %1438 = vector.load %arg11[%1437, %c0_722, %c0_723] : memref<8x8x128xbf16, #tpu.memory_space<vmem>>, vector<1x8x128xbf16>
    %1439 = vector.shape_cast %1438 : vector<1x8x128xbf16> to vector<8x128xbf16>
    %1440 = vector.shape_cast %1436 : vector<8x128xbf16> to vector<1x8x128xbf16>
    tpu.vector_store %arg11[%1437, %c0_722, %c0_723], %1440 {strides = array<i32>} : memref<8x8x128xbf16, #tpu.memory_space<vmem>>, vector<1x8x128xbf16>,
    %c0_724 = arith.constant 0 : index
    %c0_725 = arith.constant 0 : index
    %1441 = vector.load %arg13[%c0_724, %c0_725] : memref<8x128xf32, #tpu.memory_space<vmem>>, vector<8x128xf32>
    tpu.vector_store %arg13[%c0_724, %c0_725], %1431 {strides = array<i32>} : memref<8x128xf32, #tpu.memory_space<vmem>>, vector<8x128xf32>,
    %c0_726 = arith.constant 0 : index
    %c0_727 = arith.constant 0 : index
    %1442 = vector.load %arg14[%c0_726, %c0_727] : memref<8x128xf32, #tpu.memory_space<vmem>>, vector<8x128xf32>
    tpu.vector_store %arg14[%c0_726, %c0_727], %1425 {strides = array<i32>} : memref<8x128xf32, #tpu.memory_space<vmem>>, vector<8x128xf32>,
    %c0_728 = arith.constant 0 : index
    %c0_729 = arith.constant 0 : index
    %1443 = vector.load %arg15[%c0_728, %c0_729] : memref<8x128xf32, #tpu.memory_space<vmem>>, vector<8x128xf32>
    tpu.vector_store %arg15[%c0_728, %c0_729], %1433 {strides = array<i32>} : memref<8x128xf32, #tpu.memory_space<vmem>>, vector<8x128xf32>,
    %c0_730 = arith.constant 0 : index
    %c0_731 = arith.constant 0 : index
    %1444 = vector.load %arg16[%c0_730, %c0_731] : memref<8x128xf32, #tpu.memory_space<vmem>>, vector<8x128xf32>
    tpu.vector_store %arg16[%c0_730, %c0_731], %1429 {strides = array<i32>} : memref<8x128xf32, #tpu.memory_space<vmem>>, vector<8x128xf32>,
    %c0_732 = arith.constant 0 : index
    %c0_733 = arith.constant 0 : index
    %1445 = vector.load %arg17[%c0_732, %c0_733] : memref<8x128xi32, #tpu.memory_space<vmem>>, vector<8x128xi32>
    tpu.vector_store %arg17[%c0_732, %c0_733], %1435 {strides = array<i32>} : memref<8x128xi32, #tpu.memory_space<vmem>>, vector<8x128xi32>,
    %c8_i32_734 = arith.constant 8 : i32
    return
  }
  func.func @transform_0(%arg0: i32, %arg1: memref<1xi32, #tpu.memory_space<smem>>) -> (i32, i32, i32) {
    %c0_i32 = arith.constant 0 : i32
    %c0_i32_0 = arith.constant 0 : i32
    %c0_i32_1 = arith.constant 0 : i32
    return %arg0, %c0_i32, %c0_i32_0 : i32, i32, i32
  }
  func.func @transform_1(%arg0: i32, %arg1: memref<1xi32, #tpu.memory_space<smem>>) -> (i32, i32) {
    %c0_i32 = arith.constant 0 : i32
    %c0_i32_0 = arith.constant 0 : i32
    %c0_i32_1 = arith.constant 0 : i32
    return %c0_i32, %c0_i32_0 : i32, i32
  }
  func.func @transform_2(%arg0: i32, %arg1: memref<1xi32, #tpu.memory_space<smem>>) -> (i32, i32) {
    %c0_i32 = arith.constant 0 : i32
    %c0_i32_0 = arith.constant 0 : i32
    %c0_i32_1 = arith.constant 0 : i32
    return %c0_i32, %c0_i32_0 : i32, i32
  }
  func.func @transform_3(%arg0: i32, %arg1: memref<1xi32, #tpu.memory_space<smem>>) -> (i32, i32) {
    %c0_i32 = arith.constant 0 : i32
    %c0_i32_0 = arith.constant 0 : i32
    %c0_i32_1 = arith.constant 0 : i32
    return %c0_i32, %c0_i32_0 : i32, i32
  }
  func.func @transform_4(%arg0: i32, %arg1: memref<1xi32, #tpu.memory_space<smem>>) -> (i32, i32) {
    %c0_i32 = arith.constant 0 : i32
    %c0_i32_0 = arith.constant 0 : i32
    %c0_i32_1 = arith.constant 0 : i32
    return %c0_i32, %c0_i32_0 : i32, i32
  }
  func.func @transform_5(%arg0: i32, %arg1: memref<1xi32, #tpu.memory_space<smem>>) -> (i32, i32) {
    %c0_i32 = arith.constant 0 : i32
    %c0_i32_0 = arith.constant 0 : i32
    %c0_i32_1 = arith.constant 0 : i32
    return %c0_i32, %c0_i32_0 : i32, i32
  }
  func.func @transform_6(%arg0: i32, %arg1: memref<1xi32, #tpu.memory_space<smem>>) -> (i32, i32) {
    %c0_i32 = arith.constant 0 : i32
    %c0_i32_0 = arith.constant 0 : i32
    %c0_i32_1 = arith.constant 0 : i32
    return %c0_i32, %c0_i32_0 : i32, i32
  }
  func.func @transform_7(%arg0: i32, %arg1: memref<1xi32, #tpu.memory_space<smem>>) -> (i32, i32) {
    %c0_i32 = arith.constant 0 : i32
    %c0_i32_0 = arith.constant 0 : i32
    %c0_i32_1 = arith.constant 0 : i32
    return %c0_i32, %c0_i32_0 : i32, i32
  }
  func.func @transform_8(%arg0: i32, %arg1: memref<1xi32, #tpu.memory_space<smem>>) -> (i32, i32) {
    %c0_i32 = arith.constant 0 : i32
    %c0_i32_0 = arith.constant 0 : i32
    %c0_i32_1 = arith.constant 0 : i32
    return %c0_i32, %c0_i32_0 : i32, i32
  }
  func.func @transform_9(%arg0: i32, %arg1: memref<1xi32, #tpu.memory_space<smem>>) -> (i32, i32, i32) {
    %c0_i32 = arith.constant 0 : i32
    %c0_i32_0 = arith.constant 0 : i32
    %c0_i32_1 = arith.constant 0 : i32
    return %arg0, %c0_i32, %c0_i32_0 : i32, i32, i32
  }
  func.func @transform_10(%arg0: i32, %arg1: memref<1xi32, #tpu.memory_space<smem>>) -> (i32, i32) {
    %c0_i32 = arith.constant 0 : i32
    %c0_i32_0 = arith.constant 0 : i32
    %c0_i32_1 = arith.constant 0 : i32
    return %c0_i32, %c0_i32_0 : i32, i32
  }
  func.func @transform_11(%arg0: i32, %arg1: memref<1xi32, #tpu.memory_space<smem>>) -> (i32, i32) {
    %c0_i32 = arith.constant 0 : i32
    %c0_i32_0 = arith.constant 0 : i32
    %c0_i32_1 = arith.constant 0 : i32
    return %c0_i32, %c0_i32_0 : i32, i32
  }
  func.func @transform_12(%arg0: i32, %arg1: memref<1xi32, #tpu.memory_space<smem>>) -> (i32, i32) {
    %c0_i32 = arith.constant 0 : i32
    %c0_i32_0 = arith.constant 0 : i32
    %c0_i32_1 = arith.constant 0 : i32
    return %c0_i32, %c0_i32_0 : i32, i32
  }
  func.func @transform_13(%arg0: i32, %arg1: memref<1xi32, #tpu.memory_space<smem>>) -> (i32, i32) {
    %c0_i32 = arith.constant 0 : i32
    %c0_i32_0 = arith.constant 0 : i32
    %c0_i32_1 = arith.constant 0 : i32
    return %c0_i32, %c0_i32_0 : i32, i32
  }
  func.func @transform_14(%arg0: i32, %arg1: memref<1xi32, #tpu.memory_space<smem>>) -> (i32, i32) {
    %c0_i32 = arith.constant 0 : i32
    %c0_i32_0 = arith.constant 0 : i32
    %c0_i32_1 = arith.constant 0 : i32
    return %c0_i32, %c0_i32_0 : i32, i32
  }
  func.func @transform_15(%arg0: i32, %arg1: memref<1xi32, #tpu.memory_space<smem>>) -> (i32, i32) {
    %c0_i32 = arith.constant 0 : i32
    %c0_i32_0 = arith.constant 0 : i32
    %c0_i32_1 = arith.constant 0 : i32
    return %c0_i32, %c0_i32_0 : i32, i32
  }
  func.func @transform_16(%arg0: i32, %arg1: memref<1xi32, #tpu.memory_space<smem>>) -> (i32, i32) {
    %c0_i32 = arith.constant 0 : i32
    %c0_i32_0 = arith.constant 0 : i32
    %c0_i32_1 = arith.constant 0 : i32
    return %c0_i32, %c0_i32_0 : i32, i32
  }
}

</mosaic_0001>

<llo_original>
// kernel: tpu_custom_call.1
$region0: #{tpu_custom_call.1}
  #allocation0 [shape = 'u32[]', space=smem, size = 0x4, offset = 0x4, fixed_abs, tag = 'smem constant byte address 0x4 - core index']
  #allocation1 [shape = 'u32[72,128]{1,0:T(1,128)}', space=vmem, size = 0x9000, scoped, tag = 'internal scratch']
  #allocation2 [shape = 's32[1]{0}', space=sflag, size = 0x4, scoped, tag = 'scoped memory for tpu_custom_call.1']
  #allocation3 [shape = 's32[1]{0:T(128)S(6)}', space=smem, size = 0x200, scoped, tag = 'prefetched SMEM operand 0']
  %s0 = inlined_call_operand.<no memory space> [shape: s32[1], index: 0, kind: input, shape index: {}]
  %s1 = inlined_call_operand.vmem [shape: f32[16,8,128], index: 1, kind: input, shape index: {}]
  %s2 = inlined_call_operand.hbm [shape: f32[128,128], index: 2, kind: input, shape index: {}, may-alias: {2,11}]
  %s3 = inlined_call_operand.vmem [shape: f32[128,128], index: 3, kind: input, shape index: {}]
  %s4 = inlined_call_operand.hbm [shape: f32[8,128], index: 4, kind: input, shape index: {}, may-alias: {4,12}]
  %s5 = inlined_call_operand.hbm [shape: f32[8,128], index: 5, kind: input, shape index: {}, may-alias: {5,13}]
  %s6 = inlined_call_operand.hbm [shape: f32[8,128], index: 6, kind: input, shape index: {}, may-alias: {6,14}]
  %s7 = inlined_call_operand.hbm [shape: f32[8,128], index: 7, kind: input, shape index: {}, may-alias: {7,15}]
  %s8 = inlined_call_operand.hbm [shape: s32[8,128], index: 8, kind: input, shape index: {}, may-alias: {8,16}]
  %s9 = inlined_call_operand.hbm [shape: f32[8,128], index: 9, kind: input, shape index: {}, may-alias: {9,17}]
  %s10 = inlined_call_operand.hbm [shape: bf16[16,8,128], index: 10, kind: output, shape index: {0}]
  %s11 = inlined_call_operand.hbm [shape: f32[128,128], index: 11, kind: output, shape index: {1}, may-alias: {2,11}]
  %s12 = inlined_call_operand.hbm [shape: f32[8,128], index: 12, kind: output, shape index: {2}, may-alias: {4,12}]
  %s13 = inlined_call_operand.hbm [shape: f32[8,128], index: 13, kind: output, shape index: {3}, may-alias: {5,13}]
  %s14 = inlined_call_operand.hbm [shape: f32[8,128], index: 14, kind: output, shape index: {4}, may-alias: {6,14}]
  %s15 = inlined_call_operand.hbm [shape: f32[8,128], index: 15, kind: output, shape index: {5}, may-alias: {7,15}]
  %s16 = inlined_call_operand.hbm [shape: s32[8,128], index: 16, kind: output, shape index: {6}, may-alias: {8,16}]
  %s17 = inlined_call_operand.hbm [shape: f32[8,128], index: 17, kind: output, shape index: {7}, may-alias: {9,17}]
  %18 = xla_tuple %s10, %s11, %s12, %s13, %s14, %s15, %s16, %s17
  %s19 = sld [smem:[#allocation0]]
  $region157: #{tpu_custom_call.1} parent=0
    _
  %s21 = ssub.s32 1, %s19
  %s22 = scalar_select 0, %s21, %s19
  %23 = sst [smem:[#allocation3]] %s0
  $region1: #{tpu_custom_call.1} parent=0
    #allocation4 [shape = 'u8[65536]{0}', space=vmem, size = 0x10000, scoped, tag = 'input window, operand 2, single buffered']
    #allocation5 [shape = 's32[2]{0}', space=sflag, size = 0x8, scoped, tag = 'scoped memory for tpu_custom_call.1']
    #allocation6 [shape = 's32[2]{0}', space=sflag, size = 0x8, scoped, tag = 'scoped memory for tpu_custom_call.1']
    #allocation7 [shape = 'u8[4096]{0}', space=vmem, size = 0x1000, scoped, tag = 'input window, operand 4, single buffered']
    #allocation8 [shape = 's32[1]{0}', space=sflag, size = 0x4, scoped, tag = 'scoped memory for tpu_custom_call.1']
    #allocation9 [shape = 'u8[4096]{0}', space=vmem, size = 0x1000, scoped, tag = 'input window, operand 5, single buffered']
    #allocation10 [shape = 'u8[4096]{0}', space=vmem, size = 0x1000, scoped, tag = 'input window, operand 6, single buffered']
    #allocation11 [shape = 's32[1]{0}', space=sflag, size = 0x4, scoped, tag = 'scoped memory for tpu_custom_call.1']
    #allocation12 [shape = 'u8[4096]{0}', space=vmem, size = 0x1000, scoped, tag = 'input window, operand 7, single buffered']
    #allocation13 [shape = 'u8[4096]{0}', space=vmem, size = 0x1000, scoped, tag = 'input window, operand 8, single buffered']
    #allocation14 [shape = 's32[1]{0}', space=sflag, size = 0x4, scoped, tag = 'scoped memory for tpu_custom_call.1']
    #allocation15 [shape = 'u8[4096]{0}', space=vmem, size = 0x1000, scoped, tag = 'input window, operand 9, single buffered']
    #allocation16 [shape = 'u8[32768]{0}', space=vmem, size = 0x8000, scoped, tag = 'output window, operand 0']
    #allocation17 [shape = 'u8[65536]{0}', space=vmem, size = 0x10000, scoped, tag = 'output window, operand 1, single buffered']
    #allocation18 [shape = 's32[1]{0}', space=sflag, size = 0x4, scoped, tag = 'scoped memory for tpu_custom_call.1']
    #allocation19 [shape = 'u8[4096]{0}', space=vmem, size = 0x1000, scoped, tag = 'output window, operand 2, single buffered']
    #allocation20 [shape = 'u8[4096]{0}', space=vmem, size = 0x1000, scoped, tag = 'output window, operand 3, single buffered']
    #allocation21 [shape = 's32[1]{0}', space=sflag, size = 0x4, scoped, tag = 'scoped memory for tpu_custom_call.1']
    #allocation22 [shape = 'u8[4096]{0}', space=vmem, size = 0x1000, scoped, tag = 'output window, operand 4, single buffered']
    #allocation23 [shape = 'u8[4096]{0}', space=vmem, size = 0x1000, scoped, tag = 'output window, operand 5, single buffered']
    #allocation24 [shape = 's32[1]{0}', space=sflag, size = 0x4, scoped, tag = 'scoped memory for tpu_custom_call.1']
    #allocation25 [shape = 'u8[4096]{0}', space=vmem, size = 0x1000, scoped, tag = 'output window, operand 6, single buffered']
    #allocation26 [shape = 'u8[4096]{0}', space=vmem, size = 0x1000, scoped, tag = 'output window, operand 7, single buffered']
    #allocation27 [shape = 's32[1]{0}', space=sflag, size = 0x4, scoped, tag = 'scoped memory for tpu_custom_call.1']
    %24 = vsyncpa [#allocation5], 0
    %25 = vsyncpa [#allocation8], 0
    %26 = vsyncpa [#allocation11], 0
    %27 = vsyncpa [#allocation14], 0
    %28 = vsyncpa [#allocation6], 0
    %s29 = scalar_lea.sflag [#allocation6], 1
    %30 = vsyncpa %s29, 0
    %31 = vsyncpa [#allocation18], 0
    %32 = vsyncpa [#allocation21], 0
    %33 = vsyncpa [#allocation24], 0
    %34 = vsyncpa [#allocation27], 0
    loop: start=0, step=1, limit=4
    $region2: #{tpu_custom_call.1} parent=1 // loop_pre_header
      _
    $region3: #{tpu_custom_call.1} parent=1 // loop_header
      %s36 = sphi 0, %s40
      %p37 = scmp.ge.s32.totalorder %s36, 4
      %s46 = sphi 0, %s48
      %s49 = sphi 0, %s46
      %s50 = sphi 0, %s49
      %s66 = sphi 0, %s50
      %s70 = sphi 0, %s70
      %s72 = sphi 0, %s70
      %s73 = sphi 0, %s72
      %s87 = sphi 0, %s73
      %s91 = sphi 0, %s91
      %s93 = sphi 0, %s91
      %s94 = sphi 0, %s93
      %s108 = sphi 0, %s94
      %s112 = sphi 0, %s112
      %s114 = sphi 0, %s112
      %s115 = sphi 0, %s114
      %s129 = sphi 0, %s115
      %s133 = sphi 0, %s133
      %s135 = sphi 0, %s133
      %s136 = sphi 0, %s135
      %s150 = sphi 0, %s136
      %s154 = sphi 0, %s154
      %s156 = sphi 0, %s154
      %s157 = sphi 0, %s156
      %s171 = sphi 0, %s157
      %s175 = sphi 0, %s175
      %s177 = sphi 0, %s175
      %s178 = sphi 0, %s177
      %s192 = sphi 0, %s178
      %s196 = sphi 0, %s196
      %s198 = sphi 0, %s196
      %s199 = sphi 0, %s198
      %s213 = sphi 0, %s199
      %s217 = sphi 0, %s217
      %s219 = sphi 0, %s217
      %s220 = sphi 0, %s219
      %s234 = sphi 0, %s220
      %s240 = sphi 0, %s242
      %s243 = sphi 0, %s240
      %s244 = sphi 0, %s243
      %s260 = sphi 0, %s244
      %s264 = sphi 0, %s264
      %s266 = sphi 0, %s264
      %s267 = sphi 0, %s266
      %s281 = sphi 0, %s267
      %s285 = sphi 0, %s285
      %s287 = sphi 0, %s285
      %s288 = sphi 0, %s287
      %s302 = sphi 0, %s288
      %s306 = sphi 0, %s306
      %s308 = sphi 0, %s306
      %s309 = sphi 0, %s308
      %s323 = sphi 0, %s309
      %s327 = sphi 0, %s327
      %s329 = sphi 0, %s327
      %s330 = sphi 0, %s329
      %s344 = sphi 0, %s330
      %s348 = sphi 0, %s348
      %s350 = sphi 0, %s348
      %s351 = sphi 0, %s350
      %s365 = sphi 0, %s351
      %s369 = sphi 0, %s369
      %s371 = sphi 0, %s369
      %s372 = sphi 0, %s371
      %s386 = sphi 0, %s372
      %s390 = sphi 0, %s390
      %s392 = sphi 0, %s390
      %s393 = sphi 0, %s392
      %s407 = sphi 0, %s393
    $region4: #{tpu_custom_call.1} parent=1 // loop_header_branch
      %39 = sbr.rel (%p37) target = $region8
    $region5: #{tpu_custom_call.1} parent=1 // loop_body
      %s41 = ssub.s32 %s36, 1
      %s42 = ssub.s32 %s36, 2
      %s43 = sadd.s32 %s36, 1
      %s44 = ssub.s32 %s36, %s43
      %p45 = scmp.eq.s32.totalorder %s44, 0
      %s47 = sadd.s32 %s46, 1
      %s48 = scalar_select %p45, %s46, %s47
      %p51 = pneg %p45
      %p52 = scmp.eq.s32.totalorder %s36, 1
      %p53 = por %p51, %p52
      %p54 = scmp.ne.s32.totalorder %s46, %s49
      %p55 = scmp.eq.s32.totalorder %s36, 0
      %p56 = por %p54, %p55
      %p57 = scmp.ne.s32.totalorder %s46, %s49
      %p58 = scmp.eq.s32.totalorder %s41, 1
      %p59 = por %p57, %p58
      %p60 = scmp.ne.s32.totalorder %s49, %s50
      %p61 = scmp.eq.s32.totalorder %s41, 0
      %p62 = por %p60, %p61
      %p63 = scmp.ne.s32.totalorder %s49, %s50
      %p64 = scmp.eq.s32.totalorder %s42, 1
      %p65 = por %p63, %p64
      %p67 = scmp.ne.s32.totalorder %s50, %s66
      %p68 = scmp.eq.s32.totalorder %s42, 0
      %p69 = por %p67, %p68
      %s71 = sadd.s32 %s70, 1
      %p74 = scmp.eq.s32.totalorder %s36, 1
      %p75 = scmp.ne.s32.totalorder %s70, %s72
      %p76 = scmp.eq.s32.totalorder %s36, 0
      %p77 = por %p75, %p76
      %p78 = scmp.ne.s32.totalorder %s70, %s72
      %p79 = scmp.eq.s32.totalorder %s41, 1
      %p80 = por %p78, %p79
      %p81 = scmp.ne.s32.totalorder %s72, %s73
      %p82 = scmp.eq.s32.totalorder %s41, 0
      %p83 = por %p81, %p82
      %p84 = scmp.ne.s32.totalorder %s72, %s73
      %p85 = scmp.eq.s32.totalorder %s42, 1
      %p86 = por %p84, %p85
      %p88 = scmp.ne.s32.totalorder %s73, %s87
      %p89 = scmp.eq.s32.totalorder %s42, 0
      %p90 = por %p88, %p89
      %s92 = sadd.s32 %s91, 1
      %p95 = scmp.eq.s32.totalorder %s36, 1
      %p96 = scmp.ne.s32.totalorder %s91, %s93
      %p97 = scmp.eq.s32.totalorder %s36, 0
      %p98 = por %p96, %p97
      %p99 = scmp.ne.s32.totalorder %s91, %s93
      %p100 = scmp.eq.s32.totalorder %s41, 1
      %p101 = por %p99, %p100
      %p102 = scmp.ne.s32.totalorder %s93, %s94
      %p103 = scmp.eq.s32.totalorder %s41, 0
      %p104 = por %p102, %p103
      %p105 = scmp.ne.s32.totalorder %s93, %s94
      %p106 = scmp.eq.s32.totalorder %s42, 1
      %p107 = por %p105, %p106
      %p109 = scmp.ne.s32.totalorder %s94, %s108
      %p110 = scmp.eq.s32.totalorder %s42, 0
      %p111 = por %p109, %p110
      %s113 = sadd.s32 %s112, 1
      %p116 = scmp.eq.s32.totalorder %s36, 1
      %p117 = scmp.ne.s32.totalorder %s112, %s114
      %p118 = scmp.eq.s32.totalorder %s36, 0
      %p119 = por %p117, %p118
      %p120 = scmp.ne.s32.totalorder %s112, %s114
      %p121 = scmp.eq.s32.totalorder %s41, 1
      %p122 = por %p120, %p121
      %p123 = scmp.ne.s32.totalorder %s114, %s115
      %p124 = scmp.eq.s32.totalorder %s41, 0
      %p125 = por %p123, %p124
      %p126 = scmp.ne.s32.totalorder %s114, %s115
      %p127 = scmp.eq.s32.totalorder %s42, 1
      %p128 = por %p126, %p127
      %p130 = scmp.ne.s32.totalorder %s115, %s129
      %p131 = scmp.eq.s32.totalorder %s42, 0
      %p132 = por %p130, %p131
      %s134 = sadd.s32 %s133, 1
      %p137 = scmp.eq.s32.totalorder %s36, 1
      %p138 = scmp.ne.s32.totalorder %s133, %s135
      %p139 = scmp.eq.s32.totalorder %s36, 0
      %p140 = por %p138, %p139
      %p141 = scmp.ne.s32.totalorder %s133, %s135
      %p142 = scmp.eq.s32.totalorder %s41, 1
      %p143 = por %p141, %p142
      %p144 = scmp.ne.s32.totalorder %s135, %s136
      %p145 = scmp.eq.s32.totalorder %s41, 0
      %p146 = por %p144, %p145
      %p147 = scmp.ne.s32.totalorder %s135, %s136
      %p148 = scmp.eq.s32.totalorder %s42, 1
      %p149 = por %p147, %p148
      %p151 = scmp.ne.s32.totalorder %s136, %s150
      %p152 = scmp.eq.s32.totalorder %s42, 0
      %p153 = por %p151, %p152
      %s155 = sadd.s32 %s154, 1
      %p158 = scmp.eq.s32.totalorder %s36, 1
      %p159 = scmp.ne.s32.totalorder %s154, %s156
      %p160 = scmp.eq.s32.totalorder %s36, 0
      %p161 = por %p159, %p160
      %p162 = scmp.ne.s32.totalorder %s154, %s156
      %p163 = scmp.eq.s32.totalorder %s41, 1
      %p164 = por %p162, %p163
      %p165 = scmp.ne.s32.totalorder %s156, %s157
      %p166 = scmp.eq.s32.totalorder %s41, 0
      %p167 = por %p165, %p166
      %p168 = scmp.ne.s32.totalorder %s156, %s157
      %p169 = scmp.eq.s32.totalorder %s42, 1
      %p170 = por %p168, %p169
      %p172 = scmp.ne.s32.totalorder %s157, %s171
      %p173 = scmp.eq.s32.totalorder %s42, 0
      %p174 = por %p172, %p173
      %s176 = sadd.s32 %s175, 1
      %p179 = scmp.eq.s32.totalorder %s36, 1
      %p180 = scmp.ne.s32.totalorder %s175, %s177
      %p181 = scmp.eq.s32.totalorder %s36, 0
      %p182 = por %p180, %p181
      %p183 = scmp.ne.s32.totalorder %s175, %s177
      %p184 = scmp.eq.s32.totalorder %s41, 1
      %p185 = por %p183, %p184
      %p186 = scmp.ne.s32.totalorder %s177, %s178
      %p187 = scmp.eq.s32.totalorder %s41, 0
      %p188 = por %p186, %p187
      %p189 = scmp.ne.s32.totalorder %s177, %s178
      %p190 = scmp.eq.s32.totalorder %s42, 1
      %p191 = por %p189, %p190
      %p193 = scmp.ne.s32.totalorder %s178, %s192
      %p194 = scmp.eq.s32.totalorder %s42, 0
      %p195 = por %p193, %p194
      %s197 = sadd.s32 %s196, 1
      %p200 = scmp.eq.s32.totalorder %s36, 1
      %p201 = scmp.ne.s32.totalorder %s196, %s198
      %p202 = scmp.eq.s32.totalorder %s36, 0
      %p203 = por %p201, %p202
      %p204 = scmp.ne.s32.totalorder %s196, %s198
      %p205 = scmp.eq.s32.totalorder %s41, 1
      %p206 = por %p204, %p205
      %p207 = scmp.ne.s32.totalorder %s198, %s199
      %p208 = scmp.eq.s32.totalorder %s41, 0
      %p209 = por %p207, %p208
      %p210 = scmp.ne.s32.totalorder %s198, %s199
      %p211 = scmp.eq.s32.totalorder %s42, 1
      %p212 = por %p210, %p211
      %p214 = scmp.ne.s32.totalorder %s199, %s213
      %p215 = scmp.eq.s32.totalorder %s42, 0
      %p216 = por %p214, %p215
      %s218 = sadd.s32 %s217, 1
      %p221 = scmp.eq.s32.totalorder %s36, 1
      %p222 = scmp.ne.s32.totalorder %s217, %s219
      %p223 = scmp.eq.s32.totalorder %s36, 0
      %p224 = por %p222, %p223
      %p225 = scmp.ne.s32.totalorder %s217, %s219
      %p226 = scmp.eq.s32.totalorder %s41, 1
      %p227 = por %p225, %p226
      %p228 = scmp.ne.s32.totalorder %s219, %s220
      %p229 = scmp.eq.s32.totalorder %s41, 0
      %p230 = por %p228, %p229
      %p231 = scmp.ne.s32.totalorder %s219, %s220
      %p232 = scmp.eq.s32.totalorder %s42, 1
      %p233 = por %p231, %p232
      %p235 = scmp.ne.s32.totalorder %s220, %s234
      %p236 = scmp.eq.s32.totalorder %s42, 0
      %p237 = por %p235, %p236
      %s238 = ssub.s32 %s36, %s43
      %p239 = scmp.eq.s32.totalorder %s238, 0
      %s241 = sadd.s32 %s240, 1
      %s242 = scalar_select %p239, %s240, %s241
      %p245 = pneg %p239
      %p246 = scmp.eq.s32.totalorder %s36, 1
      %p247 = por %p245, %p246
      %p248 = scmp.ne.s32.totalorder %s240, %s243
      %p249 = scmp.eq.s32.totalorder %s36, 0
      %p250 = por %p248, %p249
      %p251 = scmp.ne.s32.totalorder %s240, %s243
      %p252 = scmp.eq.s32.totalorder %s41, 1
      %p253 = por %p251, %p252
      %p254 = scmp.ne.s32.totalorder %s243, %s244
      %p255 = scmp.eq.s32.totalorder %s41, 0
      %p256 = por %p254, %p255
      %p257 = scmp.ne.s32.totalorder %s243, %s244
      %p258 = scmp.eq.s32.totalorder %s42, 1
      %p259 = por %p257, %p258
      %p261 = scmp.ne.s32.totalorder %s244, %s260
      %p262 = scmp.eq.s32.totalorder %s42, 0
      %p263 = por %p261, %p262
      %s265 = sadd.s32 %s264, 1
      %p268 = scmp.eq.s32.totalorder %s36, 1
      %p269 = scmp.ne.s32.totalorder %s264, %s266
      %p270 = scmp.eq.s32.totalorder %s36, 0
      %p271 = por %p269, %p270
      %p272 = scmp.ne.s32.totalorder %s264, %s266
      %p273 = scmp.eq.s32.totalorder %s41, 1
      %p274 = por %p272, %p273
      %p275 = scmp.ne.s32.totalorder %s266, %s267
      %p276 = scmp.eq.s32.totalorder %s41, 0
      %p277 = por %p275, %p276
      %p278 = scmp.ne.s32.totalorder %s266, %s267
      %p279 = scmp.eq.s32.totalorder %s42, 1
      %p280 = por %p278, %p279
      %p282 = scmp.ne.s32.totalorder %s267, %s281
      %p283 = scmp.eq.s32.totalorder %s42, 0
      %p284 = por %p282, %p283
      %s286 = sadd.s32 %s285, 1
      %p289 = scmp.eq.s32.totalorder %s36, 1
      %p290 = scmp.ne.s32.totalorder %s285, %s287
      %p291 = scmp.eq.s32.totalorder %s36, 0
      %p292 = por %p290, %p291
      %p293 = scmp.ne.s32.totalorder %s285, %s287
      %p294 = scmp.eq.s32.totalorder %s41, 1
      %p295 = por %p293, %p294
      %p296 = scmp.ne.s32.totalorder %s287, %s288
      %p297 = scmp.eq.s32.totalorder %s41, 0
      %p298 = por %p296, %p297
      %p299 = scmp.ne.s32.totalorder %s287, %s288
      %p300 = scmp.eq.s32.totalorder %s42, 1
      %p301 = por %p299, %p300
      %p303 = scmp.ne.s32.totalorder %s288, %s302
      %p304 = scmp.eq.s32.totalorder %s42, 0
      %p305 = por %p303, %p304
      %s307 = sadd.s32 %s306, 1
      %p310 = scmp.eq.s32.totalorder %s36, 1
      %p311 = scmp.ne.s32.totalorder %s306, %s308
      %p312 = scmp.eq.s32.totalorder %s36, 0
      %p313 = por %p311, %p312
      %p314 = scmp.ne.s32.totalorder %s306, %s308
      %p315 = scmp.eq.s32.totalorder %s41, 1
      %p316 = por %p314, %p315
      %p317 = scmp.ne.s32.totalorder %s308, %s309
      %p318 = scmp.eq.s32.totalorder %s41, 0
      %p319 = por %p317, %p318
      %p320 = scmp.ne.s32.totalorder %s308, %s309
      %p321 = scmp.eq.s32.totalorder %s42, 1
      %p322 = por %p320, %p321
      %p324 = scmp.ne.s32.totalorder %s309, %s323
      %p325 = scmp.eq.s32.totalorder %s42, 0
      %p326 = por %p324, %p325
      %s328 = sadd.s32 %s327, 1
      %p331 = scmp.eq.s32.totalorder %s36, 1
      %p332 = scmp.ne.s32.totalorder %s327, %s329
      %p333 = scmp.eq.s32.totalorder %s36, 0
      %p334 = por %p332, %p333
      %p335 = scmp.ne.s32.totalorder %s327, %s329
      %p336 = scmp.eq.s32.totalorder %s41, 1
      %p337 = por %p335, %p336
      %p338 = scmp.ne.s32.totalorder %s329, %s330
      %p339 = scmp.eq.s32.totalorder %s41, 0
      %p340 = por %p338, %p339
      %p341 = scmp.ne.s32.totalorder %s329, %s330
      %p342 = scmp.eq.s32.totalorder %s42, 1
      %p343 = por %p341, %p342
      %p345 = scmp.ne.s32.totalorder %s330, %s344
      %p346 = scmp.eq.s32.totalorder %s42, 0
      %p347 = por %p345, %p346
      %s349 = sadd.s32 %s348, 1
      %p352 = scmp.eq.s32.totalorder %s36, 1
      %p353 = scmp.ne.s32.totalorder %s348, %s350
      %p354 = scmp.eq.s32.totalorder %s36, 0
      %p355 = por %p353, %p354
      %p356 = scmp.ne.s32.totalorder %s348, %s350
      %p357 = scmp.eq.s32.totalorder %s41, 1
      %p358 = por %p356, %p357
      %p359 = scmp.ne.s32.totalorder %s350, %s351
      %p360 = scmp.eq.s32.totalorder %s41, 0
      %p361 = por %p359, %p360
      %p362 = scmp.ne.s32.totalorder %s350, %s351
      %p363 = scmp.eq.s32.totalorder %s42, 1
      %p364 = por %p362, %p363
      %p366 = scmp.ne.s32.totalorder %s351, %s365
      %p367 = scmp.eq.s32.totalorder %s42, 0
      %p368 = por %p366, %p367
      %s370 = sadd.s32 %s369, 1
      %p373 = scmp.eq.s32.totalorder %s36, 1
      %p374 = scmp.ne.s32.totalorder %s369, %s371
      %p375 = scmp.eq.s32.totalorder %s36, 0
      %p376 = por %p374, %p375
      %p377 = scmp.ne.s32.totalorder %s369, %s371
      %p378 = scmp.eq.s32.totalorder %s41, 1
      %p379 = por %p377, %p378
      %p380 = scmp.ne.s32.totalorder %s371, %s372
      %p381 = scmp.eq.s32.totalorder %s41, 0
      %p382 = por %p380, %p381
      %p383 = scmp.ne.s32.totalorder %s371, %s372
      %p384 = scmp.eq.s32.totalorder %s42, 1
      %p385 = por %p383, %p384
      %p387 = scmp.ne.s32.totalorder %s372, %s386
      %p388 = scmp.eq.s32.totalorder %s42, 0
      %p389 = por %p387, %p388
      %s391 = sadd.s32 %s390, 1
      %p394 = scmp.eq.s32.totalorder %s36, 1
      %p395 = scmp.ne.s32.totalorder %s390, %s392
      %p396 = scmp.eq.s32.totalorder %s36, 0
      %p397 = por %p395, %p396
      %p398 = scmp.ne.s32.totalorder %s390, %s392
      %p399 = scmp.eq.s32.totalorder %s41, 1
      %p400 = por %p398, %p399
      %p401 = scmp.ne.s32.totalorder %s392, %s393
      %p402 = scmp.eq.s32.totalorder %s41, 0
      %p403 = por %p401, %p402
      %p404 = scmp.ne.s32.totalorder %s392, %s393
      %p405 = scmp.eq.s32.totalorder %s42, 1
      %p406 = por %p404, %p405
      %p408 = scmp.ne.s32.totalorder %s393, %s407
      %p409 = scmp.eq.s32.totalorder %s42, 0
      %p410 = por %p408, %p409
      %p411 = scmp.le.s32.totalorder 1, %s36
      %p412 = scmp.lt.s32.totalorder %s36, 3
      %p413 = pnand %p411, %p412
      %p414 = pneg %p413
      // Predicated region
      $region9: #{tpu_custom_call.1} parent=5 // pred_check
        _
      $region10: #{tpu_custom_call.1} parent=5 // pred_check_branch
        %416 = sbr.rel (%p413) target = $region12
      $region11: #{tpu_custom_call.1} parent=5 // pred_region
        %s417 = ssub.s32 %s36, 1
        // Predicated region
        $region13: #{tpu_custom_call.1} parent=11 // pred_check
          %p418 = pneg %p83
        $region14: #{tpu_custom_call.1} parent=11 // pred_check_branch
          %420 = sbr.rel (%p418) target = $region16
        $region15: #{tpu_custom_call.1} parent=11 // pred_region
          %422 = vsyncadd [#allocation5], 0
          %s423 = sshll.u32 %s2, 4
          %s424 = int_to_ptr.hbm [resolvable:$true] %s423
          %s425 = sshll.u32 [#allocation4], 4
          %s426 = int_to_ptr.vmem [resolvable:$true] %s425
          %431 = dma.hbm_to_vmem [thread:$0]  %s424, 2048, %s426, [#allocation5], 128, 128, 8
        $region16: #{tpu_custom_call.1} parent=11 // pred_fallthru
          _
        // Predicated region
        $region17: #{tpu_custom_call.1} parent=11 // pred_check
          %p432 = pneg %p104
        $region18: #{tpu_custom_call.1} parent=11 // pred_check_branch
          %434 = sbr.rel (%p432) target = $region20
        $region19: #{tpu_custom_call.1} parent=11 // pred_region
          _
        $region20: #{tpu_custom_call.1} parent=11 // pred_fallthru
          _
        // Predicated region
        $region21: #{tpu_custom_call.1} parent=11 // pred_check
          %p435 = pneg %p125
        $region22: #{tpu_custom_call.1} parent=11 // pred_check_branch
          %437 = sbr.rel (%p435) target = $region24
        $region23: #{tpu_custom_call.1} parent=11 // pred_region
          %439 = vsyncadd [#allocation8], 0
          %s441 = sshll.u32 %s4, 4
          %s442 = int_to_ptr.hbm [resolvable:$true] %s441
          %s443 = sshll.u32 [#allocation7], 4
          %s444 = int_to_ptr.vmem [resolvable:$true] %s443
          %446 = dma.hbm_to_vmem [thread:$0]  %s442, 128, %s444, [#allocation8]
        $region24: #{tpu_custom_call.1} parent=11 // pred_fallthru
          _
        // Predicated region
        $region25: #{tpu_custom_call.1} parent=11 // pred_check
          %p447 = pneg %p146
        $region26: #{tpu_custom_call.1} parent=11 // pred_check_branch
          %449 = sbr.rel (%p447) target = $region28
        $region27: #{tpu_custom_call.1} parent=11 // pred_region
          %451 = vsyncadd [#allocation8], 0
          %s453 = sshll.u32 %s5, 4
          %s454 = int_to_ptr.hbm [resolvable:$true] %s453
          %s455 = sshll.u32 [#allocation9], 4
          %s456 = int_to_ptr.vmem [resolvable:$true] %s455
          %458 = dma.hbm_to_vmem [thread:$0]  %s454, 128, %s456, [#allocation8]
        $region28: #{tpu_custom_call.1} parent=11 // pred_fallthru
          _
        // Predicated region
        $region29: #{tpu_custom_call.1} parent=11 // pred_check
          %p459 = pneg %p167
        $region30: #{tpu_custom_call.1} parent=11 // pred_check_branch
          %461 = sbr.rel (%p459) target = $region32
        $region31: #{tpu_custom_call.1} parent=11 // pred_region
          %463 = vsyncadd [#allocation11], 0
          %s465 = sshll.u32 %s6, 4
          %s466 = int_to_ptr.hbm [resolvable:$true] %s465
          %s467 = sshll.u32 [#allocation10], 4
          %s468 = int_to_ptr.vmem [resolvable:$true] %s467
          %470 = dma.hbm_to_vmem [thread:$0]  %s466, 128, %s468, [#allocation11]
        $region32: #{tpu_custom_call.1} parent=11 // pred_fallthru
          _
        // Predicated region
        $region33: #{tpu_custom_call.1} parent=11 // pred_check
          %p471 = pneg %p188
        $region34: #{tpu_custom_call.1} parent=11 // pred_check_branch
          %473 = sbr.rel (%p471) target = $region36
        $region35: #{tpu_custom_call.1} parent=11 // pred_region
          %475 = vsyncadd [#allocation11], 0
          %s477 = sshll.u32 %s7, 4
          %s478 = int_to_ptr.hbm [resolvable:$true] %s477
          %s479 = sshll.u32 [#allocation12], 4
          %s480 = int_to_ptr.vmem [resolvable:$true] %s479
          %482 = dma.hbm_to_vmem [thread:$0]  %s478, 128, %s480, [#allocation11]
        $region36: #{tpu_custom_call.1} parent=11 // pred_fallthru
          _
        // Predicated region
        $region37: #{tpu_custom_call.1} parent=11 // pred_check
          %p483 = pneg %p209
        $region38: #{tpu_custom_call.1} parent=11 // pred_check_branch
          %485 = sbr.rel (%p483) target = $region40
        $region39: #{tpu_custom_call.1} parent=11 // pred_region
          %487 = vsyncadd [#allocation14], 0
          %s489 = sshll.u32 %s8, 4
          %s490 = int_to_ptr.hbm [resolvable:$true] %s489
          %s491 = sshll.u32 [#allocation13], 4
          %s492 = int_to_ptr.vmem [resolvable:$true] %s491
          %494 = dma.hbm_to_vmem [thread:$0]  %s490, 128, %s492, [#allocation14]
        $region40: #{tpu_custom_call.1} parent=11 // pred_fallthru
          _
        // Predicated region
        $region41: #{tpu_custom_call.1} parent=11 // pred_check
          %p495 = pneg %p230
        $region42: #{tpu_custom_call.1} parent=11 // pred_check_branch
          %497 = sbr.rel (%p495) target = $region44
        $region43: #{tpu_custom_call.1} parent=11 // pred_region
          %499 = vsyncadd [#allocation14], 0
          %s501 = sshll.u32 %s9, 4
          %s502 = int_to_ptr.hbm [resolvable:$true] %s501
          %s503 = sshll.u32 [#allocation15], 4
          %s504 = int_to_ptr.vmem [resolvable:$true] %s503
          %506 = dma.hbm_to_vmem [thread:$0]  %s502, 128, %s504, [#allocation14]
        $region44: #{tpu_custom_call.1} parent=11 // pred_fallthru
          _
      $region12: #{tpu_custom_call.1} parent=5 // pred_fallthru
        _
      %p507 = scmp.lt.s32.totalorder %s36, 2
      // Predicated region
      $region45: #{tpu_custom_call.1} parent=5 // pred_check
        %p508 = pneg %p507
      $region46: #{tpu_custom_call.1} parent=5 // pred_check_branch
        %510 = sbr.rel (%p508) target = $region48
      $region47: #{tpu_custom_call.1} parent=5 // pred_region
        // Predicated region
        $region49: #{tpu_custom_call.1} parent=47 // pred_check
          %p511 = pneg %p56
        $region50: #{tpu_custom_call.1} parent=47 // pred_check_branch
          %513 = sbr.rel (%p511) target = $region52
        $region51: #{tpu_custom_call.1} parent=47 // pred_region
          %s514 = smul.u32 8, %s36
          %p515 = scmp.lt.s32.totalorder %s514, 15
          %s516 = scalar_select %p515, %s514, 15
          %s517 = smul.addr %s516, 8
          %s518 = scalar_lea.vmem %s1, %s517
          %s519 = smul.u32 8, %s36
        $region52: #{tpu_custom_call.1} parent=47 // pred_fallthru
          _
      $region48: #{tpu_custom_call.1} parent=5 // pred_fallthru
        _
      %p520 = scmp.le.s32.totalorder 1, %s36
      %p521 = scmp.lt.s32.totalorder %s36, 3
      %p522 = pnand %p520, %p521
      %p523 = pneg %p522
      // Predicated region
      $region53: #{tpu_custom_call.1} parent=5 // pred_check
        _
      $region54: #{tpu_custom_call.1} parent=5 // pred_check_branch
        %525 = sbr.rel (%p522) target = $region56
      $region55: #{tpu_custom_call.1} parent=5 // pred_region
        %s526 = ssub.s32 %s36, 1
        // Predicated region
        $region57: #{tpu_custom_call.1} parent=55 // pred_check
          %p527 = pneg %p83
        $region58: #{tpu_custom_call.1} parent=55 // pred_check_branch
          %529 = sbr.rel (%p527) target = $region60
        $region59: #{tpu_custom_call.1} parent=55 // pred_region
          %531 = dma.done [#allocation5], 2048
        $region60: #{tpu_custom_call.1} parent=55 // pred_fallthru
          _
        // Predicated region
        $region61: #{tpu_custom_call.1} parent=55 // pred_check
          %p532 = pneg %p125
        $region62: #{tpu_custom_call.1} parent=55 // pred_check_branch
          %534 = sbr.rel (%p532) target = $region64
        $region63: #{tpu_custom_call.1} parent=55 // pred_region
          %536 = dma.done [#allocation8], 128
        $region64: #{tpu_custom_call.1} parent=55 // pred_fallthru
          _
        // Predicated region
        $region65: #{tpu_custom_call.1} parent=55 // pred_check
          %p537 = pneg %p146
        $region66: #{tpu_custom_call.1} parent=55 // pred_check_branch
          %539 = sbr.rel (%p537) target = $region68
        $region67: #{tpu_custom_call.1} parent=55 // pred_region
          %541 = dma.done [#allocation8], 128
        $region68: #{tpu_custom_call.1} parent=55 // pred_fallthru
          _
        // Predicated region
        $region69: #{tpu_custom_call.1} parent=55 // pred_check
          %p542 = pneg %p167
        $region70: #{tpu_custom_call.1} parent=55 // pred_check_branch
          %544 = sbr.rel (%p542) target = $region72
        $region71: #{tpu_custom_call.1} parent=55 // pred_region
          %546 = dma.done [#allocation11], 128
        $region72: #{tpu_custom_call.1} parent=55 // pred_fallthru
          _
        // Predicated region
        $region73: #{tpu_custom_call.1} parent=55 // pred_check
          %p547 = pneg %p188
        $region74: #{tpu_custom_call.1} parent=55 // pred_check_branch
          %549 = sbr.rel (%p547) target = $region76
        $region75: #{tpu_custom_call.1} parent=55 // pred_region
          %551 = dma.done [#allocation11], 128
        $region76: #{tpu_custom_call.1} parent=55 // pred_fallthru
          _
        // Predicated region
        $region77: #{tpu_custom_call.1} parent=55 // pred_check
          %p552 = pneg %p209
        $region78: #{tpu_custom_call.1} parent=55 // pred_check_branch
          %554 = sbr.rel (%p552) target = $region80
        $region79: #{tpu_custom_call.1} parent=55 // pred_region
          %556 = dma.done [#allocation14], 128
        $region80: #{tpu_custom_call.1} parent=55 // pred_fallthru
          _
        // Predicated region
        $region81: #{tpu_custom_call.1} parent=55 // pred_check
          %p557 = pneg %p230
        $region82: #{tpu_custom_call.1} parent=55 // pred_check_branch
          %559 = sbr.rel (%p557) target = $region84
        $region83: #{tpu_custom_call.1} parent=55 // pred_region
          %561 = dma.done [#allocation14], 128
        $region84: #{tpu_custom_call.1} parent=55 // pred_fallthru
          _
        %s562 = smul.u32 8, %s41
        %p563 = scmp.lt.s32.totalorder %s562, 15
        %s564 = scalar_select %p563, %s562, 15
        %s565 = smul.addr %s564, 8
        %s566 = scalar_lea.vmem %s1, %s565
        %p567 = pneg %p62
        %p568 = pneg %p59
        %p569 = pneg %p83
        %p570 = pneg %p80
        %p571 = pneg %p104
        %p572 = pneg %p101
        %p573 = pneg %p125
        %p574 = pneg %p122
        %p575 = pneg %p146
        %p576 = pneg %p143
        %p577 = pneg %p167
        %p578 = pneg %p164
        %p579 = pneg %p188
        %p580 = pneg %p185
        %p581 = pneg %p209
        %p582 = pneg %p206
        %p583 = pneg %p230
        %p584 = pneg %p227
        %p585 = pneg %p256
        %p586 = pneg %p253
        %s587 = sand.u32 %s243, 1
        %s588 = scalar_lea.sflag [#allocation6], %s587
        %s589 = sand.u32 %s243, 1
        %s590 = smul.addr %s589, 32
        %s591 = scalar_lea.vmem [#allocation16], %s590
        %p592 = pneg %p277
        %p593 = pneg %p274
        %p594 = pneg %p298
        %p595 = pneg %p295
        %p596 = pneg %p319
        %p597 = pneg %p316
        %p598 = pneg %p340
        %p599 = pneg %p337
        %p600 = pneg %p361
        %p601 = pneg %p358
        %p602 = pneg %p382
        %p603 = pneg %p379
        %p604 = pneg %p403
        %p605 = pneg %p400
        %s606 = smul.u32 8, %s41
        %p607 = scmp.lt.s32.totalorder %s606, 15
        %s608 = scalar_select %p607, %s606, 15
        %s609 = smul.addr %s608, 8
        %s610 = scalar_lea.vmem %s1, %s609
        %s611 = smul.u32 8, %s41
        %s612 = smul.u32 8, %s41
        %p613 = scmp.eq.s32.totalorder %s41, 0
        // Predicated region
        $region85: #{tpu_custom_call.1} parent=55 // pred_check
          %p614 = pneg %p613
        $region86: #{tpu_custom_call.1} parent=55 // pred_check_branch
          %616 = sbr.rel (%p614) target = $region88
        $region87: #{tpu_custom_call.1} parent=55 // pred_region
          %v617 = vld [vmem:[#allocation4] sm:$0xff]
          %v618 = vld [vmem:[#allocation4 + $0x8] sm:$0xff]
          %v619 = vld [vmem:[#allocation4 + $0x10] sm:$0xff]
          %v620 = vld [vmem:[#allocation4 + $0x18] sm:$0xff]
          %v621 = vld [vmem:[#allocation4 + $0x20] sm:$0xff]
          %v622 = vld [vmem:[#allocation4 + $0x28] sm:$0xff]
          %v623 = vld [vmem:[#allocation4 + $0x30] sm:$0xff]
          %v624 = vld [vmem:[#allocation4 + $0x38] sm:$0xff]
          %v625 = vld [vmem:[#allocation4 + $0x40] sm:$0xff]
          %v626 = vld [vmem:[#allocation4 + $0x48] sm:$0xff]
          %v627 = vld [vmem:[#allocation4 + $0x50] sm:$0xff]
          %v628 = vld [vmem:[#allocation4 + $0x58] sm:$0xff]
          %v629 = vld [vmem:[#allocation4 + $0x60] sm:$0xff]
          %v630 = vld [vmem:[#allocation4 + $0x68] sm:$0xff]
          %v631 = vld [vmem:[#allocation4 + $0x70] sm:$0xff]
          %v632 = vld [vmem:[#allocation4 + $0x78] sm:$0xff]
          %633 = vst [vmem:[#allocation17] sm:$0xff] %v617
          %634 = vst [vmem:[#allocation17 + $0x8] sm:$0xff] %v618
          %635 = vst [vmem:[#allocation17 + $0x10] sm:$0xff] %v619
          %636 = vst [vmem:[#allocation17 + $0x18] sm:$0xff] %v620
          %637 = vst [vmem:[#allocation17 + $0x20] sm:$0xff] %v621
          %638 = vst [vmem:[#allocation17 + $0x28] sm:$0xff] %v622
          %639 = vst [vmem:[#allocation17 + $0x30] sm:$0xff] %v623
          %640 = vst [vmem:[#allocation17 + $0x38] sm:$0xff] %v624
          %641 = vst [vmem:[#allocation17 + $0x40] sm:$0xff] %v625
          %642 = vst [vmem:[#allocation17 + $0x48] sm:$0xff] %v626
          %643 = vst [vmem:[#allocation17 + $0x50] sm:$0xff] %v627
          %644 = vst [vmem:[#allocation17 + $0x58] sm:$0xff] %v628
          %645 = vst [vmem:[#allocation17 + $0x60] sm:$0xff] %v629
          %646 = vst [vmem:[#allocation17 + $0x68] sm:$0xff] %v630
          %647 = vst [vmem:[#allocation17 + $0x70] sm:$0xff] %v631
          %648 = vst [vmem:[#allocation17 + $0x78] sm:$0xff] %v632
          %v649 = vld [vmem:[#allocation7] sm:$0xff]
          %650 = vst [vmem:[#allocation19] sm:$0xff] %v649
          %v651 = vld [vmem:[#allocation9] sm:$0xff]
          %652 = vst [vmem:[#allocation20] sm:$0xff] %v651
          %v653 = vld [vmem:[#allocation10] sm:$0xff]
          %654 = vst [vmem:[#allocation22] sm:$0xff] %v653
          %v655 = vld [vmem:[#allocation12] sm:$0xff]
          %656 = vst [vmem:[#allocation23] sm:$0xff] %v655
          %v657 = vld [vmem:[#allocation13] sm:$0xff]
          %658 = vst [vmem:[#allocation25] sm:$0xff] %v657
          %v659 = vld [vmem:[#allocation15] sm:$0xff]
          %660 = vst [vmem:[#allocation26] sm:$0xff] %v659
        $region88: #{tpu_custom_call.1} parent=55 // pred_fallthru
          _
        %s661 = sld [smem:[#allocation3]]
        %s662 = smul.u32 %s41, 8
        %s663 = sadd.s32 %s661, %s662
        %s664 = scvt.s32.f32 %s663
        %v665 = vld [vmem:[#allocation19] sm:$0xff]
        %v666 = vld [vmem:[#allocation22] sm:$0xff]
        %vm667 = vcmp.gt.f32.partialorder %v665, 1.0
        %vm668 = vcmp.gt.f32.partialorder %v666, 1.025
        %v669 = vsel %vm667, 1, 0
        %v670 = vcvt.s32.f32 %v669
        %v671 = vld [vmem:[#allocation26] sm:$0xff]
        %v672 = vstv %s664
        %v673 = vsel %vm667, %v672, %v671
        %674 = vst [vmem:[#allocation26] sm:$0xff] %v673
        %v675 = vsel %vm668, 1, 0
        %v676 = vcvt.s32.f32 %v675
        %v677 = vrot.slane %v676, 4
        %v678 = vmax.f32 %v676, %v677
        %v679 = vrot.slane %v678, 2
        %v680 = vmax.f32 %v678, %v679
        %v681 = vrot.slane %v680, 1
        %v682 = vmax.f32 %v680, %v681
        %v683 = vrot.slane %v673, 4
        %v684 = vmax.f32 %v673, %v683
        %v685 = vrot.slane %v684, 2
        %v686 = vmax.f32 %v684, %v685
        %v687 = vrot.slane %v686, 1
        %v688 = vmax.f32 %v686, %v687
        %689 = vmax.xlane.f32.xlu0 %v688
        %v690 = vpop.xlane.xlu0 %689
        %v691 = vsub.f32 %v690, %v688
        %v692 = vmul.f32 %v691, 0.02
        %v693 = vmin.f32 %v692, 80.0
        %v694 = vsub.f32 0.0, %v693
        %v695 = vmul.f32 %v694, 1.442695
        %v696 = vpow.pop %v695
        %v697 = vmul.f32 %v693, 1.442695
        %v698 = vpow.pop %v697
        %v699 = vmul.f32 %v682, %v696
        %v700 = vmul.f32 %v699, 0.025
        %v701 = vlaneseq
        %v702 = vshrl.u32 %v701, 7
        %704 = vset.pattern.permute.xlu0 %v702
        %705 = vperm.xlu0 %704, %v700
        %v706 = vpop.permute.xlu0 %705
        %v707 = vlaneseq
        %v708 = vshrl.u32 %v707, 7
        %v709 = vadd.s32 %v708, 8
        %710 = vset.pattern.permute.xlu0 %v709
        %711 = vperm.xlu0 %710, %v700
        %v712 = vpop.permute.xlu0 %711
        %v713 = vlaneseq
        %v714 = vshrl.u32 %v713, 7
        %v715 = vadd.s32 %v714, 16
        %716 = vset.pattern.permute.xlu0 %v715
        %717 = vperm.xlu0 %716, %v700
        %v718 = vpop.permute.xlu0 %717
        %v719 = vlaneseq
        %v720 = vshrl.u32 %v719, 7
        %v721 = vadd.s32 %v720, 24
        %722 = vset.pattern.permute.xlu0 %v721
        %723 = vperm.xlu0 %722, %v700
        %v724 = vpop.permute.xlu0 %723
        %v725 = vlaneseq
        %v726 = vshrl.u32 %v725, 7
        %v727 = vadd.s32 %v726, 32
        %728 = vset.pattern.permute.xlu0 %v727
        %729 = vperm.xlu0 %728, %v700
        %v730 = vpop.permute.xlu0 %729
        %v731 = vlaneseq
        %v732 = vshrl.u32 %v731, 7
        %v733 = vadd.s32 %v732, 40
        %734 = vset.pattern.permute.xlu0 %v733
        %735 = vperm.xlu0 %734, %v700
        %v736 = vpop.permute.xlu0 %735
        %v737 = vlaneseq
        %v738 = vshrl.u32 %v737, 7
        %v739 = vadd.s32 %v738, 48
        %740 = vset.pattern.permute.xlu0 %v739
        %741 = vperm.xlu0 %740, %v700
        %v742 = vpop.permute.xlu0 %741
        %v743 = vlaneseq
        %v744 = vshrl.u32 %v743, 7
        %v745 = vadd.s32 %v744, 56
        %746 = vset.pattern.permute.xlu0 %v745
        %747 = vperm.xlu0 %746, %v700
        %v748 = vpop.permute.xlu0 %747
        %v749 = vlaneseq
        %v750 = vshrl.u32 %v749, 7
        %v751 = vadd.s32 %v750, 64
        %752 = vset.pattern.permute.xlu0 %v751
        %753 = vperm.xlu0 %752, %v700
        %v754 = vpop.permute.xlu0 %753
        %v755 = vlaneseq
        %v756 = vshrl.u32 %v755, 7
        %v757 = vadd.s32 %v756, 72
        %758 = vset.pattern.permute.xlu0 %v757
        %759 = vperm.xlu0 %758, %v700
        %v760 = vpop.permute.xlu0 %759
        %v761 = vlaneseq
        %v762 = vshrl.u32 %v761, 7
        %v763 = vadd.s32 %v762, 80
        %764 = vset.pattern.permute.xlu0 %v763
        %765 = vperm.xlu0 %764, %v700
        %v766 = vpop.permute.xlu0 %765
        %v767 = vlaneseq
        %v768 = vshrl.u32 %v767, 7
        %v769 = vadd.s32 %v768, 88
        %770 = vset.pattern.permute.xlu0 %v769
        %771 = vperm.xlu0 %770, %v700
        %v772 = vpop.permute.xlu0 %771
        %v773 = vlaneseq
        %v774 = vshrl.u32 %v773, 7
        %v775 = vadd.s32 %v774, 96
        %776 = vset.pattern.permute.xlu0 %v775
        %777 = vperm.xlu0 %776, %v700
        %v778 = vpop.permute.xlu0 %777
        %v779 = vlaneseq
        %v780 = vshrl.u32 %v779, 7
        %v781 = vadd.s32 %v780, 104
        %782 = vset.pattern.permute.xlu0 %v781
        %783 = vperm.xlu0 %782, %v700
        %v784 = vpop.permute.xlu0 %783
        %v785 = vlaneseq
        %v786 = vshrl.u32 %v785, 7
        %v787 = vadd.s32 %v786, 112
        %788 = vset.pattern.permute.xlu0 %v787
        %789 = vperm.xlu0 %788, %v700
        %v790 = vpop.permute.xlu0 %789
        %v791 = vlaneseq
        %v792 = vshrl.u32 %v791, 7
        %v793 = vadd.s32 %v792, 120
        %794 = vset.pattern.permute.xlu0 %v793
        %795 = vperm.xlu0 %794, %v700
        %v796 = vpop.permute.xlu0 %795
        %v797 = vmul.f32 %v682, %v698
        %v798 = vmul.f32 %v797, 0.025
        %v799 = vlaneseq
        %v800 = vshrl.u32 %v799, 7
        %802 = vset.pattern.permute.xlu0 %v800
        %803 = vperm.xlu0 %802, %v798
        %v804 = vpop.permute.xlu0 %803
        %v805 = vlaneseq
        %v806 = vshrl.u32 %v805, 7
        %v807 = vadd.s32 %v806, 8
        %808 = vset.pattern.permute.xlu0 %v807
        %809 = vperm.xlu0 %808, %v798
        %v810 = vpop.permute.xlu0 %809
        %v811 = vlaneseq
        %v812 = vshrl.u32 %v811, 7
        %v813 = vadd.s32 %v812, 16
        %814 = vset.pattern.permute.xlu0 %v813
        %815 = vperm.xlu0 %814, %v798
        %v816 = vpop.permute.xlu0 %815
        %v817 = vlaneseq
        %v818 = vshrl.u32 %v817, 7
        %v819 = vadd.s32 %v818, 24
        %820 = vset.pattern.permute.xlu0 %v819
        %821 = vperm.xlu0 %820, %v798
        %v822 = vpop.permute.xlu0 %821
        %v823 = vlaneseq
        %v824 = vshrl.u32 %v823, 7
        %v825 = vadd.s32 %v824, 32
        %826 = vset.pattern.permute.xlu0 %v825
        %827 = vperm.xlu0 %826, %v798
        %v828 = vpop.permute.xlu0 %827
        %v829 = vlaneseq
        %v830 = vshrl.u32 %v829, 7
        %v831 = vadd.s32 %v830, 40
        %832 = vset.pattern.permute.xlu0 %v831
        %833 = vperm.xlu0 %832, %v798
        %v834 = vpop.permute.xlu0 %833
        %v835 = vlaneseq
        %v836 = vshrl.u32 %v835, 7
        %v837 = vadd.s32 %v836, 48
        %838 = vset.pattern.permute.xlu0 %v837
        %839 = vperm.xlu0 %838, %v798
        %v840 = vpop.permute.xlu0 %839
        %v841 = vlaneseq
        %v842 = vshrl.u32 %v841, 7
        %v843 = vadd.s32 %v842, 56
        %844 = vset.pattern.permute.xlu0 %v843
        %845 = vperm.xlu0 %844, %v798
        %v846 = vpop.permute.xlu0 %845
        %v847 = vlaneseq
        %v848 = vshrl.u32 %v847, 7
        %v849 = vadd.s32 %v848, 64
        %850 = vset.pattern.permute.xlu0 %v849
        %851 = vperm.xlu0 %850, %v798
        %v852 = vpop.permute.xlu0 %851
        %v853 = vlaneseq
        %v854 = vshrl.u32 %v853, 7
        %v855 = vadd.s32 %v854, 72
        %856 = vset.pattern.permute.xlu0 %v855
        %857 = vperm.xlu0 %856, %v798
        %v858 = vpop.permute.xlu0 %857
        %v859 = vlaneseq
        %v860 = vshrl.u32 %v859, 7
        %v861 = vadd.s32 %v860, 80
        %862 = vset.pattern.permute.xlu0 %v861
        %863 = vperm.xlu0 %862, %v798
        %v864 = vpop.permute.xlu0 %863
        %v865 = vlaneseq
        %v866 = vshrl.u32 %v865, 7
        %v867 = vadd.s32 %v866, 88
        %868 = vset.pattern.permute.xlu0 %v867
        %869 = vperm.xlu0 %868, %v798
        %v870 = vpop.permute.xlu0 %869
        %v871 = vlaneseq
        %v872 = vshrl.u32 %v871, 7
        %v873 = vadd.s32 %v872, 96
        %874 = vset.pattern.permute.xlu0 %v873
        %875 = vperm.xlu0 %874, %v798
        %v876 = vpop.permute.xlu0 %875
        %v877 = vlaneseq
        %v878 = vshrl.u32 %v877, 7
        %v879 = vadd.s32 %v878, 104
        %880 = vset.pattern.permute.xlu0 %v879
        %881 = vperm.xlu0 %880, %v798
        %v882 = vpop.permute.xlu0 %881
        %v883 = vlaneseq
        %v884 = vshrl.u32 %v883, 7
        %v885 = vadd.s32 %v884, 112
        %886 = vset.pattern.permute.xlu0 %v885
        %887 = vperm.xlu0 %886, %v798
        %v888 = vpop.permute.xlu0 %887
        %v889 = vlaneseq
        %v890 = vshrl.u32 %v889, 7
        %v891 = vadd.s32 %v890, 120
        %892 = vset.pattern.permute.xlu0 %v891
        %893 = vperm.xlu0 %892, %v798
        %v894 = vpop.permute.xlu0 %893
        %v895 = vld [vmem:[#allocation17] sm:$0xff]
        %v896 = vld [vmem:[#allocation17 + $0x8] sm:$0xff]
        %v897 = vld [vmem:[#allocation17 + $0x10] sm:$0xff]
        %v898 = vld [vmem:[#allocation17 + $0x18] sm:$0xff]
        %v899 = vmul.f32 %v706, %v698
        %v900 = vmul.f32 %v712, %v698
        %v901 = vmul.f32 %v718, %v698
        %v902 = vmul.f32 %v724, %v698
        %v903 = vmul.f32 %v804, %v696
        %v904 = vmul.f32 %v810, %v696
        %v905 = vmul.f32 %v816, %v696
        %v906 = vmul.f32 %v822, %v696
        %v907 = vmax.f32 %v899, %v903
        %v908 = vmax.f32 %v900, %v904
        %v909 = vmax.f32 %v901, %v905
        %v910 = vmax.f32 %v902, %v906
        %v911 = vadd.f32 %v895, 0.00025
        %v912 = vadd.f32 %v896, 0.00025
        %v913 = vadd.f32 %v897, 0.00025
        %v914 = vadd.f32 %v898, 0.00025
        %v915 = vsub.f32 %v911, %v907
        %v916 = vsub.f32 %v912, %v908
        %v917 = vsub.f32 %v913, %v909
        %v918 = vsub.f32 %v914, %v910
        %v919 = vmax.f32 %v915, 0.0
        %v920 = vmax.f32 %v916, 0.0
        %v921 = vmax.f32 %v917, 0.0
        %v922 = vmax.f32 %v918, 0.0
        %v923 = vmin.f32 %v919, 1.0
        %v924 = vmin.f32 %v920, 1.0
        %v925 = vmin.f32 %v921, 1.0
        %v926 = vmin.f32 %v922, 1.0
        %v927 = vld [vmem:[%s3] sm:$0xff]
        %v928 = vld [vmem:[%s3 + $0x8] sm:$0xff]
        %v929 = vld [vmem:[%s3 + $0x10] sm:$0xff]
        %v930 = vld [vmem:[%s3 + $0x18] sm:$0xff]
        %vm931 = vcmp.ne.f32.partialorder %v927, 0.0
        %vm932 = vcmp.ne.f32.partialorder %v928, 0.0
        %vm933 = vcmp.ne.f32.partialorder %v929, 0.0
        %vm934 = vcmp.ne.f32.partialorder %v930, 0.0
        %v935 = vsel %vm931, %v923, %v895
        %v936 = vsel %vm932, %v924, %v896
        %v937 = vsel %vm933, %v925, %v897
        %v938 = vsel %vm934, %v926, %v898
        %939 = vst [vmem:[#allocation17] sm:$0xff] %v935
        %940 = vst [vmem:[#allocation17 + $0x8] sm:$0xff] %v936
        %941 = vst [vmem:[#allocation17 + $0x10] sm:$0xff] %v937
        %942 = vst [vmem:[#allocation17 + $0x18] sm:$0xff] %v938
        %v943 = vld [vmem:[#allocation17 + $0x20] sm:$0xff]
        %v944 = vld [vmem:[#allocation17 + $0x28] sm:$0xff]
        %v945 = vld [vmem:[#allocation17 + $0x30] sm:$0xff]
        %v946 = vld [vmem:[#allocation17 + $0x38] sm:$0xff]
        %v947 = vmul.f32 %v730, %v698
        %v948 = vmul.f32 %v736, %v698
        %v949 = vmul.f32 %v742, %v698
        %v950 = vmul.f32 %v748, %v698
        %v951 = vmul.f32 %v828, %v696
        %v952 = vmul.f32 %v834, %v696
        %v953 = vmul.f32 %v840, %v696
        %v954 = vmul.f32 %v846, %v696
        %v955 = vmax.f32 %v947, %v951
        %v956 = vmax.f32 %v948, %v952
        %v957 = vmax.f32 %v949, %v953
        %v958 = vmax.f32 %v950, %v954
        %v959 = vadd.f32 %v943, 0.00025
        %v960 = vadd.f32 %v944, 0.00025
        %v961 = vadd.f32 %v945, 0.00025
        %v962 = vadd.f32 %v946, 0.00025
        %v963 = vsub.f32 %v959, %v955
        %v964 = vsub.f32 %v960, %v956
        %v965 = vsub.f32 %v961, %v957
        %v966 = vsub.f32 %v962, %v958
        %v967 = vmax.f32 %v963, 0.0
        %v968 = vmax.f32 %v964, 0.0
        %v969 = vmax.f32 %v965, 0.0
        %v970 = vmax.f32 %v966, 0.0
        %v971 = vmin.f32 %v967, 1.0
        %v972 = vmin.f32 %v968, 1.0
        %v973 = vmin.f32 %v969, 1.0
        %v974 = vmin.f32 %v970, 1.0
        %v975 = vld [vmem:[%s3 + $0x20] sm:$0xff]
        %v976 = vld [vmem:[%s3 + $0x28] sm:$0xff]
        %v977 = vld [vmem:[%s3 + $0x30] sm:$0xff]
        %v978 = vld [vmem:[%s3 + $0x38] sm:$0xff]
        %vm979 = vcmp.ne.f32.partialorder %v975, 0.0
        %vm980 = vcmp.ne.f32.partialorder %v976, 0.0
        %vm981 = vcmp.ne.f32.partialorder %v977, 0.0
        %vm982 = vcmp.ne.f32.partialorder %v978, 0.0
        %v983 = vsel %vm979, %v971, %v943
        %v984 = vsel %vm980, %v972, %v944
        %v985 = vsel %vm981, %v973, %v945
        %v986 = vsel %vm982, %v974, %v946
        %987 = vst [vmem:[#allocation17 + $0x20] sm:$0xff] %v983
        %988 = vst [vmem:[#allocation17 + $0x28] sm:$0xff] %v984
        %989 = vst [vmem:[#allocation17 + $0x30] sm:$0xff] %v985
        %990 = vst [vmem:[#allocation17 + $0x38] sm:$0xff] %v986
        %v991 = vld [vmem:[#allocation17 + $0x40] sm:$0xff]
        %v992 = vld [vmem:[#allocation17 + $0x48] sm:$0xff]
        %v993 = vld [vmem:[#allocation17 + $0x50] sm:$0xff]
        %v994 = vld [vmem:[#allocation17 + $0x58] sm:$0xff]
        %v995 = vmul.f32 %v754, %v698
        %v996 = vmul.f32 %v760, %v698
        %v997 = vmul.f32 %v766, %v698
        %v998 = vmul.f32 %v772, %v698
        %v999 = vmul.f32 %v852, %v696
        %v1000 = vmul.f32 %v858, %v696
        %v1001 = vmul.f32 %v864, %v696
        %v1002 = vmul.f32 %v870, %v696
        %v1003 = vmax.f32 %v995, %v999
        %v1004 = vmax.f32 %v996, %v1000
        %v1005 = vmax.f32 %v997, %v1001
        %v1006 = vmax.f32 %v998, %v1002
        %v1007 = vadd.f32 %v991, 0.00025
        %v1008 = vadd.f32 %v992, 0.00025
        %v1009 = vadd.f32 %v993, 0.00025
        %v1010 = vadd.f32 %v994, 0.00025
        %v1011 = vsub.f32 %v1007, %v1003
        %v1012 = vsub.f32 %v1008, %v1004
        %v1013 = vsub.f32 %v1009, %v1005
        %v1014 = vsub.f32 %v1010, %v1006
        %v1015 = vmax.f32 %v1011, 0.0
        %v1016 = vmax.f32 %v1012, 0.0
        %v1017 = vmax.f32 %v1013, 0.0
        %v1018 = vmax.f32 %v1014, 0.0
        %v1019 = vmin.f32 %v1015, 1.0
        %v1020 = vmin.f32 %v1016, 1.0
        %v1021 = vmin.f32 %v1017, 1.0
        %v1022 = vmin.f32 %v1018, 1.0
        %v1023 = vld [vmem:[%s3 + $0x40] sm:$0xff]
        %v1024 = vld [vmem:[%s3 + $0x48] sm:$0xff]
        %v1025 = vld [vmem:[%s3 + $0x50] sm:$0xff]
        %v1026 = vld [vmem:[%s3 + $0x58] sm:$0xff]
        %vm1027 = vcmp.ne.f32.partialorder %v1023, 0.0
        %vm1028 = vcmp.ne.f32.partialorder %v1024, 0.0
        %vm1029 = vcmp.ne.f32.partialorder %v1025, 0.0
        %vm1030 = vcmp.ne.f32.partialorder %v1026, 0.0
        %v1031 = vsel %vm1027, %v1019, %v991
        %v1032 = vsel %vm1028, %v1020, %v992
        %v1033 = vsel %vm1029, %v1021, %v993
        %v1034 = vsel %vm1030, %v1022, %v994
        %1035 = vst [vmem:[#allocation17 + $0x40] sm:$0xff] %v1031
        %1036 = vst [vmem:[#allocation17 + $0x48] sm:$0xff] %v1032
        %1037 = vst [vmem:[#allocation17 + $0x50] sm:$0xff] %v1033
        %1038 = vst [vmem:[#allocation17 + $0x58] sm:$0xff] %v1034
        %v1039 = vld [vmem:[#allocation17 + $0x60] sm:$0xff]
        %v1040 = vld [vmem:[#allocation17 + $0x68] sm:$0xff]
        %v1041 = vld [vmem:[#allocation17 + $0x70] sm:$0xff]
        %v1042 = vld [vmem:[#allocation17 + $0x78] sm:$0xff]
        %v1043 = vmul.f32 %v778, %v698
        %v1044 = vmul.f32 %v784, %v698
        %v1045 = vmul.f32 %v790, %v698
        %v1046 = vmul.f32 %v796, %v698
        %v1047 = vmul.f32 %v876, %v696
        %v1048 = vmul.f32 %v882, %v696
        %v1049 = vmul.f32 %v888, %v696
        %v1050 = vmul.f32 %v894, %v696
        %v1051 = vmax.f32 %v1043, %v1047
        %v1052 = vmax.f32 %v1044, %v1048
        %v1053 = vmax.f32 %v1045, %v1049
        %v1054 = vmax.f32 %v1046, %v1050
        %v1055 = vadd.f32 %v1039, 0.00025
        %v1056 = vadd.f32 %v1040, 0.00025
        %v1057 = vadd.f32 %v1041, 0.00025
        %v1058 = vadd.f32 %v1042, 0.00025
        %v1059 = vsub.f32 %v1055, %v1051
        %v1060 = vsub.f32 %v1056, %v1052
        %v1061 = vsub.f32 %v1057, %v1053
        %v1062 = vsub.f32 %v1058, %v1054
        %v1063 = vmax.f32 %v1059, 0.0
        %v1064 = vmax.f32 %v1060, 0.0
        %v1065 = vmax.f32 %v1061, 0.0
        %v1066 = vmax.f32 %v1062, 0.0
        %v1067 = vmin.f32 %v1063, 1.0
        %v1068 = vmin.f32 %v1064, 1.0
        %v1069 = vmin.f32 %v1065, 1.0
        %v1070 = vmin.f32 %v1066, 1.0
        %v1071 = vld [vmem:[%s3 + $0x60] sm:$0xff]
        %v1072 = vld [vmem:[%s3 + $0x68] sm:$0xff]
        %v1073 = vld [vmem:[%s3 + $0x70] sm:$0xff]
        %v1074 = vld [vmem:[%s3 + $0x78] sm:$0xff]
        %vm1075 = vcmp.ne.f32.partialorder %v1071, 0.0
        %vm1076 = vcmp.ne.f32.partialorder %v1072, 0.0
        %vm1077 = vcmp.ne.f32.partialorder %v1073, 0.0
        %vm1078 = vcmp.ne.f32.partialorder %v1074, 0.0
        %v1079 = vsel %vm1075, %v1067, %v1039
        %v1080 = vsel %vm1076, %v1068, %v1040
        %v1081 = vsel %vm1077, %v1069, %v1041
        %v1082 = vsel %vm1078, %v1070, %v1042
        %1083 = vst [vmem:[#allocation17 + $0x60] sm:$0xff] %v1079
        %1084 = vst [vmem:[#allocation17 + $0x68] sm:$0xff] %v1080
        %1085 = vst [vmem:[#allocation17 + $0x70] sm:$0xff] %v1081
        %1086 = vst [vmem:[#allocation17 + $0x78] sm:$0xff] %v1082
        %v1087 = vld [vmem:[#allocation17] sm:$0xff]
        %v1088 = vld [vmem:[#allocation17 + $0x8] sm:$0xff]
        %v1089 = vld [vmem:[#allocation17 + $0x10] sm:$0xff]
        %v1090 = vld [vmem:[#allocation17 + $0x18] sm:$0xff]
        %v1091 = vld [vmem:[#allocation17 + $0x20] sm:$0xff]
        %v1092 = vld [vmem:[#allocation17 + $0x28] sm:$0xff]
        %v1093 = vld [vmem:[#allocation17 + $0x30] sm:$0xff]
        %v1094 = vld [vmem:[#allocation17 + $0x38] sm:$0xff]
        %v1095 = vld [vmem:[#allocation17 + $0x40] sm:$0xff]
        %v1096 = vld [vmem:[#allocation17 + $0x48] sm:$0xff]
        %v1097 = vld [vmem:[#allocation17 + $0x50] sm:$0xff]
        %v1098 = vld [vmem:[#allocation17 + $0x58] sm:$0xff]
        %v1099 = vld [vmem:[#allocation17 + $0x60] sm:$0xff]
        %v1100 = vld [vmem:[#allocation17 + $0x68] sm:$0xff]
        %v1101 = vld [vmem:[#allocation17 + $0x70] sm:$0xff]
        %v1102 = vld [vmem:[#allocation17 + $0x78] sm:$0xff]
        %1103 = vmatpush.msra.mxu0 %v1102
        %1104 = vmatpush.msra.mxu0 %v1101
        %1105 = vmatpush.msra.mxu0 %v1100
        %1106 = vmatpush.msra.mxu0 %v1099
        %1107 = vmatpush.msra.mxu0 %v1098
        %1108 = vmatpush.msra.mxu0 %v1097
        %1109 = vmatpush.msra.mxu0 %v1096
        %1110 = vmatpush.msra.mxu0 %v1095
        %1111 = vmatpush.msra.mxu0 %v1094
        %1112 = vmatpush.msra.mxu0 %v1093
        %1113 = vmatpush.msra.mxu0 %v1092
        %1114 = vmatpush.msra.mxu0 %v1091
        %1115 = vmatpush.msra.mxu0 %v1090
        %1116 = vmatpush.msra.mxu0 %v1089
        %1117 = vmatpush.msra.mxu0 %v1088
        %1118 = vmatpush.msra.mxu0 %v1087
        %1119 = vmatmul.f32.gmra.mxu0 %v670
        %v1120 = vpop.f32.mrf.mxu0
        %v1121 = vadd.f32 0.0, %v1120
        %1122 = vdwg.mxu0
        %v1123 = vld [vmem:[#allocation25] sm:$0xff]
        %vm1124 = vcmp.gt.s32.totalorder %v1123, 0
        %v1125 = vsub.s32 %v1123, 1
        %v1126 = vsel %vm1124, %v1125, %v1123
        %vm1127 = vcmp.eq.s32.totalorder %v1126, 0
        %v1128 = vld [vmem:[#allocation20] sm:$0xff]
        %v1129 = vld [vmem:[#allocation23] sm:$0xff]
        %v1130 = vld [vmem:[%s610] sm:$0xff]
        %v1131 = vadd.f32 %v1130, %v1121
        %v1132 = vadd.f32 %v1131, %v1128
        %v1133 = vsel %vm1127, %v1132, %v1128
        %1134 = vmatpush.xpose.msra.mxu0 %v1102
        %1135 = vmatpush.xpose.msra.mxu0 %v1101
        %1136 = vmatpush.xpose.msra.mxu0 %v1100
        %1137 = vmatpush.xpose.msra.mxu0 %v1099
        %1138 = vmatpush.xpose.msra.mxu0 %v1098
        %1139 = vmatpush.xpose.msra.mxu0 %v1097
        %1140 = vmatpush.xpose.msra.mxu0 %v1096
        %1141 = vmatpush.xpose.msra.mxu0 %v1095
        %1142 = vmatpush.xpose.msra.mxu0 %v1094
        %1143 = vmatpush.xpose.msra.mxu0 %v1093
        %1144 = vmatpush.xpose.msra.mxu0 %v1092
        %1145 = vmatpush.xpose.msra.mxu0 %v1091
        %1146 = vmatpush.xpose.msra.mxu0 %v1090
        %1147 = vmatpush.xpose.msra.mxu0 %v1089
        %1148 = vmatpush.xpose.msra.mxu0 %v1088
        %1149 = vmatpush.xpose.msra.mxu0 %v1087
        %1150 = vmatmul.f32.gmra.mxu0 %v670
        %v1151 = vpop.f32.mrf.mxu0
        %v1152 = vadd.f32 %v1129, %v1151
        %1153 = vdwg.mxu0
        %v1154 = vsel %vm1127, %v1152, %v1129
        %v1155 = vadd.f32 %v1133, %v665
        %v1156 = vsel %vm1127, %v1155, %v665
        %v1157 = vadd.f32 %v1154, %v666
        %v1158 = vsel %vm1127, %v1157, %v666
        %v1159 = vmul.f32 %v1156, 0.9801987
        %v1160 = vmul.f32 %v1133, 0.36787945
        %v1161 = vmul.f32 %v1158, 0.9801987
        %v1162 = vmul.f32 %v1154, 0.36787945
        %v1163 = vsel %vm667, 0.0, %v1159
        %v1164 = vsel %vm668, 0.0, %v1161
        %v1165 = vsel %vm667, 2, %v1126
        %v1166 = vpack.c.bf16 %v670, %v670
        %1167 = vst [vmem:[%s591] sm:$0xf] %v1166
        %1168 = vst [vmem:[#allocation19] sm:$0xff] %v1163
        %1169 = vst [vmem:[#allocation20] sm:$0xff] %v1160
        %1170 = vst [vmem:[#allocation22] sm:$0xff] %v1164
        %1171 = vst [vmem:[#allocation23] sm:$0xff] %v1162
        %1172 = vst [vmem:[#allocation25] sm:$0xff] %v1165
        %s1173 = sadd.s32 %s663, 1
        %s1174 = scvt.s32.f32 %s1173
        %v1175 = vld [vmem:[#allocation19] sm:$0xff]
        %v1176 = vld [vmem:[#allocation22] sm:$0xff]
        %vm1177 = vcmp.gt.f32.partialorder %v1175, 1.0
        %vm1178 = vcmp.gt.f32.partialorder %v1176, 1.025
        %v1179 = vsel %vm1177, 1, 0
        %v1180 = vcvt.s32.f32 %v1179
        %v1181 = vld [vmem:[#allocation26] sm:$0xff]
        %v1182 = vstv %s1174
        %v1183 = vsel %vm1177, %v1182, %v1181
        %1184 = vst [vmem:[#allocation26] sm:$0xff] %v1183
        %v1185 = vsel %vm1178, 1, 0
        %v1186 = vcvt.s32.f32 %v1185
        %v1187 = vrot.slane %v1186, 4
        %v1188 = vmax.f32 %v1186, %v1187
        %v1189 = vrot.slane %v1188, 2
        %v1190 = vmax.f32 %v1188, %v1189
        %v1191 = vrot.slane %v1190, 1
        %v1192 = vmax.f32 %v1190, %v1191
        %v1193 = vrot.slane %v1183, 4
        %v1194 = vmax.f32 %v1183, %v1193
        %v1195 = vrot.slane %v1194, 2
        %v1196 = vmax.f32 %v1194, %v1195
        %v1197 = vrot.slane %v1196, 1
        %v1198 = vmax.f32 %v1196, %v1197
        %1199 = vmax.xlane.f32.xlu0 %v1198
        %v1200 = vpop.xlane.xlu0 %1199
        %v1201 = vsub.f32 %v1200, %v1198
        %v1202 = vmul.f32 %v1201, 0.02
        %v1203 = vmin.f32 %v1202, 80.0
        %v1204 = vsub.f32 0.0, %v1203
        %v1205 = vmul.f32 %v1204, 1.442695
        %v1206 = vpow.pop %v1205
        %v1207 = vmul.f32 %v1203, 1.442695
        %v1208 = vpow.pop %v1207
        %v1209 = vmul.f32 %v1192, %v1206
        %v1210 = vmul.f32 %v1209, 0.025
        %v1211 = vlaneseq
        %v1212 = vshrl.u32 %v1211, 7
        %1214 = vset.pattern.permute.xlu0 %v1212
        %1215 = vperm.xlu0 %1214, %v1210
        %v1216 = vpop.permute.xlu0 %1215
        %v1217 = vlaneseq
        %v1218 = vshrl.u32 %v1217, 7
        %v1219 = vadd.s32 %v1218, 8
        %1220 = vset.pattern.permute.xlu0 %v1219
        %1221 = vperm.xlu0 %1220, %v1210
        %v1222 = vpop.permute.xlu0 %1221
        %v1223 = vlaneseq
        %v1224 = vshrl.u32 %v1223, 7
        %v1225 = vadd.s32 %v1224, 16
        %1226 = vset.pattern.permute.xlu0 %v1225
        %1227 = vperm.xlu0 %1226, %v1210
        %v1228 = vpop.permute.xlu0 %1227
        %v1229 = vlaneseq
        %v1230 = vshrl.u32 %v1229, 7
        %v1231 = vadd.s32 %v1230, 24
        %1232 = vset.pattern.permute.xlu0 %v1231
        %1233 = vperm.xlu0 %1232, %v1210
        %v1234 = vpop.permute.xlu0 %1233
        %v1235 = vlaneseq
        %v1236 = vshrl.u32 %v1235, 7
        %v1237 = vadd.s32 %v1236, 32
        %1238 = vset.pattern.permute.xlu0 %v1237
        %1239 = vperm.xlu0 %1238, %v1210
        %v1240 = vpop.permute.xlu0 %1239
        %v1241 = vlaneseq
        %v1242 = vshrl.u32 %v1241, 7
        %v1243 = vadd.s32 %v1242, 40
        %1244 = vset.pattern.permute.xlu0 %v1243
        %1245 = vperm.xlu0 %1244, %v1210
        %v1246 = vpop.permute.xlu0 %1245
        %v1247 = vlaneseq
        %v1248 = vshrl.u32 %v1247, 7
        %v1249 = vadd.s32 %v1248, 48
        %1250 = vset.pattern.permute.xlu0 %v1249
        %1251 = vperm.xlu0 %1250, %v1210
        %v1252 = vpop.permute.xlu0 %1251
        %v1253 = vlaneseq
        %v1254 = vshrl.u32 %v1253, 7
        %v1255 = vadd.s32 %v1254, 56
        %1256 = vset.pattern.permute.xlu0 %v1255
        %1257 = vperm.xlu0 %1256, %v1210
        %v1258 = vpop.permute.xlu0 %1257
        %v1259 = vlaneseq
        %v1260 = vshrl.u32 %v1259, 7
        %v1261 = vadd.s32 %v1260, 64
        %1262 = vset.pattern.permute.xlu0 %v1261
        %1263 = vperm.xlu0 %1262, %v1210
        %v1264 = vpop.permute.xlu0 %1263
        %v1265 = vlaneseq
        %v1266 = vshrl.u32 %v1265, 7
        %v1267 = vadd.s32 %v1266, 72
        %1268 = vset.pattern.permute.xlu0 %v1267
        %1269 = vperm.xlu0 %1268, %v1210
        %v1270 = vpop.permute.xlu0 %1269
        %v1271 = vlaneseq
        %v1272 = vshrl.u32 %v1271, 7
        %v1273 = vadd.s32 %v1272, 80
        %1274 = vset.pattern.permute.xlu0 %v1273
        %1275 = vperm.xlu0 %1274, %v1210
        %v1276 = vpop.permute.xlu0 %1275
        %v1277 = vlaneseq
        %v1278 = vshrl.u32 %v1277, 7
        %v1279 = vadd.s32 %v1278, 88
        %1280 = vset.pattern.permute.xlu0 %v1279
        %1281 = vperm.xlu0 %1280, %v1210
        %v1282 = vpop.permute.xlu0 %1281
        %v1283 = vlaneseq
        %v1284 = vshrl.u32 %v1283, 7
        %v1285 = vadd.s32 %v1284, 96
        %1286 = vset.pattern.permute.xlu0 %v1285
        %1287 = vperm.xlu0 %1286, %v1210
        %v1288 = vpop.permute.xlu0 %1287
        %v1289 = vlaneseq
        %v1290 = vshrl.u32 %v1289, 7
        %v1291 = vadd.s32 %v1290, 104
        %1292 = vset.pattern.permute.xlu0 %v1291
        %1293 = vperm.xlu0 %1292, %v1210
        %v1294 = vpop.permute.xlu0 %1293
        %v1295 = vlaneseq
        %v1296 = vshrl.u32 %v1295, 7
        %v1297 = vadd.s32 %v1296, 112
        %1298 = vset.pattern.permute.xlu0 %v1297
        %1299 = vperm.xlu0 %1298, %v1210
        %v1300 = vpop.permute.xlu0 %1299
        %v1301 = vlaneseq
        %v1302 = vshrl.u32 %v1301, 7
        %v1303 = vadd.s32 %v1302, 120
        %1304 = vset.pattern.permute.xlu0 %v1303
        %1305 = vperm.xlu0 %1304, %v1210
        %v1306 = vpop.permute.xlu0 %1305
        %v1307 = vmul.f32 %v1192, %v1208
        %v1308 = vmul.f32 %v1307, 0.025
        %v1309 = vlaneseq
        %v1310 = vshrl.u32 %v1309, 7
        %1312 = vset.pattern.permute.xlu0 %v1310
        %1313 = vperm.xlu0 %1312, %v1308
        %v1314 = vpop.permute.xlu0 %1313
        %v1315 = vlaneseq
        %v1316 = vshrl.u32 %v1315, 7
        %v1317 = vadd.s32 %v1316, 8
        %1318 = vset.pattern.permute.xlu0 %v1317
        %1319 = vperm.xlu0 %1318, %v1308
        %v1320 = vpop.permute.xlu0 %1319
        %v1321 = vlaneseq
        %v1322 = vshrl.u32 %v1321, 7
        %v1323 = vadd.s32 %v1322, 16
        %1324 = vset.pattern.permute.xlu0 %v1323
        %1325 = vperm.xlu0 %1324, %v1308
        %v1326 = vpop.permute.xlu0 %1325
        %v1327 = vlaneseq
        %v1328 = vshrl.u32 %v1327, 7
        %v1329 = vadd.s32 %v1328, 24
        %1330 = vset.pattern.permute.xlu0 %v1329
        %1331 = vperm.xlu0 %1330, %v1308
        %v1332 = vpop.permute.xlu0 %1331
        %v1333 = vlaneseq
        %v1334 = vshrl.u32 %v1333, 7
        %v1335 = vadd.s32 %v1334, 32
        %1336 = vset.pattern.permute.xlu0 %v1335
        %1337 = vperm.xlu0 %1336, %v1308
        %v1338 = vpop.permute.xlu0 %1337
        %v1339 = vlaneseq
        %v1340 = vshrl.u32 %v1339, 7
        %v1341 = vadd.s32 %v1340, 40
        %1342 = vset.pattern.permute.xlu0 %v1341
        %1343 = vperm.xlu0 %1342, %v1308
        %v1344 = vpop.permute.xlu0 %1343
        %v1345 = vlaneseq
        %v1346 = vshrl.u32 %v1345, 7
        %v1347 = vadd.s32 %v1346, 48
        %1348 = vset.pattern.permute.xlu0 %v1347
        %1349 = vperm.xlu0 %1348, %v1308
        %v1350 = vpop.permute.xlu0 %1349
        %v1351 = vlaneseq
        %v1352 = vshrl.u32 %v1351, 7
        %v1353 = vadd.s32 %v1352, 56
        %1354 = vset.pattern.permute.xlu0 %v1353
        %1355 = vperm.xlu0 %1354, %v1308
        %v1356 = vpop.permute.xlu0 %1355
        %v1357 = vlaneseq
        %v1358 = vshrl.u32 %v1357, 7
        %v1359 = vadd.s32 %v1358, 64
        %1360 = vset.pattern.permute.xlu0 %v1359
        %1361 = vperm.xlu0 %1360, %v1308
        %v1362 = vpop.permute.xlu0 %1361
        %v1363 = vlaneseq
        %v1364 = vshrl.u32 %v1363, 7
        %v1365 = vadd.s32 %v1364, 72
        %1366 = vset.pattern.permute.xlu0 %v1365
        %1367 = vperm.xlu0 %1366, %v1308
        %v1368 = vpop.permute.xlu0 %1367
        %v1369 = vlaneseq
        %v1370 = vshrl.u32 %v1369, 7
        %v1371 = vadd.s32 %v1370, 80
        %1372 = vset.pattern.permute.xlu0 %v1371
        %1373 = vperm.xlu0 %1372, %v1308
        %v1374 = vpop.permute.xlu0 %1373
        %v1375 = vlaneseq
        %v1376 = vshrl.u32 %v1375, 7
        %v1377 = vadd.s32 %v1376, 88
        %1378 = vset.pattern.permute.xlu0 %v1377
        %1379 = vperm.xlu0 %1378, %v1308
        %v1380 = vpop.permute.xlu0 %1379
        %v1381 = vlaneseq
        %v1382 = vshrl.u32 %v1381, 7
        %v1383 = vadd.s32 %v1382, 96
        %1384 = vset.pattern.permute.xlu0 %v1383
        %1385 = vperm.xlu0 %1384, %v1308
        %v1386 = vpop.permute.xlu0 %1385
        %v1387 = vlaneseq
        %v1388 = vshrl.u32 %v1387, 7
        %v1389 = vadd.s32 %v1388, 104
        %1390 = vset.pattern.permute.xlu0 %v1389
        %1391 = vperm.xlu0 %1390, %v1308
        %v1392 = vpop.permute.xlu0 %1391
        %v1393 = vlaneseq
        %v1394 = vshrl.u32 %v1393, 7
        %v1395 = vadd.s32 %v1394, 112
        %1396 = vset.pattern.permute.xlu0 %v1395
        %1397 = vperm.xlu0 %1396, %v1308
        %v1398 = vpop.permute.xlu0 %1397
        %v1399 = vlaneseq
        %v1400 = vshrl.u32 %v1399, 7
        %v1401 = vadd.s32 %v1400, 120
        %1402 = vset.pattern.permute.xlu0 %v1401
        %1403 = vperm.xlu0 %1402, %v1308
        %v1404 = vpop.permute.xlu0 %1403
        %v1405 = vld [vmem:[#allocation17] sm:$0xff]
        %v1406 = vld [vmem:[#allocation17 + $0x8] sm:$0xff]
        %v1407 = vld [vmem:[#allocation17 + $0x10] sm:$0xff]
        %v1408 = vld [vmem:[#allocation17 + $0x18] sm:$0xff]
        %v1409 = vmul.f32 %v1216, %v1208
        %v1410 = vmul.f32 %v1222, %v1208
        %v1411 = vmul.f32 %v1228, %v1208
        %v1412 = vmul.f32 %v1234, %v1208
        %v1413 = vmul.f32 %v1314, %v1206
        %v1414 = vmul.f32 %v1320, %v1206
        %v1415 = vmul.f32 %v1326, %v1206
        %v1416 = vmul.f32 %v1332, %v1206
        %v1417 = vmax.f32 %v1409, %v1413
        %v1418 = vmax.f32 %v1410, %v1414
        %v1419 = vmax.f32 %v1411, %v1415
        %v1420 = vmax.f32 %v1412, %v1416
        %v1421 = vadd.f32 %v1405, 0.00025
        %v1422 = vadd.f32 %v1406, 0.00025
        %v1423 = vadd.f32 %v1407, 0.00025
        %v1424 = vadd.f32 %v1408, 0.00025
        %v1425 = vsub.f32 %v1421, %v1417
        %v1426 = vsub.f32 %v1422, %v1418
        %v1427 = vsub.f32 %v1423, %v1419
        %v1428 = vsub.f32 %v1424, %v1420
        %v1429 = vmax.f32 %v1425, 0.0
        %v1430 = vmax.f32 %v1426, 0.0
        %v1431 = vmax.f32 %v1427, 0.0
        %v1432 = vmax.f32 %v1428, 0.0
        %v1433 = vmin.f32 %v1429, 1.0
        %v1434 = vmin.f32 %v1430, 1.0
        %v1435 = vmin.f32 %v1431, 1.0
        %v1436 = vmin.f32 %v1432, 1.0
        %v1437 = vld [vmem:[%s3] sm:$0xff]
        %v1438 = vld [vmem:[%s3 + $0x8] sm:$0xff]
        %v1439 = vld [vmem:[%s3 + $0x10] sm:$0xff]
        %v1440 = vld [vmem:[%s3 + $0x18] sm:$0xff]
        %vm1441 = vcmp.ne.f32.partialorder %v1437, 0.0
        %vm1442 = vcmp.ne.f32.partialorder %v1438, 0.0
        %vm1443 = vcmp.ne.f32.partialorder %v1439, 0.0
        %vm1444 = vcmp.ne.f32.partialorder %v1440, 0.0
        %v1445 = vsel %vm1441, %v1433, %v1405
        %v1446 = vsel %vm1442, %v1434, %v1406
        %v1447 = vsel %vm1443, %v1435, %v1407
        %v1448 = vsel %vm1444, %v1436, %v1408
        %1449 = vst [vmem:[#allocation17] sm:$0xff] %v1445
        %1450 = vst [vmem:[#allocation17 + $0x8] sm:$0xff] %v1446
        %1451 = vst [vmem:[#allocation17 + $0x10] sm:$0xff] %v1447
        %1452 = vst [vmem:[#allocation17 + $0x18] sm:$0xff] %v1448
        %v1453 = vld [vmem:[#allocation17 + $0x20] sm:$0xff]
        %v1454 = vld [vmem:[#allocation17 + $0x28] sm:$0xff]
        %v1455 = vld [vmem:[#allocation17 + $0x30] sm:$0xff]
        %v1456 = vld [vmem:[#allocation17 + $0x38] sm:$0xff]
        %v1457 = vmul.f32 %v1240, %v1208
        %v1458 = vmul.f32 %v1246, %v1208
        %v1459 = vmul.f32 %v1252, %v1208
        %v1460 = vmul.f32 %v1258, %v1208
        %v1461 = vmul.f32 %v1338, %v1206
        %v1462 = vmul.f32 %v1344, %v1206
        %v1463 = vmul.f32 %v1350, %v1206
        %v1464 = vmul.f32 %v1356, %v1206
        %v1465 = vmax.f32 %v1457, %v1461
        %v1466 = vmax.f32 %v1458, %v1462
        %v1467 = vmax.f32 %v1459, %v1463
        %v1468 = vmax.f32 %v1460, %v1464
        %v1469 = vadd.f32 %v1453, 0.00025
        %v1470 = vadd.f32 %v1454, 0.00025
        %v1471 = vadd.f32 %v1455, 0.00025
        %v1472 = vadd.f32 %v1456, 0.00025
        %v1473 = vsub.f32 %v1469, %v1465
        %v1474 = vsub.f32 %v1470, %v1466
        %v1475 = vsub.f32 %v1471, %v1467
        %v1476 = vsub.f32 %v1472, %v1468
        %v1477 = vmax.f32 %v1473, 0.0
        %v1478 = vmax.f32 %v1474, 0.0
        %v1479 = vmax.f32 %v1475, 0.0
        %v1480 = vmax.f32 %v1476, 0.0
        %v1481 = vmin.f32 %v1477, 1.0
        %v1482 = vmin.f32 %v1478, 1.0
        %v1483 = vmin.f32 %v1479, 1.0
        %v1484 = vmin.f32 %v1480, 1.0
        %v1485 = vld [vmem:[%s3 + $0x20] sm:$0xff]
        %v1486 = vld [vmem:[%s3 + $0x28] sm:$0xff]
        %v1487 = vld [vmem:[%s3 + $0x30] sm:$0xff]
        %v1488 = vld [vmem:[%s3 + $0x38] sm:$0xff]
        %vm1489 = vcmp.ne.f32.partialorder %v1485, 0.0
        %vm1490 = vcmp.ne.f32.partialorder %v1486, 0.0
        %vm1491 = vcmp.ne.f32.partialorder %v1487, 0.0
        %vm1492 = vcmp.ne.f32.partialorder %v1488, 0.0
        %v1493 = vsel %vm1489, %v1481, %v1453
        %v1494 = vsel %vm1490, %v1482, %v1454
        %v1495 = vsel %vm1491, %v1483, %v1455
        %v1496 = vsel %vm1492, %v1484, %v1456
        %1497 = vst [vmem:[#allocation17 + $0x20] sm:$0xff] %v1493
        %1498 = vst [vmem:[#allocation17 + $0x28] sm:$0xff] %v1494
        %1499 = vst [vmem:[#allocation17 + $0x30] sm:$0xff] %v1495
        %1500 = vst [vmem:[#allocation17 + $0x38] sm:$0xff] %v1496
        %v1501 = vld [vmem:[#allocation17 + $0x40] sm:$0xff]
        %v1502 = vld [vmem:[#allocation17 + $0x48] sm:$0xff]
        %v1503 = vld [vmem:[#allocation17 + $0x50] sm:$0xff]
        %v1504 = vld [vmem:[#allocation17 + $0x58] sm:$0xff]
        %v1505 = vmul.f32 %v1264, %v1208
        %v1506 = vmul.f32 %v1270, %v1208
        %v1507 = vmul.f32 %v1276, %v1208
        %v1508 = vmul.f32 %v1282, %v1208
        %v1509 = vmul.f32 %v1362, %v1206
        %v1510 = vmul.f32 %v1368, %v1206
        %v1511 = vmul.f32 %v1374, %v1206
        %v1512 = vmul.f32 %v1380, %v1206
        %v1513 = vmax.f32 %v1505, %v1509
        %v1514 = vmax.f32 %v1506, %v1510
        %v1515 = vmax.f32 %v1507, %v1511
        %v1516 = vmax.f32 %v1508, %v1512
        %v1517 = vadd.f32 %v1501, 0.00025
        %v1518 = vadd.f32 %v1502, 0.00025
        %v1519 = vadd.f32 %v1503, 0.00025
        %v1520 = vadd.f32 %v1504, 0.00025
        %v1521 = vsub.f32 %v1517, %v1513
        %v1522 = vsub.f32 %v1518, %v1514
        %v1523 = vsub.f32 %v1519, %v1515
        %v1524 = vsub.f32 %v1520, %v1516
        %v1525 = vmax.f32 %v1521, 0.0
        %v1526 = vmax.f32 %v1522, 0.0
        %v1527 = vmax.f32 %v1523, 0.0
        %v1528 = vmax.f32 %v1524, 0.0
        %v1529 = vmin.f32 %v1525, 1.0
        %v1530 = vmin.f32 %v1526, 1.0
        %v1531 = vmin.f32 %v1527, 1.0
        %v1532 = vmin.f32 %v1528, 1.0
        %v1533 = vld [vmem:[%s3 + $0x40] sm:$0xff]
        %v1534 = vld [vmem:[%s3 + $0x48] sm:$0xff]
        %v1535 = vld [vmem:[%s3 + $0x50] sm:$0xff]
        %v1536 = vld [vmem:[%s3 + $0x58] sm:$0xff]
        %vm1537 = vcmp.ne.f32.partialorder %v1533, 0.0
        %vm1538 = vcmp.ne.f32.partialorder %v1534, 0.0
        %vm1539 = vcmp.ne.f32.partialorder %v1535, 0.0
        %vm1540 = vcmp.ne.f32.partialorder %v1536, 0.0
        %v1541 = vsel %vm1537, %v1529, %v1501
        %v1542 = vsel %vm1538, %v1530, %v1502
        %v1543 = vsel %vm1539, %v1531, %v1503
        %v1544 = vsel %vm1540, %v1532, %v1504
        %1545 = vst [vmem:[#allocation17 + $0x40] sm:$0xff] %v1541
        %1546 = vst [vmem:[#allocation17 + $0x48] sm:$0xff] %v1542
        %1547 = vst [vmem:[#allocation17 + $0x50] sm:$0xff] %v1543
        %1548 = vst [vmem:[#allocation17 + $0x58] sm:$0xff] %v1544
        %v1549 = vld [vmem:[#allocation17 + $0x60] sm:$0xff]
        %v1550 = vld [vmem:[#allocation17 + $0x68] sm:$0xff]
        %v1551 = vld [vmem:[#allocation17 + $0x70] sm:$0xff]
        %v1552 = vld [vmem:[#allocation17 + $0x78] sm:$0xff]
        %v1553 = vmul.f32 %v1288, %v1208
        %v1554 = vmul.f32 %v1294, %v1208
        %v1555 = vmul.f32 %v1300, %v1208
        %v1556 = vmul.f32 %v1306, %v1208
        %v1557 = vmul.f32 %v1386, %v1206
        %v1558 = vmul.f32 %v1392, %v1206
        %v1559 = vmul.f32 %v1398, %v1206
        %v1560 = vmul.f32 %v1404, %v1206
        %v1561 = vmax.f32 %v1553, %v1557
        %v1562 = vmax.f32 %v1554, %v1558
        %v1563 = vmax.f32 %v1555, %v1559
        %v1564 = vmax.f32 %v1556, %v1560
        %v1565 = vadd.f32 %v1549, 0.00025
        %v1566 = vadd.f32 %v1550, 0.00025
        %v1567 = vadd.f32 %v1551, 0.00025
        %v1568 = vadd.f32 %v1552, 0.00025
        %v1569 = vsub.f32 %v1565, %v1561
        %v1570 = vsub.f32 %v1566, %v1562
        %v1571 = vsub.f32 %v1567, %v1563
        %v1572 = vsub.f32 %v1568, %v1564
        %v1573 = vmax.f32 %v1569, 0.0
        %v1574 = vmax.f32 %v1570, 0.0
        %v1575 = vmax.f32 %v1571, 0.0
        %v1576 = vmax.f32 %v1572, 0.0
        %v1577 = vmin.f32 %v1573, 1.0
        %v1578 = vmin.f32 %v1574, 1.0
        %v1579 = vmin.f32 %v1575, 1.0
        %v1580 = vmin.f32 %v1576, 1.0
        %v1581 = vld [vmem:[%s3 + $0x60] sm:$0xff]
        %v1582 = vld [vmem:[%s3 + $0x68] sm:$0xff]
        %v1583 = vld [vmem:[%s3 + $0x70] sm:$0xff]
        %v1584 = vld [vmem:[%s3 + $0x78] sm:$0xff]
        %vm1585 = vcmp.ne.f32.partialorder %v1581, 0.0
        %vm1586 = vcmp.ne.f32.partialorder %v1582, 0.0
        %vm1587 = vcmp.ne.f32.partialorder %v1583, 0.0
        %vm1588 = vcmp.ne.f32.partialorder %v1584, 0.0
        %v1589 = vsel %vm1585, %v1577, %v1549
        %v1590 = vsel %vm1586, %v1578, %v1550
        %v1591 = vsel %vm1587, %v1579, %v1551
        %v1592 = vsel %vm1588, %v1580, %v1552
        %1593 = vst [vmem:[#allocation17 + $0x60] sm:$0xff] %v1589
        %1594 = vst [vmem:[#allocation17 + $0x68] sm:$0xff] %v1590
        %1595 = vst [vmem:[#allocation17 + $0x70] sm:$0xff] %v1591
        %1596 = vst [vmem:[#allocation17 + $0x78] sm:$0xff] %v1592
        %v1597 = vld [vmem:[#allocation17] sm:$0xff]
        %v1598 = vld [vmem:[#allocation17 + $0x8] sm:$0xff]
        %v1599 = vld [vmem:[#allocation17 + $0x10] sm:$0xff]
        %v1600 = vld [vmem:[#allocation17 + $0x18] sm:$0xff]
        %v1601 = vld [vmem:[#allocation17 + $0x20] sm:$0xff]
        %v1602 = vld [vmem:[#allocation17 + $0x28] sm:$0xff]
        %v1603 = vld [vmem:[#allocation17 + $0x30] sm:$0xff]
        %v1604 = vld [vmem:[#allocation17 + $0x38] sm:$0xff]
        %v1605 = vld [vmem:[#allocation17 + $0x40] sm:$0xff]
        %v1606 = vld [vmem:[#allocation17 + $0x48] sm:$0xff]
        %v1607 = vld [vmem:[#allocation17 + $0x50] sm:$0xff]
        %v1608 = vld [vmem:[#allocation17 + $0x58] sm:$0xff]
        %v1609 = vld [vmem:[#allocation17 + $0x60] sm:$0xff]
        %v1610 = vld [vmem:[#allocation17 + $0x68] sm:$0xff]
        %v1611 = vld [vmem:[#allocation17 + $0x70] sm:$0xff]
        %v1612 = vld [vmem:[#allocation17 + $0x78] sm:$0xff]
        %1613 = vmatpush.msra.mxu0 %v1612
        %1614 = vmatpush.msra.mxu0 %v1611
        %1615 = vmatpush.msra.mxu0 %v1610
        %1616 = vmatpush.msra.mxu0 %v1609
        %1617 = vmatpush.msra.mxu0 %v1608
        %1618 = vmatpush.msra.mxu0 %v1607
        %1619 = vmatpush.msra.mxu0 %v1606
        %1620 = vmatpush.msra.mxu0 %v1605
        %1621 = vmatpush.msra.mxu0 %v1604
        %1622 = vmatpush.msra.mxu0 %v1603
        %1623 = vmatpush.msra.mxu0 %v1602
        %1624 = vmatpush.msra.mxu0 %v1601
        %1625 = vmatpush.msra.mxu0 %v1600
        %1626 = vmatpush.msra.mxu0 %v1599
        %1627 = vmatpush.msra.mxu0 %v1598
        %1628 = vmatpush.msra.mxu0 %v1597
        %1629 = vmatmul.f32.gmra.mxu0 %v1180
        %v1630 = vpop.f32.mrf.mxu0
        %v1631 = vadd.f32 0.0, %v1630
        %1632 = vdwg.mxu0
        %v1633 = vld [vmem:[#allocation25] sm:$0xff]
        %vm1634 = vcmp.gt.s32.totalorder %v1633, 0
        %v1635 = vsub.s32 %v1633, 1
        %v1636 = vsel %vm1634, %v1635, %v1633
        %vm1637 = vcmp.eq.s32.totalorder %v1636, 0
        %v1638 = vld [vmem:[#allocation20] sm:$0xff]
        %v1639 = vld [vmem:[#allocation23] sm:$0xff]
        %s1640 = scalar_lea.vmem %s610, 8
        %v1641 = vld [vmem:[%s1640] sm:$0xff]
        %v1642 = vadd.f32 %v1641, %v1631
        %v1643 = vadd.f32 %v1642, %v1638
        %v1644 = vsel %vm1637, %v1643, %v1638
        %1645 = vmatpush.xpose.msra.mxu0 %v1612
        %1646 = vmatpush.xpose.msra.mxu0 %v1611
        %1647 = vmatpush.xpose.msra.mxu0 %v1610
        %1648 = vmatpush.xpose.msra.mxu0 %v1609
        %1649 = vmatpush.xpose.msra.mxu0 %v1608
        %1650 = vmatpush.xpose.msra.mxu0 %v1607
        %1651 = vmatpush.xpose.msra.mxu0 %v1606
        %1652 = vmatpush.xpose.msra.mxu0 %v1605
        %1653 = vmatpush.xpose.msra.mxu0 %v1604
        %1654 = vmatpush.xpose.msra.mxu0 %v1603
        %1655 = vmatpush.xpose.msra.mxu0 %v1602
        %1656 = vmatpush.xpose.msra.mxu0 %v1601
        %1657 = vmatpush.xpose.msra.mxu0 %v1600
        %1658 = vmatpush.xpose.msra.mxu0 %v1599
        %1659 = vmatpush.xpose.msra.mxu0 %v1598
        %1660 = vmatpush.xpose.msra.mxu0 %v1597
        %1661 = vmatmul.f32.gmra.mxu0 %v1180
        %v1662 = vpop.f32.mrf.mxu0
        %v1663 = vadd.f32 %v1639, %v1662
        %1664 = vdwg.mxu0
        %v1665 = vsel %vm1637, %v1663, %v1639
        %v1666 = vadd.f32 %v1644, %v1175
        %v1667 = vsel %vm1637, %v1666, %v1175
        %v1668 = vadd.f32 %v1665, %v1176
        %v1669 = vsel %vm1637, %v1668, %v1176
        %v1670 = vmul.f32 %v1667, 0.9801987
        %v1671 = vmul.f32 %v1644, 0.36787945
        %v1672 = vmul.f32 %v1669, 0.9801987
        %v1673 = vmul.f32 %v1665, 0.36787945
        %v1674 = vsel %vm1177, 0.0, %v1670
        %v1675 = vsel %vm1178, 0.0, %v1672
        %v1676 = vsel %vm1177, 2, %v1636
        %v1677 = vpack.c.bf16 %v1180, %v1180
        %s1678 = scalar_lea.vmem %s591, 4 [#allocation16]
        %1679 = vst [vmem:[%s1678] sm:$0xf] %v1677
        %1680 = vst [vmem:[#allocation19] sm:$0xff] %v1674
        %1681 = vst [vmem:[#allocation20] sm:$0xff] %v1671
        %1682 = vst [vmem:[#allocation22] sm:$0xff] %v1675
        %1683 = vst [vmem:[#allocation23] sm:$0xff] %v1673
        %1684 = vst [vmem:[#allocation25] sm:$0xff] %v1676
        %s1685 = sadd.s32 %s663, 2
        %s1686 = scvt.s32.f32 %s1685
        %v1687 = vld [vmem:[#allocation19] sm:$0xff]
        %v1688 = vld [vmem:[#allocation22] sm:$0xff]
        %vm1689 = vcmp.gt.f32.partialorder %v1687, 1.0
        %vm1690 = vcmp.gt.f32.partialorder %v1688, 1.025
        %v1691 = vsel %vm1689, 1, 0
        %v1692 = vcvt.s32.f32 %v1691
        %v1693 = vld [vmem:[#allocation26] sm:$0xff]
        %v1694 = vstv %s1686
        %v1695 = vsel %vm1689, %v1694, %v1693
        %1696 = vst [vmem:[#allocation26] sm:$0xff] %v1695
        %v1697 = vsel %vm1690, 1, 0
        %v1698 = vcvt.s32.f32 %v1697
        %v1699 = vrot.slane %v1698, 4
        %v1700 = vmax.f32 %v1698, %v1699
        %v1701 = vrot.slane %v1700, 2
        %v1702 = vmax.f32 %v1700, %v1701
        %v1703 = vrot.slane %v1702, 1
        %v1704 = vmax.f32 %v1702, %v1703
        %v1705 = vrot.slane %v1695, 4
        %v1706 = vmax.f32 %v1695, %v1705
        %v1707 = vrot.slane %v1706, 2
        %v1708 = vmax.f32 %v1706, %v1707
        %v1709 = vrot.slane %v1708, 1
        %v1710 = vmax.f32 %v1708, %v1709
        %1711 = vmax.xlane.f32.xlu0 %v1710
        %v1712 = vpop.xlane.xlu0 %1711
        %v1713 = vsub.f32 %v1712, %v1710
        %v1714 = vmul.f32 %v1713, 0.02
        %v1715 = vmin.f32 %v1714, 80.0
        %v1716 = vsub.f32 0.0, %v1715
        %v1717 = vmul.f32 %v1716, 1.442695
        %v1718 = vpow.pop %v1717
        %v1719 = vmul.f32 %v1715, 1.442695
        %v1720 = vpow.pop %v1719
        %v1721 = vmul.f32 %v1704, %v1718
        %v1722 = vmul.f32 %v1721, 0.025
        %v1723 = vlaneseq
        %v1724 = vshrl.u32 %v1723, 7
        %1726 = vset.pattern.permute.xlu0 %v1724
        %1727 = vperm.xlu0 %1726, %v1722
        %v1728 = vpop.permute.xlu0 %1727
        %v1729 = vlaneseq
        %v1730 = vshrl.u32 %v1729, 7
        %v1731 = vadd.s32 %v1730, 8
        %1732 = vset.pattern.permute.xlu0 %v1731
        %1733 = vperm.xlu0 %1732, %v1722
        %v1734 = vpop.permute.xlu0 %1733
        %v1735 = vlaneseq
        %v1736 = vshrl.u32 %v1735, 7
        %v1737 = vadd.s32 %v1736, 16
        %1738 = vset.pattern.permute.xlu0 %v1737
        %1739 = vperm.xlu0 %1738, %v1722
        %v1740 = vpop.permute.xlu0 %1739
        %v1741 = vlaneseq
        %v1742 = vshrl.u32 %v1741, 7
        %v1743 = vadd.s32 %v1742, 24
        %1744 = vset.pattern.permute.xlu0 %v1743
        %1745 = vperm.xlu0 %1744, %v1722
        %v1746 = vpop.permute.xlu0 %1745
        %v1747 = vlaneseq
        %v1748 = vshrl.u32 %v1747, 7
        %v1749 = vadd.s32 %v1748, 32
        %1750 = vset.pattern.permute.xlu0 %v1749
        %1751 = vperm.xlu0 %1750, %v1722
        %v1752 = vpop.permute.xlu0 %1751
        %v1753 = vlaneseq
        %v1754 = vshrl.u32 %v1753, 7
        %v1755 = vadd.s32 %v1754, 40
        %1756 = vset.pattern.permute.xlu0 %v1755
        %1757 = vperm.xlu0 %1756, %v1722
        %v1758 = vpop.permute.xlu0 %1757
        %v1759 = vlaneseq
        %v1760 = vshrl.u32 %v1759, 7
        %v1761 = vadd.s32 %v1760, 48
        %1762 = vset.pattern.permute.xlu0 %v1761
        %1763 = vperm.xlu0 %1762, %v1722
        %v1764 = vpop.permute.xlu0 %1763
        %v1765 = vlaneseq
        %v1766 = vshrl.u32 %v1765, 7
        %v1767 = vadd.s32 %v1766, 56
        %1768 = vset.pattern.permute.xlu0 %v1767
        %1769 = vperm.xlu0 %1768, %v1722
        %v1770 = vpop.permute.xlu0 %1769
        %v1771 = vlaneseq
        %v1772 = vshrl.u32 %v1771, 7
        %v1773 = vadd.s32 %v1772, 64
        %1774 = vset.pattern.permute.xlu0 %v1773
        %1775 = vperm.xlu0 %1774, %v1722
        %v1776 = vpop.permute.xlu0 %1775
        %v1777 = vlaneseq
        %v1778 = vshrl.u32 %v1777, 7
        %v1779 = vadd.s32 %v1778, 72
        %1780 = vset.pattern.permute.xlu0 %v1779
        %1781 = vperm.xlu0 %1780, %v1722
        %v1782 = vpop.permute.xlu0 %1781
        %v1783 = vlaneseq
        %v1784 = vshrl.u32 %v1783, 7
        %v1785 = vadd.s32 %v1784, 80
        %1786 = vset.pattern.permute.xlu0 %v1785
        %1787 = vperm.xlu0 %1786, %v1722
        %v1788 = vpop.permute.xlu0 %1787
        %v1789 = vlaneseq
        %v1790 = vshrl.u32 %v1789, 7
        %v1791 = vadd.s32 %v1790, 88
        %1792 = vset.pattern.permute.xlu0 %v1791
        %1793 = vperm.xlu0 %1792, %v1722
        %v1794 = vpop.permute.xlu0 %1793
        %v1795 = vlaneseq
        %v1796 = vshrl.u32 %v1795, 7
        %v1797 = vadd.s32 %v1796, 96
        %1798 = vset.pattern.permute.xlu0 %v1797
        %1799 = vperm.xlu0 %1798, %v1722
        %v1800 = vpop.permute.xlu0 %1799
        %v1801 = vlaneseq
        %v1802 = vshrl.u32 %v1801, 7
        %v1803 = vadd.s32 %v1802, 104
        %1804 = vset.pattern.permute.xlu0 %v1803
        %1805 = vperm.xlu0 %1804, %v1722
        %v1806 = vpop.permute.xlu0 %1805
        %v1807 = vlaneseq
        %v1808 = vshrl.u32 %v1807, 7
        %v1809 = vadd.s32 %v1808, 112
        %1810 = vset.pattern.permute.xlu0 %v1809
        %1811 = vperm.xlu0 %1810, %v1722
        %v1812 = vpop.permute.xlu0 %1811
        %v1813 = vlaneseq
        %v1814 = vshrl.u32 %v1813, 7
        %v1815 = vadd.s32 %v1814, 120
        %1816 = vset.pattern.permute.xlu0 %v1815
        %1817 = vperm.xlu0 %1816, %v1722
        %v1818 = vpop.permute.xlu0 %1817
        %v1819 = vmul.f32 %v1704, %v1720
        %v1820 = vmul.f32 %v1819, 0.025
        %v1821 = vlaneseq
        %v1822 = vshrl.u32 %v1821, 7
        %1824 = vset.pattern.permute.xlu0 %v1822
        %1825 = vperm.xlu0 %1824, %v1820
        %v1826 = vpop.permute.xlu0 %1825
        %v1827 = vlaneseq
        %v1828 = vshrl.u32 %v1827, 7
        %v1829 = vadd.s32 %v1828, 8
        %1830 = vset.pattern.permute.xlu0 %v1829
        %1831 = vperm.xlu0 %1830, %v1820
        %v1832 = vpop.permute.xlu0 %1831
        %v1833 = vlaneseq
        %v1834 = vshrl.u32 %v1833, 7
        %v1835 = vadd.s32 %v1834, 16
        %1836 = vset.pattern.permute.xlu0 %v1835
        %1837 = vperm.xlu0 %1836, %v1820
        %v1838 = vpop.permute.xlu0 %1837
        %v1839 = vlaneseq
        %v1840 = vshrl.u32 %v1839, 7
        %v1841 = vadd.s32 %v1840, 24
        %1842 = vset.pattern.permute.xlu0 %v1841
        %1843 = vperm.xlu0 %1842, %v1820
        %v1844 = vpop.permute.xlu0 %1843
        %v1845 = vlaneseq
        %v1846 = vshrl.u32 %v1845, 7
        %v1847 = vadd.s32 %v1846, 32
        %1848 = vset.pattern.permute.xlu0 %v1847
        %1849 = vperm.xlu0 %1848, %v1820
        %v1850 = vpop.permute.xlu0 %1849
        %v1851 = vlaneseq
        %v1852 = vshrl.u32 %v1851, 7
        %v1853 = vadd.s32 %v1852, 40
        %1854 = vset.pattern.permute.xlu0 %v1853
        %1855 = vperm.xlu0 %1854, %v1820
        %v1856 = vpop.permute.xlu0 %1855
        %v1857 = vlaneseq
        %v1858 = vshrl.u32 %v1857, 7
        %v1859 = vadd.s32 %v1858, 48
        %1860 = vset.pattern.permute.xlu0 %v1859
        %1861 = vperm.xlu0 %1860, %v1820
        %v1862 = vpop.permute.xlu0 %1861
        %v1863 = vlaneseq
        %v1864 = vshrl.u32 %v1863, 7
        %v1865 = vadd.s32 %v1864, 56
        %1866 = vset.pattern.permute.xlu0 %v1865
        %1867 = vperm.xlu0 %1866, %v1820
        %v1868 = vpop.permute.xlu0 %1867
        %v1869 = vlaneseq
        %v1870 = vshrl.u32 %v1869, 7
        %v1871 = vadd.s32 %v1870, 64
        %1872 = vset.pattern.permute.xlu0 %v1871
        %1873 = vperm.xlu0 %1872, %v1820
        %v1874 = vpop.permute.xlu0 %1873
        %v1875 = vlaneseq
        %v1876 = vshrl.u32 %v1875, 7
        %v1877 = vadd.s32 %v1876, 72
        %1878 = vset.pattern.permute.xlu0 %v1877
        %1879 = vperm.xlu0 %1878, %v1820
        %v1880 = vpop.permute.xlu0 %1879
        %v1881 = vlaneseq
        %v1882 = vshrl.u32 %v1881, 7
        %v1883 = vadd.s32 %v1882, 80
        %1884 = vset.pattern.permute.xlu0 %v1883
        %1885 = vperm.xlu0 %1884, %v1820
        %v1886 = vpop.permute.xlu0 %1885
        %v1887 = vlaneseq
        %v1888 = vshrl.u32 %v1887, 7
        %v1889 = vadd.s32 %v1888, 88
        %1890 = vset.pattern.permute.xlu0 %v1889
        %1891 = vperm.xlu0 %1890, %v1820
        %v1892 = vpop.permute.xlu0 %1891
        %v1893 = vlaneseq
        %v1894 = vshrl.u32 %v1893, 7
        %v1895 = vadd.s32 %v1894, 96
        %1896 = vset.pattern.permute.xlu0 %v1895
        %1897 = vperm.xlu0 %1896, %v1820
        %v1898 = vpop.permute.xlu0 %1897
        %v1899 = vlaneseq
        %v1900 = vshrl.u32 %v1899, 7
        %v1901 = vadd.s32 %v1900, 104
        %1902 = vset.pattern.permute.xlu0 %v1901
        %1903 = vperm.xlu0 %1902, %v1820
        %v1904 = vpop.permute.xlu0 %1903
        %v1905 = vlaneseq
        %v1906 = vshrl.u32 %v1905, 7
        %v1907 = vadd.s32 %v1906, 112
        %1908 = vset.pattern.permute.xlu0 %v1907
        %1909 = vperm.xlu0 %1908, %v1820
        %v1910 = vpop.permute.xlu0 %1909
        %v1911 = vlaneseq
        %v1912 = vshrl.u32 %v1911, 7
        %v1913 = vadd.s32 %v1912, 120
        %1914 = vset.pattern.permute.xlu0 %v1913
        %1915 = vperm.xlu0 %1914, %v1820
        %v1916 = vpop.permute.xlu0 %1915
        %v1917 = vld [vmem:[#allocation17] sm:$0xff]
        %v1918 = vld [vmem:[#allocation17 + $0x8] sm:$0xff]
        %v1919 = vld [vmem:[#allocation17 + $0x10] sm:$0xff]
        %v1920 = vld [vmem:[#allocation17 + $0x18] sm:$0xff]
        %v1921 = vmul.f32 %v1728, %v1720
        %v1922 = vmul.f32 %v1734, %v1720
        %v1923 = vmul.f32 %v1740, %v1720
        %v1924 = vmul.f32 %v1746, %v1720
        %v1925 = vmul.f32 %v1826, %v1718
        %v1926 = vmul.f32 %v1832, %v1718
        %v1927 = vmul.f32 %v1838, %v1718
        %v1928 = vmul.f32 %v1844, %v1718
        %v1929 = vmax.f32 %v1921, %v1925
        %v1930 = vmax.f32 %v1922, %v1926
        %v1931 = vmax.f32 %v1923, %v1927
        %v1932 = vmax.f32 %v1924, %v1928
        %v1933 = vadd.f32 %v1917, 0.00025
        %v1934 = vadd.f32 %v1918, 0.00025
        %v1935 = vadd.f32 %v1919, 0.00025
        %v1936 = vadd.f32 %v1920, 0.00025
        %v1937 = vsub.f32 %v1933, %v1929
        %v1938 = vsub.f32 %v1934, %v1930
        %v1939 = vsub.f32 %v1935, %v1931
        %v1940 = vsub.f32 %v1936, %v1932
        %v1941 = vmax.f32 %v1937, 0.0
        %v1942 = vmax.f32 %v1938, 0.0
        %v1943 = vmax.f32 %v1939, 0.0
        %v1944 = vmax.f32 %v1940, 0.0
        %v1945 = vmin.f32 %v1941, 1.0
        %v1946 = vmin.f32 %v1942, 1.0
        %v1947 = vmin.f32 %v1943, 1.0
        %v1948 = vmin.f32 %v1944, 1.0
        %v1949 = vld [vmem:[%s3] sm:$0xff]
        %v1950 = vld [vmem:[%s3 + $0x8] sm:$0xff]
        %v1951 = vld [vmem:[%s3 + $0x10] sm:$0xff]
        %v1952 = vld [vmem:[%s3 + $0x18] sm:$0xff]
        %vm1953 = vcmp.ne.f32.partialorder %v1949, 0.0
        %vm1954 = vcmp.ne.f32.partialorder %v1950, 0.0
        %vm1955 = vcmp.ne.f32.partialorder %v1951, 0.0
        %vm1956 = vcmp.ne.f32.partialorder %v1952, 0.0
        %v1957 = vsel %vm1953, %v1945, %v1917
        %v1958 = vsel %vm1954, %v1946, %v1918
        %v1959 = vsel %vm1955, %v1947, %v1919
        %v1960 = vsel %vm1956, %v1948, %v1920
        %1961 = vst [vmem:[#allocation17] sm:$0xff] %v1957
        %1962 = vst [vmem:[#allocation17 + $0x8] sm:$0xff] %v1958
        %1963 = vst [vmem:[#allocation17 + $0x10] sm:$0xff] %v1959
        %1964 = vst [vmem:[#allocation17 + $0x18] sm:$0xff] %v1960
        %v1965 = vld [vmem:[#allocation17 + $0x20] sm:$0xff]
        %v1966 = vld [vmem:[#allocation17 + $0x28] sm:$0xff]
        %v1967 = vld [vmem:[#allocation17 + $0x30] sm:$0xff]
        %v1968 = vld [vmem:[#allocation17 + $0x38] sm:$0xff]
        %v1969 = vmul.f32 %v1752, %v1720
        %v1970 = vmul.f32 %v1758, %v1720
        %v1971 = vmul.f32 %v1764, %v1720
        %v1972 = vmul.f32 %v1770, %v1720
        %v1973 = vmul.f32 %v1850, %v1718
        %v1974 = vmul.f32 %v1856, %v1718
        %v1975 = vmul.f32 %v1862, %v1718
        %v1976 = vmul.f32 %v1868, %v1718
        %v1977 = vmax.f32 %v1969, %v1973
        %v1978 = vmax.f32 %v1970, %v1974
        %v1979 = vmax.f32 %v1971, %v1975
        %v1980 = vmax.f32 %v1972, %v1976
        %v1981 = vadd.f32 %v1965, 0.00025
        %v1982 = vadd.f32 %v1966, 0.00025
        %v1983 = vadd.f32 %v1967, 0.00025
        %v1984 = vadd.f32 %v1968, 0.00025
        %v1985 = vsub.f32 %v1981, %v1977
        %v1986 = vsub.f32 %v1982, %v1978
        %v1987 = vsub.f32 %v1983, %v1979
        %v1988 = vsub.f32 %v1984, %v1980
        %v1989 = vmax.f32 %v1985, 0.0
        %v1990 = vmax.f32 %v1986, 0.0
        %v1991 = vmax.f32 %v1987, 0.0
        %v1992 = vmax.f32 %v1988, 0.0
        %v1993 = vmin.f32 %v1989, 1.0
        %v1994 = vmin.f32 %v1990, 1.0
        %v1995 = vmin.f32 %v1991, 1.0
        %v1996 = vmin.f32 %v1992, 1.0
        %v1997 = vld [vmem:[%s3 + $0x20] sm:$0xff]
        %v1998 = vld [vmem:[%s3 + $0x28] sm:$0xff]
        %v1999 = vld [vmem:[%s3 + $0x30] sm:$0xff]
        %v2000 = vld [vmem:[%s3 + $0x38] sm:$0xff]
        %vm2001 = vcmp.ne.f32.partialorder %v1997, 0.0
        %vm2002 = vcmp.ne.f32.partialorder %v1998, 0.0
        %vm2003 = vcmp.ne.f32.partialorder %v1999, 0.0
        %vm2004 = vcmp.ne.f32.partialorder %v2000, 0.0
        %v2005 = vsel %vm2001, %v1993, %v1965
        %v2006 = vsel %vm2002, %v1994, %v1966
        %v2007 = vsel %vm2003, %v1995, %v1967
        %v2008 = vsel %vm2004, %v1996, %v1968
        %2009 = vst [vmem:[#allocation17 + $0x20] sm:$0xff] %v2005
        %2010 = vst [vmem:[#allocation17 + $0x28] sm:$0xff] %v2006
        %2011 = vst [vmem:[#allocation17 + $0x30] sm:$0xff] %v2007
        %2012 = vst [vmem:[#allocation17 + $0x38] sm:$0xff] %v2008
        %v2013 = vld [vmem:[#allocation17 + $0x40] sm:$0xff]
        %v2014 = vld [vmem:[#allocation17 + $0x48] sm:$0xff]
        %v2015 = vld [vmem:[#allocation17 + $0x50] sm:$0xff]
        %v2016 = vld [vmem:[#allocation17 + $0x58] sm:$0xff]
        %v2017 = vmul.f32 %v1776, %v1720
        %v2018 = vmul.f32 %v1782, %v1720
        %v2019 = vmul.f32 %v1788, %v1720
        %v2020 = vmul.f32 %v1794, %v1720
        %v2021 = vmul.f32 %v1874, %v1718
        %v2022 = vmul.f32 %v1880, %v1718
        %v2023 = vmul.f32 %v1886, %v1718
        %v2024 = vmul.f32 %v1892, %v1718
        %v2025 = vmax.f32 %v2017, %v2021
        %v2026 = vmax.f32 %v2018, %v2022
        %v2027 = vmax.f32 %v2019, %v2023
        %v2028 = vmax.f32 %v2020, %v2024
        %v2029 = vadd.f32 %v2013, 0.00025
        %v2030 = vadd.f32 %v2014, 0.00025
        %v2031 = vadd.f32 %v2015, 0.00025
        %v2032 = vadd.f32 %v2016, 0.00025
        %v2033 = vsub.f32 %v2029, %v2025
        %v2034 = vsub.f32 %v2030, %v2026
        %v2035 = vsub.f32 %v2031, %v2027
        %v2036 = vsub.f32 %v2032, %v2028
        %v2037 = vmax.f32 %v2033, 0.0
        %v2038 = vmax.f32 %v2034, 0.0
        %v2039 = vmax.f32 %v2035, 0.0
        %v2040 = vmax.f32 %v2036, 0.0
        %v2041 = vmin.f32 %v2037, 1.0
        %v2042 = vmin.f32 %v2038, 1.0
        %v2043 = vmin.f32 %v2039, 1.0
        %v2044 = vmin.f32 %v2040, 1.0
        %v2045 = vld [vmem:[%s3 + $0x40] sm:$0xff]
        %v2046 = vld [vmem:[%s3 + $0x48] sm:$0xff]
        %v2047 = vld [vmem:[%s3 + $0x50] sm:$0xff]
        %v2048 = vld [vmem:[%s3 + $0x58] sm:$0xff]
        %vm2049 = vcmp.ne.f32.partialorder %v2045, 0.0
        %vm2050 = vcmp.ne.f32.partialorder %v2046, 0.0
        %vm2051 = vcmp.ne.f32.partialorder %v2047, 0.0
        %vm2052 = vcmp.ne.f32.partialorder %v2048, 0.0
        %v2053 = vsel %vm2049, %v2041, %v2013
        %v2054 = vsel %vm2050, %v2042, %v2014
        %v2055 = vsel %vm2051, %v2043, %v2015
        %v2056 = vsel %vm2052, %v2044, %v2016
        %2057 = vst [vmem:[#allocation17 + $0x40] sm:$0xff] %v2053
        %2058 = vst [vmem:[#allocation17 + $0x48] sm:$0xff] %v2054
        %2059 = vst [vmem:[#allocation17 + $0x50] sm:$0xff] %v2055
        %2060 = vst [vmem:[#allocation17 + $0x58] sm:$0xff] %v2056
        %v2061 = vld [vmem:[#allocation17 + $0x60] sm:$0xff]
        %v2062 = vld [vmem:[#allocation17 + $0x68] sm:$0xff]
        %v2063 = vld [vmem:[#allocation17 + $0x70] sm:$0xff]
        %v2064 = vld [vmem:[#allocation17 + $0x78] sm:$0xff]
        %v2065 = vmul.f32 %v1800, %v1720
        %v2066 = vmul.f32 %v1806, %v1720
        %v2067 = vmul.f32 %v1812, %v1720
        %v2068 = vmul.f32 %v1818, %v1720
        %v2069 = vmul.f32 %v1898, %v1718
        %v2070 = vmul.f32 %v1904, %v1718
        %v2071 = vmul.f32 %v1910, %v1718
        %v2072 = vmul.f32 %v1916, %v1718
        %v2073 = vmax.f32 %v2065, %v2069
        %v2074 = vmax.f32 %v2066, %v2070
        %v2075 = vmax.f32 %v2067, %v2071
        %v2076 = vmax.f32 %v2068, %v2072
        %v2077 = vadd.f32 %v2061, 0.00025
        %v2078 = vadd.f32 %v2062, 0.00025
        %v2079 = vadd.f32 %v2063, 0.00025
        %v2080 = vadd.f32 %v2064, 0.00025
        %v2081 = vsub.f32 %v2077, %v2073
        %v2082 = vsub.f32 %v2078, %v2074
        %v2083 = vsub.f32 %v2079, %v2075
        %v2084 = vsub.f32 %v2080, %v2076
        %v2085 = vmax.f32 %v2081, 0.0
        %v2086 = vmax.f32 %v2082, 0.0
        %v2087 = vmax.f32 %v2083, 0.0
        %v2088 = vmax.f32 %v2084, 0.0
        %v2089 = vmin.f32 %v2085, 1.0
        %v2090 = vmin.f32 %v2086, 1.0
        %v2091 = vmin.f32 %v2087, 1.0
        %v2092 = vmin.f32 %v2088, 1.0
        %v2093 = vld [vmem:[%s3 + $0x60] sm:$0xff]
        %v2094 = vld [vmem:[%s3 + $0x68] sm:$0xff]
        %v2095 = vld [vmem:[%s3 + $0x70] sm:$0xff]
        %v2096 = vld [vmem:[%s3 + $0x78] sm:$0xff]
        %vm2097 = vcmp.ne.f32.partialorder %v2093, 0.0
        %vm2098 = vcmp.ne.f32.partialorder %v2094, 0.0
        %vm2099 = vcmp.ne.f32.partialorder %v2095, 0.0
        %vm2100 = vcmp.ne.f32.partialorder %v2096, 0.0
        %v2101 = vsel %vm2097, %v2089, %v2061
        %v2102 = vsel %vm2098, %v2090, %v2062
        %v2103 = vsel %vm2099, %v2091, %v2063
        %v2104 = vsel %vm2100, %v2092, %v2064
        %2105 = vst [vmem:[#allocation17 + $0x60] sm:$0xff] %v2101
        %2106 = vst [vmem:[#allocation17 + $0x68] sm:$0xff] %v2102
        %2107 = vst [vmem:[#allocation17 + $0x70] sm:$0xff] %v2103
        %2108 = vst [vmem:[#allocation17 + $0x78] sm:$0xff] %v2104
        %v2109 = vld [vmem:[#allocation17] sm:$0xff]
        %v2110 = vld [vmem:[#allocation17 + $0x8] sm:$0xff]
        %v2111 = vld [vmem:[#allocation17 + $0x10] sm:$0xff]
        %v2112 = vld [vmem:[#allocation17 + $0x18] sm:$0xff]
        %v2113 = vld [vmem:[#allocation17 + $0x20] sm:$0xff]
        %v2114 = vld [vmem:[#allocation17 + $0x28] sm:$0xff]
        %v2115 = vld [vmem:[#allocation17 + $0x30] sm:$0xff]
        %v2116 = vld [vmem:[#allocation17 + $0x38] sm:$0xff]
        %v2117 = vld [vmem:[#allocation17 + $0x40] sm:$0xff]
        %v2118 = vld [vmem:[#allocation17 + $0x48] sm:$0xff]
        %v2119 = vld [vmem:[#allocation17 + $0x50] sm:$0xff]
        %v2120 = vld [vmem:[#allocation17 + $0x58] sm:$0xff]
        %v2121 = vld [vmem:[#allocation17 + $0x60] sm:$0xff]
        %v2122 = vld [vmem:[#allocation17 + $0x68] sm:$0xff]
        %v2123 = vld [vmem:[#allocation17 + $0x70] sm:$0xff]
        %v2124 = vld [vmem:[#allocation17 + $0x78] sm:$0xff]
        %2125 = vmatpush.msra.mxu0 %v2124
        %2126 = vmatpush.msra.mxu0 %v2123
        %2127 = vmatpush.msra.mxu0 %v2122
        %2128 = vmatpush.msra.mxu0 %v2121
        %2129 = vmatpush.msra.mxu0 %v2120
        %2130 = vmatpush.msra.mxu0 %v2119
        %2131 = vmatpush.msra.mxu0 %v2118
        %2132 = vmatpush.msra.mxu0 %v2117
        %2133 = vmatpush.msra.mxu0 %v2116
        %2134 = vmatpush.msra.mxu0 %v2115
        %2135 = vmatpush.msra.mxu0 %v2114
        %2136 = vmatpush.msra.mxu0 %v2113
        %2137 = vmatpush.msra.mxu0 %v2112
        %2138 = vmatpush.msra.mxu0 %v2111
        %2139 = vmatpush.msra.mxu0 %v2110
        %2140 = vmatpush.msra.mxu0 %v2109
        %2141 = vmatmul.f32.gmra.mxu0 %v1692
        %v2142 = vpop.f32.mrf.mxu0
        %v2143 = vadd.f32 0.0, %v2142
        %2144 = vdwg.mxu0
        %v2145 = vld [vmem:[#allocation25] sm:$0xff]
        %vm2146 = vcmp.gt.s32.totalorder %v2145, 0
        %v2147 = vsub.s32 %v2145, 1
        %v2148 = vsel %vm2146, %v2147, %v2145
        %vm2149 = vcmp.eq.s32.totalorder %v2148, 0
        %v2150 = vld [vmem:[#allocation20] sm:$0xff]
        %v2151 = vld [vmem:[#allocation23] sm:$0xff]
        %s2152 = scalar_lea.vmem %s610, 16
        %v2153 = vld [vmem:[%s2152] sm:$0xff]
        %v2154 = vadd.f32 %v2153, %v2143
        %v2155 = vadd.f32 %v2154, %v2150
        %v2156 = vsel %vm2149, %v2155, %v2150
        %2157 = vmatpush.xpose.msra.mxu0 %v2124
        %2158 = vmatpush.xpose.msra.mxu0 %v2123
        %2159 = vmatpush.xpose.msra.mxu0 %v2122
        %2160 = vmatpush.xpose.msra.mxu0 %v2121
        %2161 = vmatpush.xpose.msra.mxu0 %v2120
        %2162 = vmatpush.xpose.msra.mxu0 %v2119
        %2163 = vmatpush.xpose.msra.mxu0 %v2118
        %2164 = vmatpush.xpose.msra.mxu0 %v2117
        %2165 = vmatpush.xpose.msra.mxu0 %v2116
        %2166 = vmatpush.xpose.msra.mxu0 %v2115
        %2167 = vmatpush.xpose.msra.mxu0 %v2114
        %2168 = vmatpush.xpose.msra.mxu0 %v2113
        %2169 = vmatpush.xpose.msra.mxu0 %v2112
        %2170 = vmatpush.xpose.msra.mxu0 %v2111
        %2171 = vmatpush.xpose.msra.mxu0 %v2110
        %2172 = vmatpush.xpose.msra.mxu0 %v2109
        %2173 = vmatmul.f32.gmra.mxu0 %v1692
        %v2174 = vpop.f32.mrf.mxu0
        %v2175 = vadd.f32 %v2151, %v2174
        %2176 = vdwg.mxu0
        %v2177 = vsel %vm2149, %v2175, %v2151
        %v2178 = vadd.f32 %v2156, %v1687
        %v2179 = vsel %vm2149, %v2178, %v1687
        %v2180 = vadd.f32 %v2177, %v1688
        %v2181 = vsel %vm2149, %v2180, %v1688
        %v2182 = vmul.f32 %v2179, 0.9801987
        %v2183 = vmul.f32 %v2156, 0.36787945
        %v2184 = vmul.f32 %v2181, 0.9801987
        %v2185 = vmul.f32 %v2177, 0.36787945
        %v2186 = vsel %vm1689, 0.0, %v2182
        %v2187 = vsel %vm1690, 0.0, %v2184
        %v2188 = vsel %vm1689, 2, %v2148
        %v2189 = vpack.c.bf16 %v1692, %v1692
        %s2190 = scalar_lea.vmem %s591, 8 [#allocation16]
        %2191 = vst [vmem:[%s2190] sm:$0xf] %v2189
        %2192 = vst [vmem:[#allocation19] sm:$0xff] %v2186
        %2193 = vst [vmem:[#allocation20] sm:$0xff] %v2183
        %2194 = vst [vmem:[#allocation22] sm:$0xff] %v2187
        %2195 = vst [vmem:[#allocation23] sm:$0xff] %v2185
        %2196 = vst [vmem:[#allocation25] sm:$0xff] %v2188
        %s2197 = sadd.s32 %s663, 3
        %s2198 = scvt.s32.f32 %s2197
        %v2199 = vld [vmem:[#allocation19] sm:$0xff]
        %v2200 = vld [vmem:[#allocation22] sm:$0xff]
        %vm2201 = vcmp.gt.f32.partialorder %v2199, 1.0
        %vm2202 = vcmp.gt.f32.partialorder %v2200, 1.025
        %v2203 = vsel %vm2201, 1, 0
        %v2204 = vcvt.s32.f32 %v2203
        %v2205 = vld [vmem:[#allocation26] sm:$0xff]
        %v2206 = vstv %s2198
        %v2207 = vsel %vm2201, %v2206, %v2205
        %2208 = vst [vmem:[#allocation26] sm:$0xff] %v2207
        %v2209 = vsel %vm2202, 1, 0
        %v2210 = vcvt.s32.f32 %v2209
        %v2211 = vrot.slane %v2210, 4
        %v2212 = vmax.f32 %v2210, %v2211
        %v2213 = vrot.slane %v2212, 2
        %v2214 = vmax.f32 %v2212, %v2213
        %v2215 = vrot.slane %v2214, 1
        %v2216 = vmax.f32 %v2214, %v2215
        %v2217 = vrot.slane %v2207, 4
        %v2218 = vmax.f32 %v2207, %v2217
        %v2219 = vrot.slane %v2218, 2
        %v2220 = vmax.f32 %v2218, %v2219
        %v2221 = vrot.slane %v2220, 1
        %v2222 = vmax.f32 %v2220, %v2221
        %2223 = vmax.xlane.f32.xlu0 %v2222
        %v2224 = vpop.xlane.xlu0 %2223
        %v2225 = vsub.f32 %v2224, %v2222
        %v2226 = vmul.f32 %v2225, 0.02
        %v2227 = vmin.f32 %v2226, 80.0
        %v2228 = vsub.f32 0.0, %v2227
        %v2229 = vmul.f32 %v2228, 1.442695
        %v2230 = vpow.pop %v2229
        %v2231 = vmul.f32 %v2227, 1.442695
        %v2232 = vpow.pop %v2231
        %v2233 = vmul.f32 %v2216, %v2230
        %v2234 = vmul.f32 %v2233, 0.025
        %v2235 = vlaneseq
        %v2236 = vshrl.u32 %v2235, 7
        %2238 = vset.pattern.permute.xlu0 %v2236
        %2239 = vperm.xlu0 %2238, %v2234
        %v2240 = vpop.permute.xlu0 %2239
        %v2241 = vlaneseq
        %v2242 = vshrl.u32 %v2241, 7
        %v2243 = vadd.s32 %v2242, 8
        %2244 = vset.pattern.permute.xlu0 %v2243
        %2245 = vperm.xlu0 %2244, %v2234
        %v2246 = vpop.permute.xlu0 %2245
        %v2247 = vlaneseq
        %v2248 = vshrl.u32 %v2247, 7
        %v2249 = vadd.s32 %v2248, 16
        %2250 = vset.pattern.permute.xlu0 %v2249
        %2251 = vperm.xlu0 %2250, %v2234
        %v2252 = vpop.permute.xlu0 %2251
        %v2253 = vlaneseq
        %v2254 = vshrl.u32 %v2253, 7
        %v2255 = vadd.s32 %v2254, 24
        %2256 = vset.pattern.permute.xlu0 %v2255
        %2257 = vperm.xlu0 %2256, %v2234
        %v2258 = vpop.permute.xlu0 %2257
        %v2259 = vlaneseq
        %v2260 = vshrl.u32 %v2259, 7
        %v2261 = vadd.s32 %v2260, 32
        %2262 = vset.pattern.permute.xlu0 %v2261
        %2263 = vperm.xlu0 %2262, %v2234
        %v2264 = vpop.permute.xlu0 %2263
        %v2265 = vlaneseq
        %v2266 = vshrl.u32 %v2265, 7
        %v2267 = vadd.s32 %v2266, 40
        %2268 = vset.pattern.permute.xlu0 %v2267
        %2269 = vperm.xlu0 %2268, %v2234
        %v2270 = vpop.permute.xlu0 %2269
        %v2271 = vlaneseq
        %v2272 = vshrl.u32 %v2271, 7
        %v2273 = vadd.s32 %v2272, 48
        %2274 = vset.pattern.permute.xlu0 %v2273
        %2275 = vperm.xlu0 %2274, %v2234
        %v2276 = vpop.permute.xlu0 %2275
        %v2277 = vlaneseq
        %v2278 = vshrl.u32 %v2277, 7
        %v2279 = vadd.s32 %v2278, 56
        %2280 = vset.pattern.permute.xlu0 %v2279
        %2281 = vperm.xlu0 %2280, %v2234
        %v2282 = vpop.permute.xlu0 %2281
        %v2283 = vlaneseq
        %v2284 = vshrl.u32 %v2283, 7
        %v2285 = vadd.s32 %v2284, 64
        %2286 = vset.pattern.permute.xlu0 %v2285
        %2287 = vperm.xlu0 %2286, %v2234
        %v2288 = vpop.permute.xlu0 %2287
        %v2289 = vlaneseq
        %v2290 = vshrl.u32 %v2289, 7
        %v2291 = vadd.s32 %v2290, 72
        %2292 = vset.pattern.permute.xlu0 %v2291
        %2293 = vperm.xlu0 %2292, %v2234
        %v2294 = vpop.permute.xlu0 %2293
        %v2295 = vlaneseq
        %v2296 = vshrl.u32 %v2295, 7
        %v2297 = vadd.s32 %v2296, 80
        %2298 = vset.pattern.permute.xlu0 %v2297
        %2299 = vperm.xlu0 %2298, %v2234
        %v2300 = vpop.permute.xlu0 %2299
        %v2301 = vlaneseq
        %v2302 = vshrl.u32 %v2301, 7
        %v2303 = vadd.s32 %v2302, 88
        %2304 = vset.pattern.permute.xlu0 %v2303
        %2305 = vperm.xlu0 %2304, %v2234
        %v2306 = vpop.permute.xlu0 %2305
        %v2307 = vlaneseq
        %v2308 = vshrl.u32 %v2307, 7
        %v2309 = vadd.s32 %v2308, 96
        %2310 = vset.pattern.permute.xlu0 %v2309
        %2311 = vperm.xlu0 %2310, %v2234
        %v2312 = vpop.permute.xlu0 %2311
        %v2313 = vlaneseq
        %v2314 = vshrl.u32 %v2313, 7
        %v2315 = vadd.s32 %v2314, 104
        %2316 = vset.pattern.permute.xlu0 %v2315
        %2317 = vperm.xlu0 %2316, %v2234
        %v2318 = vpop.permute.xlu0 %2317
        %v2319 = vlaneseq
        %v2320 = vshrl.u32 %v2319, 7
        %v2321 = vadd.s32 %v2320, 112
        %2322 = vset.pattern.permute.xlu0 %v2321
        %2323 = vperm.xlu0 %2322, %v2234
        %v2324 = vpop.permute.xlu0 %2323
        %v2325 = vlaneseq
        %v2326 = vshrl.u32 %v2325, 7
        %v2327 = vadd.s32 %v2326, 120
        %2328 = vset.pattern.permute.xlu0 %v2327
        %2329 = vperm.xlu0 %2328, %v2234
        %v2330 = vpop.permute.xlu0 %2329
        %v2331 = vmul.f32 %v2216, %v2232
        %v2332 = vmul.f32 %v2331, 0.025
        %v2333 = vlaneseq
        %v2334 = vshrl.u32 %v2333, 7
        %2336 = vset.pattern.permute.xlu0 %v2334
        %2337 = vperm.xlu0 %2336, %v2332
        %v2338 = vpop.permute.xlu0 %2337
        %v2339 = vlaneseq
        %v2340 = vshrl.u32 %v2339, 7
        %v2341 = vadd.s32 %v2340, 8
        %2342 = vset.pattern.permute.xlu0 %v2341
        %2343 = vperm.xlu0 %2342, %v2332
        %v2344 = vpop.permute.xlu0 %2343
        %v2345 = vlaneseq
        %v2346 = vshrl.u32 %v2345, 7
        %v2347 = vadd.s32 %v2346, 16
        %2348 = vset.pattern.permute.xlu0 %v2347
        %2349 = vperm.xlu0 %2348, %v2332
        %v2350 = vpop.permute.xlu0 %2349
        %v2351 = vlaneseq
        %v2352 = vshrl.u32 %v2351, 7
        %v2353 = vadd.s32 %v2352, 24
        %2354 = vset.pattern.permute.xlu0 %v2353
        %2355 = vperm.xlu0 %2354, %v2332
        %v2356 = vpop.permute.xlu0 %2355
        %v2357 = vlaneseq
        %v2358 = vshrl.u32 %v2357, 7
        %v2359 = vadd.s32 %v2358, 32
        %2360 = vset.pattern.permute.xlu0 %v2359
        %2361 = vperm.xlu0 %2360, %v2332
        %v2362 = vpop.permute.xlu0 %2361
        %v2363 = vlaneseq
        %v2364 = vshrl.u32 %v2363, 7
        %v2365 = vadd.s32 %v2364, 40
        %2366 = vset.pattern.permute.xlu0 %v2365
        %2367 = vperm.xlu0 %2366, %v2332
        %v2368 = vpop.permute.xlu0 %2367
        %v2369 = vlaneseq
        %v2370 = vshrl.u32 %v2369, 7
        %v2371 = vadd.s32 %v2370, 48
        %2372 = vset.pattern.permute.xlu0 %v2371
        %2373 = vperm.xlu0 %2372, %v2332
        %v2374 = vpop.permute.xlu0 %2373
        %v2375 = vlaneseq
        %v2376 = vshrl.u32 %v2375, 7
        %v2377 = vadd.s32 %v2376, 56
        %2378 = vset.pattern.permute.xlu0 %v2377
        %2379 = vperm.xlu0 %2378, %v2332
        %v2380 = vpop.permute.xlu0 %2379
        %v2381 = vlaneseq
        %v2382 = vshrl.u32 %v2381, 7
        %v2383 = vadd.s32 %v2382, 64
        %2384 = vset.pattern.permute.xlu0 %v2383
        %2385 = vperm.xlu0 %2384, %v2332
        %v2386 = vpop.permute.xlu0 %2385
        %v2387 = vlaneseq
        %v2388 = vshrl.u32 %v2387, 7
        %v2389 = vadd.s32 %v2388, 72
        %2390 = vset.pattern.permute.xlu0 %v2389
        %2391 = vperm.xlu0 %2390, %v2332
        %v2392 = vpop.permute.xlu0 %2391
        %v2393 = vlaneseq
        %v2394 = vshrl.u32 %v2393, 7
        %v2395 = vadd.s32 %v2394, 80
        %2396 = vset.pattern.permute.xlu0 %v2395
        %2397 = vperm.xlu0 %2396, %v2332
        %v2398 = vpop.permute.xlu0 %2397
        %v2399 = vlaneseq
        %v2400 = vshrl.u32 %v2399, 7
        %v2401 = vadd.s32 %v2400, 88
        %2402 = vset.pattern.permute.xlu0 %v2401
        %2403 = vperm.xlu0 %2402, %v2332
        %v2404 = vpop.permute.xlu0 %2403
        %v2405 = vlaneseq
        %v2406 = vshrl.u32 %v2405, 7
        %v2407 = vadd.s32 %v2406, 96
        %2408 = vset.pattern.permute.xlu0 %v2407
        %2409 = vperm.xlu0 %2408, %v2332
        %v2410 = vpop.permute.xlu0 %2409
        %v2411 = vlaneseq
        %v2412 = vshrl.u32 %v2411, 7
        %v2413 = vadd.s32 %v2412, 104
        %2414 = vset.pattern.permute.xlu0 %v2413
        %2415 = vperm.xlu0 %2414, %v2332
        %v2416 = vpop.permute.xlu0 %2415
        %v2417 = vlaneseq
        %v2418 = vshrl.u32 %v2417, 7
        %v2419 = vadd.s32 %v2418, 112
        %2420 = vset.pattern.permute.xlu0 %v2419
        %2421 = vperm.xlu0 %2420, %v2332
        %v2422 = vpop.permute.xlu0 %2421
        %v2423 = vlaneseq
        %v2424 = vshrl.u32 %v2423, 7
        %v2425 = vadd.s32 %v2424, 120
        %2426 = vset.pattern.permute.xlu0 %v2425
        %2427 = vperm.xlu0 %2426, %v2332
        %v2428 = vpop.permute.xlu0 %2427
        %v2429 = vld [vmem:[#allocation17] sm:$0xff]
        %v2430 = vld [vmem:[#allocation17 + $0x8] sm:$0xff]
        %v2431 = vld [vmem:[#allocation17 + $0x10] sm:$0xff]
        %v2432 = vld [vmem:[#allocation17 + $0x18] sm:$0xff]
        %v2433 = vmul.f32 %v2240, %v2232
        %v2434 = vmul.f32 %v2246, %v2232
        %v2435 = vmul.f32 %v2252, %v2232
        %v2436 = vmul.f32 %v2258, %v2232
        %v2437 = vmul.f32 %v2338, %v2230
        %v2438 = vmul.f32 %v2344, %v2230
        %v2439 = vmul.f32 %v2350, %v2230
        %v2440 = vmul.f32 %v2356, %v2230
        %v2441 = vmax.f32 %v2433, %v2437
        %v2442 = vmax.f32 %v2434, %v2438
        %v2443 = vmax.f32 %v2435, %v2439
        %v2444 = vmax.f32 %v2436, %v2440
        %v2445 = vadd.f32 %v2429, 0.00025
        %v2446 = vadd.f32 %v2430, 0.00025
        %v2447 = vadd.f32 %v2431, 0.00025
        %v2448 = vadd.f32 %v2432, 0.00025
        %v2449 = vsub.f32 %v2445, %v2441
        %v2450 = vsub.f32 %v2446, %v2442
        %v2451 = vsub.f32 %v2447, %v2443
        %v2452 = vsub.f32 %v2448, %v2444
        %v2453 = vmax.f32 %v2449, 0.0
        %v2454 = vmax.f32 %v2450, 0.0
        %v2455 = vmax.f32 %v2451, 0.0
        %v2456 = vmax.f32 %v2452, 0.0
        %v2457 = vmin.f32 %v2453, 1.0
        %v2458 = vmin.f32 %v2454, 1.0
        %v2459 = vmin.f32 %v2455, 1.0
        %v2460 = vmin.f32 %v2456, 1.0
        %v2461 = vld [vmem:[%s3] sm:$0xff]
        %v2462 = vld [vmem:[%s3 + $0x8] sm:$0xff]
        %v2463 = vld [vmem:[%s3 + $0x10] sm:$0xff]
        %v2464 = vld [vmem:[%s3 + $0x18] sm:$0xff]
        %vm2465 = vcmp.ne.f32.partialorder %v2461, 0.0
        %vm2466 = vcmp.ne.f32.partialorder %v2462, 0.0
        %vm2467 = vcmp.ne.f32.partialorder %v2463, 0.0
        %vm2468 = vcmp.ne.f32.partialorder %v2464, 0.0
        %v2469 = vsel %vm2465, %v2457, %v2429
        %v2470 = vsel %vm2466, %v2458, %v2430
        %v2471 = vsel %vm2467, %v2459, %v2431
        %v2472 = vsel %vm2468, %v2460, %v2432
        %2473 = vst [vmem:[#allocation17] sm:$0xff] %v2469
        %2474 = vst [vmem:[#allocation17 + $0x8] sm:$0xff] %v2470
        %2475 = vst [vmem:[#allocation17 + $0x10] sm:$0xff] %v2471
        %2476 = vst [vmem:[#allocation17 + $0x18] sm:$0xff] %v2472
        %v2477 = vld [vmem:[#allocation17 + $0x20] sm:$0xff]
        %v2478 = vld [vmem:[#allocation17 + $0x28] sm:$0xff]
        %v2479 = vld [vmem:[#allocation17 + $0x30] sm:$0xff]
        %v2480 = vld [vmem:[#allocation17 + $0x38] sm:$0xff]
        %v2481 = vmul.f32 %v2264, %v2232
        %v2482 = vmul.f32 %v2270, %v2232
        %v2483 = vmul.f32 %v2276, %v2232
        %v2484 = vmul.f32 %v2282, %v2232
        %v2485 = vmul.f32 %v2362, %v2230
        %v2486 = vmul.f32 %v2368, %v2230
        %v2487 = vmul.f32 %v2374, %v2230
        %v2488 = vmul.f32 %v2380, %v2230
        %v2489 = vmax.f32 %v2481, %v2485
        %v2490 = vmax.f32 %v2482, %v2486
        %v2491 = vmax.f32 %v2483, %v2487
        %v2492 = vmax.f32 %v2484, %v2488
        %v2493 = vadd.f32 %v2477, 0.00025
        %v2494 = vadd.f32 %v2478, 0.00025
        %v2495 = vadd.f32 %v2479, 0.00025
        %v2496 = vadd.f32 %v2480, 0.00025
        %v2497 = vsub.f32 %v2493, %v2489
        %v2498 = vsub.f32 %v2494, %v2490
        %v2499 = vsub.f32 %v2495, %v2491
        %v2500 = vsub.f32 %v2496, %v2492
        %v2501 = vmax.f32 %v2497, 0.0
        %v2502 = vmax.f32 %v2498, 0.0
        %v2503 = vmax.f32 %v2499, 0.0
        %v2504 = vmax.f32 %v2500, 0.0
        %v2505 = vmin.f32 %v2501, 1.0
        %v2506 = vmin.f32 %v2502, 1.0
        %v2507 = vmin.f32 %v2503, 1.0
        %v2508 = vmin.f32 %v2504, 1.0
        %v2509 = vld [vmem:[%s3 + $0x20] sm:$0xff]
        %v2510 = vld [vmem:[%s3 + $0x28] sm:$0xff]
        %v2511 = vld [vmem:[%s3 + $0x30] sm:$0xff]
        %v2512 = vld [vmem:[%s3 + $0x38] sm:$0xff]
        %vm2513 = vcmp.ne.f32.partialorder %v2509, 0.0
        %vm2514 = vcmp.ne.f32.partialorder %v2510, 0.0
        %vm2515 = vcmp.ne.f32.partialorder %v2511, 0.0
        %vm2516 = vcmp.ne.f32.partialorder %v2512, 0.0
        %v2517 = vsel %vm2513, %v2505, %v2477
        %v2518 = vsel %vm2514, %v2506, %v2478
        %v2519 = vsel %vm2515, %v2507, %v2479
        %v2520 = vsel %vm2516, %v2508, %v2480
        %2521 = vst [vmem:[#allocation17 + $0x20] sm:$0xff] %v2517
        %2522 = vst [vmem:[#allocation17 + $0x28] sm:$0xff] %v2518
        %2523 = vst [vmem:[#allocation17 + $0x30] sm:$0xff] %v2519
        %2524 = vst [vmem:[#allocation17 + $0x38] sm:$0xff] %v2520
        %v2525 = vld [vmem:[#allocation17 + $0x40] sm:$0xff]
        %v2526 = vld [vmem:[#allocation17 + $0x48] sm:$0xff]
        %v2527 = vld [vmem:[#allocation17 + $0x50] sm:$0xff]
        %v2528 = vld [vmem:[#allocation17 + $0x58] sm:$0xff]
        %v2529 = vmul.f32 %v2288, %v2232
        %v2530 = vmul.f32 %v2294, %v2232
        %v2531 = vmul.f32 %v2300, %v2232
        %v2532 = vmul.f32 %v2306, %v2232
        %v2533 = vmul.f32 %v2386, %v2230
        %v2534 = vmul.f32 %v2392, %v2230
        %v2535 = vmul.f32 %v2398, %v2230
        %v2536 = vmul.f32 %v2404, %v2230
        %v2537 = vmax.f32 %v2529, %v2533
        %v2538 = vmax.f32 %v2530, %v2534
        %v2539 = vmax.f32 %v2531, %v2535
        %v2540 = vmax.f32 %v2532, %v2536
        %v2541 = vadd.f32 %v2525, 0.00025
        %v2542 = vadd.f32 %v2526, 0.00025
        %v2543 = vadd.f32 %v2527, 0.00025
        %v2544 = vadd.f32 %v2528, 0.00025
        %v2545 = vsub.f32 %v2541, %v2537
        %v2546 = vsub.f32 %v2542, %v2538
        %v2547 = vsub.f32 %v2543, %v2539
        %v2548 = vsub.f32 %v2544, %v2540
        %v2549 = vmax.f32 %v2545, 0.0
        %v2550 = vmax.f32 %v2546, 0.0
        %v2551 = vmax.f32 %v2547, 0.0
        %v2552 = vmax.f32 %v2548, 0.0
        %v2553 = vmin.f32 %v2549, 1.0
        %v2554 = vmin.f32 %v2550, 1.0
        %v2555 = vmin.f32 %v2551, 1.0
        %v2556 = vmin.f32 %v2552, 1.0
        %v2557 = vld [vmem:[%s3 + $0x40] sm:$0xff]
        %v2558 = vld [vmem:[%s3 + $0x48] sm:$0xff]
        %v2559 = vld [vmem:[%s3 + $0x50] sm:$0xff]
        %v2560 = vld [vmem:[%s3 + $0x58] sm:$0xff]
        %vm2561 = vcmp.ne.f32.partialorder %v2557, 0.0
        %vm2562 = vcmp.ne.f32.partialorder %v2558, 0.0
        %vm2563 = vcmp.ne.f32.partialorder %v2559, 0.0
        %vm2564 = vcmp.ne.f32.partialorder %v2560, 0.0
        %v2565 = vsel %vm2561, %v2553, %v2525
        %v2566 = vsel %vm2562, %v2554, %v2526
        %v2567 = vsel %vm2563, %v2555, %v2527
        %v2568 = vsel %vm2564, %v2556, %v2528
        %2569 = vst [vmem:[#allocation17 + $0x40] sm:$0xff] %v2565
        %2570 = vst [vmem:[#allocation17 + $0x48] sm:$0xff] %v2566
        %2571 = vst [vmem:[#allocation17 + $0x50] sm:$0xff] %v2567
        %2572 = vst [vmem:[#allocation17 + $0x58] sm:$0xff] %v2568
        %v2573 = vld [vmem:[#allocation17 + $0x60] sm:$0xff]
        %v2574 = vld [vmem:[#allocation17 + $0x68] sm:$0xff]
        %v2575 = vld [vmem:[#allocation17 + $0x70] sm:$0xff]
        %v2576 = vld [vmem:[#allocation17 + $0x78] sm:$0xff]
        %v2577 = vmul.f32 %v2312, %v2232
        %v2578 = vmul.f32 %v2318, %v2232
        %v2579 = vmul.f32 %v2324, %v2232
        %v2580 = vmul.f32 %v2330, %v2232
        %v2581 = vmul.f32 %v2410, %v2230
        %v2582 = vmul.f32 %v2416, %v2230
        %v2583 = vmul.f32 %v2422, %v2230
        %v2584 = vmul.f32 %v2428, %v2230
        %v2585 = vmax.f32 %v2577, %v2581
        %v2586 = vmax.f32 %v2578, %v2582
        %v2587 = vmax.f32 %v2579, %v2583
        %v2588 = vmax.f32 %v2580, %v2584
        %v2589 = vadd.f32 %v2573, 0.00025
        %v2590 = vadd.f32 %v2574, 0.00025
        %v2591 = vadd.f32 %v2575, 0.00025
        %v2592 = vadd.f32 %v2576, 0.00025
        %v2593 = vsub.f32 %v2589, %v2585
        %v2594 = vsub.f32 %v2590, %v2586
        %v2595 = vsub.f32 %v2591, %v2587
        %v2596 = vsub.f32 %v2592, %v2588
        %v2597 = vmax.f32 %v2593, 0.0
        %v2598 = vmax.f32 %v2594, 0.0
        %v2599 = vmax.f32 %v2595, 0.0
        %v2600 = vmax.f32 %v2596, 0.0
        %v2601 = vmin.f32 %v2597, 1.0
        %v2602 = vmin.f32 %v2598, 1.0
        %v2603 = vmin.f32 %v2599, 1.0
        %v2604 = vmin.f32 %v2600, 1.0
        %v2605 = vld [vmem:[%s3 + $0x60] sm:$0xff]
        %v2606 = vld [vmem:[%s3 + $0x68] sm:$0xff]
        %v2607 = vld [vmem:[%s3 + $0x70] sm:$0xff]
        %v2608 = vld [vmem:[%s3 + $0x78] sm:$0xff]
        %vm2609 = vcmp.ne.f32.partialorder %v2605, 0.0
        %vm2610 = vcmp.ne.f32.partialorder %v2606, 0.0
        %vm2611 = vcmp.ne.f32.partialorder %v2607, 0.0
        %vm2612 = vcmp.ne.f32.partialorder %v2608, 0.0
        %v2613 = vsel %vm2609, %v2601, %v2573
        %v2614 = vsel %vm2610, %v2602, %v2574
        %v2615 = vsel %vm2611, %v2603, %v2575
        %v2616 = vsel %vm2612, %v2604, %v2576
        %2617 = vst [vmem:[#allocation17 + $0x60] sm:$0xff] %v2613
        %2618 = vst [vmem:[#allocation17 + $0x68] sm:$0xff] %v2614
        %2619 = vst [vmem:[#allocation17 + $0x70] sm:$0xff] %v2615
        %2620 = vst [vmem:[#allocation17 + $0x78] sm:$0xff] %v2616
        %v2621 = vld [vmem:[#allocation17] sm:$0xff]
        %v2622 = vld [vmem:[#allocation17 + $0x8] sm:$0xff]
        %v2623 = vld [vmem:[#allocation17 + $0x10] sm:$0xff]
        %v2624 = vld [vmem:[#allocation17 + $0x18] sm:$0xff]
        %v2625 = vld [vmem:[#allocation17 + $0x20] sm:$0xff]
        %v2626 = vld [vmem:[#allocation17 + $0x28] sm:$0xff]
        %v2627 = vld [vmem:[#allocation17 + $0x30] sm:$0xff]
        %v2628 = vld [vmem:[#allocation17 + $0x38] sm:$0xff]
        %v2629 = vld [vmem:[#allocation17 + $0x40] sm:$0xff]
        %v2630 = vld [vmem:[#allocation17 + $0x48] sm:$0xff]
        %v2631 = vld [vmem:[#allocation17 + $0x50] sm:$0xff]
        %v2632 = vld [vmem:[#allocation17 + $0x58] sm:$0xff]
        %v2633 = vld [vmem:[#allocation17 + $0x60] sm:$0xff]
        %v2634 = vld [vmem:[#allocation17 + $0x68] sm:$0xff]
        %v2635 = vld [vmem:[#allocation17 + $0x70] sm:$0xff]
        %v2636 = vld [vmem:[#allocation17 + $0x78] sm:$0xff]
        %2637 = vmatpush.msra.mxu0 %v2636
        %2638 = vmatpush.msra.mxu0 %v2635
        %2639 = vmatpush.msra.mxu0 %v2634
        %2640 = vmatpush.msra.mxu0 %v2633
        %2641 = vmatpush.msra.mxu0 %v2632
        %2642 = vmatpush.msra.mxu0 %v2631
        %2643 = vmatpush.msra.mxu0 %v2630
        %2644 = vmatpush.msra.mxu0 %v2629
        %2645 = vmatpush.msra.mxu0 %v2628
        %2646 = vmatpush.msra.mxu0 %v2627
        %2647 = vmatpush.msra.mxu0 %v2626
        %2648 = vmatpush.msra.mxu0 %v2625
        %2649 = vmatpush.msra.mxu0 %v2624
        %2650 = vmatpush.msra.mxu0 %v2623
        %2651 = vmatpush.msra.mxu0 %v2622
        %2652 = vmatpush.msra.mxu0 %v2621
        %2653 = vmatmul.f32.gmra.mxu0 %v2204
        %v2654 = vpop.f32.mrf.mxu0
        %v2655 = vadd.f32 0.0, %v2654
        %2656 = vdwg.mxu0
        %v2657 = vld [vmem:[#allocation25] sm:$0xff]
        %vm2658 = vcmp.gt.s32.totalorder %v2657, 0
        %v2659 = vsub.s32 %v2657, 1
        %v2660 = vsel %vm2658, %v2659, %v2657
        %vm2661 = vcmp.eq.s32.totalorder %v2660, 0
        %v2662 = vld [vmem:[#allocation20] sm:$0xff]
        %v2663 = vld [vmem:[#allocation23] sm:$0xff]
        %s2664 = scalar_lea.vmem %s610, 24
        %v2665 = vld [vmem:[%s2664] sm:$0xff]
        %v2666 = vadd.f32 %v2665, %v2655
        %v2667 = vadd.f32 %v2666, %v2662
        %v2668 = vsel %vm2661, %v2667, %v2662
        %2669 = vmatpush.xpose.msra.mxu0 %v2636
        %2670 = vmatpush.xpose.msra.mxu0 %v2635
        %2671 = vmatpush.xpose.msra.mxu0 %v2634
        %2672 = vmatpush.xpose.msra.mxu0 %v2633
        %2673 = vmatpush.xpose.msra.mxu0 %v2632
        %2674 = vmatpush.xpose.msra.mxu0 %v2631
        %2675 = vmatpush.xpose.msra.mxu0 %v2630
        %2676 = vmatpush.xpose.msra.mxu0 %v2629
        %2677 = vmatpush.xpose.msra.mxu0 %v2628
        %2678 = vmatpush.xpose.msra.mxu0 %v2627
        %2679 = vmatpush.xpose.msra.mxu0 %v2626
        %2680 = vmatpush.xpose.msra.mxu0 %v2625
        %2681 = vmatpush.xpose.msra.mxu0 %v2624
        %2682 = vmatpush.xpose.msra.mxu0 %v2623
        %2683 = vmatpush.xpose.msra.mxu0 %v2622
        %2684 = vmatpush.xpose.msra.mxu0 %v2621
        %2685 = vmatmul.f32.gmra.mxu0 %v2204
        %v2686 = vpop.f32.mrf.mxu0
        %v2687 = vadd.f32 %v2663, %v2686
        %2688 = vdwg.mxu0
        %v2689 = vsel %vm2661, %v2687, %v2663
        %v2690 = vadd.f32 %v2668, %v2199
        %v2691 = vsel %vm2661, %v2690, %v2199
        %v2692 = vadd.f32 %v2689, %v2200
        %v2693 = vsel %vm2661, %v2692, %v2200
        %v2694 = vmul.f32 %v2691, 0.9801987
        %v2695 = vmul.f32 %v2668, 0.36787945
        %v2696 = vmul.f32 %v2693, 0.9801987
        %v2697 = vmul.f32 %v2689, 0.36787945
        %v2698 = vsel %vm2201, 0.0, %v2694
        %v2699 = vsel %vm2202, 0.0, %v2696
        %v2700 = vsel %vm2201, 2, %v2660
        %v2701 = vpack.c.bf16 %v2204, %v2204
        %s2702 = scalar_lea.vmem %s591, 12 [#allocation16]
        %2703 = vst [vmem:[%s2702] sm:$0xf] %v2701
        %2704 = vst [vmem:[#allocation19] sm:$0xff] %v2698
        %2705 = vst [vmem:[#allocation20] sm:$0xff] %v2695
        %2706 = vst [vmem:[#allocation22] sm:$0xff] %v2699
        %2707 = vst [vmem:[#allocation23] sm:$0xff] %v2697
        %2708 = vst [vmem:[#allocation25] sm:$0xff] %v2700
        %s2709 = sadd.s32 %s663, 4
        %s2710 = scvt.s32.f32 %s2709
        %v2711 = vld [vmem:[#allocation19] sm:$0xff]
        %v2712 = vld [vmem:[#allocation22] sm:$0xff]
        %vm2713 = vcmp.gt.f32.partialorder %v2711, 1.0
        %vm2714 = vcmp.gt.f32.partialorder %v2712, 1.025
        %v2715 = vsel %vm2713, 1, 0
        %v2716 = vcvt.s32.f32 %v2715
        %v2717 = vld [vmem:[#allocation26] sm:$0xff]
        %v2718 = vstv %s2710
        %v2719 = vsel %vm2713, %v2718, %v2717
        %2720 = vst [vmem:[#allocation26] sm:$0xff] %v2719
        %v2721 = vsel %vm2714, 1, 0
        %v2722 = vcvt.s32.f32 %v2721
        %v2723 = vrot.slane %v2722, 4
        %v2724 = vmax.f32 %v2722, %v2723
        %v2725 = vrot.slane %v2724, 2
        %v2726 = vmax.f32 %v2724, %v2725
        %v2727 = vrot.slane %v2726, 1
        %v2728 = vmax.f32 %v2726, %v2727
        %v2729 = vrot.slane %v2719, 4
        %v2730 = vmax.f32 %v2719, %v2729
        %v2731 = vrot.slane %v2730, 2
        %v2732 = vmax.f32 %v2730, %v2731
        %v2733 = vrot.slane %v2732, 1
        %v2734 = vmax.f32 %v2732, %v2733
        %2735 = vmax.xlane.f32.xlu0 %v2734
        %v2736 = vpop.xlane.xlu0 %2735
        %v2737 = vsub.f32 %v2736, %v2734
        %v2738 = vmul.f32 %v2737, 0.02
        %v2739 = vmin.f32 %v2738, 80.0
        %v2740 = vsub.f32 0.0, %v2739
        %v2741 = vmul.f32 %v2740, 1.442695
        %v2742 = vpow.pop %v2741
        %v2743 = vmul.f32 %v2739, 1.442695
        %v2744 = vpow.pop %v2743
        %v2745 = vmul.f32 %v2728, %v2742
        %v2746 = vmul.f32 %v2745, 0.025
        %v2747 = vlaneseq
        %v2748 = vshrl.u32 %v2747, 7
        %2750 = vset.pattern.permute.xlu0 %v2748
        %2751 = vperm.xlu0 %2750, %v2746
        %v2752 = vpop.permute.xlu0 %2751
        %v2753 = vlaneseq
        %v2754 = vshrl.u32 %v2753, 7
        %v2755 = vadd.s32 %v2754, 8
        %2756 = vset.pattern.permute.xlu0 %v2755
        %2757 = vperm.xlu0 %2756, %v2746
        %v2758 = vpop.permute.xlu0 %2757
        %v2759 = vlaneseq
        %v2760 = vshrl.u32 %v2759, 7
        %v2761 = vadd.s32 %v2760, 16
        %2762 = vset.pattern.permute.xlu0 %v2761
        %2763 = vperm.xlu0 %2762, %v2746
        %v2764 = vpop.permute.xlu0 %2763
        %v2765 = vlaneseq
        %v2766 = vshrl.u32 %v2765, 7
        %v2767 = vadd.s32 %v2766, 24
        %2768 = vset.pattern.permute.xlu0 %v2767
        %2769 = vperm.xlu0 %2768, %v2746
        %v2770 = vpop.permute.xlu0 %2769
        %v2771 = vlaneseq
        %v2772 = vshrl.u32 %v2771, 7
        %v2773 = vadd.s32 %v2772, 32
        %2774 = vset.pattern.permute.xlu0 %v2773
        %2775 = vperm.xlu0 %2774, %v2746
        %v2776 = vpop.permute.xlu0 %2775
        %v2777 = vlaneseq
        %v2778 = vshrl.u32 %v2777, 7
        %v2779 = vadd.s32 %v2778, 40
        %2780 = vset.pattern.permute.xlu0 %v2779
        %2781 = vperm.xlu0 %2780, %v2746
        %v2782 = vpop.permute.xlu0 %2781
        %v2783 = vlaneseq
        %v2784 = vshrl.u32 %v2783, 7
        %v2785 = vadd.s32 %v2784, 48
        %2786 = vset.pattern.permute.xlu0 %v2785
        %2787 = vperm.xlu0 %2786, %v2746
        %v2788 = vpop.permute.xlu0 %2787
        %v2789 = vlaneseq
        %v2790 = vshrl.u32 %v2789, 7
        %v2791 = vadd.s32 %v2790, 56
        %2792 = vset.pattern.permute.xlu0 %v2791
        %2793 = vperm.xlu0 %2792, %v2746
        %v2794 = vpop.permute.xlu0 %2793
        %v2795 = vlaneseq
        %v2796 = vshrl.u32 %v2795, 7
        %v2797 = vadd.s32 %v2796, 64
        %2798 = vset.pattern.permute.xlu0 %v2797
        %2799 = vperm.xlu0 %2798, %v2746
        %v2800 = vpop.permute.xlu0 %2799
        %v2801 = vlaneseq
        %v2802 = vshrl.u32 %v2801, 7
        %v2803 = vadd.s32 %v2802, 72
        %2804 = vset.pattern.permute.xlu0 %v2803
        %2805 = vperm.xlu0 %2804, %v2746
        %v2806 = vpop.permute.xlu0 %2805
        %v2807 = vlaneseq
        %v2808 = vshrl.u32 %v2807, 7
        %v2809 = vadd.s32 %v2808, 80
        %2810 = vset.pattern.permute.xlu0 %v2809
        %2811 = vperm.xlu0 %2810, %v2746
        %v2812 = vpop.permute.xlu0 %2811
        %v2813 = vlaneseq
        %v2814 = vshrl.u32 %v2813, 7
        %v2815 = vadd.s32 %v2814, 88
        %2816 = vset.pattern.permute.xlu0 %v2815
        %2817 = vperm.xlu0 %2816, %v2746
        %v2818 = vpop.permute.xlu0 %2817
        %v2819 = vlaneseq
        %v2820 = vshrl.u32 %v2819, 7
        %v2821 = vadd.s32 %v2820, 96
        %2822 = vset.pattern.permute.xlu0 %v2821
        %2823 = vperm.xlu0 %2822, %v2746
        %v2824 = vpop.permute.xlu0 %2823
        %v2825 = vlaneseq
        %v2826 = vshrl.u32 %v2825, 7
        %v2827 = vadd.s32 %v2826, 104
        %2828 = vset.pattern.permute.xlu0 %v2827
        %2829 = vperm.xlu0 %2828, %v2746
        %v2830 = vpop.permute.xlu0 %2829
        %v2831 = vlaneseq
        %v2832 = vshrl.u32 %v2831, 7
        %v2833 = vadd.s32 %v2832, 112
        %2834 = vset.pattern.permute.xlu0 %v2833
        %2835 = vperm.xlu0 %2834, %v2746
        %v2836 = vpop.permute.xlu0 %2835
        %v2837 = vlaneseq
        %v2838 = vshrl.u32 %v2837, 7
        %v2839 = vadd.s32 %v2838, 120
        %2840 = vset.pattern.permute.xlu0 %v2839
        %2841 = vperm.xlu0 %2840, %v2746
        %v2842 = vpop.permute.xlu0 %2841
        %v2843 = vmul.f32 %v2728, %v2744
        %v2844 = vmul.f32 %v2843, 0.025
        %v2845 = vlaneseq
        %v2846 = vshrl.u32 %v2845, 7
        %2848 = vset.pattern.permute.xlu0 %v2846
        %2849 = vperm.xlu0 %2848, %v2844
        %v2850 = vpop.permute.xlu0 %2849
        %v2851 = vlaneseq
        %v2852 = vshrl.u32 %v2851, 7
        %v2853 = vadd.s32 %v2852, 8
        %2854 = vset.pattern.permute.xlu0 %v2853
        %2855 = vperm.xlu0 %2854, %v2844
        %v2856 = vpop.permute.xlu0 %2855
        %v2857 = vlaneseq
        %v2858 = vshrl.u32 %v2857, 7
        %v2859 = vadd.s32 %v2858, 16
        %2860 = vset.pattern.permute.xlu0 %v2859
        %2861 = vperm.xlu0 %2860, %v2844
        %v2862 = vpop.permute.xlu0 %2861
        %v2863 = vlaneseq
        %v2864 = vshrl.u32 %v2863, 7
        %v2865 = vadd.s32 %v2864, 24
        %2866 = vset.pattern.permute.xlu0 %v2865
        %2867 = vperm.xlu0 %2866, %v2844
        %v2868 = vpop.permute.xlu0 %2867
        %v2869 = vlaneseq
        %v2870 = vshrl.u32 %v2869, 7
        %v2871 = vadd.s32 %v2870, 32
        %2872 = vset.pattern.permute.xlu0 %v2871
        %2873 = vperm.xlu0 %2872, %v2844
        %v2874 = vpop.permute.xlu0 %2873
        %v2875 = vlaneseq
        %v2876 = vshrl.u32 %v2875, 7
        %v2877 = vadd.s32 %v2876, 40
        %2878 = vset.pattern.permute.xlu0 %v2877
        %2879 = vperm.xlu0 %2878, %v2844
        %v2880 = vpop.permute.xlu0 %2879
        %v2881 = vlaneseq
        %v2882 = vshrl.u32 %v2881, 7
        %v2883 = vadd.s32 %v2882, 48
        %2884 = vset.pattern.permute.xlu0 %v2883
        %2885 = vperm.xlu0 %2884, %v2844
        %v2886 = vpop.permute.xlu0 %2885
        %v2887 = vlaneseq
        %v2888 = vshrl.u32 %v2887, 7
        %v2889 = vadd.s32 %v2888, 56
        %2890 = vset.pattern.permute.xlu0 %v2889
        %2891 = vperm.xlu0 %2890, %v2844
        %v2892 = vpop.permute.xlu0 %2891
        %v2893 = vlaneseq
        %v2894 = vshrl.u32 %v2893, 7
        %v2895 = vadd.s32 %v2894, 64
        %2896 = vset.pattern.permute.xlu0 %v2895
        %2897 = vperm.xlu0 %2896, %v2844
        %v2898 = vpop.permute.xlu0 %2897
        %v2899 = vlaneseq
        %v2900 = vshrl.u32 %v2899, 7
        %v2901 = vadd.s32 %v2900, 72
        %2902 = vset.pattern.permute.xlu0 %v2901
        %2903 = vperm.xlu0 %2902, %v2844
        %v2904 = vpop.permute.xlu0 %2903
        %v2905 = vlaneseq
        %v2906 = vshrl.u32 %v2905, 7
        %v2907 = vadd.s32 %v2906, 80
        %2908 = vset.pattern.permute.xlu0 %v2907
        %2909 = vperm.xlu0 %2908, %v2844
        %v2910 = vpop.permute.xlu0 %2909
        %v2911 = vlaneseq
        %v2912 = vshrl.u32 %v2911, 7
        %v2913 = vadd.s32 %v2912, 88
        %2914 = vset.pattern.permute.xlu0 %v2913
        %2915 = vperm.xlu0 %2914, %v2844
        %v2916 = vpop.permute.xlu0 %2915
        %v2917 = vlaneseq
        %v2918 = vshrl.u32 %v2917, 7
        %v2919 = vadd.s32 %v2918, 96
        %2920 = vset.pattern.permute.xlu0 %v2919
        %2921 = vperm.xlu0 %2920, %v2844
        %v2922 = vpop.permute.xlu0 %2921
        %v2923 = vlaneseq
        %v2924 = vshrl.u32 %v2923, 7
        %v2925 = vadd.s32 %v2924, 104
        %2926 = vset.pattern.permute.xlu0 %v2925
        %2927 = vperm.xlu0 %2926, %v2844
        %v2928 = vpop.permute.xlu0 %2927
        %v2929 = vlaneseq
        %v2930 = vshrl.u32 %v2929, 7
        %v2931 = vadd.s32 %v2930, 112
        %2932 = vset.pattern.permute.xlu0 %v2931
        %2933 = vperm.xlu0 %2932, %v2844
        %v2934 = vpop.permute.xlu0 %2933
        %v2935 = vlaneseq
        %v2936 = vshrl.u32 %v2935, 7
        %v2937 = vadd.s32 %v2936, 120
        %2938 = vset.pattern.permute.xlu0 %v2937
        %2939 = vperm.xlu0 %2938, %v2844
        %v2940 = vpop.permute.xlu0 %2939
        %v2941 = vld [vmem:[#allocation17] sm:$0xff]
        %v2942 = vld [vmem:[#allocation17 + $0x8] sm:$0xff]
        %v2943 = vld [vmem:[#allocation17 + $0x10] sm:$0xff]
        %v2944 = vld [vmem:[#allocation17 + $0x18] sm:$0xff]
        %v2945 = vmul.f32 %v2752, %v2744
        %v2946 = vmul.f32 %v2758, %v2744
        %v2947 = vmul.f32 %v2764, %v2744
        %v2948 = vmul.f32 %v2770, %v2744
        %v2949 = vmul.f32 %v2850, %v2742
        %v2950 = vmul.f32 %v2856, %v2742
        %v2951 = vmul.f32 %v2862, %v2742
        %v2952 = vmul.f32 %v2868, %v2742
        %v2953 = vmax.f32 %v2945, %v2949
        %v2954 = vmax.f32 %v2946, %v2950
        %v2955 = vmax.f32 %v2947, %v2951
        %v2956 = vmax.f32 %v2948, %v2952
        %v2957 = vadd.f32 %v2941, 0.00025
        %v2958 = vadd.f32 %v2942, 0.00025
        %v2959 = vadd.f32 %v2943, 0.00025
        %v2960 = vadd.f32 %v2944, 0.00025
        %v2961 = vsub.f32 %v2957, %v2953
        %v2962 = vsub.f32 %v2958, %v2954
        %v2963 = vsub.f32 %v2959, %v2955
        %v2964 = vsub.f32 %v2960, %v2956
        %v2965 = vmax.f32 %v2961, 0.0
        %v2966 = vmax.f32 %v2962, 0.0
        %v2967 = vmax.f32 %v2963, 0.0
        %v2968 = vmax.f32 %v2964, 0.0
        %v2969 = vmin.f32 %v2965, 1.0
        %v2970 = vmin.f32 %v2966, 1.0
        %v2971 = vmin.f32 %v2967, 1.0
        %v2972 = vmin.f32 %v2968, 1.0
        %v2973 = vld [vmem:[%s3] sm:$0xff]
        %v2974 = vld [vmem:[%s3 + $0x8] sm:$0xff]
        %v2975 = vld [vmem:[%s3 + $0x10] sm:$0xff]
        %v2976 = vld [vmem:[%s3 + $0x18] sm:$0xff]
        %vm2977 = vcmp.ne.f32.partialorder %v2973, 0.0
        %vm2978 = vcmp.ne.f32.partialorder %v2974, 0.0
        %vm2979 = vcmp.ne.f32.partialorder %v2975, 0.0
        %vm2980 = vcmp.ne.f32.partialorder %v2976, 0.0
        %v2981 = vsel %vm2977, %v2969, %v2941
        %v2982 = vsel %vm2978, %v2970, %v2942
        %v2983 = vsel %vm2979, %v2971, %v2943
        %v2984 = vsel %vm2980, %v2972, %v2944
        %2985 = vst [vmem:[#allocation17] sm:$0xff] %v2981
        %2986 = vst [vmem:[#allocation17 + $0x8] sm:$0xff] %v2982
        %2987 = vst [vmem:[#allocation17 + $0x10] sm:$0xff] %v2983
        %2988 = vst [vmem:[#allocation17 + $0x18] sm:$0xff] %v2984
        %v2989 = vld [vmem:[#allocation17 + $0x20] sm:$0xff]
        %v2990 = vld [vmem:[#allocation17 + $0x28] sm:$0xff]
        %v2991 = vld [vmem:[#allocation17 + $0x30] sm:$0xff]
        %v2992 = vld [vmem:[#allocation17 + $0x38] sm:$0xff]
        %v2993 = vmul.f32 %v2776, %v2744
        %v2994 = vmul.f32 %v2782, %v2744
        %v2995 = vmul.f32 %v2788, %v2744
        %v2996 = vmul.f32 %v2794, %v2744
        %v2997 = vmul.f32 %v2874, %v2742
        %v2998 = vmul.f32 %v2880, %v2742
        %v2999 = vmul.f32 %v2886, %v2742
        %v3000 = vmul.f32 %v2892, %v2742
        %v3001 = vmax.f32 %v2993, %v2997
        %v3002 = vmax.f32 %v2994, %v2998
        %v3003 = vmax.f32 %v2995, %v2999
        %v3004 = vmax.f32 %v2996, %v3000
        %v3005 = vadd.f32 %v2989, 0.00025
        %v3006 = vadd.f32 %v2990, 0.00025
        %v3007 = vadd.f32 %v2991, 0.00025
        %v3008 = vadd.f32 %v2992, 0.00025
        %v3009 = vsub.f32 %v3005, %v3001
        %v3010 = vsub.f32 %v3006, %v3002
        %v3011 = vsub.f32 %v3007, %v3003
        %v3012 = vsub.f32 %v3008, %v3004
        %v3013 = vmax.f32 %v3009, 0.0
        %v3014 = vmax.f32 %v3010, 0.0
        %v3015 = vmax.f32 %v3011, 0.0
        %v3016 = vmax.f32 %v3012, 0.0
        %v3017 = vmin.f32 %v3013, 1.0
        %v3018 = vmin.f32 %v3014, 1.0
        %v3019 = vmin.f32 %v3015, 1.0
        %v3020 = vmin.f32 %v3016, 1.0
        %v3021 = vld [vmem:[%s3 + $0x20] sm:$0xff]
        %v3022 = vld [vmem:[%s3 + $0x28] sm:$0xff]
        %v3023 = vld [vmem:[%s3 + $0x30] sm:$0xff]
        %v3024 = vld [vmem:[%s3 + $0x38] sm:$0xff]
        %vm3025 = vcmp.ne.f32.partialorder %v3021, 0.0
        %vm3026 = vcmp.ne.f32.partialorder %v3022, 0.0
        %vm3027 = vcmp.ne.f32.partialorder %v3023, 0.0
        %vm3028 = vcmp.ne.f32.partialorder %v3024, 0.0
        %v3029 = vsel %vm3025, %v3017, %v2989
        %v3030 = vsel %vm3026, %v3018, %v2990
        %v3031 = vsel %vm3027, %v3019, %v2991
        %v3032 = vsel %vm3028, %v3020, %v2992
        %3033 = vst [vmem:[#allocation17 + $0x20] sm:$0xff] %v3029
        %3034 = vst [vmem:[#allocation17 + $0x28] sm:$0xff] %v3030
        %3035 = vst [vmem:[#allocation17 + $0x30] sm:$0xff] %v3031
        %3036 = vst [vmem:[#allocation17 + $0x38] sm:$0xff] %v3032
        %v3037 = vld [vmem:[#allocation17 + $0x40] sm:$0xff]
        %v3038 = vld [vmem:[#allocation17 + $0x48] sm:$0xff]
        %v3039 = vld [vmem:[#allocation17 + $0x50] sm:$0xff]
        %v3040 = vld [vmem:[#allocation17 + $0x58] sm:$0xff]
        %v3041 = vmul.f32 %v2800, %v2744
        %v3042 = vmul.f32 %v2806, %v2744
        %v3043 = vmul.f32 %v2812, %v2744
        %v3044 = vmul.f32 %v2818, %v2744
        %v3045 = vmul.f32 %v2898, %v2742
        %v3046 = vmul.f32 %v2904, %v2742
        %v3047 = vmul.f32 %v2910, %v2742
        %v3048 = vmul.f32 %v2916, %v2742
        %v3049 = vmax.f32 %v3041, %v3045
        %v3050 = vmax.f32 %v3042, %v3046
        %v3051 = vmax.f32 %v3043, %v3047
        %v3052 = vmax.f32 %v3044, %v3048
        %v3053 = vadd.f32 %v3037, 0.00025
        %v3054 = vadd.f32 %v3038, 0.00025
        %v3055 = vadd.f32 %v3039, 0.00025
        %v3056 = vadd.f32 %v3040, 0.00025
        %v3057 = vsub.f32 %v3053, %v3049
        %v3058 = vsub.f32 %v3054, %v3050
        %v3059 = vsub.f32 %v3055, %v3051
        %v3060 = vsub.f32 %v3056, %v3052
        %v3061 = vmax.f32 %v3057, 0.0
        %v3062 = vmax.f32 %v3058, 0.0
        %v3063 = vmax.f32 %v3059, 0.0
        %v3064 = vmax.f32 %v3060, 0.0
        %v3065 = vmin.f32 %v3061, 1.0
        %v3066 = vmin.f32 %v3062, 1.0
        %v3067 = vmin.f32 %v3063, 1.0
        %v3068 = vmin.f32 %v3064, 1.0
        %v3069 = vld [vmem:[%s3 + $0x40] sm:$0xff]
        %v3070 = vld [vmem:[%s3 + $0x48] sm:$0xff]
        %v3071 = vld [vmem:[%s3 + $0x50] sm:$0xff]
        %v3072 = vld [vmem:[%s3 + $0x58] sm:$0xff]
        %vm3073 = vcmp.ne.f32.partialorder %v3069, 0.0
        %vm3074 = vcmp.ne.f32.partialorder %v3070, 0.0
        %vm3075 = vcmp.ne.f32.partialorder %v3071, 0.0
        %vm3076 = vcmp.ne.f32.partialorder %v3072, 0.0
        %v3077 = vsel %vm3073, %v3065, %v3037
        %v3078 = vsel %vm3074, %v3066, %v3038
        %v3079 = vsel %vm3075, %v3067, %v3039
        %v3080 = vsel %vm3076, %v3068, %v3040
        %3081 = vst [vmem:[#allocation17 + $0x40] sm:$0xff] %v3077
        %3082 = vst [vmem:[#allocation17 + $0x48] sm:$0xff] %v3078
        %3083 = vst [vmem:[#allocation17 + $0x50] sm:$0xff] %v3079
        %3084 = vst [vmem:[#allocation17 + $0x58] sm:$0xff] %v3080
        %v3085 = vld [vmem:[#allocation17 + $0x60] sm:$0xff]
        %v3086 = vld [vmem:[#allocation17 + $0x68] sm:$0xff]
        %v3087 = vld [vmem:[#allocation17 + $0x70] sm:$0xff]
        %v3088 = vld [vmem:[#allocation17 + $0x78] sm:$0xff]
        %v3089 = vmul.f32 %v2824, %v2744
        %v3090 = vmul.f32 %v2830, %v2744
        %v3091 = vmul.f32 %v2836, %v2744
        %v3092 = vmul.f32 %v2842, %v2744
        %v3093 = vmul.f32 %v2922, %v2742
        %v3094 = vmul.f32 %v2928, %v2742
        %v3095 = vmul.f32 %v2934, %v2742
        %v3096 = vmul.f32 %v2940, %v2742
        %v3097 = vmax.f32 %v3089, %v3093
        %v3098 = vmax.f32 %v3090, %v3094
        %v3099 = vmax.f32 %v3091, %v3095
        %v3100 = vmax.f32 %v3092, %v3096
        %v3101 = vadd.f32 %v3085, 0.00025
        %v3102 = vadd.f32 %v3086, 0.00025
        %v3103 = vadd.f32 %v3087, 0.00025
        %v3104 = vadd.f32 %v3088, 0.00025
        %v3105 = vsub.f32 %v3101, %v3097
        %v3106 = vsub.f32 %v3102, %v3098
        %v3107 = vsub.f32 %v3103, %v3099
        %v3108 = vsub.f32 %v3104, %v3100
        %v3109 = vmax.f32 %v3105, 0.0
        %v3110 = vmax.f32 %v3106, 0.0
        %v3111 = vmax.f32 %v3107, 0.0
        %v3112 = vmax.f32 %v3108, 0.0
        %v3113 = vmin.f32 %v3109, 1.0
        %v3114 = vmin.f32 %v3110, 1.0
        %v3115 = vmin.f32 %v3111, 1.0
        %v3116 = vmin.f32 %v3112, 1.0
        %v3117 = vld [vmem:[%s3 + $0x60] sm:$0xff]
        %v3118 = vld [vmem:[%s3 + $0x68] sm:$0xff]
        %v3119 = vld [vmem:[%s3 + $0x70] sm:$0xff]
        %v3120 = vld [vmem:[%s3 + $0x78] sm:$0xff]
        %vm3121 = vcmp.ne.f32.partialorder %v3117, 0.0
        %vm3122 = vcmp.ne.f32.partialorder %v3118, 0.0
        %vm3123 = vcmp.ne.f32.partialorder %v3119, 0.0
        %vm3124 = vcmp.ne.f32.partialorder %v3120, 0.0
        %v3125 = vsel %vm3121, %v3113, %v3085
        %v3126 = vsel %vm3122, %v3114, %v3086
        %v3127 = vsel %vm3123, %v3115, %v3087
        %v3128 = vsel %vm3124, %v3116, %v3088
        %3129 = vst [vmem:[#allocation17 + $0x60] sm:$0xff] %v3125
        %3130 = vst [vmem:[#allocation17 + $0x68] sm:$0xff] %v3126
        %3131 = vst [vmem:[#allocation17 + $0x70] sm:$0xff] %v3127
        %3132 = vst [vmem:[#allocation17 + $0x78] sm:$0xff] %v3128
        %v3133 = vld [vmem:[#allocation17] sm:$0xff]
        %v3134 = vld [vmem:[#allocation17 + $0x8] sm:$0xff]
        %v3135 = vld [vmem:[#allocation17 + $0x10] sm:$0xff]
        %v3136 = vld [vmem:[#allocation17 + $0x18] sm:$0xff]
        %v3137 = vld [vmem:[#allocation17 + $0x20] sm:$0xff]
        %v3138 = vld [vmem:[#allocation17 + $0x28] sm:$0xff]
        %v3139 = vld [vmem:[#allocation17 + $0x30] sm:$0xff]
        %v3140 = vld [vmem:[#allocation17 + $0x38] sm:$0xff]
        %v3141 = vld [vmem:[#allocation17 + $0x40] sm:$0xff]
        %v3142 = vld [vmem:[#allocation17 + $0x48] sm:$0xff]
        %v3143 = vld [vmem:[#allocation17 + $0x50] sm:$0xff]
        %v3144 = vld [vmem:[#allocation17 + $0x58] sm:$0xff]
        %v3145 = vld [vmem:[#allocation17 + $0x60] sm:$0xff]
        %v3146 = vld [vmem:[#allocation17 + $0x68] sm:$0xff]
        %v3147 = vld [vmem:[#allocation17 + $0x70] sm:$0xff]
        %v3148 = vld [vmem:[#allocation17 + $0x78] sm:$0xff]
        %3149 = vmatpush.msra.mxu0 %v3148
        %3150 = vmatpush.msra.mxu0 %v3147
        %3151 = vmatpush.msra.mxu0 %v3146
        %3152 = vmatpush.msra.mxu0 %v3145
        %3153 = vmatpush.msra.mxu0 %v3144
        %3154 = vmatpush.msra.mxu0 %v3143
        %3155 = vmatpush.msra.mxu0 %v3142
        %3156 = vmatpush.msra.mxu0 %v3141
        %3157 = vmatpush.msra.mxu0 %v3140
        %3158 = vmatpush.msra.mxu0 %v3139
        %3159 = vmatpush.msra.mxu0 %v3138
        %3160 = vmatpush.msra.mxu0 %v3137
        %3161 = vmatpush.msra.mxu0 %v3136
        %3162 = vmatpush.msra.mxu0 %v3135
        %3163 = vmatpush.msra.mxu0 %v3134
        %3164 = vmatpush.msra.mxu0 %v3133
        %3165 = vmatmul.f32.gmra.mxu0 %v2716
        %v3166 = vpop.f32.mrf.mxu0
        %v3167 = vadd.f32 0.0, %v3166
        %3168 = vdwg.mxu0
        %v3169 = vld [vmem:[#allocation25] sm:$0xff]
        %vm3170 = vcmp.gt.s32.totalorder %v3169, 0
        %v3171 = vsub.s32 %v3169, 1
        %v3172 = vsel %vm3170, %v3171, %v3169
        %vm3173 = vcmp.eq.s32.totalorder %v3172, 0
        %v3174 = vld [vmem:[#allocation20] sm:$0xff]
        %v3175 = vld [vmem:[#allocation23] sm:$0xff]
        %s3176 = scalar_lea.vmem %s610, 32
        %v3177 = vld [vmem:[%s3176] sm:$0xff]
        %v3178 = vadd.f32 %v3177, %v3167
        %v3179 = vadd.f32 %v3178, %v3174
        %v3180 = vsel %vm3173, %v3179, %v3174
        %3181 = vmatpush.xpose.msra.mxu0 %v3148
        %3182 = vmatpush.xpose.msra.mxu0 %v3147
        %3183 = vmatpush.xpose.msra.mxu0 %v3146
        %3184 = vmatpush.xpose.msra.mxu0 %v3145
        %3185 = vmatpush.xpose.msra.mxu0 %v3144
        %3186 = vmatpush.xpose.msra.mxu0 %v3143
        %3187 = vmatpush.xpose.msra.mxu0 %v3142
        %3188 = vmatpush.xpose.msra.mxu0 %v3141
        %3189 = vmatpush.xpose.msra.mxu0 %v3140
        %3190 = vmatpush.xpose.msra.mxu0 %v3139
        %3191 = vmatpush.xpose.msra.mxu0 %v3138
        %3192 = vmatpush.xpose.msra.mxu0 %v3137
        %3193 = vmatpush.xpose.msra.mxu0 %v3136
        %3194 = vmatpush.xpose.msra.mxu0 %v3135
        %3195 = vmatpush.xpose.msra.mxu0 %v3134
        %3196 = vmatpush.xpose.msra.mxu0 %v3133
        %3197 = vmatmul.f32.gmra.mxu0 %v2716
        %v3198 = vpop.f32.mrf.mxu0
        %v3199 = vadd.f32 %v3175, %v3198
        %3200 = vdwg.mxu0
        %v3201 = vsel %vm3173, %v3199, %v3175
        %v3202 = vadd.f32 %v3180, %v2711
        %v3203 = vsel %vm3173, %v3202, %v2711
        %v3204 = vadd.f32 %v3201, %v2712
        %v3205 = vsel %vm3173, %v3204, %v2712
        %v3206 = vmul.f32 %v3203, 0.9801987
        %v3207 = vmul.f32 %v3180, 0.36787945
        %v3208 = vmul.f32 %v3205, 0.9801987
        %v3209 = vmul.f32 %v3201, 0.36787945
        %v3210 = vsel %vm2713, 0.0, %v3206
        %v3211 = vsel %vm2714, 0.0, %v3208
        %v3212 = vsel %vm2713, 2, %v3172
        %v3213 = vpack.c.bf16 %v2716, %v2716
        %s3214 = scalar_lea.vmem %s591, 16 [#allocation16]
        %3215 = vst [vmem:[%s3214] sm:$0xf] %v3213
        %3216 = vst [vmem:[#allocation19] sm:$0xff] %v3210
        %3217 = vst [vmem:[#allocation20] sm:$0xff] %v3207
        %3218 = vst [vmem:[#allocation22] sm:$0xff] %v3211
        %3219 = vst [vmem:[#allocation23] sm:$0xff] %v3209
        %3220 = vst [vmem:[#allocation25] sm:$0xff] %v3212
        %s3221 = sadd.s32 %s663, 5
        %s3222 = scvt.s32.f32 %s3221
        %v3223 = vld [vmem:[#allocation19] sm:$0xff]
        %v3224 = vld [vmem:[#allocation22] sm:$0xff]
        %vm3225 = vcmp.gt.f32.partialorder %v3223, 1.0
        %vm3226 = vcmp.gt.f32.partialorder %v3224, 1.025
        %v3227 = vsel %vm3225, 1, 0
        %v3228 = vcvt.s32.f32 %v3227
        %v3229 = vld [vmem:[#allocation26] sm:$0xff]
        %v3230 = vstv %s3222
        %v3231 = vsel %vm3225, %v3230, %v3229
        %3232 = vst [vmem:[#allocation26] sm:$0xff] %v3231
        %v3233 = vsel %vm3226, 1, 0
        %v3234 = vcvt.s32.f32 %v3233
        %v3235 = vrot.slane %v3234, 4
        %v3236 = vmax.f32 %v3234, %v3235
        %v3237 = vrot.slane %v3236, 2
        %v3238 = vmax.f32 %v3236, %v3237
        %v3239 = vrot.slane %v3238, 1
        %v3240 = vmax.f32 %v3238, %v3239
        %v3241 = vrot.slane %v3231, 4
        %v3242 = vmax.f32 %v3231, %v3241
        %v3243 = vrot.slane %v3242, 2
        %v3244 = vmax.f32 %v3242, %v3243
        %v3245 = vrot.slane %v3244, 1
        %v3246 = vmax.f32 %v3244, %v3245
        %3247 = vmax.xlane.f32.xlu0 %v3246
        %v3248 = vpop.xlane.xlu0 %3247
        %v3249 = vsub.f32 %v3248, %v3246
        %v3250 = vmul.f32 %v3249, 0.02
        %v3251 = vmin.f32 %v3250, 80.0
        %v3252 = vsub.f32 0.0, %v3251
        %v3253 = vmul.f32 %v3252, 1.442695
        %v3254 = vpow.pop %v3253
        %v3255 = vmul.f32 %v3251, 1.442695
        %v3256 = vpow.pop %v3255
        %v3257 = vmul.f32 %v3240, %v3254
        %v3258 = vmul.f32 %v3257, 0.025
        %v3259 = vlaneseq
        %v3260 = vshrl.u32 %v3259, 7
        %3262 = vset.pattern.permute.xlu0 %v3260
        %3263 = vperm.xlu0 %3262, %v3258
        %v3264 = vpop.permute.xlu0 %3263
        %v3265 = vlaneseq
        %v3266 = vshrl.u32 %v3265, 7
        %v3267 = vadd.s32 %v3266, 8
        %3268 = vset.pattern.permute.xlu0 %v3267
        %3269 = vperm.xlu0 %3268, %v3258
        %v3270 = vpop.permute.xlu0 %3269
        %v3271 = vlaneseq
        %v3272 = vshrl.u32 %v3271, 7
        %v3273 = vadd.s32 %v3272, 16
        %3274 = vset.pattern.permute.xlu0 %v3273
        %3275 = vperm.xlu0 %3274, %v3258
        %v3276 = vpop.permute.xlu0 %3275
        %v3277 = vlaneseq
        %v3278 = vshrl.u32 %v3277, 7
        %v3279 = vadd.s32 %v3278, 24
        %3280 = vset.pattern.permute.xlu0 %v3279
        %3281 = vperm.xlu0 %3280, %v3258
        %v3282 = vpop.permute.xlu0 %3281
        %v3283 = vlaneseq
        %v3284 = vshrl.u32 %v3283, 7
        %v3285 = vadd.s32 %v3284, 32
        %3286 = vset.pattern.permute.xlu0 %v3285
        %3287 = vperm.xlu0 %3286, %v3258
        %v3288 = vpop.permute.xlu0 %3287
        %v3289 = vlaneseq
        %v3290 = vshrl.u32 %v3289, 7
        %v3291 = vadd.s32 %v3290, 40
        %3292 = vset.pattern.permute.xlu0 %v3291
        %3293 = vperm.xlu0 %3292, %v3258
        %v3294 = vpop.permute.xlu0 %3293
        %v3295 = vlaneseq
        %v3296 = vshrl.u32 %v3295, 7
        %v3297 = vadd.s32 %v3296, 48
        %3298 = vset.pattern.permute.xlu0 %v3297
        %3299 = vperm.xlu0 %3298, %v3258
        %v3300 = vpop.permute.xlu0 %3299
        %v3301 = vlaneseq
        %v3302 = vshrl.u32 %v3301, 7
        %v3303 = vadd.s32 %v3302, 56
        %3304 = vset.pattern.permute.xlu0 %v3303
        %3305 = vperm.xlu0 %3304, %v3258
        %v3306 = vpop.permute.xlu0 %3305
        %v3307 = vlaneseq
        %v3308 = vshrl.u32 %v3307, 7
        %v3309 = vadd.s32 %v3308, 64
        %3310 = vset.pattern.permute.xlu0 %v3309
        %3311 = vperm.xlu0 %3310, %v3258
        %v3312 = vpop.permute.xlu0 %3311
        %v3313 = vlaneseq
        %v3314 = vshrl.u32 %v3313, 7
        %v3315 = vadd.s32 %v3314, 72
        %3316 = vset.pattern.permute.xlu0 %v3315
        %3317 = vperm.xlu0 %3316, %v3258
        %v3318 = vpop.permute.xlu0 %3317
        %v3319 = vlaneseq
        %v3320 = vshrl.u32 %v3319, 7
        %v3321 = vadd.s32 %v3320, 80
        %3322 = vset.pattern.permute.xlu0 %v3321
        %3323 = vperm.xlu0 %3322, %v3258
        %v3324 = vpop.permute.xlu0 %3323
        %v3325 = vlaneseq
        %v3326 = vshrl.u32 %v3325, 7
        %v3327 = vadd.s32 %v3326, 88
        %3328 = vset.pattern.permute.xlu0 %v3327
        %3329 = vperm.xlu0 %3328, %v3258
        %v3330 = vpop.permute.xlu0 %3329
        %v3331 = vlaneseq
        %v3332 = vshrl.u32 %v3331, 7
        %v3333 = vadd.s32 %v3332, 96
        %3334 = vset.pattern.permute.xlu0 %v3333
        %3335 = vperm.xlu0 %3334, %v3258
        %v3336 = vpop.permute.xlu0 %3335
        %v3337 = vlaneseq
        %v3338 = vshrl.u32 %v3337, 7
        %v3339 = vadd.s32 %v3338, 104
        %3340 = vset.pattern.permute.xlu0 %v3339
        %3341 = vperm.xlu0 %3340, %v3258
        %v3342 = vpop.permute.xlu0 %3341
        %v3343 = vlaneseq
        %v3344 = vshrl.u32 %v3343, 7
        %v3345 = vadd.s32 %v3344, 112
        %3346 = vset.pattern.permute.xlu0 %v3345
        %3347 = vperm.xlu0 %3346, %v3258
        %v3348 = vpop.permute.xlu0 %3347
        %v3349 = vlaneseq
        %v3350 = vshrl.u32 %v3349, 7
        %v3351 = vadd.s32 %v3350, 120
        %3352 = vset.pattern.permute.xlu0 %v3351
        %3353 = vperm.xlu0 %3352, %v3258
        %v3354 = vpop.permute.xlu0 %3353
        %v3355 = vmul.f32 %v3240, %v3256
        %v3356 = vmul.f32 %v3355, 0.025
        %v3357 = vlaneseq
        %v3358 = vshrl.u32 %v3357, 7
        %3360 = vset.pattern.permute.xlu0 %v3358
        %3361 = vperm.xlu0 %3360, %v3356
        %v3362 = vpop.permute.xlu0 %3361
        %v3363 = vlaneseq
        %v3364 = vshrl.u32 %v3363, 7
        %v3365 = vadd.s32 %v3364, 8
        %3366 = vset.pattern.permute.xlu0 %v3365
        %3367 = vperm.xlu0 %3366, %v3356
        %v3368 = vpop.permute.xlu0 %3367
        %v3369 = vlaneseq
        %v3370 = vshrl.u32 %v3369, 7
        %v3371 = vadd.s32 %v3370, 16
        %3372 = vset.pattern.permute.xlu0 %v3371
        %3373 = vperm.xlu0 %3372, %v3356
        %v3374 = vpop.permute.xlu0 %3373
        %v3375 = vlaneseq
        %v3376 = vshrl.u32 %v3375, 7
        %v3377 = vadd.s32 %v3376, 24
        %3378 = vset.pattern.permute.xlu0 %v3377
        %3379 = vperm.xlu0 %3378, %v3356
        %v3380 = vpop.permute.xlu0 %3379
        %v3381 = vlaneseq
        %v3382 = vshrl.u32 %v3381, 7
        %v3383 = vadd.s32 %v3382, 32
        %3384 = vset.pattern.permute.xlu0 %v3383
        %3385 = vperm.xlu0 %3384, %v3356
        %v3386 = vpop.permute.xlu0 %3385
        %v3387 = vlaneseq
        %v3388 = vshrl.u32 %v3387, 7
        %v3389 = vadd.s32 %v3388, 40
        %3390 = vset.pattern.permute.xlu0 %v3389
        %3391 = vperm.xlu0 %3390, %v3356
        %v3392 = vpop.permute.xlu0 %3391
        %v3393 = vlaneseq
        %v3394 = vshrl.u32 %v3393, 7
        %v3395 = vadd.s32 %v3394, 48
        %3396 = vset.pattern.permute.xlu0 %v3395
        %3397 = vperm.xlu0 %3396, %v3356
        %v3398 = vpop.permute.xlu0 %3397
        %v3399 = vlaneseq
        %v3400 = vshrl.u32 %v3399, 7
        %v3401 = vadd.s32 %v3400, 56
        %3402 = vset.pattern.permute.xlu0 %v3401
        %3403 = vperm.xlu0 %3402, %v3356
        %v3404 = vpop.permute.xlu0 %3403
        %v3405 = vlaneseq
        %v3406 = vshrl.u32 %v3405, 7
        %v3407 = vadd.s32 %v3406, 64
        %3408 = vset.pattern.permute.xlu0 %v3407
        %3409 = vperm.xlu0 %3408, %v3356
        %v3410 = vpop.permute.xlu0 %3409
        %v3411 = vlaneseq
        %v3412 = vshrl.u32 %v3411, 7
        %v3413 = vadd.s32 %v3412, 72
        %3414 = vset.pattern.permute.xlu0 %v3413
        %3415 = vperm.xlu0 %3414, %v3356
        %v3416 = vpop.permute.xlu0 %3415
        %v3417 = vlaneseq
        %v3418 = vshrl.u32 %v3417, 7
        %v3419 = vadd.s32 %v3418, 80
        %3420 = vset.pattern.permute.xlu0 %v3419
        %3421 = vperm.xlu0 %3420, %v3356
        %v3422 = vpop.permute.xlu0 %3421
        %v3423 = vlaneseq
        %v3424 = vshrl.u32 %v3423, 7
        %v3425 = vadd.s32 %v3424, 88
        %3426 = vset.pattern.permute.xlu0 %v3425
        %3427 = vperm.xlu0 %3426, %v3356
        %v3428 = vpop.permute.xlu0 %3427
        %v3429 = vlaneseq
        %v3430 = vshrl.u32 %v3429, 7
        %v3431 = vadd.s32 %v3430, 96
        %3432 = vset.pattern.permute.xlu0 %v3431
        %3433 = vperm.xlu0 %3432, %v3356
        %v3434 = vpop.permute.xlu0 %3433
        %v3435 = vlaneseq
        %v3436 = vshrl.u32 %v3435, 7
        %v3437 = vadd.s32 %v3436, 104
        %3438 = vset.pattern.permute.xlu0 %v3437
        %3439 = vperm.xlu0 %3438, %v3356
        %v3440 = vpop.permute.xlu0 %3439
        %v3441 = vlaneseq
        %v3442 = vshrl.u32 %v3441, 7
        %v3443 = vadd.s32 %v3442, 112
        %3444 = vset.pattern.permute.xlu0 %v3443
        %3445 = vperm.xlu0 %3444, %v3356
        %v3446 = vpop.permute.xlu0 %3445
        %v3447 = vlaneseq
        %v3448 = vshrl.u32 %v3447, 7
        %v3449 = vadd.s32 %v3448, 120
        %3450 = vset.pattern.permute.xlu0 %v3449
        %3451 = vperm.xlu0 %3450, %v3356
        %v3452 = vpop.permute.xlu0 %3451
        %v3453 = vld [vmem:[#allocation17] sm:$0xff]
        %v3454 = vld [vmem:[#allocation17 + $0x8] sm:$0xff]
        %v3455 = vld [vmem:[#allocation17 + $0x10] sm:$0xff]
        %v3456 = vld [vmem:[#allocation17 + $0x18] sm:$0xff]
        %v3457 = vmul.f32 %v3264, %v3256
        %v3458 = vmul.f32 %v3270, %v3256
        %v3459 = vmul.f32 %v3276, %v3256
        %v3460 = vmul.f32 %v3282, %v3256
        %v3461 = vmul.f32 %v3362, %v3254
        %v3462 = vmul.f32 %v3368, %v3254
        %v3463 = vmul.f32 %v3374, %v3254
        %v3464 = vmul.f32 %v3380, %v3254
        %v3465 = vmax.f32 %v3457, %v3461
        %v3466 = vmax.f32 %v3458, %v3462
        %v3467 = vmax.f32 %v3459, %v3463
        %v3468 = vmax.f32 %v3460, %v3464
        %v3469 = vadd.f32 %v3453, 0.00025
        %v3470 = vadd.f32 %v3454, 0.00025
        %v3471 = vadd.f32 %v3455, 0.00025
        %v3472 = vadd.f32 %v3456, 0.00025
        %v3473 = vsub.f32 %v3469, %v3465
        %v3474 = vsub.f32 %v3470, %v3466
        %v3475 = vsub.f32 %v3471, %v3467
        %v3476 = vsub.f32 %v3472, %v3468
        %v3477 = vmax.f32 %v3473, 0.0
        %v3478 = vmax.f32 %v3474, 0.0
        %v3479 = vmax.f32 %v3475, 0.0
        %v3480 = vmax.f32 %v3476, 0.0
        %v3481 = vmin.f32 %v3477, 1.0
        %v3482 = vmin.f32 %v3478, 1.0
        %v3483 = vmin.f32 %v3479, 1.0
        %v3484 = vmin.f32 %v3480, 1.0
        %v3485 = vld [vmem:[%s3] sm:$0xff]
        %v3486 = vld [vmem:[%s3 + $0x8] sm:$0xff]
        %v3487 = vld [vmem:[%s3 + $0x10] sm:$0xff]
        %v3488 = vld [vmem:[%s3 + $0x18] sm:$0xff]
        %vm3489 = vcmp.ne.f32.partialorder %v3485, 0.0
        %vm3490 = vcmp.ne.f32.partialorder %v3486, 0.0
        %vm3491 = vcmp.ne.f32.partialorder %v3487, 0.0
        %vm3492 = vcmp.ne.f32.partialorder %v3488, 0.0
        %v3493 = vsel %vm3489, %v3481, %v3453
        %v3494 = vsel %vm3490, %v3482, %v3454
        %v3495 = vsel %vm3491, %v3483, %v3455
        %v3496 = vsel %vm3492, %v3484, %v3456
        %3497 = vst [vmem:[#allocation17] sm:$0xff] %v3493
        %3498 = vst [vmem:[#allocation17 + $0x8] sm:$0xff] %v3494
        %3499 = vst [vmem:[#allocation17 + $0x10] sm:$0xff] %v3495
        %3500 = vst [vmem:[#allocation17 + $0x18] sm:$0xff] %v3496
        %v3501 = vld [vmem:[#allocation17 + $0x20] sm:$0xff]
        %v3502 = vld [vmem:[#allocation17 + $0x28] sm:$0xff]
        %v3503 = vld [vmem:[#allocation17 + $0x30] sm:$0xff]
        %v3504 = vld [vmem:[#allocation17 + $0x38] sm:$0xff]
        %v3505 = vmul.f32 %v3288, %v3256
        %v3506 = vmul.f32 %v3294, %v3256
        %v3507 = vmul.f32 %v3300, %v3256
        %v3508 = vmul.f32 %v3306, %v3256
        %v3509 = vmul.f32 %v3386, %v3254
        %v3510 = vmul.f32 %v3392, %v3254
        %v3511 = vmul.f32 %v3398, %v3254
        %v3512 = vmul.f32 %v3404, %v3254
        %v3513 = vmax.f32 %v3505, %v3509
        %v3514 = vmax.f32 %v3506, %v3510
        %v3515 = vmax.f32 %v3507, %v3511
        %v3516 = vmax.f32 %v3508, %v3512
        %v3517 = vadd.f32 %v3501, 0.00025
        %v3518 = vadd.f32 %v3502, 0.00025
        %v3519 = vadd.f32 %v3503, 0.00025
        %v3520 = vadd.f32 %v3504, 0.00025
        %v3521 = vsub.f32 %v3517, %v3513
        %v3522 = vsub.f32 %v3518, %v3514
        %v3523 = vsub.f32 %v3519, %v3515
        %v3524 = vsub.f32 %v3520, %v3516
        %v3525 = vmax.f32 %v3521, 0.0
        %v3526 = vmax.f32 %v3522, 0.0
        %v3527 = vmax.f32 %v3523, 0.0
        %v3528 = vmax.f32 %v3524, 0.0
        %v3529 = vmin.f32 %v3525, 1.0
        %v3530 = vmin.f32 %v3526, 1.0
        %v3531 = vmin.f32 %v3527, 1.0
        %v3532 = vmin.f32 %v3528, 1.0
        %v3533 = vld [vmem:[%s3 + $0x20] sm:$0xff]
        %v3534 = vld [vmem:[%s3 + $0x28] sm:$0xff]
        %v3535 = vld [vmem:[%s3 + $0x30] sm:$0xff]
        %v3536 = vld [vmem:[%s3 + $0x38] sm:$0xff]
        %vm3537 = vcmp.ne.f32.partialorder %v3533, 0.0
        %vm3538 = vcmp.ne.f32.partialorder %v3534, 0.0
        %vm3539 = vcmp.ne.f32.partialorder %v3535, 0.0
        %vm3540 = vcmp.ne.f32.partialorder %v3536, 0.0
        %v3541 = vsel %vm3537, %v3529, %v3501
        %v3542 = vsel %vm3538, %v3530, %v3502
        %v3543 = vsel %vm3539, %v3531, %v3503
        %v3544 = vsel %vm3540, %v3532, %v3504
        %3545 = vst [vmem:[#allocation17 + $0x20] sm:$0xff] %v3541
        %3546 = vst [vmem:[#allocation17 + $0x28] sm:$0xff] %v3542
        %3547 = vst [vmem:[#allocation17 + $0x30] sm:$0xff] %v3543
        %3548 = vst [vmem:[#allocation17 + $0x38] sm:$0xff] %v3544
        %v3549 = vld [vmem:[#allocation17 + $0x40] sm:$0xff]
        %v3550 = vld [vmem:[#allocation17 + $0x48] sm:$0xff]
        %v3551 = vld [vmem:[#allocation17 + $0x50] sm:$0xff]
        %v3552 = vld [vmem:[#allocation17 + $0x58] sm:$0xff]
        %v3553 = vmul.f32 %v3312, %v3256
        %v3554 = vmul.f32 %v3318, %v3256
        %v3555 = vmul.f32 %v3324, %v3256
        %v3556 = vmul.f32 %v3330, %v3256
        %v3557 = vmul.f32 %v3410, %v3254
        %v3558 = vmul.f32 %v3416, %v3254
        %v3559 = vmul.f32 %v3422, %v3254
        %v3560 = vmul.f32 %v3428, %v3254
        %v3561 = vmax.f32 %v3553, %v3557
        %v3562 = vmax.f32 %v3554, %v3558
        %v3563 = vmax.f32 %v3555, %v3559
        %v3564 = vmax.f32 %v3556, %v3560
        %v3565 = vadd.f32 %v3549, 0.00025
        %v3566 = vadd.f32 %v3550, 0.00025
        %v3567 = vadd.f32 %v3551, 0.00025
        %v3568 = vadd.f32 %v3552, 0.00025
        %v3569 = vsub.f32 %v3565, %v3561
        %v3570 = vsub.f32 %v3566, %v3562
        %v3571 = vsub.f32 %v3567, %v3563
        %v3572 = vsub.f32 %v3568, %v3564
        %v3573 = vmax.f32 %v3569, 0.0
        %v3574 = vmax.f32 %v3570, 0.0
        %v3575 = vmax.f32 %v3571, 0.0
        %v3576 = vmax.f32 %v3572, 0.0
        %v3577 = vmin.f32 %v3573, 1.0
        %v3578 = vmin.f32 %v3574, 1.0
        %v3579 = vmin.f32 %v3575, 1.0
        %v3580 = vmin.f32 %v3576, 1.0
        %v3581 = vld [vmem:[%s3 + $0x40] sm:$0xff]
        %v3582 = vld [vmem:[%s3 + $0x48] sm:$0xff]
        %v3583 = vld [vmem:[%s3 + $0x50] sm:$0xff]
        %v3584 = vld [vmem:[%s3 + $0x58] sm:$0xff]
        %vm3585 = vcmp.ne.f32.partialorder %v3581, 0.0
        %vm3586 = vcmp.ne.f32.partialorder %v3582, 0.0
        %vm3587 = vcmp.ne.f32.partialorder %v3583, 0.0
        %vm3588 = vcmp.ne.f32.partialorder %v3584, 0.0
        %v3589 = vsel %vm3585, %v3577, %v3549
        %v3590 = vsel %vm3586, %v3578, %v3550
        %v3591 = vsel %vm3587, %v3579, %v3551
        %v3592 = vsel %vm3588, %v3580, %v3552
        %3593 = vst [vmem:[#allocation17 + $0x40] sm:$0xff] %v3589
        %3594 = vst [vmem:[#allocation17 + $0x48] sm:$0xff] %v3590
        %3595 = vst [vmem:[#allocation17 + $0x50] sm:$0xff] %v3591
        %3596 = vst [vmem:[#allocation17 + $0x58] sm:$0xff] %v3592
        %v3597 = vld [vmem:[#allocation17 + $0x60] sm:$0xff]
        %v3598 = vld [vmem:[#allocation17 + $0x68] sm:$0xff]
        %v3599 = vld [vmem:[#allocation17 + $0x70] sm:$0xff]
        %v3600 = vld [vmem:[#allocation17 + $0x78] sm:$0xff]
        %v3601 = vmul.f32 %v3336, %v3256
        %v3602 = vmul.f32 %v3342, %v3256
        %v3603 = vmul.f32 %v3348, %v3256
        %v3604 = vmul.f32 %v3354, %v3256
        %v3605 = vmul.f32 %v3434, %v3254
        %v3606 = vmul.f32 %v3440, %v3254
        %v3607 = vmul.f32 %v3446, %v3254
        %v3608 = vmul.f32 %v3452, %v3254
        %v3609 = vmax.f32 %v3601, %v3605
        %v3610 = vmax.f32 %v3602, %v3606
        %v3611 = vmax.f32 %v3603, %v3607
        %v3612 = vmax.f32 %v3604, %v3608
        %v3613 = vadd.f32 %v3597, 0.00025
        %v3614 = vadd.f32 %v3598, 0.00025
        %v3615 = vadd.f32 %v3599, 0.00025
        %v3616 = vadd.f32 %v3600, 0.00025
        %v3617 = vsub.f32 %v3613, %v3609
        %v3618 = vsub.f32 %v3614, %v3610
        %v3619 = vsub.f32 %v3615, %v3611
        %v3620 = vsub.f32 %v3616, %v3612
        %v3621 = vmax.f32 %v3617, 0.0
        %v3622 = vmax.f32 %v3618, 0.0
        %v3623 = vmax.f32 %v3619, 0.0
        %v3624 = vmax.f32 %v3620, 0.0
        %v3625 = vmin.f32 %v3621, 1.0
        %v3626 = vmin.f32 %v3622, 1.0
        %v3627 = vmin.f32 %v3623, 1.0
        %v3628 = vmin.f32 %v3624, 1.0
        %v3629 = vld [vmem:[%s3 + $0x60] sm:$0xff]
        %v3630 = vld [vmem:[%s3 + $0x68] sm:$0xff]
        %v3631 = vld [vmem:[%s3 + $0x70] sm:$0xff]
        %v3632 = vld [vmem:[%s3 + $0x78] sm:$0xff]
        %vm3633 = vcmp.ne.f32.partialorder %v3629, 0.0
        %vm3634 = vcmp.ne.f32.partialorder %v3630, 0.0
        %vm3635 = vcmp.ne.f32.partialorder %v3631, 0.0
        %vm3636 = vcmp.ne.f32.partialorder %v3632, 0.0
        %v3637 = vsel %vm3633, %v3625, %v3597
        %v3638 = vsel %vm3634, %v3626, %v3598
        %v3639 = vsel %vm3635, %v3627, %v3599
        %v3640 = vsel %vm3636, %v3628, %v3600
        %3641 = vst [vmem:[#allocation17 + $0x60] sm:$0xff] %v3637
        %3642 = vst [vmem:[#allocation17 + $0x68] sm:$0xff] %v3638
        %3643 = vst [vmem:[#allocation17 + $0x70] sm:$0xff] %v3639
        %3644 = vst [vmem:[#allocation17 + $0x78] sm:$0xff] %v3640
        %v3645 = vld [vmem:[#allocation17] sm:$0xff]
        %v3646 = vld [vmem:[#allocation17 + $0x8] sm:$0xff]
        %v3647 = vld [vmem:[#allocation17 + $0x10] sm:$0xff]
        %v3648 = vld [vmem:[#allocation17 + $0x18] sm:$0xff]
        %v3649 = vld [vmem:[#allocation17 + $0x20] sm:$0xff]
        %v3650 = vld [vmem:[#allocation17 + $0x28] sm:$0xff]
        %v3651 = vld [vmem:[#allocation17 + $0x30] sm:$0xff]
        %v3652 = vld [vmem:[#allocation17 + $0x38] sm:$0xff]
        %v3653 = vld [vmem:[#allocation17 + $0x40] sm:$0xff]
        %v3654 = vld [vmem:[#allocation17 + $0x48] sm:$0xff]
        %v3655 = vld [vmem:[#allocation17 + $0x50] sm:$0xff]
        %v3656 = vld [vmem:[#allocation17 + $0x58] sm:$0xff]
        %v3657 = vld [vmem:[#allocation17 + $0x60] sm:$0xff]
        %v3658 = vld [vmem:[#allocation17 + $0x68] sm:$0xff]
        %v3659 = vld [vmem:[#allocation17 + $0x70] sm:$0xff]
        %v3660 = vld [vmem:[#allocation17 + $0x78] sm:$0xff]
        %3661 = vmatpush.msra.mxu0 %v3660
        %3662 = vmatpush.msra.mxu0 %v3659
        %3663 = vmatpush.msra.mxu0 %v3658
        %3664 = vmatpush.msra.mxu0 %v3657
        %3665 = vmatpush.msra.mxu0 %v3656
        %3666 = vmatpush.msra.mxu0 %v3655
        %3667 = vmatpush.msra.mxu0 %v3654
        %3668 = vmatpush.msra.mxu0 %v3653
        %3669 = vmatpush.msra.mxu0 %v3652
        %3670 = vmatpush.msra.mxu0 %v3651
        %3671 = vmatpush.msra.mxu0 %v3650
        %3672 = vmatpush.msra.mxu0 %v3649
        %3673 = vmatpush.msra.mxu0 %v3648
        %3674 = vmatpush.msra.mxu0 %v3647
        %3675 = vmatpush.msra.mxu0 %v3646
        %3676 = vmatpush.msra.mxu0 %v3645
        %3677 = vmatmul.f32.gmra.mxu0 %v3228
        %v3678 = vpop.f32.mrf.mxu0
        %v3679 = vadd.f32 0.0, %v3678
        %3680 = vdwg.mxu0
        %v3681 = vld [vmem:[#allocation25] sm:$0xff]
        %vm3682 = vcmp.gt.s32.totalorder %v3681, 0
        %v3683 = vsub.s32 %v3681, 1
        %v3684 = vsel %vm3682, %v3683, %v3681
        %vm3685 = vcmp.eq.s32.totalorder %v3684, 0
        %v3686 = vld [vmem:[#allocation20] sm:$0xff]
        %v3687 = vld [vmem:[#allocation23] sm:$0xff]
        %s3688 = scalar_lea.vmem %s610, 40
        %v3689 = vld [vmem:[%s3688] sm:$0xff]
        %v3690 = vadd.f32 %v3689, %v3679
        %v3691 = vadd.f32 %v3690, %v3686
        %v3692 = vsel %vm3685, %v3691, %v3686
        %3693 = vmatpush.xpose.msra.mxu0 %v3660
        %3694 = vmatpush.xpose.msra.mxu0 %v3659
        %3695 = vmatpush.xpose.msra.mxu0 %v3658
        %3696 = vmatpush.xpose.msra.mxu0 %v3657
        %3697 = vmatpush.xpose.msra.mxu0 %v3656
        %3698 = vmatpush.xpose.msra.mxu0 %v3655
        %3699 = vmatpush.xpose.msra.mxu0 %v3654
        %3700 = vmatpush.xpose.msra.mxu0 %v3653
        %3701 = vmatpush.xpose.msra.mxu0 %v3652
        %3702 = vmatpush.xpose.msra.mxu0 %v3651
        %3703 = vmatpush.xpose.msra.mxu0 %v3650
        %3704 = vmatpush.xpose.msra.mxu0 %v3649
        %3705 = vmatpush.xpose.msra.mxu0 %v3648
        %3706 = vmatpush.xpose.msra.mxu0 %v3647
        %3707 = vmatpush.xpose.msra.mxu0 %v3646
        %3708 = vmatpush.xpose.msra.mxu0 %v3645
        %3709 = vmatmul.f32.gmra.mxu0 %v3228
        %v3710 = vpop.f32.mrf.mxu0
        %v3711 = vadd.f32 %v3687, %v3710
        %3712 = vdwg.mxu0
        %v3713 = vsel %vm3685, %v3711, %v3687
        %v3714 = vadd.f32 %v3692, %v3223
        %v3715 = vsel %vm3685, %v3714, %v3223
        %v3716 = vadd.f32 %v3713, %v3224
        %v3717 = vsel %vm3685, %v3716, %v3224
        %v3718 = vmul.f32 %v3715, 0.9801987
        %v3719 = vmul.f32 %v3692, 0.36787945
        %v3720 = vmul.f32 %v3717, 0.9801987
        %v3721 = vmul.f32 %v3713, 0.36787945
        %v3722 = vsel %vm3225, 0.0, %v3718
        %v3723 = vsel %vm3226, 0.0, %v3720
        %v3724 = vsel %vm3225, 2, %v3684
        %v3725 = vpack.c.bf16 %v3228, %v3228
        %s3726 = scalar_lea.vmem %s591, 20 [#allocation16]
        %3727 = vst [vmem:[%s3726] sm:$0xf] %v3725
        %3728 = vst [vmem:[#allocation19] sm:$0xff] %v3722
        %3729 = vst [vmem:[#allocation20] sm:$0xff] %v3719
        %3730 = vst [vmem:[#allocation22] sm:$0xff] %v3723
        %3731 = vst [vmem:[#allocation23] sm:$0xff] %v3721
        %3732 = vst [vmem:[#allocation25] sm:$0xff] %v3724
        %s3733 = sadd.s32 %s663, 6
        %s3734 = scvt.s32.f32 %s3733
        %v3735 = vld [vmem:[#allocation19] sm:$0xff]
        %v3736 = vld [vmem:[#allocation22] sm:$0xff]
        %vm3737 = vcmp.gt.f32.partialorder %v3735, 1.0
        %vm3738 = vcmp.gt.f32.partialorder %v3736, 1.025
        %v3739 = vsel %vm3737, 1, 0
        %v3740 = vcvt.s32.f32 %v3739
        %v3741 = vld [vmem:[#allocation26] sm:$0xff]
        %v3742 = vstv %s3734
        %v3743 = vsel %vm3737, %v3742, %v3741
        %3744 = vst [vmem:[#allocation26] sm:$0xff] %v3743
        %v3745 = vsel %vm3738, 1, 0
        %v3746 = vcvt.s32.f32 %v3745
        %v3747 = vrot.slane %v3746, 4
        %v3748 = vmax.f32 %v3746, %v3747
        %v3749 = vrot.slane %v3748, 2
        %v3750 = vmax.f32 %v3748, %v3749
        %v3751 = vrot.slane %v3750, 1
        %v3752 = vmax.f32 %v3750, %v3751
        %v3753 = vrot.slane %v3743, 4
        %v3754 = vmax.f32 %v3743, %v3753
        %v3755 = vrot.slane %v3754, 2
        %v3756 = vmax.f32 %v3754, %v3755
        %v3757 = vrot.slane %v3756, 1
        %v3758 = vmax.f32 %v3756, %v3757
        %3759 = vmax.xlane.f32.xlu0 %v3758
        %v3760 = vpop.xlane.xlu0 %3759
        %v3761 = vsub.f32 %v3760, %v3758
        %v3762 = vmul.f32 %v3761, 0.02
        %v3763 = vmin.f32 %v3762, 80.0
        %v3764 = vsub.f32 0.0, %v3763
        %v3765 = vmul.f32 %v3764, 1.442695
        %v3766 = vpow.pop %v3765
        %v3767 = vmul.f32 %v3763, 1.442695
        %v3768 = vpow.pop %v3767
        %v3769 = vmul.f32 %v3752, %v3766
        %v3770 = vmul.f32 %v3769, 0.025
        %v3771 = vlaneseq
        %v3772 = vshrl.u32 %v3771, 7
        %3774 = vset.pattern.permute.xlu0 %v3772
        %3775 = vperm.xlu0 %3774, %v3770
        %v3776 = vpop.permute.xlu0 %3775
        %v3777 = vlaneseq
        %v3778 = vshrl.u32 %v3777, 7
        %v3779 = vadd.s32 %v3778, 8
        %3780 = vset.pattern.permute.xlu0 %v3779
        %3781 = vperm.xlu0 %3780, %v3770
        %v3782 = vpop.permute.xlu0 %3781
        %v3783 = vlaneseq
        %v3784 = vshrl.u32 %v3783, 7
        %v3785 = vadd.s32 %v3784, 16
        %3786 = vset.pattern.permute.xlu0 %v3785
        %3787 = vperm.xlu0 %3786, %v3770
        %v3788 = vpop.permute.xlu0 %3787
        %v3789 = vlaneseq
        %v3790 = vshrl.u32 %v3789, 7
        %v3791 = vadd.s32 %v3790, 24
        %3792 = vset.pattern.permute.xlu0 %v3791
        %3793 = vperm.xlu0 %3792, %v3770
        %v3794 = vpop.permute.xlu0 %3793
        %v3795 = vlaneseq
        %v3796 = vshrl.u32 %v3795, 7
        %v3797 = vadd.s32 %v3796, 32
        %3798 = vset.pattern.permute.xlu0 %v3797
        %3799 = vperm.xlu0 %3798, %v3770
        %v3800 = vpop.permute.xlu0 %3799
        %v3801 = vlaneseq
        %v3802 = vshrl.u32 %v3801, 7
        %v3803 = vadd.s32 %v3802, 40
        %3804 = vset.pattern.permute.xlu0 %v3803
        %3805 = vperm.xlu0 %3804, %v3770
        %v3806 = vpop.permute.xlu0 %3805
        %v3807 = vlaneseq
        %v3808 = vshrl.u32 %v3807, 7
        %v3809 = vadd.s32 %v3808, 48
        %3810 = vset.pattern.permute.xlu0 %v3809
        %3811 = vperm.xlu0 %3810, %v3770
        %v3812 = vpop.permute.xlu0 %3811
        %v3813 = vlaneseq
        %v3814 = vshrl.u32 %v3813, 7
        %v3815 = vadd.s32 %v3814, 56
        %3816 = vset.pattern.permute.xlu0 %v3815
        %3817 = vperm.xlu0 %3816, %v3770
        %v3818 = vpop.permute.xlu0 %3817
        %v3819 = vlaneseq
        %v3820 = vshrl.u32 %v3819, 7
        %v3821 = vadd.s32 %v3820, 64
        %3822 = vset.pattern.permute.xlu0 %v3821
        %3823 = vperm.xlu0 %3822, %v3770
        %v3824 = vpop.permute.xlu0 %3823
        %v3825 = vlaneseq
        %v3826 = vshrl.u32 %v3825, 7
        %v3827 = vadd.s32 %v3826, 72
        %3828 = vset.pattern.permute.xlu0 %v3827
        %3829 = vperm.xlu0 %3828, %v3770
        %v3830 = vpop.permute.xlu0 %3829
        %v3831 = vlaneseq
        %v3832 = vshrl.u32 %v3831, 7
        %v3833 = vadd.s32 %v3832, 80
        %3834 = vset.pattern.permute.xlu0 %v3833
        %3835 = vperm.xlu0 %3834, %v3770
        %v3836 = vpop.permute.xlu0 %3835
        %v3837 = vlaneseq
        %v3838 = vshrl.u32 %v3837, 7
        %v3839 = vadd.s32 %v3838, 88
        %3840 = vset.pattern.permute.xlu0 %v3839
        %3841 = vperm.xlu0 %3840, %v3770
        %v3842 = vpop.permute.xlu0 %3841
        %v3843 = vlaneseq
        %v3844 = vshrl.u32 %v3843, 7
        %v3845 = vadd.s32 %v3844, 96
        %3846 = vset.pattern.permute.xlu0 %v3845
        %3847 = vperm.xlu0 %3846, %v3770
        %v3848 = vpop.permute.xlu0 %3847
        %v3849 = vlaneseq
        %v3850 = vshrl.u32 %v3849, 7
        %v3851 = vadd.s32 %v3850, 104
        %3852 = vset.pattern.permute.xlu0 %v3851
        %3853 = vperm.xlu0 %3852, %v3770
        %v3854 = vpop.permute.xlu0 %3853
        %v3855 = vlaneseq
        %v3856 = vshrl.u32 %v3855, 7
        %v3857 = vadd.s32 %v3856, 112
        %3858 = vset.pattern.permute.xlu0 %v3857
        %3859 = vperm.xlu0 %3858, %v3770
        %v3860 = vpop.permute.xlu0 %3859
        %v3861 = vlaneseq
        %v3862 = vshrl.u32 %v3861, 7
        %v3863 = vadd.s32 %v3862, 120
        %3864 = vset.pattern.permute.xlu0 %v3863
        %3865 = vperm.xlu0 %3864, %v3770
        %v3866 = vpop.permute.xlu0 %3865
        %v3867 = vmul.f32 %v3752, %v3768
        %v3868 = vmul.f32 %v3867, 0.025
        %v3869 = vlaneseq
        %v3870 = vshrl.u32 %v3869, 7
        %3872 = vset.pattern.permute.xlu0 %v3870
        %3873 = vperm.xlu0 %3872, %v3868
        %v3874 = vpop.permute.xlu0 %3873
        %v3875 = vlaneseq
        %v3876 = vshrl.u32 %v3875, 7
        %v3877 = vadd.s32 %v3876, 8
        %3878 = vset.pattern.permute.xlu0 %v3877
        %3879 = vperm.xlu0 %3878, %v3868
        %v3880 = vpop.permute.xlu0 %3879
        %v3881 = vlaneseq
        %v3882 = vshrl.u32 %v3881, 7
        %v3883 = vadd.s32 %v3882, 16
        %3884 = vset.pattern.permute.xlu0 %v3883
        %3885 = vperm.xlu0 %3884, %v3868
        %v3886 = vpop.permute.xlu0 %3885
        %v3887 = vlaneseq
        %v3888 = vshrl.u32 %v3887, 7
        %v3889 = vadd.s32 %v3888, 24
        %3890 = vset.pattern.permute.xlu0 %v3889
        %3891 = vperm.xlu0 %3890, %v3868
        %v3892 = vpop.permute.xlu0 %3891
        %v3893 = vlaneseq
        %v3894 = vshrl.u32 %v3893, 7
        %v3895 = vadd.s32 %v3894, 32
        %3896 = vset.pattern.permute.xlu0 %v3895
        %3897 = vperm.xlu0 %3896, %v3868
        %v3898 = vpop.permute.xlu0 %3897
        %v3899 = vlaneseq
        %v3900 = vshrl.u32 %v3899, 7
        %v3901 = vadd.s32 %v3900, 40
        %3902 = vset.pattern.permute.xlu0 %v3901
        %3903 = vperm.xlu0 %3902, %v3868
        %v3904 = vpop.permute.xlu0 %3903
        %v3905 = vlaneseq
        %v3906 = vshrl.u32 %v3905, 7
        %v3907 = vadd.s32 %v3906, 48
        %3908 = vset.pattern.permute.xlu0 %v3907
        %3909 = vperm.xlu0 %3908, %v3868
        %v3910 = vpop.permute.xlu0 %3909
        %v3911 = vlaneseq
        %v3912 = vshrl.u32 %v3911, 7
        %v3913 = vadd.s32 %v3912, 56
        %3914 = vset.pattern.permute.xlu0 %v3913
        %3915 = vperm.xlu0 %3914, %v3868
        %v3916 = vpop.permute.xlu0 %3915
        %v3917 = vlaneseq
        %v3918 = vshrl.u32 %v3917, 7
        %v3919 = vadd.s32 %v3918, 64
        %3920 = vset.pattern.permute.xlu0 %v3919
        %3921 = vperm.xlu0 %3920, %v3868
        %v3922 = vpop.permute.xlu0 %3921
        %v3923 = vlaneseq
        %v3924 = vshrl.u32 %v3923, 7
        %v3925 = vadd.s32 %v3924, 72
        %3926 = vset.pattern.permute.xlu0 %v3925
        %3927 = vperm.xlu0 %3926, %v3868
        %v3928 = vpop.permute.xlu0 %3927
        %v3929 = vlaneseq
        %v3930 = vshrl.u32 %v3929, 7
        %v3931 = vadd.s32 %v3930, 80
        %3932 = vset.pattern.permute.xlu0 %v3931
        %3933 = vperm.xlu0 %3932, %v3868
        %v3934 = vpop.permute.xlu0 %3933
        %v3935 = vlaneseq
        %v3936 = vshrl.u32 %v3935, 7
        %v3937 = vadd.s32 %v3936, 88
        %3938 = vset.pattern.permute.xlu0 %v3937
        %3939 = vperm.xlu0 %3938, %v3868
        %v3940 = vpop.permute.xlu0 %3939
        %v3941 = vlaneseq
        %v3942 = vshrl.u32 %v3941, 7
        %v3943 = vadd.s32 %v3942, 96
        %3944 = vset.pattern.permute.xlu0 %v3943
        %3945 = vperm.xlu0 %3944, %v3868
        %v3946 = vpop.permute.xlu0 %3945
        %v3947 = vlaneseq
        %v3948 = vshrl.u32 %v3947, 7
        %v3949 = vadd.s32 %v3948, 104
        %3950 = vset.pattern.permute.xlu0 %v3949
        %3951 = vperm.xlu0 %3950, %v3868
        %v3952 = vpop.permute.xlu0 %3951
        %v3953 = vlaneseq
        %v3954 = vshrl.u32 %v3953, 7
        %v3955 = vadd.s32 %v3954, 112
        %3956 = vset.pattern.permute.xlu0 %v3955
        %3957 = vperm.xlu0 %3956, %v3868
        %v3958 = vpop.permute.xlu0 %3957
        %v3959 = vlaneseq
        %v3960 = vshrl.u32 %v3959, 7
        %v3961 = vadd.s32 %v3960, 120
        %3962 = vset.pattern.permute.xlu0 %v3961
        %3963 = vperm.xlu0 %3962, %v3868
        %v3964 = vpop.permute.xlu0 %3963
        %v3965 = vld [vmem:[#allocation17] sm:$0xff]
        %v3966 = vld [vmem:[#allocation17 + $0x8] sm:$0xff]
        %v3967 = vld [vmem:[#allocation17 + $0x10] sm:$0xff]
        %v3968 = vld [vmem:[#allocation17 + $0x18] sm:$0xff]
        %v3969 = vmul.f32 %v3776, %v3768
        %v3970 = vmul.f32 %v3782, %v3768
        %v3971 = vmul.f32 %v3788, %v3768
        %v3972 = vmul.f32 %v3794, %v3768
        %v3973 = vmul.f32 %v3874, %v3766
        %v3974 = vmul.f32 %v3880, %v3766
        %v3975 = vmul.f32 %v3886, %v3766
        %v3976 = vmul.f32 %v3892, %v3766
        %v3977 = vmax.f32 %v3969, %v3973
        %v3978 = vmax.f32 %v3970, %v3974
        %v3979 = vmax.f32 %v3971, %v3975
        %v3980 = vmax.f32 %v3972, %v3976
        %v3981 = vadd.f32 %v3965, 0.00025
        %v3982 = vadd.f32 %v3966, 0.00025
        %v3983 = vadd.f32 %v3967, 0.00025
        %v3984 = vadd.f32 %v3968, 0.00025
        %v3985 = vsub.f32 %v3981, %v3977
        %v3986 = vsub.f32 %v3982, %v3978
        %v3987 = vsub.f32 %v3983, %v3979
        %v3988 = vsub.f32 %v3984, %v3980
        %v3989 = vmax.f32 %v3985, 0.0
        %v3990 = vmax.f32 %v3986, 0.0
        %v3991 = vmax.f32 %v3987, 0.0
        %v3992 = vmax.f32 %v3988, 0.0
        %v3993 = vmin.f32 %v3989, 1.0
        %v3994 = vmin.f32 %v3990, 1.0
        %v3995 = vmin.f32 %v3991, 1.0
        %v3996 = vmin.f32 %v3992, 1.0
        %v3997 = vld [vmem:[%s3] sm:$0xff]
        %v3998 = vld [vmem:[%s3 + $0x8] sm:$0xff]
        %v3999 = vld [vmem:[%s3 + $0x10] sm:$0xff]
        %v4000 = vld [vmem:[%s3 + $0x18] sm:$0xff]
        %vm4001 = vcmp.ne.f32.partialorder %v3997, 0.0
        %vm4002 = vcmp.ne.f32.partialorder %v3998, 0.0
        %vm4003 = vcmp.ne.f32.partialorder %v3999, 0.0
        %vm4004 = vcmp.ne.f32.partialorder %v4000, 0.0
        %v4005 = vsel %vm4001, %v3993, %v3965
        %v4006 = vsel %vm4002, %v3994, %v3966
        %v4007 = vsel %vm4003, %v3995, %v3967
        %v4008 = vsel %vm4004, %v3996, %v3968
        %4009 = vst [vmem:[#allocation17] sm:$0xff] %v4005
        %4010 = vst [vmem:[#allocation17 + $0x8] sm:$0xff] %v4006
        %4011 = vst [vmem:[#allocation17 + $0x10] sm:$0xff] %v4007
        %4012 = vst [vmem:[#allocation17 + $0x18] sm:$0xff] %v4008
        %v4013 = vld [vmem:[#allocation17 + $0x20] sm:$0xff]
        %v4014 = vld [vmem:[#allocation17 + $0x28] sm:$0xff]
        %v4015 = vld [vmem:[#allocation17 + $0x30] sm:$0xff]
        %v4016 = vld [vmem:[#allocation17 + $0x38] sm:$0xff]
        %v4017 = vmul.f32 %v3800, %v3768
        %v4018 = vmul.f32 %v3806, %v3768
        %v4019 = vmul.f32 %v3812, %v3768
        %v4020 = vmul.f32 %v3818, %v3768
        %v4021 = vmul.f32 %v3898, %v3766
        %v4022 = vmul.f32 %v3904, %v3766
        %v4023 = vmul.f32 %v3910, %v3766
        %v4024 = vmul.f32 %v3916, %v3766
        %v4025 = vmax.f32 %v4017, %v4021
        %v4026 = vmax.f32 %v4018, %v4022
        %v4027 = vmax.f32 %v4019, %v4023
        %v4028 = vmax.f32 %v4020, %v4024
        %v4029 = vadd.f32 %v4013, 0.00025
        %v4030 = vadd.f32 %v4014, 0.00025
        %v4031 = vadd.f32 %v4015, 0.00025
        %v4032 = vadd.f32 %v4016, 0.00025
        %v4033 = vsub.f32 %v4029, %v4025
        %v4034 = vsub.f32 %v4030, %v4026
        %v4035 = vsub.f32 %v4031, %v4027
        %v4036 = vsub.f32 %v4032, %v4028
        %v4037 = vmax.f32 %v4033, 0.0
        %v4038 = vmax.f32 %v4034, 0.0
        %v4039 = vmax.f32 %v4035, 0.0
        %v4040 = vmax.f32 %v4036, 0.0
        %v4041 = vmin.f32 %v4037, 1.0
        %v4042 = vmin.f32 %v4038, 1.0
        %v4043 = vmin.f32 %v4039, 1.0
        %v4044 = vmin.f32 %v4040, 1.0
        %v4045 = vld [vmem:[%s3 + $0x20] sm:$0xff]
        %v4046 = vld [vmem:[%s3 + $0x28] sm:$0xff]
        %v4047 = vld [vmem:[%s3 + $0x30] sm:$0xff]
        %v4048 = vld [vmem:[%s3 + $0x38] sm:$0xff]
        %vm4049 = vcmp.ne.f32.partialorder %v4045, 0.0
        %vm4050 = vcmp.ne.f32.partialorder %v4046, 0.0
        %vm4051 = vcmp.ne.f32.partialorder %v4047, 0.0
        %vm4052 = vcmp.ne.f32.partialorder %v4048, 0.0
        %v4053 = vsel %vm4049, %v4041, %v4013
        %v4054 = vsel %vm4050, %v4042, %v4014
        %v4055 = vsel %vm4051, %v4043, %v4015
        %v4056 = vsel %vm4052, %v4044, %v4016
        %4057 = vst [vmem:[#allocation17 + $0x20] sm:$0xff] %v4053
        %4058 = vst [vmem:[#allocation17 + $0x28] sm:$0xff] %v4054
        %4059 = vst [vmem:[#allocation17 + $0x30] sm:$0xff] %v4055
        %4060 = vst [vmem:[#allocation17 + $0x38] sm:$0xff] %v4056
        %v4061 = vld [vmem:[#allocation17 + $0x40] sm:$0xff]
        %v4062 = vld [vmem:[#allocation17 + $0x48] sm:$0xff]
        %v4063 = vld [vmem:[#allocation17 + $0x50] sm:$0xff]
        %v4064 = vld [vmem:[#allocation17 + $0x58] sm:$0xff]
        %v4065 = vmul.f32 %v3824, %v3768
        %v4066 = vmul.f32 %v3830, %v3768
        %v4067 = vmul.f32 %v3836, %v3768
        %v4068 = vmul.f32 %v3842, %v3768
        %v4069 = vmul.f32 %v3922, %v3766
        %v4070 = vmul.f32 %v3928, %v3766
        %v4071 = vmul.f32 %v3934, %v3766
        %v4072 = vmul.f32 %v3940, %v3766
        %v4073 = vmax.f32 %v4065, %v4069
        %v4074 = vmax.f32 %v4066, %v4070
        %v4075 = vmax.f32 %v4067, %v4071
        %v4076 = vmax.f32 %v4068, %v4072
        %v4077 = vadd.f32 %v4061, 0.00025
        %v4078 = vadd.f32 %v4062, 0.00025
        %v4079 = vadd.f32 %v4063, 0.00025
        %v4080 = vadd.f32 %v4064, 0.00025
        %v4081 = vsub.f32 %v4077, %v4073
        %v4082 = vsub.f32 %v4078, %v4074
        %v4083 = vsub.f32 %v4079, %v4075
        %v4084 = vsub.f32 %v4080, %v4076
        %v4085 = vmax.f32 %v4081, 0.0
        %v4086 = vmax.f32 %v4082, 0.0
        %v4087 = vmax.f32 %v4083, 0.0
        %v4088 = vmax.f32 %v4084, 0.0
        %v4089 = vmin.f32 %v4085, 1.0
        %v4090 = vmin.f32 %v4086, 1.0
        %v4091 = vmin.f32 %v4087, 1.0
        %v4092 = vmin.f32 %v4088, 1.0
        %v4093 = vld [vmem:[%s3 + $0x40] sm:$0xff]
        %v4094 = vld [vmem:[%s3 + $0x48] sm:$0xff]
        %v4095 = vld [vmem:[%s3 + $0x50] sm:$0xff]
        %v4096 = vld [vmem:[%s3 + $0x58] sm:$0xff]
        %vm4097 = vcmp.ne.f32.partialorder %v4093, 0.0
        %vm4098 = vcmp.ne.f32.partialorder %v4094, 0.0
        %vm4099 = vcmp.ne.f32.partialorder %v4095, 0.0
        %vm4100 = vcmp.ne.f32.partialorder %v4096, 0.0
        %v4101 = vsel %vm4097, %v4089, %v4061
        %v4102 = vsel %vm4098, %v4090, %v4062
        %v4103 = vsel %vm4099, %v4091, %v4063
        %v4104 = vsel %vm4100, %v4092, %v4064
        %4105 = vst [vmem:[#allocation17 + $0x40] sm:$0xff] %v4101
        %4106 = vst [vmem:[#allocation17 + $0x48] sm:$0xff] %v4102
        %4107 = vst [vmem:[#allocation17 + $0x50] sm:$0xff] %v4103
        %4108 = vst [vmem:[#allocation17 + $0x58] sm:$0xff] %v4104
        %v4109 = vld [vmem:[#allocation17 + $0x60] sm:$0xff]
        %v4110 = vld [vmem:[#allocation17 + $0x68] sm:$0xff]
        %v4111 = vld [vmem:[#allocation17 + $0x70] sm:$0xff]
        %v4112 = vld [vmem:[#allocation17 + $0x78] sm:$0xff]
        %v4113 = vmul.f32 %v3848, %v3768
        %v4114 = vmul.f32 %v3854, %v3768
        %v4115 = vmul.f32 %v3860, %v3768
        %v4116 = vmul.f32 %v3866, %v3768
        %v4117 = vmul.f32 %v3946, %v3766
        %v4118 = vmul.f32 %v3952, %v3766
        %v4119 = vmul.f32 %v3958, %v3766
        %v4120 = vmul.f32 %v3964, %v3766
        %v4121 = vmax.f32 %v4113, %v4117
        %v4122 = vmax.f32 %v4114, %v4118
        %v4123 = vmax.f32 %v4115, %v4119
        %v4124 = vmax.f32 %v4116, %v4120
        %v4125 = vadd.f32 %v4109, 0.00025
        %v4126 = vadd.f32 %v4110, 0.00025
        %v4127 = vadd.f32 %v4111, 0.00025
        %v4128 = vadd.f32 %v4112, 0.00025
        %v4129 = vsub.f32 %v4125, %v4121
        %v4130 = vsub.f32 %v4126, %v4122
        %v4131 = vsub.f32 %v4127, %v4123
        %v4132 = vsub.f32 %v4128, %v4124
        %v4133 = vmax.f32 %v4129, 0.0
        %v4134 = vmax.f32 %v4130, 0.0
        %v4135 = vmax.f32 %v4131, 0.0
        %v4136 = vmax.f32 %v4132, 0.0
        %v4137 = vmin.f32 %v4133, 1.0
        %v4138 = vmin.f32 %v4134, 1.0
        %v4139 = vmin.f32 %v4135, 1.0
        %v4140 = vmin.f32 %v4136, 1.0
        %v4141 = vld [vmem:[%s3 + $0x60] sm:$0xff]
        %v4142 = vld [vmem:[%s3 + $0x68] sm:$0xff]
        %v4143 = vld [vmem:[%s3 + $0x70] sm:$0xff]
        %v4144 = vld [vmem:[%s3 + $0x78] sm:$0xff]
        %vm4145 = vcmp.ne.f32.partialorder %v4141, 0.0
        %vm4146 = vcmp.ne.f32.partialorder %v4142, 0.0
        %vm4147 = vcmp.ne.f32.partialorder %v4143, 0.0
        %vm4148 = vcmp.ne.f32.partialorder %v4144, 0.0
        %v4149 = vsel %vm4145, %v4137, %v4109
        %v4150 = vsel %vm4146, %v4138, %v4110
        %v4151 = vsel %vm4147, %v4139, %v4111
        %v4152 = vsel %vm4148, %v4140, %v4112
        %4153 = vst [vmem:[#allocation17 + $0x60] sm:$0xff] %v4149
        %4154 = vst [vmem:[#allocation17 + $0x68] sm:$0xff] %v4150
        %4155 = vst [vmem:[#allocation17 + $0x70] sm:$0xff] %v4151
        %4156 = vst [vmem:[#allocation17 + $0x78] sm:$0xff] %v4152
        %v4157 = vld [vmem:[#allocation17] sm:$0xff]
        %v4158 = vld [vmem:[#allocation17 + $0x8] sm:$0xff]
        %v4159 = vld [vmem:[#allocation17 + $0x10] sm:$0xff]
        %v4160 = vld [vmem:[#allocation17 + $0x18] sm:$0xff]
        %v4161 = vld [vmem:[#allocation17 + $0x20] sm:$0xff]
        %v4162 = vld [vmem:[#allocation17 + $0x28] sm:$0xff]
        %v4163 = vld [vmem:[#allocation17 + $0x30] sm:$0xff]
        %v4164 = vld [vmem:[#allocation17 + $0x38] sm:$0xff]
        %v4165 = vld [vmem:[#allocation17 + $0x40] sm:$0xff]
        %v4166 = vld [vmem:[#allocation17 + $0x48] sm:$0xff]
        %v4167 = vld [vmem:[#allocation17 + $0x50] sm:$0xff]
        %v4168 = vld [vmem:[#allocation17 + $0x58] sm:$0xff]
        %v4169 = vld [vmem:[#allocation17 + $0x60] sm:$0xff]
        %v4170 = vld [vmem:[#allocation17 + $0x68] sm:$0xff]
        %v4171 = vld [vmem:[#allocation17 + $0x70] sm:$0xff]
        %v4172 = vld [vmem:[#allocation17 + $0x78] sm:$0xff]
        %4173 = vmatpush.msra.mxu0 %v4172
        %4174 = vmatpush.msra.mxu0 %v4171
        %4175 = vmatpush.msra.mxu0 %v4170
        %4176 = vmatpush.msra.mxu0 %v4169
        %4177 = vmatpush.msra.mxu0 %v4168
        %4178 = vmatpush.msra.mxu0 %v4167
        %4179 = vmatpush.msra.mxu0 %v4166
        %4180 = vmatpush.msra.mxu0 %v4165
        %4181 = vmatpush.msra.mxu0 %v4164
        %4182 = vmatpush.msra.mxu0 %v4163
        %4183 = vmatpush.msra.mxu0 %v4162
        %4184 = vmatpush.msra.mxu0 %v4161
        %4185 = vmatpush.msra.mxu0 %v4160
        %4186 = vmatpush.msra.mxu0 %v4159
        %4187 = vmatpush.msra.mxu0 %v4158
        %4188 = vmatpush.msra.mxu0 %v4157
        %4189 = vmatmul.f32.gmra.mxu0 %v3740
        %v4190 = vpop.f32.mrf.mxu0
        %v4191 = vadd.f32 0.0, %v4190
        %4192 = vdwg.mxu0
        %v4193 = vld [vmem:[#allocation25] sm:$0xff]
        %vm4194 = vcmp.gt.s32.totalorder %v4193, 0
        %v4195 = vsub.s32 %v4193, 1
        %v4196 = vsel %vm4194, %v4195, %v4193
        %vm4197 = vcmp.eq.s32.totalorder %v4196, 0
        %v4198 = vld [vmem:[#allocation20] sm:$0xff]
        %v4199 = vld [vmem:[#allocation23] sm:$0xff]
        %s4200 = scalar_lea.vmem %s610, 48
        %v4201 = vld [vmem:[%s4200] sm:$0xff]
        %v4202 = vadd.f32 %v4201, %v4191
        %v4203 = vadd.f32 %v4202, %v4198
        %v4204 = vsel %vm4197, %v4203, %v4198
        %4205 = vmatpush.xpose.msra.mxu0 %v4172
        %4206 = vmatpush.xpose.msra.mxu0 %v4171
        %4207 = vmatpush.xpose.msra.mxu0 %v4170
        %4208 = vmatpush.xpose.msra.mxu0 %v4169
        %4209 = vmatpush.xpose.msra.mxu0 %v4168
        %4210 = vmatpush.xpose.msra.mxu0 %v4167
        %4211 = vmatpush.xpose.msra.mxu0 %v4166
        %4212 = vmatpush.xpose.msra.mxu0 %v4165
        %4213 = vmatpush.xpose.msra.mxu0 %v4164
        %4214 = vmatpush.xpose.msra.mxu0 %v4163
        %4215 = vmatpush.xpose.msra.mxu0 %v4162
        %4216 = vmatpush.xpose.msra.mxu0 %v4161
        %4217 = vmatpush.xpose.msra.mxu0 %v4160
        %4218 = vmatpush.xpose.msra.mxu0 %v4159
        %4219 = vmatpush.xpose.msra.mxu0 %v4158
        %4220 = vmatpush.xpose.msra.mxu0 %v4157
        %4221 = vmatmul.f32.gmra.mxu0 %v3740
        %v4222 = vpop.f32.mrf.mxu0
        %v4223 = vadd.f32 %v4199, %v4222
        %4224 = vdwg.mxu0
        %v4225 = vsel %vm4197, %v4223, %v4199
        %v4226 = vadd.f32 %v4204, %v3735
        %v4227 = vsel %vm4197, %v4226, %v3735
        %v4228 = vadd.f32 %v4225, %v3736
        %v4229 = vsel %vm4197, %v4228, %v3736
        %v4230 = vmul.f32 %v4227, 0.9801987
        %v4231 = vmul.f32 %v4204, 0.36787945
        %v4232 = vmul.f32 %v4229, 0.9801987
        %v4233 = vmul.f32 %v4225, 0.36787945
        %v4234 = vsel %vm3737, 0.0, %v4230
        %v4235 = vsel %vm3738, 0.0, %v4232
        %v4236 = vsel %vm3737, 2, %v4196
        %v4237 = vpack.c.bf16 %v3740, %v3740
        %s4238 = scalar_lea.vmem %s591, 24 [#allocation16]
        %4239 = vst [vmem:[%s4238] sm:$0xf] %v4237
        %4240 = vst [vmem:[#allocation19] sm:$0xff] %v4234
        %4241 = vst [vmem:[#allocation20] sm:$0xff] %v4231
        %4242 = vst [vmem:[#allocation22] sm:$0xff] %v4235
        %4243 = vst [vmem:[#allocation23] sm:$0xff] %v4233
        %4244 = vst [vmem:[#allocation25] sm:$0xff] %v4236
        %s4245 = sadd.s32 %s663, 7
        %s4246 = scvt.s32.f32 %s4245
        %v4247 = vld [vmem:[#allocation19] sm:$0xff]
        %v4248 = vld [vmem:[#allocation22] sm:$0xff]
        %vm4249 = vcmp.gt.f32.partialorder %v4247, 1.0
        %vm4250 = vcmp.gt.f32.partialorder %v4248, 1.025
        %v4251 = vsel %vm4249, 1, 0
        %v4252 = vcvt.s32.f32 %v4251
        %v4253 = vld [vmem:[#allocation26] sm:$0xff]
        %v4254 = vstv %s4246
        %v4255 = vsel %vm4249, %v4254, %v4253
        %4256 = vst [vmem:[#allocation26] sm:$0xff] %v4255
        %v4257 = vsel %vm4250, 1, 0
        %v4258 = vcvt.s32.f32 %v4257
        %v4259 = vrot.slane %v4258, 4
        %v4260 = vmax.f32 %v4258, %v4259
        %v4261 = vrot.slane %v4260, 2
        %v4262 = vmax.f32 %v4260, %v4261
        %v4263 = vrot.slane %v4262, 1
        %v4264 = vmax.f32 %v4262, %v4263
        %v4265 = vrot.slane %v4255, 4
        %v4266 = vmax.f32 %v4255, %v4265
        %v4267 = vrot.slane %v4266, 2
        %v4268 = vmax.f32 %v4266, %v4267
        %v4269 = vrot.slane %v4268, 1
        %v4270 = vmax.f32 %v4268, %v4269
        %4271 = vmax.xlane.f32.xlu0 %v4270
        %v4272 = vpop.xlane.xlu0 %4271
        %v4273 = vsub.f32 %v4272, %v4270
        %v4274 = vmul.f32 %v4273, 0.02
        %v4275 = vmin.f32 %v4274, 80.0
        %v4276 = vsub.f32 0.0, %v4275
        %v4277 = vmul.f32 %v4276, 1.442695
        %v4278 = vpow.pop %v4277
        %v4279 = vmul.f32 %v4275, 1.442695
        %v4280 = vpow.pop %v4279
        %v4281 = vmul.f32 %v4264, %v4278
        %v4282 = vmul.f32 %v4281, 0.025
        %v4283 = vlaneseq
        %v4284 = vshrl.u32 %v4283, 7
        %4286 = vset.pattern.permute.xlu0 %v4284
        %4287 = vperm.xlu0 %4286, %v4282
        %v4288 = vpop.permute.xlu0 %4287
        %v4289 = vlaneseq
        %v4290 = vshrl.u32 %v4289, 7
        %v4291 = vadd.s32 %v4290, 8
        %4292 = vset.pattern.permute.xlu0 %v4291
        %4293 = vperm.xlu0 %4292, %v4282
        %v4294 = vpop.permute.xlu0 %4293
        %v4295 = vlaneseq
        %v4296 = vshrl.u32 %v4295, 7
        %v4297 = vadd.s32 %v4296, 16
        %4298 = vset.pattern.permute.xlu0 %v4297
        %4299 = vperm.xlu0 %4298, %v4282
        %v4300 = vpop.permute.xlu0 %4299
        %v4301 = vlaneseq
        %v4302 = vshrl.u32 %v4301, 7
        %v4303 = vadd.s32 %v4302, 24
        %4304 = vset.pattern.permute.xlu0 %v4303
        %4305 = vperm.xlu0 %4304, %v4282
        %v4306 = vpop.permute.xlu0 %4305
        %v4307 = vlaneseq
        %v4308 = vshrl.u32 %v4307, 7
        %v4309 = vadd.s32 %v4308, 32
        %4310 = vset.pattern.permute.xlu0 %v4309
        %4311 = vperm.xlu0 %4310, %v4282
        %v4312 = vpop.permute.xlu0 %4311
        %v4313 = vlaneseq
        %v4314 = vshrl.u32 %v4313, 7
        %v4315 = vadd.s32 %v4314, 40
        %4316 = vset.pattern.permute.xlu0 %v4315
        %4317 = vperm.xlu0 %4316, %v4282
        %v4318 = vpop.permute.xlu0 %4317
        %v4319 = vlaneseq
        %v4320 = vshrl.u32 %v4319, 7
        %v4321 = vadd.s32 %v4320, 48
        %4322 = vset.pattern.permute.xlu0 %v4321
        %4323 = vperm.xlu0 %4322, %v4282
        %v4324 = vpop.permute.xlu0 %4323
        %v4325 = vlaneseq
        %v4326 = vshrl.u32 %v4325, 7
        %v4327 = vadd.s32 %v4326, 56
        %4328 = vset.pattern.permute.xlu0 %v4327
        %4329 = vperm.xlu0 %4328, %v4282
        %v4330 = vpop.permute.xlu0 %4329
        %v4331 = vlaneseq
        %v4332 = vshrl.u32 %v4331, 7
        %v4333 = vadd.s32 %v4332, 64
        %4334 = vset.pattern.permute.xlu0 %v4333
        %4335 = vperm.xlu0 %4334, %v4282
        %v4336 = vpop.permute.xlu0 %4335
        %v4337 = vlaneseq
        %v4338 = vshrl.u32 %v4337, 7
        %v4339 = vadd.s32 %v4338, 72
        %4340 = vset.pattern.permute.xlu0 %v4339
        %4341 = vperm.xlu0 %4340, %v4282
        %v4342 = vpop.permute.xlu0 %4341
        %v4343 = vlaneseq
        %v4344 = vshrl.u32 %v4343, 7
        %v4345 = vadd.s32 %v4344, 80
        %4346 = vset.pattern.permute.xlu0 %v4345
        %4347 = vperm.xlu0 %4346, %v4282
        %v4348 = vpop.permute.xlu0 %4347
        %v4349 = vlaneseq
        %v4350 = vshrl.u32 %v4349, 7
        %v4351 = vadd.s32 %v4350, 88
        %4352 = vset.pattern.permute.xlu0 %v4351
        %4353 = vperm.xlu0 %4352, %v4282
        %v4354 = vpop.permute.xlu0 %4353
        %v4355 = vlaneseq
        %v4356 = vshrl.u32 %v4355, 7
        %v4357 = vadd.s32 %v4356, 96
        %4358 = vset.pattern.permute.xlu0 %v4357
        %4359 = vperm.xlu0 %4358, %v4282
        %v4360 = vpop.permute.xlu0 %4359
        %v4361 = vlaneseq
        %v4362 = vshrl.u32 %v4361, 7
        %v4363 = vadd.s32 %v4362, 104
        %4364 = vset.pattern.permute.xlu0 %v4363
        %4365 = vperm.xlu0 %4364, %v4282
        %v4366 = vpop.permute.xlu0 %4365
        %v4367 = vlaneseq
        %v4368 = vshrl.u32 %v4367, 7
        %v4369 = vadd.s32 %v4368, 112
        %4370 = vset.pattern.permute.xlu0 %v4369
        %4371 = vperm.xlu0 %4370, %v4282
        %v4372 = vpop.permute.xlu0 %4371
        %v4373 = vlaneseq
        %v4374 = vshrl.u32 %v4373, 7
        %v4375 = vadd.s32 %v4374, 120
        %4376 = vset.pattern.permute.xlu0 %v4375
        %4377 = vperm.xlu0 %4376, %v4282
        %v4378 = vpop.permute.xlu0 %4377
        %v4379 = vmul.f32 %v4264, %v4280
        %v4380 = vmul.f32 %v4379, 0.025
        %v4381 = vlaneseq
        %v4382 = vshrl.u32 %v4381, 7
        %4384 = vset.pattern.permute.xlu0 %v4382
        %4385 = vperm.xlu0 %4384, %v4380
        %v4386 = vpop.permute.xlu0 %4385
        %v4387 = vlaneseq
        %v4388 = vshrl.u32 %v4387, 7
        %v4389 = vadd.s32 %v4388, 8
        %4390 = vset.pattern.permute.xlu0 %v4389
        %4391 = vperm.xlu0 %4390, %v4380
        %v4392 = vpop.permute.xlu0 %4391
        %v4393 = vlaneseq
        %v4394 = vshrl.u32 %v4393, 7
        %v4395 = vadd.s32 %v4394, 16
        %4396 = vset.pattern.permute.xlu0 %v4395
        %4397 = vperm.xlu0 %4396, %v4380
        %v4398 = vpop.permute.xlu0 %4397
        %v4399 = vlaneseq
        %v4400 = vshrl.u32 %v4399, 7
        %v4401 = vadd.s32 %v4400, 24
        %4402 = vset.pattern.permute.xlu0 %v4401
        %4403 = vperm.xlu0 %4402, %v4380
        %v4404 = vpop.permute.xlu0 %4403
        %v4405 = vlaneseq
        %v4406 = vshrl.u32 %v4405, 7
        %v4407 = vadd.s32 %v4406, 32
        %4408 = vset.pattern.permute.xlu0 %v4407
        %4409 = vperm.xlu0 %4408, %v4380
        %v4410 = vpop.permute.xlu0 %4409
        %v4411 = vlaneseq
        %v4412 = vshrl.u32 %v4411, 7
        %v4413 = vadd.s32 %v4412, 40
        %4414 = vset.pattern.permute.xlu0 %v4413
        %4415 = vperm.xlu0 %4414, %v4380
        %v4416 = vpop.permute.xlu0 %4415
        %v4417 = vlaneseq
        %v4418 = vshrl.u32 %v4417, 7
        %v4419 = vadd.s32 %v4418, 48
        %4420 = vset.pattern.permute.xlu0 %v4419
        %4421 = vperm.xlu0 %4420, %v4380
        %v4422 = vpop.permute.xlu0 %4421
        %v4423 = vlaneseq
        %v4424 = vshrl.u32 %v4423, 7
        %v4425 = vadd.s32 %v4424, 56
        %4426 = vset.pattern.permute.xlu0 %v4425
        %4427 = vperm.xlu0 %4426, %v4380
        %v4428 = vpop.permute.xlu0 %4427
        %v4429 = vlaneseq
        %v4430 = vshrl.u32 %v4429, 7
        %v4431 = vadd.s32 %v4430, 64
        %4432 = vset.pattern.permute.xlu0 %v4431
        %4433 = vperm.xlu0 %4432, %v4380
        %v4434 = vpop.permute.xlu0 %4433
        %v4435 = vlaneseq
        %v4436 = vshrl.u32 %v4435, 7
        %v4437 = vadd.s32 %v4436, 72
        %4438 = vset.pattern.permute.xlu0 %v4437
        %4439 = vperm.xlu0 %4438, %v4380
        %v4440 = vpop.permute.xlu0 %4439
        %v4441 = vlaneseq
        %v4442 = vshrl.u32 %v4441, 7
        %v4443 = vadd.s32 %v4442, 80
        %4444 = vset.pattern.permute.xlu0 %v4443
        %4445 = vperm.xlu0 %4444, %v4380
        %v4446 = vpop.permute.xlu0 %4445
        %v4447 = vlaneseq
        %v4448 = vshrl.u32 %v4447, 7
        %v4449 = vadd.s32 %v4448, 88
        %4450 = vset.pattern.permute.xlu0 %v4449
        %4451 = vperm.xlu0 %4450, %v4380
        %v4452 = vpop.permute.xlu0 %4451
        %v4453 = vlaneseq
        %v4454 = vshrl.u32 %v4453, 7
        %v4455 = vadd.s32 %v4454, 96
        %4456 = vset.pattern.permute.xlu0 %v4455
        %4457 = vperm.xlu0 %4456, %v4380
        %v4458 = vpop.permute.xlu0 %4457
        %v4459 = vlaneseq
        %v4460 = vshrl.u32 %v4459, 7
        %v4461 = vadd.s32 %v4460, 104
        %4462 = vset.pattern.permute.xlu0 %v4461
        %4463 = vperm.xlu0 %4462, %v4380
        %v4464 = vpop.permute.xlu0 %4463
        %v4465 = vlaneseq
        %v4466 = vshrl.u32 %v4465, 7
        %v4467 = vadd.s32 %v4466, 112
        %4468 = vset.pattern.permute.xlu0 %v4467
        %4469 = vperm.xlu0 %4468, %v4380
        %v4470 = vpop.permute.xlu0 %4469
        %v4471 = vlaneseq
        %v4472 = vshrl.u32 %v4471, 7
        %v4473 = vadd.s32 %v4472, 120
        %4474 = vset.pattern.permute.xlu0 %v4473
        %4475 = vperm.xlu0 %4474, %v4380
        %v4476 = vpop.permute.xlu0 %4475
        %v4477 = vld [vmem:[#allocation17] sm:$0xff]
        %v4478 = vld [vmem:[#allocation17 + $0x8] sm:$0xff]
        %v4479 = vld [vmem:[#allocation17 + $0x10] sm:$0xff]
        %v4480 = vld [vmem:[#allocation17 + $0x18] sm:$0xff]
        %v4481 = vmul.f32 %v4288, %v4280
        %v4482 = vmul.f32 %v4294, %v4280
        %v4483 = vmul.f32 %v4300, %v4280
        %v4484 = vmul.f32 %v4306, %v4280
        %v4485 = vmul.f32 %v4386, %v4278
        %v4486 = vmul.f32 %v4392, %v4278
        %v4487 = vmul.f32 %v4398, %v4278
        %v4488 = vmul.f32 %v4404, %v4278
        %v4489 = vmax.f32 %v4481, %v4485
        %v4490 = vmax.f32 %v4482, %v4486
        %v4491 = vmax.f32 %v4483, %v4487
        %v4492 = vmax.f32 %v4484, %v4488
        %v4493 = vadd.f32 %v4477, 0.00025
        %v4494 = vadd.f32 %v4478, 0.00025
        %v4495 = vadd.f32 %v4479, 0.00025
        %v4496 = vadd.f32 %v4480, 0.00025
        %v4497 = vsub.f32 %v4493, %v4489
        %v4498 = vsub.f32 %v4494, %v4490
        %v4499 = vsub.f32 %v4495, %v4491
        %v4500 = vsub.f32 %v4496, %v4492
        %v4501 = vmax.f32 %v4497, 0.0
        %v4502 = vmax.f32 %v4498, 0.0
        %v4503 = vmax.f32 %v4499, 0.0
        %v4504 = vmax.f32 %v4500, 0.0
        %v4505 = vmin.f32 %v4501, 1.0
        %v4506 = vmin.f32 %v4502, 1.0
        %v4507 = vmin.f32 %v4503, 1.0
        %v4508 = vmin.f32 %v4504, 1.0
        %v4509 = vld [vmem:[%s3] sm:$0xff]
        %v4510 = vld [vmem:[%s3 + $0x8] sm:$0xff]
        %v4511 = vld [vmem:[%s3 + $0x10] sm:$0xff]
        %v4512 = vld [vmem:[%s3 + $0x18] sm:$0xff]
        %vm4513 = vcmp.ne.f32.partialorder %v4509, 0.0
        %vm4514 = vcmp.ne.f32.partialorder %v4510, 0.0
        %vm4515 = vcmp.ne.f32.partialorder %v4511, 0.0
        %vm4516 = vcmp.ne.f32.partialorder %v4512, 0.0
        %v4517 = vsel %vm4513, %v4505, %v4477
        %v4518 = vsel %vm4514, %v4506, %v4478
        %v4519 = vsel %vm4515, %v4507, %v4479
        %v4520 = vsel %vm4516, %v4508, %v4480
        %4521 = vst [vmem:[#allocation17] sm:$0xff] %v4517
        %4522 = vst [vmem:[#allocation17 + $0x8] sm:$0xff] %v4518
        %4523 = vst [vmem:[#allocation17 + $0x10] sm:$0xff] %v4519
        %4524 = vst [vmem:[#allocation17 + $0x18] sm:$0xff] %v4520
        %v4525 = vld [vmem:[#allocation17 + $0x20] sm:$0xff]
        %v4526 = vld [vmem:[#allocation17 + $0x28] sm:$0xff]
        %v4527 = vld [vmem:[#allocation17 + $0x30] sm:$0xff]
        %v4528 = vld [vmem:[#allocation17 + $0x38] sm:$0xff]
        %v4529 = vmul.f32 %v4312, %v4280
        %v4530 = vmul.f32 %v4318, %v4280
        %v4531 = vmul.f32 %v4324, %v4280
        %v4532 = vmul.f32 %v4330, %v4280
        %v4533 = vmul.f32 %v4410, %v4278
        %v4534 = vmul.f32 %v4416, %v4278
        %v4535 = vmul.f32 %v4422, %v4278
        %v4536 = vmul.f32 %v4428, %v4278
        %v4537 = vmax.f32 %v4529, %v4533
        %v4538 = vmax.f32 %v4530, %v4534
        %v4539 = vmax.f32 %v4531, %v4535
        %v4540 = vmax.f32 %v4532, %v4536
        %v4541 = vadd.f32 %v4525, 0.00025
        %v4542 = vadd.f32 %v4526, 0.00025
        %v4543 = vadd.f32 %v4527, 0.00025
        %v4544 = vadd.f32 %v4528, 0.00025
        %v4545 = vsub.f32 %v4541, %v4537
        %v4546 = vsub.f32 %v4542, %v4538
        %v4547 = vsub.f32 %v4543, %v4539
        %v4548 = vsub.f32 %v4544, %v4540
        %v4549 = vmax.f32 %v4545, 0.0
        %v4550 = vmax.f32 %v4546, 0.0
        %v4551 = vmax.f32 %v4547, 0.0
        %v4552 = vmax.f32 %v4548, 0.0
        %v4553 = vmin.f32 %v4549, 1.0
        %v4554 = vmin.f32 %v4550, 1.0
        %v4555 = vmin.f32 %v4551, 1.0
        %v4556 = vmin.f32 %v4552, 1.0
        %v4557 = vld [vmem:[%s3 + $0x20] sm:$0xff]
        %v4558 = vld [vmem:[%s3 + $0x28] sm:$0xff]
        %v4559 = vld [vmem:[%s3 + $0x30] sm:$0xff]
        %v4560 = vld [vmem:[%s3 + $0x38] sm:$0xff]
        %vm4561 = vcmp.ne.f32.partialorder %v4557, 0.0
        %vm4562 = vcmp.ne.f32.partialorder %v4558, 0.0
        %vm4563 = vcmp.ne.f32.partialorder %v4559, 0.0
        %vm4564 = vcmp.ne.f32.partialorder %v4560, 0.0
        %v4565 = vsel %vm4561, %v4553, %v4525
        %v4566 = vsel %vm4562, %v4554, %v4526
        %v4567 = vsel %vm4563, %v4555, %v4527
        %v4568 = vsel %vm4564, %v4556, %v4528
        %4569 = vst [vmem:[#allocation17 + $0x20] sm:$0xff] %v4565
        %4570 = vst [vmem:[#allocation17 + $0x28] sm:$0xff] %v4566
        %4571 = vst [vmem:[#allocation17 + $0x30] sm:$0xff] %v4567
        %4572 = vst [vmem:[#allocation17 + $0x38] sm:$0xff] %v4568
        %v4573 = vld [vmem:[#allocation17 + $0x40] sm:$0xff]
        %v4574 = vld [vmem:[#allocation17 + $0x48] sm:$0xff]
        %v4575 = vld [vmem:[#allocation17 + $0x50] sm:$0xff]
        %v4576 = vld [vmem:[#allocation17 + $0x58] sm:$0xff]
        %v4577 = vmul.f32 %v4336, %v4280
        %v4578 = vmul.f32 %v4342, %v4280
        %v4579 = vmul.f32 %v4348, %v4280
        %v4580 = vmul.f32 %v4354, %v4280
        %v4581 = vmul.f32 %v4434, %v4278
        %v4582 = vmul.f32 %v4440, %v4278
        %v4583 = vmul.f32 %v4446, %v4278
        %v4584 = vmul.f32 %v4452, %v4278
        %v4585 = vmax.f32 %v4577, %v4581
        %v4586 = vmax.f32 %v4578, %v4582
        %v4587 = vmax.f32 %v4579, %v4583
        %v4588 = vmax.f32 %v4580, %v4584
        %v4589 = vadd.f32 %v4573, 0.00025
        %v4590 = vadd.f32 %v4574, 0.00025
        %v4591 = vadd.f32 %v4575, 0.00025
        %v4592 = vadd.f32 %v4576, 0.00025
        %v4593 = vsub.f32 %v4589, %v4585
        %v4594 = vsub.f32 %v4590, %v4586
        %v4595 = vsub.f32 %v4591, %v4587
        %v4596 = vsub.f32 %v4592, %v4588
        %v4597 = vmax.f32 %v4593, 0.0
        %v4598 = vmax.f32 %v4594, 0.0
        %v4599 = vmax.f32 %v4595, 0.0
        %v4600 = vmax.f32 %v4596, 0.0
        %v4601 = vmin.f32 %v4597, 1.0
        %v4602 = vmin.f32 %v4598, 1.0
        %v4603 = vmin.f32 %v4599, 1.0
        %v4604 = vmin.f32 %v4600, 1.0
        %v4605 = vld [vmem:[%s3 + $0x40] sm:$0xff]
        %v4606 = vld [vmem:[%s3 + $0x48] sm:$0xff]
        %v4607 = vld [vmem:[%s3 + $0x50] sm:$0xff]
        %v4608 = vld [vmem:[%s3 + $0x58] sm:$0xff]
        %vm4609 = vcmp.ne.f32.partialorder %v4605, 0.0
        %vm4610 = vcmp.ne.f32.partialorder %v4606, 0.0
        %vm4611 = vcmp.ne.f32.partialorder %v4607, 0.0
        %vm4612 = vcmp.ne.f32.partialorder %v4608, 0.0
        %v4613 = vsel %vm4609, %v4601, %v4573
        %v4614 = vsel %vm4610, %v4602, %v4574
        %v4615 = vsel %vm4611, %v4603, %v4575
        %v4616 = vsel %vm4612, %v4604, %v4576
        %4617 = vst [vmem:[#allocation17 + $0x40] sm:$0xff] %v4613
        %4618 = vst [vmem:[#allocation17 + $0x48] sm:$0xff] %v4614
        %4619 = vst [vmem:[#allocation17 + $0x50] sm:$0xff] %v4615
        %4620 = vst [vmem:[#allocation17 + $0x58] sm:$0xff] %v4616
        %v4621 = vld [vmem:[#allocation17 + $0x60] sm:$0xff]
        %v4622 = vld [vmem:[#allocation17 + $0x68] sm:$0xff]
        %v4623 = vld [vmem:[#allocation17 + $0x70] sm:$0xff]
        %v4624 = vld [vmem:[#allocation17 + $0x78] sm:$0xff]
        %v4625 = vmul.f32 %v4360, %v4280
        %v4626 = vmul.f32 %v4366, %v4280
        %v4627 = vmul.f32 %v4372, %v4280
        %v4628 = vmul.f32 %v4378, %v4280
        %v4629 = vmul.f32 %v4458, %v4278
        %v4630 = vmul.f32 %v4464, %v4278
        %v4631 = vmul.f32 %v4470, %v4278
        %v4632 = vmul.f32 %v4476, %v4278
        %v4633 = vmax.f32 %v4625, %v4629
        %v4634 = vmax.f32 %v4626, %v4630
        %v4635 = vmax.f32 %v4627, %v4631
        %v4636 = vmax.f32 %v4628, %v4632
        %v4637 = vadd.f32 %v4621, 0.00025
        %v4638 = vadd.f32 %v4622, 0.00025
        %v4639 = vadd.f32 %v4623, 0.00025
        %v4640 = vadd.f32 %v4624, 0.00025
        %v4641 = vsub.f32 %v4637, %v4633
        %v4642 = vsub.f32 %v4638, %v4634
        %v4643 = vsub.f32 %v4639, %v4635
        %v4644 = vsub.f32 %v4640, %v4636
        %v4645 = vmax.f32 %v4641, 0.0
        %v4646 = vmax.f32 %v4642, 0.0
        %v4647 = vmax.f32 %v4643, 0.0
        %v4648 = vmax.f32 %v4644, 0.0
        %v4649 = vmin.f32 %v4645, 1.0
        %v4650 = vmin.f32 %v4646, 1.0
        %v4651 = vmin.f32 %v4647, 1.0
        %v4652 = vmin.f32 %v4648, 1.0
        %v4653 = vld [vmem:[%s3 + $0x60] sm:$0xff]
        %v4654 = vld [vmem:[%s3 + $0x68] sm:$0xff]
        %v4655 = vld [vmem:[%s3 + $0x70] sm:$0xff]
        %v4656 = vld [vmem:[%s3 + $0x78] sm:$0xff]
        %vm4657 = vcmp.ne.f32.partialorder %v4653, 0.0
        %vm4658 = vcmp.ne.f32.partialorder %v4654, 0.0
        %vm4659 = vcmp.ne.f32.partialorder %v4655, 0.0
        %vm4660 = vcmp.ne.f32.partialorder %v4656, 0.0
        %v4661 = vsel %vm4657, %v4649, %v4621
        %v4662 = vsel %vm4658, %v4650, %v4622
        %v4663 = vsel %vm4659, %v4651, %v4623
        %v4664 = vsel %vm4660, %v4652, %v4624
        %4665 = vst [vmem:[#allocation17 + $0x60] sm:$0xff] %v4661
        %4666 = vst [vmem:[#allocation17 + $0x68] sm:$0xff] %v4662
        %4667 = vst [vmem:[#allocation17 + $0x70] sm:$0xff] %v4663
        %4668 = vst [vmem:[#allocation17 + $0x78] sm:$0xff] %v4664
        %v4669 = vld [vmem:[#allocation17] sm:$0xff]
        %v4670 = vld [vmem:[#allocation17 + $0x8] sm:$0xff]
        %v4671 = vld [vmem:[#allocation17 + $0x10] sm:$0xff]
        %v4672 = vld [vmem:[#allocation17 + $0x18] sm:$0xff]
        %v4673 = vld [vmem:[#allocation17 + $0x20] sm:$0xff]
        %v4674 = vld [vmem:[#allocation17 + $0x28] sm:$0xff]
        %v4675 = vld [vmem:[#allocation17 + $0x30] sm:$0xff]
        %v4676 = vld [vmem:[#allocation17 + $0x38] sm:$0xff]
        %v4677 = vld [vmem:[#allocation17 + $0x40] sm:$0xff]
        %v4678 = vld [vmem:[#allocation17 + $0x48] sm:$0xff]
        %v4679 = vld [vmem:[#allocation17 + $0x50] sm:$0xff]
        %v4680 = vld [vmem:[#allocation17 + $0x58] sm:$0xff]
        %v4681 = vld [vmem:[#allocation17 + $0x60] sm:$0xff]
        %v4682 = vld [vmem:[#allocation17 + $0x68] sm:$0xff]
        %v4683 = vld [vmem:[#allocation17 + $0x70] sm:$0xff]
        %v4684 = vld [vmem:[#allocation17 + $0x78] sm:$0xff]
        %4685 = vmatpush.msra.mxu0 %v4684
        %4686 = vmatpush.msra.mxu0 %v4683
        %4687 = vmatpush.msra.mxu0 %v4682
        %4688 = vmatpush.msra.mxu0 %v4681
        %4689 = vmatpush.msra.mxu0 %v4680
        %4690 = vmatpush.msra.mxu0 %v4679
        %4691 = vmatpush.msra.mxu0 %v4678
        %4692 = vmatpush.msra.mxu0 %v4677
        %4693 = vmatpush.msra.mxu0 %v4676
        %4694 = vmatpush.msra.mxu0 %v4675
        %4695 = vmatpush.msra.mxu0 %v4674
        %4696 = vmatpush.msra.mxu0 %v4673
        %4697 = vmatpush.msra.mxu0 %v4672
        %4698 = vmatpush.msra.mxu0 %v4671
        %4699 = vmatpush.msra.mxu0 %v4670
        %4700 = vmatpush.msra.mxu0 %v4669
        %4701 = vmatmul.f32.gmra.mxu0 %v4252
        %v4702 = vpop.f32.mrf.mxu0
        %v4703 = vadd.f32 0.0, %v4702
        %4704 = vdwg.mxu0
        %v4705 = vld [vmem:[#allocation25] sm:$0xff]
        %vm4706 = vcmp.gt.s32.totalorder %v4705, 0
        %v4707 = vsub.s32 %v4705, 1
        %v4708 = vsel %vm4706, %v4707, %v4705
        %vm4709 = vcmp.eq.s32.totalorder %v4708, 0
        %v4710 = vld [vmem:[#allocation20] sm:$0xff]
        %v4711 = vld [vmem:[#allocation23] sm:$0xff]
        %s4712 = scalar_lea.vmem %s610, 56
        %v4713 = vld [vmem:[%s4712] sm:$0xff]
        %v4714 = vadd.f32 %v4713, %v4703
        %v4715 = vadd.f32 %v4714, %v4710
        %v4716 = vsel %vm4709, %v4715, %v4710
        %4717 = vmatpush.xpose.msra.mxu0 %v4684
        %4718 = vmatpush.xpose.msra.mxu0 %v4683
        %4719 = vmatpush.xpose.msra.mxu0 %v4682
        %4720 = vmatpush.xpose.msra.mxu0 %v4681
        %4721 = vmatpush.xpose.msra.mxu0 %v4680
        %4722 = vmatpush.xpose.msra.mxu0 %v4679
        %4723 = vmatpush.xpose.msra.mxu0 %v4678
        %4724 = vmatpush.xpose.msra.mxu0 %v4677
        %4725 = vmatpush.xpose.msra.mxu0 %v4676
        %4726 = vmatpush.xpose.msra.mxu0 %v4675
        %4727 = vmatpush.xpose.msra.mxu0 %v4674
        %4728 = vmatpush.xpose.msra.mxu0 %v4673
        %4729 = vmatpush.xpose.msra.mxu0 %v4672
        %4730 = vmatpush.xpose.msra.mxu0 %v4671
        %4731 = vmatpush.xpose.msra.mxu0 %v4670
        %4732 = vmatpush.xpose.msra.mxu0 %v4669
        %4733 = vmatmul.f32.gmra.mxu0 %v4252
        %v4734 = vpop.f32.mrf.mxu0
        %v4735 = vadd.f32 %v4711, %v4734
        %4736 = vdwg.mxu0
        %v4737 = vsel %vm4709, %v4735, %v4711
        %v4738 = vadd.f32 %v4716, %v4247
        %v4739 = vsel %vm4709, %v4738, %v4247
        %v4740 = vadd.f32 %v4737, %v4248
        %v4741 = vsel %vm4709, %v4740, %v4248
        %v4742 = vmul.f32 %v4739, 0.9801987
        %v4743 = vmul.f32 %v4716, 0.36787945
        %v4744 = vmul.f32 %v4741, 0.9801987
        %v4745 = vmul.f32 %v4737, 0.36787945
        %v4746 = vsel %vm4249, 0.0, %v4742
        %v4747 = vsel %vm4250, 0.0, %v4744
        %v4748 = vsel %vm4249, 2, %v4708
        %v4749 = vpack.c.bf16 %v4252, %v4252
        %s4750 = scalar_lea.vmem %s591, 28 [#allocation16]
        %4751 = vst [vmem:[%s4750] sm:$0xf] %v4749
        %4752 = vst [vmem:[#allocation19] sm:$0xff] %v4746
        %4753 = vst [vmem:[#allocation20] sm:$0xff] %v4743
        %4754 = vst [vmem:[#allocation22] sm:$0xff] %v4747
        %4755 = vst [vmem:[#allocation23] sm:$0xff] %v4745
        %4756 = vst [vmem:[#allocation25] sm:$0xff] %v4748
        %s4757 = sand.u32 %s243, 1
        %s4758 = scalar_lea.sflag [#allocation6], %s4757
        %s4759 = sand.u32 %s243, 1
        %s4760 = smul.addr %s4759, 32
        %s4761 = scalar_lea.vmem [#allocation16], %s4760
        // Predicated region
        $region89: #{tpu_custom_call.1} parent=55 // pred_check
          %p4762 = pneg %p253
        $region90: #{tpu_custom_call.1} parent=55 // pred_check_branch
          %4764 = sbr.rel (%p4762) target = $region92
        $region91: #{tpu_custom_call.1} parent=55 // pred_region
          %s4765 = smul.u32 8, %s41
          %4767 = vsyncadd %s4758, 0
          %s4768 = smul.addr %s4765, 4
          %s4769 = scalar_lea.hbm %s10, %s4768
          %s4770 = sshll.u32 %s4761, 4
          %s4771 = int_to_ptr.vmem [resolvable:$true] %s4770
          %s4772 = sshll.u32 %s4769, 4
          %s4773 = int_to_ptr.hbm [resolvable:$true] %s4772
          %4778 = dma.vmem_to_hbm [thread:$0]  %s4771, 512, %s4773, %s4758, 64, 64, 4
        $region92: #{tpu_custom_call.1} parent=55 // pred_fallthru
          _
        // Predicated region
        $region93: #{tpu_custom_call.1} parent=55 // pred_check
          %p4779 = pneg %p274
        $region94: #{tpu_custom_call.1} parent=55 // pred_check_branch
          %4781 = sbr.rel (%p4779) target = $region96
        $region95: #{tpu_custom_call.1} parent=55 // pred_region
          %4783 = vsyncadd [#allocation18], 0
          %s4784 = sshll.u32 [#allocation17], 4
          %s4785 = int_to_ptr.vmem [resolvable:$true] %s4784
          %s4786 = sshll.u32 %s11, 4
          %s4787 = int_to_ptr.hbm [resolvable:$true] %s4786
          %4792 = dma.vmem_to_hbm [thread:$0]  %s4785, 2048, %s4787, [#allocation18], 128, 128, 8
        $region96: #{tpu_custom_call.1} parent=55 // pred_fallthru
          _
        // Predicated region
        $region97: #{tpu_custom_call.1} parent=55 // pred_check
          %p4793 = pneg %p295
        $region98: #{tpu_custom_call.1} parent=55 // pred_check_branch
          %4795 = sbr.rel (%p4793) target = $region100
        $region99: #{tpu_custom_call.1} parent=55 // pred_region
          %4797 = vsyncadd [#allocation18], 0
          %s4799 = sshll.u32 [#allocation19], 4
          %s4800 = int_to_ptr.vmem [resolvable:$true] %s4799
          %s4801 = sshll.u32 %s12, 4
          %s4802 = int_to_ptr.hbm [resolvable:$true] %s4801
          %4804 = dma.vmem_to_hbm [thread:$0]  %s4800, 128, %s4802, [#allocation18]
        $region100: #{tpu_custom_call.1} parent=55 // pred_fallthru
          _
        // Predicated region
        $region101: #{tpu_custom_call.1} parent=55 // pred_check
          %p4805 = pneg %p316
        $region102: #{tpu_custom_call.1} parent=55 // pred_check_branch
          %4807 = sbr.rel (%p4805) target = $region104
        $region103: #{tpu_custom_call.1} parent=55 // pred_region
          %4809 = vsyncadd [#allocation21], 0
          %s4811 = sshll.u32 [#allocation20], 4
          %s4812 = int_to_ptr.vmem [resolvable:$true] %s4811
          %s4813 = sshll.u32 %s13, 4
          %s4814 = int_to_ptr.hbm [resolvable:$true] %s4813
          %4816 = dma.vmem_to_hbm [thread:$0]  %s4812, 128, %s4814, [#allocation21]
        $region104: #{tpu_custom_call.1} parent=55 // pred_fallthru
          _
        // Predicated region
        $region105: #{tpu_custom_call.1} parent=55 // pred_check
          %p4817 = pneg %p337
        $region106: #{tpu_custom_call.1} parent=55 // pred_check_branch
          %4819 = sbr.rel (%p4817) target = $region108
        $region107: #{tpu_custom_call.1} parent=55 // pred_region
          %4821 = vsyncadd [#allocation21], 0
          %s4823 = sshll.u32 [#allocation22], 4
          %s4824 = int_to_ptr.vmem [resolvable:$true] %s4823
          %s4825 = sshll.u32 %s14, 4
          %s4826 = int_to_ptr.hbm [resolvable:$true] %s4825
          %4828 = dma.vmem_to_hbm [thread:$0]  %s4824, 128, %s4826, [#allocation21]
        $region108: #{tpu_custom_call.1} parent=55 // pred_fallthru
          _
        // Predicated region
        $region109: #{tpu_custom_call.1} parent=55 // pred_check
          %p4829 = pneg %p358
        $region110: #{tpu_custom_call.1} parent=55 // pred_check_branch
          %4831 = sbr.rel (%p4829) target = $region112
        $region111: #{tpu_custom_call.1} parent=55 // pred_region
          %4833 = vsyncadd [#allocation24], 0
          %s4835 = sshll.u32 [#allocation23], 4
          %s4836 = int_to_ptr.vmem [resolvable:$true] %s4835
          %s4837 = sshll.u32 %s15, 4
          %s4838 = int_to_ptr.hbm [resolvable:$true] %s4837
          %4840 = dma.vmem_to_hbm [thread:$0]  %s4836, 128, %s4838, [#allocation24]
        $region112: #{tpu_custom_call.1} parent=55 // pred_fallthru
          _
        // Predicated region
        $region113: #{tpu_custom_call.1} parent=55 // pred_check
          %p4841 = pneg %p379
        $region114: #{tpu_custom_call.1} parent=55 // pred_check_branch
          %4843 = sbr.rel (%p4841) target = $region116
        $region115: #{tpu_custom_call.1} parent=55 // pred_region
          %4845 = vsyncadd [#allocation24], 0
          %s4847 = sshll.u32 [#allocation25], 4
          %s4848 = int_to_ptr.vmem [resolvable:$true] %s4847
          %s4849 = sshll.u32 %s16, 4
          %s4850 = int_to_ptr.hbm [resolvable:$true] %s4849
          %4852 = dma.vmem_to_hbm [thread:$0]  %s4848, 128, %s4850, [#allocation24]
        $region116: #{tpu_custom_call.1} parent=55 // pred_fallthru
          _
        // Predicated region
        $region117: #{tpu_custom_call.1} parent=55 // pred_check
          %p4853 = pneg %p400
        $region118: #{tpu_custom_call.1} parent=55 // pred_check_branch
          %4855 = sbr.rel (%p4853) target = $region120
        $region119: #{tpu_custom_call.1} parent=55 // pred_region
          %4857 = vsyncadd [#allocation27], 0
          %s4859 = sshll.u32 [#allocation26], 4
          %s4860 = int_to_ptr.vmem [resolvable:$true] %s4859
          %s4861 = sshll.u32 %s17, 4
          %s4862 = int_to_ptr.hbm [resolvable:$true] %s4861
          %4864 = dma.vmem_to_hbm [thread:$0]  %s4860, 128, %s4862, [#allocation27]
        $region120: #{tpu_custom_call.1} parent=55 // pred_fallthru
          _
        // Predicated region
        $region121: #{tpu_custom_call.1} parent=55 // pred_check
          %p4865 = pneg %p274
        $region122: #{tpu_custom_call.1} parent=55 // pred_check_branch
          %4867 = sbr.rel (%p4865) target = $region124
        $region123: #{tpu_custom_call.1} parent=55 // pred_region
          %4869 = dma.done [#allocation18], 2048
        $region124: #{tpu_custom_call.1} parent=55 // pred_fallthru
          _
        // Predicated region
        $region125: #{tpu_custom_call.1} parent=55 // pred_check
          %p4870 = pneg %p295
        $region126: #{tpu_custom_call.1} parent=55 // pred_check_branch
          %4872 = sbr.rel (%p4870) target = $region128
        $region127: #{tpu_custom_call.1} parent=55 // pred_region
          %4874 = dma.done [#allocation18], 128
        $region128: #{tpu_custom_call.1} parent=55 // pred_fallthru
          _
        // Predicated region
        $region129: #{tpu_custom_call.1} parent=55 // pred_check
          %p4875 = pneg %p316
        $region130: #{tpu_custom_call.1} parent=55 // pred_check_branch
          %4877 = sbr.rel (%p4875) target = $region132
        $region131: #{tpu_custom_call.1} parent=55 // pred_region
          %4879 = dma.done [#allocation21], 128
        $region132: #{tpu_custom_call.1} parent=55 // pred_fallthru
          _
        // Predicated region
        $region133: #{tpu_custom_call.1} parent=55 // pred_check
          %p4880 = pneg %p337
        $region134: #{tpu_custom_call.1} parent=55 // pred_check_branch
          %4882 = sbr.rel (%p4880) target = $region136
        $region135: #{tpu_custom_call.1} parent=55 // pred_region
          %4884 = dma.done [#allocation21], 128
        $region136: #{tpu_custom_call.1} parent=55 // pred_fallthru
          _
        // Predicated region
        $region137: #{tpu_custom_call.1} parent=55 // pred_check
          %p4885 = pneg %p358
        $region138: #{tpu_custom_call.1} parent=55 // pred_check_branch
          %4887 = sbr.rel (%p4885) target = $region140
        $region139: #{tpu_custom_call.1} parent=55 // pred_region
          %4889 = dma.done [#allocation24], 128
        $region140: #{tpu_custom_call.1} parent=55 // pred_fallthru
          _
        // Predicated region
        $region141: #{tpu_custom_call.1} parent=55 // pred_check
          %p4890 = pneg %p379
        $region142: #{tpu_custom_call.1} parent=55 // pred_check_branch
          %4892 = sbr.rel (%p4890) target = $region144
        $region143: #{tpu_custom_call.1} parent=55 // pred_region
          %4894 = dma.done [#allocation24], 128
        $region144: #{tpu_custom_call.1} parent=55 // pred_fallthru
          _
        // Predicated region
        $region145: #{tpu_custom_call.1} parent=55 // pred_check
          %p4895 = pneg %p400
        $region146: #{tpu_custom_call.1} parent=55 // pred_check_branch
          %4897 = sbr.rel (%p4895) target = $region148
        $region147: #{tpu_custom_call.1} parent=55 // pred_region
          %4899 = dma.done [#allocation27], 128
        $region148: #{tpu_custom_call.1} parent=55 // pred_fallthru
          _
      $region56: #{tpu_custom_call.1} parent=5 // pred_fallthru
        _
      %p4900 = scmp.le.s32.totalorder 2, %s36
      // Predicated region
      $region149: #{tpu_custom_call.1} parent=5 // pred_check
        %p4901 = pneg %p4900
      $region150: #{tpu_custom_call.1} parent=5 // pred_check_branch
        %4903 = sbr.rel (%p4901) target = $region152
      $region151: #{tpu_custom_call.1} parent=5 // pred_region
        %s4904 = ssub.s32 %s36, 2
        // Predicated region
        $region153: #{tpu_custom_call.1} parent=151 // pred_check
          %p4905 = pneg %p259
        $region154: #{tpu_custom_call.1} parent=151 // pred_check_branch
          %4907 = sbr.rel (%p4905) target = $region156
        $region155: #{tpu_custom_call.1} parent=151 // pred_region
          %s4908 = sand.u32 %s244, 1
          %s4909 = scalar_lea.sflag [#allocation6], %s4908
          %s4910 = sand.u32 %s244, 1
          %s4911 = smul.addr %s4910, 32
          %s4912 = scalar_lea.vmem [#allocation16], %s4911
          %4914 = dma.done %s4909, 512
        $region156: #{tpu_custom_call.1} parent=151 // pred_fallthru
          _
      $region152: #{tpu_custom_call.1} parent=5 // pred_fallthru
        _
    $region6: #{tpu_custom_call.1} parent=1 // loop_footer
      %s40 = sadd.s32 1, %s36
    $region7: #{tpu_custom_call.1} parent=1 // loop_footer_branch
      %35 = sbr.rel target = $region3
    $region8: #{tpu_custom_call.1} parent=1 // loop_exit
      _
    %4915 = vsyncpa [#allocation5], 1
    %s4916 = scalar_lea.sflag [#allocation5], 1
    %4917 = vsyncpa %s4916, 1
    %4918 = vsyncpa [#allocation8], 1
    %4919 = vsyncpa [#allocation11], 1
    %4920 = vsyncpa [#allocation14], 1
    %4921 = vsyncpa [#allocation6], 1
    %s4922 = scalar_lea.sflag [#allocation6], 1
    %4923 = vsyncpa %s4922, 1
    %4924 = vsyncpa [#allocation18], 1
    %4925 = vsyncpa [#allocation21], 1
    %4926 = vsyncpa [#allocation24], 1
    %4927 = vsyncpa [#allocation27], 1

</llo_original>
